<compile_context>
chip_gen: v7x
topology: tpu7x:2x2x1
jax: 0.10.0
libtpu: 0.0.40
codegen_flags: <defaults>
</compile_context>

<pallas_src>
import jax
import jax.numpy as jnp
from jax import lax
from jax.experimental import pallas as pl
from jax.experimental.pallas import tpu as pltpu

TOKEN_DIM = 1024
ID_DIM = 512
SPATIAL = 49          # 7 * 7
LN_EPS = 1e-5


def _dil_kernel(x_ref, xm_ref, w_feat_ref, b_feat_ref, w_tok_ref, b_tok_ref,
                gamma_ref, beta_ref, tokens_ref, global_ref):
    """Fused: id-feature projection -> global feature -> tokenizer (1x1 conv) -> LayerNorm."""
    w_feat = w_feat_ref[...]                                   # [3, 512] f32
    b_feat = b_feat_ref[...]                                   # [1, 512] f32

    # --- stand-in id_extractor head: pointwise 3 -> 512 projection ------------
    # TODO(synk): real CosFace backbone (id_extractor) is an external
    # checkpointed model with no definition here; deterministic synthetic stand-in.
    # K=3 contraction done as 3 VPU broadcast-FMAs (keeps the MXU free).
    x = x_ref[...]                                             # [TB*49, 3] f32
    det = (x[:, 0:1] * w_feat[0:1, :] +
           x[:, 1:2] * w_feat[1:2, :] +
           x[:, 2:3] * w_feat[2:3, :] + b_feat)                # [TB*49, 512] f32

    # --- global identity feature: mean over spatial commutes with the affine map
    xm = xm_ref[...]                                           # [TB, 3] f32
    global_ref[...] = (xm[:, 0:1] * w_feat[0:1, :] +
                       xm[:, 1:2] * w_feat[1:2, :] +
                       xm[:, 2:3] * w_feat[2:3, :] + b_feat)   # [TB, 512] f32

    # --- DetailedIdentityTokenizer: 1x1 conv 512 -> 1024 as one flat matmul ---
    # bf16 operands, f32 accumulation (MXU peak path on v5e/v6e/v7x).
    tok = jnp.dot(det.astype(jnp.bfloat16), w_tok_ref[...],
                  preferred_element_type=jnp.float32)          # [TB*49, 1024] f32
    tok = tok + b_tok_ref[...]

    # LayerNorm over token_dim (f32 statistics)
    mu = jnp.mean(tok, axis=-1, keepdims=True)
    var = jnp.mean((tok - mu) ** 2, axis=-1, keepdims=True)
    tok = (tok - mu) * lax.rsqrt(var + LN_EPS)
    tok = tok * gamma_ref[...] + beta_ref[...]
    tokens_ref[...] = tok.astype(tokens_ref.dtype)


def init_params(key):
    k1, k2, k3, k4 = jax.random.split(key, 4)
    scale_feat = 1.0 / jnp.sqrt(3.0)
    scale_tok = 1.0 / jnp.sqrt(float(ID_DIM))
    return {
        'w_feat': jax.random.normal(k1, (3, ID_DIM), jnp.float32) * scale_feat,
        'b_feat': jax.random.normal(k2, (1, ID_DIM), jnp.float32) * 0.01,
        'w_tok':  jax.random.normal(k3, (ID_DIM, TOKEN_DIM), jnp.float32) * scale_tok,
        'b_tok':  jax.random.normal(k4, (1, TOKEN_DIM), jnp.float32) * 0.01,
        'gamma':  jnp.ones((1, TOKEN_DIM), jnp.float32),
        'beta':   jnp.zeros((1, TOKEN_DIM), jnp.float32),
    }


def _round_up(x, m):
    return ((x + m - 1) // m) * m


def dil_forward(source_image, params, *, return_global=True, num_frames=None,
                block_b=16, tokens_dtype=jnp.float32):
    """Mirrors DIL.forward.

    source_image: [B, 3, H, W] (NCHW); H and W multiples of 7.
    Returns (tokens, global_feat) if return_global else tokens.
      tokens      : [B, 49, 1024]   (or [B*num_frames, 49, 1024] if num_frames)
      global_feat : [B, 512]
    """
    B, C, H, W = source_image.shape
    assert C == 3 and H % 7 == 0 and W % 7 == 0
    ph, pw = H // 7, W // 7

    # Glue: adaptive avg-pool to 7x7 (synthetic backbone stem), NCHW -> [B, 49, 3]
    pooled = source_image.reshape(B, C, 7, ph, 7, pw).mean(axis=(3, 5))       # [B, 3, 7, 7]
    pooled = pooled.transpose(0, 2, 3, 1).reshape(B, SPATIAL, C)              # [B, 49, 3]

    # Batch tile: multiple of 8 so TB*49 rows are sublane aligned; pad B to a
    # whole number of tiles (padded rows are sliced off after the kernel).
    TB = min(_round_up(block_b, 8), _round_up(B, 8))
    Bp = TB * pl.cdiv(B, TB)
    if Bp != B:
        pooled = jnp.pad(pooled, ((0, Bp - B), (0, 0), (0, 0)))

    x_flat = pooled.reshape(Bp * SPATIAL, C)                                  # [Bp*49, 3]
    x_mean = pooled.mean(axis=1)                                              # [Bp, 3]
    w_tok_bf16 = params['w_tok'].astype(jnp.bfloat16)                         # resident 1 MiB

    rows = TB * SPATIAL
    grid = (Bp // TB,)

    tokens_flat, global_feat = pl.pallas_call(
        _dil_kernel,
        grid=grid,
        in_specs=[
            pl.BlockSpec((rows, C), lambda i: (i, 0)),            # x_flat tile
            pl.BlockSpec((TB, C), lambda i: (i, 0)),              # x_mean tile
            pl.BlockSpec((C, ID_DIM), lambda i: (0, 0)),          # w_feat (const)
            pl.BlockSpec((1, ID_DIM), lambda i: (0, 0)),          # b_feat (const)
            pl.BlockSpec((ID_DIM, TOKEN_DIM), lambda i: (0, 0)),  # w_tok  (const, bf16)
            pl.BlockSpec((1, TOKEN_DIM), lambda i: (0, 0)),       # b_tok  (const)
            pl.BlockSpec((1, TOKEN_DIM), lambda i: (0, 0)),       # gamma  (const)
            pl.BlockSpec((1, TOKEN_DIM), lambda i: (0, 0)),       # beta   (const)
        ],
        out_specs=(
            pl.BlockSpec((rows, TOKEN_DIM), lambda i: (i, 0)),    # tokens tile
            pl.BlockSpec((TB, ID_DIM), lambda i: (i, 0)),         # global tile
        ),
        out_shape=(
            jax.ShapeDtypeStruct((Bp * SPATIAL, TOKEN_DIM), tokens_dtype),
            jax.ShapeDtypeStruct((Bp, ID_DIM), jnp.float32),
        ),
        compiler_params=pltpu.CompilerParams(
            dimension_semantics=("parallel",),        # v7x: shard batch tiles across both TCs
            vmem_limit_bytes=32 * 1024 * 1024,        # headroom above v5e's 16 MiB default
        ),
    )(x_flat, x_mean, params['w_feat'], params['b_feat'], w_tok_bf16,
      params['b_tok'], params['gamma'], params['beta'])

    tokens = tokens_flat.reshape(Bp, SPATIAL, TOKEN_DIM)[:B]                  # [B, 49, 1024]
    global_feat = global_feat[:B]                                             # [B, 512]

    if num_frames is not None:
        # expand_tokens_to_frames: [B, 49, D] -> [B*num_frames, 49, D] (broadcast glue)
        tokens = jnp.broadcast_to(tokens[:, None],
                                  (B, num_frames, SPATIAL, TOKEN_DIM))
        tokens = tokens.reshape(B * num_frames, SPATIAL, TOKEN_DIM)

    if return_global:
        return tokens, global_feat
    return tokens


if __name__ == "__main__":
    key = jax.random.PRNGKey(0)
    k_img, k_par = jax.random.split(key)

    B = 2
    source_image = jax.random.normal(k_img, (B, 3, 112, 112), jnp.float32)   # NCHW
    params = init_params(k_par)

    # default forward: (tokens [B,49,1024], global [B,512])
    tokens, gfeat = dil_forward(source_image, params, return_global=True)
    jax.block_until_ready((tokens, gfeat))
    assert tokens.shape == (B, SPATIAL, TOKEN_DIM)
    assert gfeat.shape == (B, ID_DIM)

    # forward with frame expansion: tokens [B*num_frames, 49, 1024]
    tokens_f = dil_forward(source_image, params, return_global=False, num_frames=4)
    jax.block_until_ready(tokens_f)
    assert tokens_f.shape == (B * 4, SPATIAL, TOKEN_DIM)

    print("KERNEL_OK")
</pallas_src>

<mosaic_0001>
module attributes {stable_mosaic.version = 11 : i64} {
  func.func @_dil_kernel(%arg0: i32, %arg1: memref<392x3xf32, #tpu.memory_space<vmem>>, %arg2: memref<8x3xf32, #tpu.memory_space<vmem>>, %arg3: memref<3x512xf32, #tpu.memory_space<vmem>>, %arg4: memref<1x512xf32, #tpu.memory_space<vmem>>, %arg5: memref<512x1024xbf16, #tpu.memory_space<vmem>>, %arg6: memref<1x1024xf32, #tpu.memory_space<vmem>>, %arg7: memref<1x1024xf32, #tpu.memory_space<vmem>>, %arg8: memref<1x1024xf32, #tpu.memory_space<vmem>>, %arg9: memref<392x1024xf32, #tpu.memory_space<vmem>>, %arg10: memref<8x512xf32, #tpu.memory_space<vmem>>) attributes {dimension_semantics = [#tpu.dimension_semantics<parallel>], iteration_bounds = array<i64: 1>, scalar_prefetch = 0 : i64, scratch_operands = 0 : i64, tpu.core_type = #tpu.core_type<tc>, window_params = [{transform_indices = @transform_0, window_bounds = array<i64: 392, 3>}, {transform_indices = @transform_1, window_bounds = array<i64: 8, 3>}, {pipeline_mode = #tpu.pipeline_mode<synchronous>, transform_indices = @transform_2, window_bounds = array<i64: 3, 512>}, {pipeline_mode = #tpu.pipeline_mode<synchronous>, transform_indices = @transform_3, window_bounds = array<i64: 1, 512>}, {pipeline_mode = #tpu.pipeline_mode<synchronous>, transform_indices = @transform_4, window_bounds = array<i64: 512, 1024>}, {pipeline_mode = #tpu.pipeline_mode<synchronous>, transform_indices = @transform_5, window_bounds = array<i64: 1, 1024>}, {pipeline_mode = #tpu.pipeline_mode<synchronous>, transform_indices = @transform_6, window_bounds = array<i64: 1, 1024>}, {pipeline_mode = #tpu.pipeline_mode<synchronous>, transform_indices = @transform_7, window_bounds = array<i64: 1, 1024>}, {transform_indices = @transform_8, window_bounds = array<i64: 392, 1024>}, {transform_indices = @transform_9, window_bounds = array<i64: 8, 512>}]} {
    %c0 = arith.constant 0 : index
    %c0_0 = arith.constant 0 : index
    %0 = vector.load %arg3[%c0, %c0_0] : memref<3x512xf32, #tpu.memory_space<vmem>>, vector<3x512xf32>
    %c0_1 = arith.constant 0 : index
    %c0_2 = arith.constant 0 : index
    %1 = vector.load %arg4[%c0_1, %c0_2] : memref<1x512xf32, #tpu.memory_space<vmem>>, vector<1x512xf32>
    %c0_3 = arith.constant 0 : index
    %c0_4 = arith.constant 0 : index
    %2 = vector.load %arg1[%c0_3, %c0_4] : memref<392x3xf32, #tpu.memory_space<vmem>>, vector<392x3xf32>
    %3 = vector.extract_strided_slice %2 {offsets = [0, 0], sizes = [392, 1], strides = [1, 1]} : vector<392x3xf32> to vector<392x1xf32>
    %4 = vector.extract_strided_slice %0 {offsets = [0, 0], sizes = [1, 512], strides = [1, 1]} : vector<3x512xf32> to vector<1x512xf32>
    %5 = vector.broadcast %3 : vector<392x1xf32> to vector<392x512xf32>
    %6 = vector.broadcast %4 : vector<1x512xf32> to vector<392x512xf32>
    %7 = arith.mulf %5, %6 : vector<392x512xf32>
    %8 = vector.extract_strided_slice %2 {offsets = [0, 1], sizes = [392, 1], strides = [1, 1]} : vector<392x3xf32> to vector<392x1xf32>
    %9 = vector.extract_strided_slice %0 {offsets = [1, 0], sizes = [1, 512], strides = [1, 1]} : vector<3x512xf32> to vector<1x512xf32>
    %10 = vector.broadcast %8 : vector<392x1xf32> to vector<392x512xf32>
    %11 = vector.broadcast %9 : vector<1x512xf32> to vector<392x512xf32>
    %12 = arith.mulf %10, %11 : vector<392x512xf32>
    %13 = arith.addf %7, %12 : vector<392x512xf32>
    %14 = vector.extract_strided_slice %2 {offsets = [0, 2], sizes = [392, 1], strides = [1, 1]} : vector<392x3xf32> to vector<392x1xf32>
    %15 = vector.extract_strided_slice %0 {offsets = [2, 0], sizes = [1, 512], strides = [1, 1]} : vector<3x512xf32> to vector<1x512xf32>
    %16 = vector.broadcast %14 : vector<392x1xf32> to vector<392x512xf32>
    %17 = vector.broadcast %15 : vector<1x512xf32> to vector<392x512xf32>
    %18 = arith.mulf %16, %17 : vector<392x512xf32>
    %19 = arith.addf %13, %18 : vector<392x512xf32>
    %20 = vector.broadcast %1 : vector<1x512xf32> to vector<392x512xf32>
    %21 = arith.addf %19, %20 : vector<392x512xf32>
    %c0_5 = arith.constant 0 : index
    %c0_6 = arith.constant 0 : index
    %22 = vector.load %arg2[%c0_5, %c0_6] : memref<8x3xf32, #tpu.memory_space<vmem>>, vector<8x3xf32>
    %23 = vector.extract_strided_slice %22 {offsets = [0, 0], sizes = [8, 1], strides = [1, 1]} : vector<8x3xf32> to vector<8x1xf32>
    %24 = vector.extract_strided_slice %0 {offsets = [0, 0], sizes = [1, 512], strides = [1, 1]} : vector<3x512xf32> to vector<1x512xf32>
    %25 = vector.broadcast %23 : vector<8x1xf32> to vector<8x512xf32>
    %26 = vector.broadcast %24 : vector<1x512xf32> to vector<8x512xf32>
    %27 = arith.mulf %25, %26 : vector<8x512xf32>
    %28 = vector.extract_strided_slice %22 {offsets = [0, 1], sizes = [8, 1], strides = [1, 1]} : vector<8x3xf32> to vector<8x1xf32>
    %29 = vector.extract_strided_slice %0 {offsets = [1, 0], sizes = [1, 512], strides = [1, 1]} : vector<3x512xf32> to vector<1x512xf32>
    %30 = vector.broadcast %28 : vector<8x1xf32> to vector<8x512xf32>
    %31 = vector.broadcast %29 : vector<1x512xf32> to vector<8x512xf32>
    %32 = arith.mulf %30, %31 : vector<8x512xf32>
    %33 = arith.addf %27, %32 : vector<8x512xf32>
    %34 = vector.extract_strided_slice %22 {offsets = [0, 2], sizes = [8, 1], strides = [1, 1]} : vector<8x3xf32> to vector<8x1xf32>
    %35 = vector.extract_strided_slice %0 {offsets = [2, 0], sizes = [1, 512], strides = [1, 1]} : vector<3x512xf32> to vector<1x512xf32>
    %36 = vector.broadcast %34 : vector<8x1xf32> to vector<8x512xf32>
    %37 = vector.broadcast %35 : vector<1x512xf32> to vector<8x512xf32>
    %38 = arith.mulf %36, %37 : vector<8x512xf32>
    %39 = arith.addf %33, %38 : vector<8x512xf32>
    %40 = vector.broadcast %1 : vector<1x512xf32> to vector<8x512xf32>
    %41 = arith.addf %39, %40 : vector<8x512xf32>
    %c0_7 = arith.constant 0 : index
    %c0_8 = arith.constant 0 : index
    %42 = vector.load %arg10[%c0_7, %c0_8] : memref<8x512xf32, #tpu.memory_space<vmem>>, vector<8x512xf32>
    tpu.vector_store %arg10[%c0_7, %c0_8], %41 {strides = array<i32>} : memref<8x512xf32, #tpu.memory_space<vmem>>, vector<8x512xf32>,
    %43 = arith.truncf %21 : vector<392x512xf32> to vector<392x512xbf16>
    %c0_9 = arith.constant 0 : index
    %c0_10 = arith.constant 0 : index
    %44 = vector.load %arg5[%c0_9, %c0_10] : memref<512x1024xbf16, #tpu.memory_space<vmem>>, vector<512x1024xbf16>
    %cst = arith.constant dense<0.000000e+00> : vector<392x1024xf32>
    %45 = tpu.matmul %43, %44, %cst {dimension_numbers = #tpu.dot_dimension_numbers<[1], [0], [0], [1], [0, 0, 1, 1], [], []>} : vector<392x512xbf16>, vector<512x1024xbf16>, vector<392x1024xf32> -> vector<392x1024xf32>
    %c0_11 = arith.constant 0 : index
    %c0_12 = arith.constant 0 : index
    %46 = vector.load %arg6[%c0_11, %c0_12] : memref<1x1024xf32, #tpu.memory_space<vmem>>, vector<1x1024xf32>
    %47 = vector.broadcast %46 : vector<1x1024xf32> to vector<392x1024xf32>
    %48 = arith.addf %45, %47 : vector<392x1024xf32>
    %cst_13 = arith.constant dense<0.000000e+00> : vector<392xf32>
    %49 = vector.multi_reduction <add>, %48, %cst_13 [1] : vector<392x1024xf32> to vector<392xf32>
    %50 = vector.shape_cast %49 : vector<392xf32> to vector<392x1xf32>
    %cst_14 = arith.constant 1.024000e+03 : f32
    %51 = vector.broadcast %cst_14 : f32 to vector<392x1xf32>
    %52 = arith.divf %50, %51 : vector<392x1xf32>
    %53 = vector.broadcast %52 : vector<392x1xf32> to vector<392x1024xf32>
    %54 = arith.subf %48, %53 : vector<392x1024xf32>
    %55 = arith.mulf %54, %54 : vector<392x1024xf32>
    %cst_15 = arith.constant dense<0.000000e+00> : vector<392xf32>
    %56 = vector.multi_reduction <add>, %55, %cst_15 [1] : vector<392x1024xf32> to vector<392xf32>
    %57 = vector.shape_cast %56 : vector<392xf32> to vector<392x1xf32>
    %cst_16 = arith.constant 1.024000e+03 : f32
    %58 = vector.broadcast %cst_16 : f32 to vector<392x1xf32>
    %59 = arith.divf %57, %58 : vector<392x1xf32>
    %60 = vector.broadcast %52 : vector<392x1xf32> to vector<392x1024xf32>
    %61 = arith.subf %48, %60 : vector<392x1024xf32>
    %cst_17 = arith.constant 9.99999974E-6 : f32
    %62 = vector.broadcast %cst_17 : f32 to vector<392x1xf32>
    %63 = arith.addf %59, %62 : vector<392x1xf32>
    %64 = math.rsqrt %63 : vector<392x1xf32>
    %65 = vector.broadcast %64 : vector<392x1xf32> to vector<392x1024xf32>
    %66 = arith.mulf %61, %65 : vector<392x1024xf32>
    %c0_18 = arith.constant 0 : index
    %c0_19 = arith.constant 0 : index
    %67 = vector.load %arg7[%c0_18, %c0_19] : memref<1x1024xf32, #tpu.memory_space<vmem>>, vector<1x1024xf32>
    %68 = vector.broadcast %67 : vector<1x1024xf32> to vector<392x1024xf32>
    %69 = arith.mulf %66, %68 : vector<392x1024xf32>
    %c0_20 = arith.constant 0 : index
    %c0_21 = arith.constant 0 : index
    %70 = vector.load %arg8[%c0_20, %c0_21] : memref<1x1024xf32, #tpu.memory_space<vmem>>, vector<1x1024xf32>
    %71 = vector.broadcast %70 : vector<1x1024xf32> to vector<392x1024xf32>
    %72 = arith.addf %69, %71 : vector<392x1024xf32>
    %c0_22 = arith.constant 0 : index
    %c0_23 = arith.constant 0 : index
    %73 = vector.load %arg9[%c0_22, %c0_23] : memref<392x1024xf32, #tpu.memory_space<vmem>>, vector<392x1024xf32>
    tpu.vector_store %arg9[%c0_22, %c0_23], %72 {strides = array<i32>} : memref<392x1024xf32, #tpu.memory_space<vmem>>, vector<392x1024xf32>,
    return
  }
  func.func @transform_0(%arg0: i32) -> (i32, i32) {
    %c0_i32 = arith.constant 0 : i32
    %c0_i32_0 = arith.constant 0 : i32
    return %arg0, %c0_i32 : i32, i32
  }
  func.func @transform_1(%arg0: i32) -> (i32, i32) {
    %c0_i32 = arith.constant 0 : i32
    %c0_i32_0 = arith.constant 0 : i32
    return %arg0, %c0_i32 : i32, i32
  }
  func.func @transform_2(%arg0: i32) -> (i32, i32) {
    %c0_i32 = arith.constant 0 : i32
    %c0_i32_0 = arith.constant 0 : i32
    %c0_i32_1 = arith.constant 0 : i32
    return %c0_i32, %c0_i32_0 : i32, i32
  }
  func.func @transform_3(%arg0: i32) -> (i32, i32) {
    %c0_i32 = arith.constant 0 : i32
    %c0_i32_0 = arith.constant 0 : i32
    %c0_i32_1 = arith.constant 0 : i32
    return %c0_i32, %c0_i32_0 : i32, i32
  }
  func.func @transform_4(%arg0: i32) -> (i32, i32) {
    %c0_i32 = arith.constant 0 : i32
    %c0_i32_0 = arith.constant 0 : i32
    %c0_i32_1 = arith.constant 0 : i32
    return %c0_i32, %c0_i32_0 : i32, i32
  }
  func.func @transform_5(%arg0: i32) -> (i32, i32) {
    %c0_i32 = arith.constant 0 : i32
    %c0_i32_0 = arith.constant 0 : i32
    %c0_i32_1 = arith.constant 0 : i32
    return %c0_i32, %c0_i32_0 : i32, i32
  }
  func.func @transform_6(%arg0: i32) -> (i32, i32) {
    %c0_i32 = arith.constant 0 : i32
    %c0_i32_0 = arith.constant 0 : i32
    %c0_i32_1 = arith.constant 0 : i32
    return %c0_i32, %c0_i32_0 : i32, i32
  }
  func.func @transform_7(%arg0: i32) -> (i32, i32) {
    %c0_i32 = arith.constant 0 : i32
    %c0_i32_0 = arith.constant 0 : i32
    %c0_i32_1 = arith.constant 0 : i32
    return %c0_i32, %c0_i32_0 : i32, i32
  }
  func.func @transform_8(%arg0: i32) -> (i32, i32) {
    %c0_i32 = arith.constant 0 : i32
    %c0_i32_0 = arith.constant 0 : i32
    return %arg0, %c0_i32 : i32, i32
  }
  func.func @transform_9(%arg0: i32) -> (i32, i32) {
    %c0_i32 = arith.constant 0 : i32
    %c0_i32_0 = arith.constant 0 : i32
    return %arg0, %c0_i32 : i32, i32
  }
}

</mosaic_0001>

<llo_original>
// kernel: tpu_custom_call.1
$region0: #{tpu_custom_call.1}
  #allocation0 [shape = 'u32[]', space=smem, size = 0x4, offset = 0x4, fixed_abs, tag = 'smem constant byte address 0x4 - core index']
  #allocation1 [shape = 'u32[144,128]{1,0:T(1,128)}', space=vmem, size = 0x12000, scoped, tag = 'internal scratch']
  %s0 = inlined_call_operand.vmem [shape: f32[392,3], index: 0, kind: input, shape index: {}]
  %s1 = inlined_call_operand.vmem [shape: f32[8,3], index: 1, kind: input, shape index: {}]
  %s2 = inlined_call_operand.hbm [shape: f32[3,512], index: 2, kind: input, shape index: {}]
  %s3 = inlined_call_operand.hbm [shape: f32[1,512], index: 3, kind: input, shape index: {}]
  %s4 = inlined_call_operand.hbm [shape: bf16[512,1024], index: 4, kind: input, shape index: {}]
  %s5 = inlined_call_operand.hbm [shape: f32[1,1024], index: 5, kind: input, shape index: {}]
  %s6 = inlined_call_operand.hbm [shape: f32[1,1024], index: 6, kind: input, shape index: {}]
  %s7 = inlined_call_operand.hbm [shape: f32[1,1024], index: 7, kind: input, shape index: {}]
  %s8 = inlined_call_operand.hbm [shape: f32[392,1024], index: 8, kind: output, shape index: {0}]
  %s9 = inlined_call_operand.hbm [shape: f32[8,512], index: 9, kind: output, shape index: {1}]
  %10 = xla_tuple %s8, %s9
  %s11 = sld [smem:[#allocation0]]
  $region74: #{tpu_custom_call.1} parent=0
    _
  %s13 = ssub.s32 1, %s11
  %s14 = scalar_select 0, %s13, %s11
  $region1: #{tpu_custom_call.1} parent=0
    #allocation2 [shape = 'u8[8192]{0}', space=vmem, size = 0x2000, scoped, tag = 'input window, operand 2, single buffered']
    #allocation3 [shape = 's32[1]{0}', space=sflag, size = 0x4, scoped, tag = 'scoped memory for tpu_custom_call.1']
    #allocation4 [shape = 's32[1]{0}', space=sflag, size = 0x4, scoped, tag = 'scoped memory for tpu_custom_call.1']
    #allocation5 [shape = 'u8[2048]{0}', space=vmem, size = 0x800, scoped, tag = 'input window, operand 3, single buffered']
    #allocation6 [shape = 's32[1]{0}', space=sflag, size = 0x4, scoped, tag = 'scoped memory for tpu_custom_call.1']
    #allocation7 [shape = 'u8[1048576]{0}', space=vmem, size = 0x100000, scoped, tag = 'input window, operand 4, single buffered']
    #allocation8 [shape = 'u8[4096]{0}', space=vmem, size = 0x1000, scoped, tag = 'input window, operand 5, single buffered']
    #allocation9 [shape = 's32[1]{0}', space=sflag, size = 0x4, scoped, tag = 'scoped memory for tpu_custom_call.1']
    #allocation10 [shape = 'u8[4096]{0}', space=vmem, size = 0x1000, scoped, tag = 'input window, operand 6, single buffered']
    #allocation11 [shape = 'u8[4096]{0}', space=vmem, size = 0x1000, scoped, tag = 'input window, operand 7, single buffered']
    #allocation12 [shape = 's32[1]{0}', space=sflag, size = 0x4, scoped, tag = 'scoped memory for tpu_custom_call.1']
    #allocation13 [shape = 'u8[1605632]{0}', space=vmem, size = 0x188000, scoped, tag = 'output window, operand 0, single buffered']
    #allocation14 [shape = 'u8[16384]{0}', space=vmem, size = 0x4000, scoped, tag = 'output window, operand 1, single buffered']
    #allocation15 [shape = 's32[1]{0}', space=sflag, size = 0x4, scoped, tag = 'scoped memory for tpu_custom_call.1']
    %15 = vsyncpa [#allocation3], 0
    %16 = vsyncpa [#allocation6], 0
    %17 = vsyncpa [#allocation9], 0
    %18 = vsyncpa [#allocation12], 0
    %19 = vsyncpa [#allocation4], 0
    %20 = vsyncpa [#allocation15], 0
    // Predicated region
    $region2: #{tpu_custom_call.1} parent=1 // pred_check
      _
    $region3: #{tpu_custom_call.1} parent=1 // pred_check_branch
      %22 = sbr.rel (0) target = $region5
    $region4: #{tpu_custom_call.1} parent=1 // pred_region
      _
    $region5: #{tpu_custom_call.1} parent=1 // pred_fallthru
      _
    // Predicated region
    $region6: #{tpu_custom_call.1} parent=1 // pred_check
      _
    $region7: #{tpu_custom_call.1} parent=1 // pred_check_branch
      %24 = sbr.rel (0) target = $region9
    $region8: #{tpu_custom_call.1} parent=1 // pred_region
      _
    $region9: #{tpu_custom_call.1} parent=1 // pred_fallthru
      _
    // Predicated region
    $region10: #{tpu_custom_call.1} parent=1 // pred_check
      _
    $region11: #{tpu_custom_call.1} parent=1 // pred_check_branch
      %26 = sbr.rel (0) target = $region13
    $region12: #{tpu_custom_call.1} parent=1 // pred_region
      %s28 = ssub.s32 256, 256
      %29 = vsyncadd [#allocation3], %s28
      %s31 = sshll.u32 [#allocation2], 4
      %s32 = int_to_ptr.vmem [resolvable:$true] %s31
      %34 = dma.hbm_to_vmem [thread:$0]  %s2, 256, %s32, [#allocation3]
    $region13: #{tpu_custom_call.1} parent=1 // pred_fallthru
      _
    // Predicated region
    $region14: #{tpu_custom_call.1} parent=1 // pred_check
      _
    $region15: #{tpu_custom_call.1} parent=1 // pred_check_branch
      %36 = sbr.rel (0) target = $region17
    $region16: #{tpu_custom_call.1} parent=1 // pred_region
      %s38 = ssub.s32 64, 64
      %39 = vsyncadd [#allocation6], %s38
      %s41 = sshll.u32 [#allocation5], 4
      %s42 = int_to_ptr.vmem [resolvable:$true] %s41
      %44 = dma.hbm_to_vmem [thread:$0]  %s3, 64, %s42, [#allocation6]
    $region17: #{tpu_custom_call.1} parent=1 // pred_fallthru
      _
    // Predicated region
    $region18: #{tpu_custom_call.1} parent=1 // pred_check
      _
    $region19: #{tpu_custom_call.1} parent=1 // pred_check_branch
      %46 = sbr.rel (0) target = $region21
    $region20: #{tpu_custom_call.1} parent=1 // pred_region
      %s48 = ssub.s32 32768, 32768
      %49 = vsyncadd [#allocation6], %s48
      %s50 = sshll.u32 [#allocation7], 4
      %s51 = int_to_ptr.vmem [resolvable:$true] %s50
      %56 = dma.hbm_to_vmem [thread:$0]  %s4, 32768, %s51, [#allocation6], 512, 512, 32
    $region21: #{tpu_custom_call.1} parent=1 // pred_fallthru
      _
    // Predicated region
    $region22: #{tpu_custom_call.1} parent=1 // pred_check
      _
    $region23: #{tpu_custom_call.1} parent=1 // pred_check_branch
      %58 = sbr.rel (0) target = $region25
    $region24: #{tpu_custom_call.1} parent=1 // pred_region
      %s60 = ssub.s32 128, 128
      %61 = vsyncadd [#allocation9], %s60
      %s63 = sshll.u32 [#allocation8], 4
      %s64 = int_to_ptr.vmem [resolvable:$true] %s63
      %66 = dma.hbm_to_vmem [thread:$0]  %s5, 128, %s64, [#allocation9]
    $region25: #{tpu_custom_call.1} parent=1 // pred_fallthru
      _
    // Predicated region
    $region26: #{tpu_custom_call.1} parent=1 // pred_check
      _
    $region27: #{tpu_custom_call.1} parent=1 // pred_check_branch
      %68 = sbr.rel (0) target = $region29
    $region28: #{tpu_custom_call.1} parent=1 // pred_region
      %s70 = ssub.s32 128, 128
      %71 = vsyncadd [#allocation9], %s70
      %s73 = sshll.u32 [#allocation10], 4
      %s74 = int_to_ptr.vmem [resolvable:$true] %s73
      %76 = dma.hbm_to_vmem [thread:$0]  %s6, 128, %s74, [#allocation9]
    $region29: #{tpu_custom_call.1} parent=1 // pred_fallthru
      _
    // Predicated region
    $region30: #{tpu_custom_call.1} parent=1 // pred_check
      _
    $region31: #{tpu_custom_call.1} parent=1 // pred_check_branch
      %78 = sbr.rel (0) target = $region33
    $region32: #{tpu_custom_call.1} parent=1 // pred_region
      %s80 = ssub.s32 128, 128
      %81 = vsyncadd [#allocation12], %s80
      %s83 = sshll.u32 [#allocation11], 4
      %s84 = int_to_ptr.vmem [resolvable:$true] %s83
      %86 = dma.hbm_to_vmem [thread:$0]  %s7, 128, %s84, [#allocation12]
    $region33: #{tpu_custom_call.1} parent=1 // pred_fallthru
      _
    // Predicated region
    $region34: #{tpu_custom_call.1} parent=1 // pred_check
      _
    $region35: #{tpu_custom_call.1} parent=1 // pred_check_branch
      %88 = sbr.rel (0) target = $region37
    $region36: #{tpu_custom_call.1} parent=1 // pred_region
      %89 = dma.done [#allocation3], 256
    $region37: #{tpu_custom_call.1} parent=1 // pred_fallthru
      _
    // Predicated region
    $region38: #{tpu_custom_call.1} parent=1 // pred_check
      _
    $region39: #{tpu_custom_call.1} parent=1 // pred_check_branch
      %91 = sbr.rel (0) target = $region41
    $region40: #{tpu_custom_call.1} parent=1 // pred_region
      %92 = dma.done [#allocation6], 64
    $region41: #{tpu_custom_call.1} parent=1 // pred_fallthru
      _
    // Predicated region
    $region42: #{tpu_custom_call.1} parent=1 // pred_check
      _
    $region43: #{tpu_custom_call.1} parent=1 // pred_check_branch
      %94 = sbr.rel (0) target = $region45
    $region44: #{tpu_custom_call.1} parent=1 // pred_region
      %95 = dma.done [#allocation6], 32768
    $region45: #{tpu_custom_call.1} parent=1 // pred_fallthru
      _
    // Predicated region
    $region46: #{tpu_custom_call.1} parent=1 // pred_check
      _
    $region47: #{tpu_custom_call.1} parent=1 // pred_check_branch
      %97 = sbr.rel (0) target = $region49
    $region48: #{tpu_custom_call.1} parent=1 // pred_region
      %98 = dma.done [#allocation9], 128
    $region49: #{tpu_custom_call.1} parent=1 // pred_fallthru
      _
    // Predicated region
    $region50: #{tpu_custom_call.1} parent=1 // pred_check
      _
    $region51: #{tpu_custom_call.1} parent=1 // pred_check_branch
      %100 = sbr.rel (0) target = $region53
    $region52: #{tpu_custom_call.1} parent=1 // pred_region
      %101 = dma.done [#allocation9], 128
    $region53: #{tpu_custom_call.1} parent=1 // pred_fallthru
      _
    // Predicated region
    $region54: #{tpu_custom_call.1} parent=1 // pred_check
      _
    $region55: #{tpu_custom_call.1} parent=1 // pred_check_branch
      %103 = sbr.rel (0) target = $region57
    $region56: #{tpu_custom_call.1} parent=1 // pred_region
      %104 = dma.done [#allocation12], 128
    $region57: #{tpu_custom_call.1} parent=1 // pred_fallthru
      _
    %v105 = vld [vmem:[#allocation2] sm:$0x77]
    %v106 = vld [vmem:[#allocation2 + $0x8] sm:$0x77]
    %v107 = vld [vmem:[#allocation5] sm:$0xf]
    %v108 = vld [vmem:[%s0] sm:$0xff]
    %v109 = vld [vmem:[%s0 + $0x8] sm:$0xff]
    %v110 = vld [vmem:[%s0 + $0x10] sm:$0xff]
    %v111 = vld [vmem:[%s0 + $0x18] sm:$0xff]
    %v112 = vld [vmem:[%s0 + $0x20] sm:$0xff]
    %v113 = vld [vmem:[%s0 + $0x28] sm:$0xff]
    %v114 = vld [vmem:[%s0 + $0x30] sm:$0xff]
    %v115 = vld [vmem:[%s0 + $0x38] sm:$0xff]
    %v116 = vld [vmem:[%s0 + $0x40] sm:$0xff]
    %v117 = vld [vmem:[%s0 + $0x48] sm:$0xff]
    %v118 = vld [vmem:[%s0 + $0x50] sm:$0xff]
    %v119 = vld [vmem:[%s0 + $0x58] sm:$0xff]
    %v120 = vld [vmem:[%s0 + $0x60] sm:$0xff]
    %v121 = vld [vmem:[%s0 + $0x68] sm:$0xff]
    %v122 = vld [vmem:[%s0 + $0x70] sm:$0xff]
    %v123 = vld [vmem:[%s0 + $0x78] sm:$0xff]
    %v124 = vld [vmem:[%s0 + $0x80] sm:$0xff]
    %v125 = vld [vmem:[%s0 + $0x88] sm:$0xff]
    %v126 = vld [vmem:[%s0 + $0x90] sm:$0xff]
    %v127 = vld [vmem:[%s0 + $0x98] sm:$0xff]
    %v128 = vld [vmem:[%s0 + $0xa0] sm:$0xff]
    %v129 = vld [vmem:[%s0 + $0xa8] sm:$0xff]
    %v130 = vld [vmem:[%s0 + $0xb0] sm:$0xff]
    %v131 = vld [vmem:[%s0 + $0xb8] sm:$0xff]
    %v132 = vld [vmem:[%s0 + $0xc0] sm:$0xff]
    %v133 = vld [vmem:[%s0 + $0xc8] sm:$0xff]
    %v134 = vld [vmem:[%s0 + $0xd0] sm:$0xff]
    %v135 = vld [vmem:[%s0 + $0xd8] sm:$0xff]
    %v136 = vld [vmem:[%s0 + $0xe0] sm:$0xff]
    %v137 = vld [vmem:[%s0 + $0xe8] sm:$0xff]
    %v138 = vld [vmem:[%s0 + $0xf0] sm:$0xff]
    %v139 = vld [vmem:[%s0 + $0xf8] sm:$0xff]
    %v140 = vld [vmem:[%s0 + $0x100] sm:$0xff]
    %v141 = vld [vmem:[%s0 + $0x108] sm:$0xff]
    %v142 = vld [vmem:[%s0 + $0x110] sm:$0xff]
    %v143 = vld [vmem:[%s0 + $0x118] sm:$0xff]
    %v144 = vld [vmem:[%s0 + $0x120] sm:$0xff]
    %v145 = vld [vmem:[%s0 + $0x128] sm:$0xff]
    %v146 = vld [vmem:[%s0 + $0x130] sm:$0xff]
    %v147 = vld [vmem:[%s0 + $0x138] sm:$0xff]
    %v148 = vld [vmem:[%s0 + $0x140] sm:$0xff]
    %v149 = vld [vmem:[%s0 + $0x148] sm:$0xff]
    %v150 = vld [vmem:[%s0 + $0x150] sm:$0xff]
    %v151 = vld [vmem:[%s0 + $0x158] sm:$0xff]
    %v152 = vld [vmem:[%s0 + $0x160] sm:$0xff]
    %v153 = vld [vmem:[%s0 + $0x168] sm:$0xff]
    %v154 = vld [vmem:[%s0 + $0x170] sm:$0xff]
    %v155 = vld [vmem:[%s0 + $0x178] sm:$0xff]
    %v156 = vld [vmem:[%s0 + $0x180] sm:$0xff]
    %158 = vset.pattern.permute.xlu0 0
    %159 = vperm.xlu0 %158, %v108
    %v160 = vpop.permute.xlu0 %159
    %163 = vset.pattern.permute.xlu0 0
    %164 = vperm.xlu0 %163, %v109
    %v165 = vpop.permute.xlu0 %164
    %168 = vset.pattern.permute.xlu0 0
    %169 = vperm.xlu0 %168, %v110
    %v170 = vpop.permute.xlu0 %169
    %173 = vset.pattern.permute.xlu0 0
    %174 = vperm.xlu0 %173, %v111
    %v175 = vpop.permute.xlu0 %174
    %178 = vset.pattern.permute.xlu0 0
    %179 = vperm.xlu0 %178, %v112
    %v180 = vpop.permute.xlu0 %179
    %183 = vset.pattern.permute.xlu0 0
    %184 = vperm.xlu0 %183, %v113
    %v185 = vpop.permute.xlu0 %184
    %188 = vset.pattern.permute.xlu0 0
    %189 = vperm.xlu0 %188, %v114
    %v190 = vpop.permute.xlu0 %189
    %193 = vset.pattern.permute.xlu0 0
    %194 = vperm.xlu0 %193, %v115
    %v195 = vpop.permute.xlu0 %194
    %198 = vset.pattern.permute.xlu0 0
    %199 = vperm.xlu0 %198, %v116
    %v200 = vpop.permute.xlu0 %199
    %203 = vset.pattern.permute.xlu0 0
    %204 = vperm.xlu0 %203, %v117
    %v205 = vpop.permute.xlu0 %204
    %208 = vset.pattern.permute.xlu0 0
    %209 = vperm.xlu0 %208, %v118
    %v210 = vpop.permute.xlu0 %209
    %213 = vset.pattern.permute.xlu0 0
    %214 = vperm.xlu0 %213, %v119
    %v215 = vpop.permute.xlu0 %214
    %218 = vset.pattern.permute.xlu0 0
    %219 = vperm.xlu0 %218, %v120
    %v220 = vpop.permute.xlu0 %219
    %223 = vset.pattern.permute.xlu0 0
    %224 = vperm.xlu0 %223, %v121
    %v225 = vpop.permute.xlu0 %224
    %228 = vset.pattern.permute.xlu0 0
    %229 = vperm.xlu0 %228, %v122
    %v230 = vpop.permute.xlu0 %229
    %233 = vset.pattern.permute.xlu0 0
    %234 = vperm.xlu0 %233, %v123
    %v235 = vpop.permute.xlu0 %234
    %238 = vset.pattern.permute.xlu0 0
    %239 = vperm.xlu0 %238, %v124
    %v240 = vpop.permute.xlu0 %239
    %243 = vset.pattern.permute.xlu0 0
    %244 = vperm.xlu0 %243, %v125
    %v245 = vpop.permute.xlu0 %244
    %248 = vset.pattern.permute.xlu0 0
    %249 = vperm.xlu0 %248, %v126
    %v250 = vpop.permute.xlu0 %249
    %253 = vset.pattern.permute.xlu0 0
    %254 = vperm.xlu0 %253, %v127
    %v255 = vpop.permute.xlu0 %254
    %258 = vset.pattern.permute.xlu0 0
    %259 = vperm.xlu0 %258, %v128
    %v260 = vpop.permute.xlu0 %259
    %263 = vset.pattern.permute.xlu0 0
    %264 = vperm.xlu0 %263, %v129
    %v265 = vpop.permute.xlu0 %264
    %268 = vset.pattern.permute.xlu0 0
    %269 = vperm.xlu0 %268, %v130
    %v270 = vpop.permute.xlu0 %269
    %273 = vset.pattern.permute.xlu0 0
    %274 = vperm.xlu0 %273, %v131
    %v275 = vpop.permute.xlu0 %274
    %278 = vset.pattern.permute.xlu0 0
    %279 = vperm.xlu0 %278, %v132
    %v280 = vpop.permute.xlu0 %279
    %283 = vset.pattern.permute.xlu0 0
    %284 = vperm.xlu0 %283, %v133
    %v285 = vpop.permute.xlu0 %284
    %288 = vset.pattern.permute.xlu0 0
    %289 = vperm.xlu0 %288, %v134
    %v290 = vpop.permute.xlu0 %289
    %293 = vset.pattern.permute.xlu0 0
    %294 = vperm.xlu0 %293, %v135
    %v295 = vpop.permute.xlu0 %294
    %298 = vset.pattern.permute.xlu0 0
    %299 = vperm.xlu0 %298, %v136
    %v300 = vpop.permute.xlu0 %299
    %303 = vset.pattern.permute.xlu0 0
    %304 = vperm.xlu0 %303, %v137
    %v305 = vpop.permute.xlu0 %304
    %308 = vset.pattern.permute.xlu0 0
    %309 = vperm.xlu0 %308, %v138
    %v310 = vpop.permute.xlu0 %309
    %313 = vset.pattern.permute.xlu0 0
    %314 = vperm.xlu0 %313, %v139
    %v315 = vpop.permute.xlu0 %314
    %318 = vset.pattern.permute.xlu0 0
    %319 = vperm.xlu0 %318, %v140
    %v320 = vpop.permute.xlu0 %319
    %323 = vset.pattern.permute.xlu0 0
    %324 = vperm.xlu0 %323, %v141
    %v325 = vpop.permute.xlu0 %324
    %328 = vset.pattern.permute.xlu0 0
    %329 = vperm.xlu0 %328, %v142
    %v330 = vpop.permute.xlu0 %329
    %333 = vset.pattern.permute.xlu0 0
    %334 = vperm.xlu0 %333, %v143
    %v335 = vpop.permute.xlu0 %334
    %338 = vset.pattern.permute.xlu0 0
    %339 = vperm.xlu0 %338, %v144
    %v340 = vpop.permute.xlu0 %339
    %343 = vset.pattern.permute.xlu0 0
    %344 = vperm.xlu0 %343, %v145
    %v345 = vpop.permute.xlu0 %344
    %348 = vset.pattern.permute.xlu0 0
    %349 = vperm.xlu0 %348, %v146
    %v350 = vpop.permute.xlu0 %349
    %353 = vset.pattern.permute.xlu0 0
    %354 = vperm.xlu0 %353, %v147
    %v355 = vpop.permute.xlu0 %354
    %358 = vset.pattern.permute.xlu0 0
    %359 = vperm.xlu0 %358, %v148
    %v360 = vpop.permute.xlu0 %359
    %363 = vset.pattern.permute.xlu0 0
    %364 = vperm.xlu0 %363, %v149
    %v365 = vpop.permute.xlu0 %364
    %368 = vset.pattern.permute.xlu0 0
    %369 = vperm.xlu0 %368, %v150
    %v370 = vpop.permute.xlu0 %369
    %373 = vset.pattern.permute.xlu0 0
    %374 = vperm.xlu0 %373, %v151
    %v375 = vpop.permute.xlu0 %374
    %378 = vset.pattern.permute.xlu0 0
    %379 = vperm.xlu0 %378, %v152
    %v380 = vpop.permute.xlu0 %379
    %383 = vset.pattern.permute.xlu0 0
    %384 = vperm.xlu0 %383, %v153
    %v385 = vpop.permute.xlu0 %384
    %388 = vset.pattern.permute.xlu0 0
    %389 = vperm.xlu0 %388, %v154
    %v390 = vpop.permute.xlu0 %389
    %393 = vset.pattern.permute.xlu0 0
    %394 = vperm.xlu0 %393, %v155
    %v395 = vpop.permute.xlu0 %394
    %398 = vset.pattern.permute.xlu0 0
    %399 = vperm.xlu0 %398, %v156
    %v400 = vpop.permute.xlu0 %399
    %v404 = vlaneseq
    %v405 = vshrl.u32 %v404, 7
    %v406 = vsub.s32 0, %v405
    %v407 = vrot.slane %v105, %v406
    %v408 = vlaneseq
    %v409 = vshrl.u32 %v408, 7
    %v410 = vsub.s32 4, %v409
    %v411 = vrot.slane %v105, %v410
    %v412 = vlaneseq
    %v413 = vshrl.u32 %v412, 7
    %v414 = vsub.s32 0, %v413
    %v415 = vrot.slane %v106, %v414
    %v416 = vlaneseq
    %v417 = vshrl.u32 %v416, 7
    %v418 = vsub.s32 4, %v417
    %v419 = vrot.slane %v106, %v418
    %v424 = vlaneseq
    %v425 = vshrl.u32 %v424, 7
    %v426 = vsub.s32 0, %v425
    %v427 = vrot.slane %v407, %v426
    %v428 = vlaneseq
    %v429 = vshrl.u32 %v428, 7
    %v430 = vsub.s32 0, %v429
    %v431 = vrot.slane %v411, %v430
    %v432 = vlaneseq
    %v433 = vshrl.u32 %v432, 7
    %v434 = vsub.s32 0, %v433
    %v435 = vrot.slane %v415, %v434
    %v436 = vlaneseq
    %v437 = vshrl.u32 %v436, 7
    %v438 = vsub.s32 0, %v437
    %v439 = vrot.slane %v419, %v438
    %v440 = vmul.f32 %v160, %v427
    %v441 = vmul.f32 %v160, %v431
    %v442 = vmul.f32 %v160, %v435
    %v443 = vmul.f32 %v160, %v439
    %v444 = vmul.f32 %v165, %v427
    %v445 = vmul.f32 %v165, %v431
    %v446 = vmul.f32 %v165, %v435
    %v447 = vmul.f32 %v165, %v439
    %v448 = vmul.f32 %v170, %v427
    %v449 = vmul.f32 %v170, %v431
    %v450 = vmul.f32 %v170, %v435
    %v451 = vmul.f32 %v170, %v439
    %v452 = vmul.f32 %v175, %v427
    %v453 = vmul.f32 %v175, %v431
    %v454 = vmul.f32 %v175, %v435
    %v455 = vmul.f32 %v175, %v439
    %v456 = vmul.f32 %v180, %v427
    %v457 = vmul.f32 %v180, %v431
    %v458 = vmul.f32 %v180, %v435
    %v459 = vmul.f32 %v180, %v439
    %v460 = vmul.f32 %v185, %v427
    %v461 = vmul.f32 %v185, %v431
    %v462 = vmul.f32 %v185, %v435
    %v463 = vmul.f32 %v185, %v439
    %v464 = vmul.f32 %v190, %v427
    %v465 = vmul.f32 %v190, %v431
    %v466 = vmul.f32 %v190, %v435
    %v467 = vmul.f32 %v190, %v439
    %v468 = vmul.f32 %v195, %v427
    %v469 = vmul.f32 %v195, %v431
    %v470 = vmul.f32 %v195, %v435
    %v471 = vmul.f32 %v195, %v439
    %v472 = vmul.f32 %v200, %v427
    %v473 = vmul.f32 %v200, %v431
    %v474 = vmul.f32 %v200, %v435
    %v475 = vmul.f32 %v200, %v439
    %v476 = vmul.f32 %v205, %v427
    %v477 = vmul.f32 %v205, %v431
    %v478 = vmul.f32 %v205, %v435
    %v479 = vmul.f32 %v205, %v439
    %v480 = vmul.f32 %v210, %v427
    %v481 = vmul.f32 %v210, %v431
    %v482 = vmul.f32 %v210, %v435
    %v483 = vmul.f32 %v210, %v439
    %v484 = vmul.f32 %v215, %v427
    %v485 = vmul.f32 %v215, %v431
    %v486 = vmul.f32 %v215, %v435
    %v487 = vmul.f32 %v215, %v439
    %v488 = vmul.f32 %v220, %v427
    %v489 = vmul.f32 %v220, %v431
    %v490 = vmul.f32 %v220, %v435
    %v491 = vmul.f32 %v220, %v439
    %v492 = vmul.f32 %v225, %v427
    %v493 = vmul.f32 %v225, %v431
    %v494 = vmul.f32 %v225, %v435
    %v495 = vmul.f32 %v225, %v439
    %v496 = vmul.f32 %v230, %v427
    %v497 = vmul.f32 %v230, %v431
    %v498 = vmul.f32 %v230, %v435
    %v499 = vmul.f32 %v230, %v439
    %v500 = vmul.f32 %v235, %v427
    %v501 = vmul.f32 %v235, %v431
    %v502 = vmul.f32 %v235, %v435
    %v503 = vmul.f32 %v235, %v439
    %v504 = vmul.f32 %v240, %v427
    %v505 = vmul.f32 %v240, %v431
    %v506 = vmul.f32 %v240, %v435
    %v507 = vmul.f32 %v240, %v439
    %v508 = vmul.f32 %v245, %v427
    %v509 = vmul.f32 %v245, %v431
    %v510 = vmul.f32 %v245, %v435
    %v511 = vmul.f32 %v245, %v439
    %v512 = vmul.f32 %v250, %v427
    %v513 = vmul.f32 %v250, %v431
    %v514 = vmul.f32 %v250, %v435
    %v515 = vmul.f32 %v250, %v439
    %v516 = vmul.f32 %v255, %v427
    %v517 = vmul.f32 %v255, %v431
    %v518 = vmul.f32 %v255, %v435
    %v519 = vmul.f32 %v255, %v439
    %v520 = vmul.f32 %v260, %v427
    %v521 = vmul.f32 %v260, %v431
    %v522 = vmul.f32 %v260, %v435
    %v523 = vmul.f32 %v260, %v439
    %v524 = vmul.f32 %v265, %v427
    %v525 = vmul.f32 %v265, %v431
    %v526 = vmul.f32 %v265, %v435
    %v527 = vmul.f32 %v265, %v439
    %v528 = vmul.f32 %v270, %v427
    %v529 = vmul.f32 %v270, %v431
    %v530 = vmul.f32 %v270, %v435
    %v531 = vmul.f32 %v270, %v439
    %v532 = vmul.f32 %v275, %v427
    %v533 = vmul.f32 %v275, %v431
    %v534 = vmul.f32 %v275, %v435
    %v535 = vmul.f32 %v275, %v439
    %v536 = vmul.f32 %v280, %v427
    %v537 = vmul.f32 %v280, %v431
    %v538 = vmul.f32 %v280, %v435
    %v539 = vmul.f32 %v280, %v439
    %v540 = vmul.f32 %v285, %v427
    %v541 = vmul.f32 %v285, %v431
    %v542 = vmul.f32 %v285, %v435
    %v543 = vmul.f32 %v285, %v439
    %v544 = vmul.f32 %v290, %v427
    %v545 = vmul.f32 %v290, %v431
    %v546 = vmul.f32 %v290, %v435
    %v547 = vmul.f32 %v290, %v439
    %v548 = vmul.f32 %v295, %v427
    %v549 = vmul.f32 %v295, %v431
    %v550 = vmul.f32 %v295, %v435
    %v551 = vmul.f32 %v295, %v439
    %v552 = vmul.f32 %v300, %v427
    %v553 = vmul.f32 %v300, %v431
    %v554 = vmul.f32 %v300, %v435
    %v555 = vmul.f32 %v300, %v439
    %v556 = vmul.f32 %v305, %v427
    %v557 = vmul.f32 %v305, %v431
    %v558 = vmul.f32 %v305, %v435
    %v559 = vmul.f32 %v305, %v439
    %v560 = vmul.f32 %v310, %v427
    %v561 = vmul.f32 %v310, %v431
    %v562 = vmul.f32 %v310, %v435
    %v563 = vmul.f32 %v310, %v439
    %v564 = vmul.f32 %v315, %v427
    %v565 = vmul.f32 %v315, %v431
    %v566 = vmul.f32 %v315, %v435
    %v567 = vmul.f32 %v315, %v439
    %v568 = vmul.f32 %v320, %v427
    %v569 = vmul.f32 %v320, %v431
    %v570 = vmul.f32 %v320, %v435
    %v571 = vmul.f32 %v320, %v439
    %v572 = vmul.f32 %v325, %v427
    %v573 = vmul.f32 %v325, %v431
    %v574 = vmul.f32 %v325, %v435
    %v575 = vmul.f32 %v325, %v439
    %v576 = vmul.f32 %v330, %v427
    %v577 = vmul.f32 %v330, %v431
    %v578 = vmul.f32 %v330, %v435
    %v579 = vmul.f32 %v330, %v439
    %v580 = vmul.f32 %v335, %v427
    %v581 = vmul.f32 %v335, %v431
    %v582 = vmul.f32 %v335, %v435
    %v583 = vmul.f32 %v335, %v439
    %v584 = vmul.f32 %v340, %v427
    %v585 = vmul.f32 %v340, %v431
    %v586 = vmul.f32 %v340, %v435
    %v587 = vmul.f32 %v340, %v439
    %v588 = vmul.f32 %v345, %v427
    %v589 = vmul.f32 %v345, %v431
    %v590 = vmul.f32 %v345, %v435
    %v591 = vmul.f32 %v345, %v439
    %v592 = vmul.f32 %v350, %v427
    %v593 = vmul.f32 %v350, %v431
    %v594 = vmul.f32 %v350, %v435
    %v595 = vmul.f32 %v350, %v439
    %v596 = vmul.f32 %v355, %v427
    %v597 = vmul.f32 %v355, %v431
    %v598 = vmul.f32 %v355, %v435
    %v599 = vmul.f32 %v355, %v439
    %v600 = vmul.f32 %v360, %v427
    %v601 = vmul.f32 %v360, %v431
    %v602 = vmul.f32 %v360, %v435
    %v603 = vmul.f32 %v360, %v439
    %v604 = vmul.f32 %v365, %v427
    %v605 = vmul.f32 %v365, %v431
    %v606 = vmul.f32 %v365, %v435
    %v607 = vmul.f32 %v365, %v439
    %v608 = vmul.f32 %v370, %v427
    %v609 = vmul.f32 %v370, %v431
    %v610 = vmul.f32 %v370, %v435
    %v611 = vmul.f32 %v370, %v439
    %v612 = vmul.f32 %v375, %v427
    %v613 = vmul.f32 %v375, %v431
    %v614 = vmul.f32 %v375, %v435
    %v615 = vmul.f32 %v375, %v439
    %v616 = vmul.f32 %v380, %v427
    %v617 = vmul.f32 %v380, %v431
    %v618 = vmul.f32 %v380, %v435
    %v619 = vmul.f32 %v380, %v439
    %v620 = vmul.f32 %v385, %v427
    %v621 = vmul.f32 %v385, %v431
    %v622 = vmul.f32 %v385, %v435
    %v623 = vmul.f32 %v385, %v439
    %v624 = vmul.f32 %v390, %v427
    %v625 = vmul.f32 %v390, %v431
    %v626 = vmul.f32 %v390, %v435
    %v627 = vmul.f32 %v390, %v439
    %v628 = vmul.f32 %v395, %v427
    %v629 = vmul.f32 %v395, %v431
    %v630 = vmul.f32 %v395, %v435
    %v631 = vmul.f32 %v395, %v439
    %v632 = vmul.f32 %v400, %v427
    %v633 = vmul.f32 %v400, %v431
    %v634 = vmul.f32 %v400, %v435
    %v635 = vmul.f32 %v400, %v439
    %636 = vset.pattern.permute.xlu0 1
    %637 = vperm.xlu0 %636, %v108
    %v638 = vpop.permute.xlu0 %637
    %640 = vset.pattern.permute.xlu0 1
    %641 = vperm.xlu0 %640, %v109
    %v642 = vpop.permute.xlu0 %641
    %644 = vset.pattern.permute.xlu0 1
    %645 = vperm.xlu0 %644, %v110
    %v646 = vpop.permute.xlu0 %645
    %648 = vset.pattern.permute.xlu0 1
    %649 = vperm.xlu0 %648, %v111
    %v650 = vpop.permute.xlu0 %649
    %652 = vset.pattern.permute.xlu0 1
    %653 = vperm.xlu0 %652, %v112
    %v654 = vpop.permute.xlu0 %653
    %656 = vset.pattern.permute.xlu0 1
    %657 = vperm.xlu0 %656, %v113
    %v658 = vpop.permute.xlu0 %657
    %660 = vset.pattern.permute.xlu0 1
    %661 = vperm.xlu0 %660, %v114
    %v662 = vpop.permute.xlu0 %661
    %664 = vset.pattern.permute.xlu0 1
    %665 = vperm.xlu0 %664, %v115
    %v666 = vpop.permute.xlu0 %665
    %668 = vset.pattern.permute.xlu0 1
    %669 = vperm.xlu0 %668, %v116
    %v670 = vpop.permute.xlu0 %669
    %672 = vset.pattern.permute.xlu0 1
    %673 = vperm.xlu0 %672, %v117
    %v674 = vpop.permute.xlu0 %673
    %676 = vset.pattern.permute.xlu0 1
    %677 = vperm.xlu0 %676, %v118
    %v678 = vpop.permute.xlu0 %677
    %680 = vset.pattern.permute.xlu0 1
    %681 = vperm.xlu0 %680, %v119
    %v682 = vpop.permute.xlu0 %681
    %684 = vset.pattern.permute.xlu0 1
    %685 = vperm.xlu0 %684, %v120
    %v686 = vpop.permute.xlu0 %685
    %688 = vset.pattern.permute.xlu0 1
    %689 = vperm.xlu0 %688, %v121
    %v690 = vpop.permute.xlu0 %689
    %692 = vset.pattern.permute.xlu0 1
    %693 = vperm.xlu0 %692, %v122
    %v694 = vpop.permute.xlu0 %693
    %696 = vset.pattern.permute.xlu0 1
    %697 = vperm.xlu0 %696, %v123
    %v698 = vpop.permute.xlu0 %697
    %700 = vset.pattern.permute.xlu0 1
    %701 = vperm.xlu0 %700, %v124
    %v702 = vpop.permute.xlu0 %701
    %704 = vset.pattern.permute.xlu0 1
    %705 = vperm.xlu0 %704, %v125
    %v706 = vpop.permute.xlu0 %705
    %708 = vset.pattern.permute.xlu0 1
    %709 = vperm.xlu0 %708, %v126
    %v710 = vpop.permute.xlu0 %709
    %712 = vset.pattern.permute.xlu0 1
    %713 = vperm.xlu0 %712, %v127
    %v714 = vpop.permute.xlu0 %713
    %716 = vset.pattern.permute.xlu0 1
    %717 = vperm.xlu0 %716, %v128
    %v718 = vpop.permute.xlu0 %717
    %720 = vset.pattern.permute.xlu0 1
    %721 = vperm.xlu0 %720, %v129
    %v722 = vpop.permute.xlu0 %721
    %724 = vset.pattern.permute.xlu0 1
    %725 = vperm.xlu0 %724, %v130
    %v726 = vpop.permute.xlu0 %725
    %728 = vset.pattern.permute.xlu0 1
    %729 = vperm.xlu0 %728, %v131
    %v730 = vpop.permute.xlu0 %729
    %732 = vset.pattern.permute.xlu0 1
    %733 = vperm.xlu0 %732, %v132
    %v734 = vpop.permute.xlu0 %733
    %736 = vset.pattern.permute.xlu0 1
    %737 = vperm.xlu0 %736, %v133
    %v738 = vpop.permute.xlu0 %737
    %740 = vset.pattern.permute.xlu0 1
    %741 = vperm.xlu0 %740, %v134
    %v742 = vpop.permute.xlu0 %741
    %744 = vset.pattern.permute.xlu0 1
    %745 = vperm.xlu0 %744, %v135
    %v746 = vpop.permute.xlu0 %745
    %748 = vset.pattern.permute.xlu0 1
    %749 = vperm.xlu0 %748, %v136
    %v750 = vpop.permute.xlu0 %749
    %752 = vset.pattern.permute.xlu0 1
    %753 = vperm.xlu0 %752, %v137
    %v754 = vpop.permute.xlu0 %753
    %756 = vset.pattern.permute.xlu0 1
    %757 = vperm.xlu0 %756, %v138
    %v758 = vpop.permute.xlu0 %757
    %760 = vset.pattern.permute.xlu0 1
    %761 = vperm.xlu0 %760, %v139
    %v762 = vpop.permute.xlu0 %761
    %764 = vset.pattern.permute.xlu0 1
    %765 = vperm.xlu0 %764, %v140
    %v766 = vpop.permute.xlu0 %765
    %768 = vset.pattern.permute.xlu0 1
    %769 = vperm.xlu0 %768, %v141
    %v770 = vpop.permute.xlu0 %769
    %772 = vset.pattern.permute.xlu0 1
    %773 = vperm.xlu0 %772, %v142
    %v774 = vpop.permute.xlu0 %773
    %776 = vset.pattern.permute.xlu0 1
    %777 = vperm.xlu0 %776, %v143
    %v778 = vpop.permute.xlu0 %777
    %780 = vset.pattern.permute.xlu0 1
    %781 = vperm.xlu0 %780, %v144
    %v782 = vpop.permute.xlu0 %781
    %784 = vset.pattern.permute.xlu0 1
    %785 = vperm.xlu0 %784, %v145
    %v786 = vpop.permute.xlu0 %785
    %788 = vset.pattern.permute.xlu0 1
    %789 = vperm.xlu0 %788, %v146
    %v790 = vpop.permute.xlu0 %789
    %792 = vset.pattern.permute.xlu0 1
    %793 = vperm.xlu0 %792, %v147
    %v794 = vpop.permute.xlu0 %793
    %796 = vset.pattern.permute.xlu0 1
    %797 = vperm.xlu0 %796, %v148
    %v798 = vpop.permute.xlu0 %797
    %800 = vset.pattern.permute.xlu0 1
    %801 = vperm.xlu0 %800, %v149
    %v802 = vpop.permute.xlu0 %801
    %804 = vset.pattern.permute.xlu0 1
    %805 = vperm.xlu0 %804, %v150
    %v806 = vpop.permute.xlu0 %805
    %808 = vset.pattern.permute.xlu0 1
    %809 = vperm.xlu0 %808, %v151
    %v810 = vpop.permute.xlu0 %809
    %812 = vset.pattern.permute.xlu0 1
    %813 = vperm.xlu0 %812, %v152
    %v814 = vpop.permute.xlu0 %813
    %816 = vset.pattern.permute.xlu0 1
    %817 = vperm.xlu0 %816, %v153
    %v818 = vpop.permute.xlu0 %817
    %820 = vset.pattern.permute.xlu0 1
    %821 = vperm.xlu0 %820, %v154
    %v822 = vpop.permute.xlu0 %821
    %824 = vset.pattern.permute.xlu0 1
    %825 = vperm.xlu0 %824, %v155
    %v826 = vpop.permute.xlu0 %825
    %828 = vset.pattern.permute.xlu0 1
    %829 = vperm.xlu0 %828, %v156
    %v830 = vpop.permute.xlu0 %829
    %v832 = vlaneseq
    %v833 = vshrl.u32 %v832, 7
    %v834 = vsub.s32 1, %v833
    %v835 = vrot.slane %v105, %v834
    %v836 = vlaneseq
    %v837 = vshrl.u32 %v836, 7
    %v838 = vsub.s32 5, %v837
    %v839 = vrot.slane %v105, %v838
    %v840 = vlaneseq
    %v841 = vshrl.u32 %v840, 7
    %v842 = vsub.s32 1, %v841
    %v843 = vrot.slane %v106, %v842
    %v844 = vlaneseq
    %v845 = vshrl.u32 %v844, 7
    %v846 = vsub.s32 5, %v845
    %v847 = vrot.slane %v106, %v846
    %v852 = vlaneseq
    %v853 = vshrl.u32 %v852, 7
    %v854 = vsub.s32 1, %v853
    %v855 = vrot.slane %v835, %v854
    %v856 = vlaneseq
    %v857 = vshrl.u32 %v856, 7
    %v858 = vsub.s32 1, %v857
    %v859 = vrot.slane %v839, %v858
    %v860 = vlaneseq
    %v861 = vshrl.u32 %v860, 7
    %v862 = vsub.s32 1, %v861
    %v863 = vrot.slane %v843, %v862
    %v864 = vlaneseq
    %v865 = vshrl.u32 %v864, 7
    %v866 = vsub.s32 1, %v865
    %v867 = vrot.slane %v847, %v866
    %v868 = vmul.f32 %v638, %v855
    %v869 = vmul.f32 %v638, %v859
    %v870 = vmul.f32 %v638, %v863
    %v871 = vmul.f32 %v638, %v867
    %v872 = vmul.f32 %v642, %v855
    %v873 = vmul.f32 %v642, %v859
    %v874 = vmul.f32 %v642, %v863
    %v875 = vmul.f32 %v642, %v867
    %v876 = vmul.f32 %v646, %v855
    %v877 = vmul.f32 %v646, %v859
    %v878 = vmul.f32 %v646, %v863
    %v879 = vmul.f32 %v646, %v867
    %v880 = vmul.f32 %v650, %v855
    %v881 = vmul.f32 %v650, %v859
    %v882 = vmul.f32 %v650, %v863
    %v883 = vmul.f32 %v650, %v867
    %v884 = vmul.f32 %v654, %v855
    %v885 = vmul.f32 %v654, %v859
    %v886 = vmul.f32 %v654, %v863
    %v887 = vmul.f32 %v654, %v867
    %v888 = vmul.f32 %v658, %v855
    %v889 = vmul.f32 %v658, %v859
    %v890 = vmul.f32 %v658, %v863
    %v891 = vmul.f32 %v658, %v867
    %v892 = vmul.f32 %v662, %v855
    %v893 = vmul.f32 %v662, %v859
    %v894 = vmul.f32 %v662, %v863
    %v895 = vmul.f32 %v662, %v867
    %v896 = vmul.f32 %v666, %v855
    %v897 = vmul.f32 %v666, %v859
    %v898 = vmul.f32 %v666, %v863
    %v899 = vmul.f32 %v666, %v867
    %v900 = vmul.f32 %v670, %v855
    %v901 = vmul.f32 %v670, %v859
    %v902 = vmul.f32 %v670, %v863
    %v903 = vmul.f32 %v670, %v867
    %v904 = vmul.f32 %v674, %v855
    %v905 = vmul.f32 %v674, %v859
    %v906 = vmul.f32 %v674, %v863
    %v907 = vmul.f32 %v674, %v867
    %v908 = vmul.f32 %v678, %v855
    %v909 = vmul.f32 %v678, %v859
    %v910 = vmul.f32 %v678, %v863
    %v911 = vmul.f32 %v678, %v867
    %v912 = vmul.f32 %v682, %v855
    %v913 = vmul.f32 %v682, %v859
    %v914 = vmul.f32 %v682, %v863
    %v915 = vmul.f32 %v682, %v867
    %v916 = vmul.f32 %v686, %v855
    %v917 = vmul.f32 %v686, %v859
    %v918 = vmul.f32 %v686, %v863
    %v919 = vmul.f32 %v686, %v867
    %v920 = vmul.f32 %v690, %v855
    %v921 = vmul.f32 %v690, %v859
    %v922 = vmul.f32 %v690, %v863
    %v923 = vmul.f32 %v690, %v867
    %v924 = vmul.f32 %v694, %v855
    %v925 = vmul.f32 %v694, %v859
    %v926 = vmul.f32 %v694, %v863
    %v927 = vmul.f32 %v694, %v867
    %v928 = vmul.f32 %v698, %v855
    %v929 = vmul.f32 %v698, %v859
    %v930 = vmul.f32 %v698, %v863
    %v931 = vmul.f32 %v698, %v867
    %v932 = vmul.f32 %v702, %v855
    %v933 = vmul.f32 %v702, %v859
    %v934 = vmul.f32 %v702, %v863
    %v935 = vmul.f32 %v702, %v867
    %v936 = vmul.f32 %v706, %v855
    %v937 = vmul.f32 %v706, %v859
    %v938 = vmul.f32 %v706, %v863
    %v939 = vmul.f32 %v706, %v867
    %v940 = vmul.f32 %v710, %v855
    %v941 = vmul.f32 %v710, %v859
    %v942 = vmul.f32 %v710, %v863
    %v943 = vmul.f32 %v710, %v867
    %v944 = vmul.f32 %v714, %v855
    %v945 = vmul.f32 %v714, %v859
    %v946 = vmul.f32 %v714, %v863
    %v947 = vmul.f32 %v714, %v867
    %v948 = vmul.f32 %v718, %v855
    %v949 = vmul.f32 %v718, %v859
    %v950 = vmul.f32 %v718, %v863
    %v951 = vmul.f32 %v718, %v867
    %v952 = vmul.f32 %v722, %v855
    %v953 = vmul.f32 %v722, %v859
    %v954 = vmul.f32 %v722, %v863
    %v955 = vmul.f32 %v722, %v867
    %v956 = vmul.f32 %v726, %v855
    %v957 = vmul.f32 %v726, %v859
    %v958 = vmul.f32 %v726, %v863
    %v959 = vmul.f32 %v726, %v867
    %v960 = vmul.f32 %v730, %v855
    %v961 = vmul.f32 %v730, %v859
    %v962 = vmul.f32 %v730, %v863
    %v963 = vmul.f32 %v730, %v867
    %v964 = vmul.f32 %v734, %v855
    %v965 = vmul.f32 %v734, %v859
    %v966 = vmul.f32 %v734, %v863
    %v967 = vmul.f32 %v734, %v867
    %v968 = vmul.f32 %v738, %v855
    %v969 = vmul.f32 %v738, %v859
    %v970 = vmul.f32 %v738, %v863
    %v971 = vmul.f32 %v738, %v867
    %v972 = vmul.f32 %v742, %v855
    %v973 = vmul.f32 %v742, %v859
    %v974 = vmul.f32 %v742, %v863
    %v975 = vmul.f32 %v742, %v867
    %v976 = vmul.f32 %v746, %v855
    %v977 = vmul.f32 %v746, %v859
    %v978 = vmul.f32 %v746, %v863
    %v979 = vmul.f32 %v746, %v867
    %v980 = vmul.f32 %v750, %v855
    %v981 = vmul.f32 %v750, %v859
    %v982 = vmul.f32 %v750, %v863
    %v983 = vmul.f32 %v750, %v867
    %v984 = vmul.f32 %v754, %v855
    %v985 = vmul.f32 %v754, %v859
    %v986 = vmul.f32 %v754, %v863
    %v987 = vmul.f32 %v754, %v867
    %v988 = vmul.f32 %v758, %v855
    %v989 = vmul.f32 %v758, %v859
    %v990 = vmul.f32 %v758, %v863
    %v991 = vmul.f32 %v758, %v867
    %v992 = vmul.f32 %v762, %v855
    %v993 = vmul.f32 %v762, %v859
    %v994 = vmul.f32 %v762, %v863
    %v995 = vmul.f32 %v762, %v867
    %v996 = vmul.f32 %v766, %v855
    %v997 = vmul.f32 %v766, %v859
    %v998 = vmul.f32 %v766, %v863
    %v999 = vmul.f32 %v766, %v867
    %v1000 = vmul.f32 %v770, %v855
    %v1001 = vmul.f32 %v770, %v859
    %v1002 = vmul.f32 %v770, %v863
    %v1003 = vmul.f32 %v770, %v867
    %v1004 = vmul.f32 %v774, %v855
    %v1005 = vmul.f32 %v774, %v859
    %v1006 = vmul.f32 %v774, %v863
    %v1007 = vmul.f32 %v774, %v867
    %v1008 = vmul.f32 %v778, %v855
    %v1009 = vmul.f32 %v778, %v859
    %v1010 = vmul.f32 %v778, %v863
    %v1011 = vmul.f32 %v778, %v867
    %v1012 = vmul.f32 %v782, %v855
    %v1013 = vmul.f32 %v782, %v859
    %v1014 = vmul.f32 %v782, %v863
    %v1015 = vmul.f32 %v782, %v867
    %v1016 = vmul.f32 %v786, %v855
    %v1017 = vmul.f32 %v786, %v859
    %v1018 = vmul.f32 %v786, %v863
    %v1019 = vmul.f32 %v786, %v867
    %v1020 = vmul.f32 %v790, %v855
    %v1021 = vmul.f32 %v790, %v859
    %v1022 = vmul.f32 %v790, %v863
    %v1023 = vmul.f32 %v790, %v867
    %v1024 = vmul.f32 %v794, %v855
    %v1025 = vmul.f32 %v794, %v859
    %v1026 = vmul.f32 %v794, %v863
    %v1027 = vmul.f32 %v794, %v867
    %v1028 = vmul.f32 %v798, %v855
    %v1029 = vmul.f32 %v798, %v859
    %v1030 = vmul.f32 %v798, %v863
    %v1031 = vmul.f32 %v798, %v867
    %v1032 = vmul.f32 %v802, %v855
    %v1033 = vmul.f32 %v802, %v859
    %v1034 = vmul.f32 %v802, %v863
    %v1035 = vmul.f32 %v802, %v867
    %v1036 = vmul.f32 %v806, %v855
    %v1037 = vmul.f32 %v806, %v859
    %v1038 = vmul.f32 %v806, %v863
    %v1039 = vmul.f32 %v806, %v867
    %v1040 = vmul.f32 %v810, %v855
    %v1041 = vmul.f32 %v810, %v859
    %v1042 = vmul.f32 %v810, %v863
    %v1043 = vmul.f32 %v810, %v867
    %v1044 = vmul.f32 %v814, %v855
    %v1045 = vmul.f32 %v814, %v859
    %v1046 = vmul.f32 %v814, %v863
    %v1047 = vmul.f32 %v814, %v867
    %v1048 = vmul.f32 %v818, %v855
    %v1049 = vmul.f32 %v818, %v859
    %v1050 = vmul.f32 %v818, %v863
    %v1051 = vmul.f32 %v818, %v867
    %v1052 = vmul.f32 %v822, %v855
    %v1053 = vmul.f32 %v822, %v859
    %v1054 = vmul.f32 %v822, %v863
    %v1055 = vmul.f32 %v822, %v867
    %v1056 = vmul.f32 %v826, %v855
    %v1057 = vmul.f32 %v826, %v859
    %v1058 = vmul.f32 %v826, %v863
    %v1059 = vmul.f32 %v826, %v867
    %v1060 = vmul.f32 %v830, %v855
    %v1061 = vmul.f32 %v830, %v859
    %v1062 = vmul.f32 %v830, %v863
    %v1063 = vmul.f32 %v830, %v867
    %v1064 = vadd.f32 %v440, %v868
    %v1065 = vadd.f32 %v441, %v869
    %v1066 = vadd.f32 %v442, %v870
    %v1067 = vadd.f32 %v443, %v871
    %v1068 = vadd.f32 %v444, %v872
    %v1069 = vadd.f32 %v445, %v873
    %v1070 = vadd.f32 %v446, %v874
    %v1071 = vadd.f32 %v447, %v875
    %v1072 = vadd.f32 %v448, %v876
    %v1073 = vadd.f32 %v449, %v877
    %v1074 = vadd.f32 %v450, %v878
    %v1075 = vadd.f32 %v451, %v879
    %v1076 = vadd.f32 %v452, %v880
    %v1077 = vadd.f32 %v453, %v881
    %v1078 = vadd.f32 %v454, %v882
    %v1079 = vadd.f32 %v455, %v883
    %v1080 = vadd.f32 %v456, %v884
    %v1081 = vadd.f32 %v457, %v885
    %v1082 = vadd.f32 %v458, %v886
    %v1083 = vadd.f32 %v459, %v887
    %v1084 = vadd.f32 %v460, %v888
    %v1085 = vadd.f32 %v461, %v889
    %v1086 = vadd.f32 %v462, %v890
    %v1087 = vadd.f32 %v463, %v891
    %v1088 = vadd.f32 %v464, %v892
    %v1089 = vadd.f32 %v465, %v893
    %v1090 = vadd.f32 %v466, %v894
    %v1091 = vadd.f32 %v467, %v895
    %v1092 = vadd.f32 %v468, %v896
    %v1093 = vadd.f32 %v469, %v897
    %v1094 = vadd.f32 %v470, %v898
    %v1095 = vadd.f32 %v471, %v899
    %v1096 = vadd.f32 %v472, %v900
    %v1097 = vadd.f32 %v473, %v901
    %v1098 = vadd.f32 %v474, %v902
    %v1099 = vadd.f32 %v475, %v903
    %v1100 = vadd.f32 %v476, %v904
    %v1101 = vadd.f32 %v477, %v905
    %v1102 = vadd.f32 %v478, %v906
    %v1103 = vadd.f32 %v479, %v907
    %v1104 = vadd.f32 %v480, %v908
    %v1105 = vadd.f32 %v481, %v909
    %v1106 = vadd.f32 %v482, %v910
    %v1107 = vadd.f32 %v483, %v911
    %v1108 = vadd.f32 %v484, %v912
    %v1109 = vadd.f32 %v485, %v913
    %v1110 = vadd.f32 %v486, %v914
    %v1111 = vadd.f32 %v487, %v915
    %v1112 = vadd.f32 %v488, %v916
    %v1113 = vadd.f32 %v489, %v917
    %v1114 = vadd.f32 %v490, %v918
    %v1115 = vadd.f32 %v491, %v919
    %v1116 = vadd.f32 %v492, %v920
    %v1117 = vadd.f32 %v493, %v921
    %v1118 = vadd.f32 %v494, %v922
    %v1119 = vadd.f32 %v495, %v923
    %v1120 = vadd.f32 %v496, %v924
    %v1121 = vadd.f32 %v497, %v925
    %v1122 = vadd.f32 %v498, %v926
    %v1123 = vadd.f32 %v499, %v927
    %v1124 = vadd.f32 %v500, %v928
    %v1125 = vadd.f32 %v501, %v929
    %v1126 = vadd.f32 %v502, %v930
    %v1127 = vadd.f32 %v503, %v931
    %v1128 = vadd.f32 %v504, %v932
    %v1129 = vadd.f32 %v505, %v933
    %v1130 = vadd.f32 %v506, %v934
    %v1131 = vadd.f32 %v507, %v935
    %v1132 = vadd.f32 %v508, %v936
    %v1133 = vadd.f32 %v509, %v937
    %v1134 = vadd.f32 %v510, %v938
    %v1135 = vadd.f32 %v511, %v939
    %v1136 = vadd.f32 %v512, %v940
    %v1137 = vadd.f32 %v513, %v941
    %v1138 = vadd.f32 %v514, %v942
    %v1139 = vadd.f32 %v515, %v943
    %v1140 = vadd.f32 %v516, %v944
    %v1141 = vadd.f32 %v517, %v945
    %v1142 = vadd.f32 %v518, %v946
    %v1143 = vadd.f32 %v519, %v947
    %v1144 = vadd.f32 %v520, %v948
    %v1145 = vadd.f32 %v521, %v949
    %v1146 = vadd.f32 %v522, %v950
    %v1147 = vadd.f32 %v523, %v951
    %v1148 = vadd.f32 %v524, %v952
    %v1149 = vadd.f32 %v525, %v953
    %v1150 = vadd.f32 %v526, %v954
    %v1151 = vadd.f32 %v527, %v955
    %v1152 = vadd.f32 %v528, %v956
    %v1153 = vadd.f32 %v529, %v957
    %v1154 = vadd.f32 %v530, %v958
    %v1155 = vadd.f32 %v531, %v959
    %v1156 = vadd.f32 %v532, %v960
    %v1157 = vadd.f32 %v533, %v961
    %v1158 = vadd.f32 %v534, %v962
    %v1159 = vadd.f32 %v535, %v963
    %v1160 = vadd.f32 %v536, %v964
    %v1161 = vadd.f32 %v537, %v965
    %v1162 = vadd.f32 %v538, %v966
    %v1163 = vadd.f32 %v539, %v967
    %v1164 = vadd.f32 %v540, %v968
    %v1165 = vadd.f32 %v541, %v969
    %v1166 = vadd.f32 %v542, %v970
    %v1167 = vadd.f32 %v543, %v971
    %v1168 = vadd.f32 %v544, %v972
    %v1169 = vadd.f32 %v545, %v973
    %v1170 = vadd.f32 %v546, %v974
    %v1171 = vadd.f32 %v547, %v975
    %v1172 = vadd.f32 %v548, %v976
    %v1173 = vadd.f32 %v549, %v977
    %v1174 = vadd.f32 %v550, %v978
    %v1175 = vadd.f32 %v551, %v979
    %v1176 = vadd.f32 %v552, %v980
    %v1177 = vadd.f32 %v553, %v981
    %v1178 = vadd.f32 %v554, %v982
    %v1179 = vadd.f32 %v555, %v983
    %v1180 = vadd.f32 %v556, %v984
    %v1181 = vadd.f32 %v557, %v985
    %v1182 = vadd.f32 %v558, %v986
    %v1183 = vadd.f32 %v559, %v987
    %v1184 = vadd.f32 %v560, %v988
    %v1185 = vadd.f32 %v561, %v989
    %v1186 = vadd.f32 %v562, %v990
    %v1187 = vadd.f32 %v563, %v991
    %v1188 = vadd.f32 %v564, %v992
    %v1189 = vadd.f32 %v565, %v993
    %v1190 = vadd.f32 %v566, %v994
    %v1191 = vadd.f32 %v567, %v995
    %v1192 = vadd.f32 %v568, %v996
    %v1193 = vadd.f32 %v569, %v997
    %v1194 = vadd.f32 %v570, %v998
    %v1195 = vadd.f32 %v571, %v999
    %v1196 = vadd.f32 %v572, %v1000
    %v1197 = vadd.f32 %v573, %v1001
    %v1198 = vadd.f32 %v574, %v1002
    %v1199 = vadd.f32 %v575, %v1003
    %v1200 = vadd.f32 %v576, %v1004
    %v1201 = vadd.f32 %v577, %v1005
    %v1202 = vadd.f32 %v578, %v1006
    %v1203 = vadd.f32 %v579, %v1007
    %v1204 = vadd.f32 %v580, %v1008
    %v1205 = vadd.f32 %v581, %v1009
    %v1206 = vadd.f32 %v582, %v1010
    %v1207 = vadd.f32 %v583, %v1011
    %v1208 = vadd.f32 %v584, %v1012
    %v1209 = vadd.f32 %v585, %v1013
    %v1210 = vadd.f32 %v586, %v1014
    %v1211 = vadd.f32 %v587, %v1015
    %v1212 = vadd.f32 %v588, %v1016
    %v1213 = vadd.f32 %v589, %v1017
    %v1214 = vadd.f32 %v590, %v1018
    %v1215 = vadd.f32 %v591, %v1019
    %v1216 = vadd.f32 %v592, %v1020
    %v1217 = vadd.f32 %v593, %v1021
    %v1218 = vadd.f32 %v594, %v1022
    %v1219 = vadd.f32 %v595, %v1023
    %v1220 = vadd.f32 %v596, %v1024
    %v1221 = vadd.f32 %v597, %v1025
    %v1222 = vadd.f32 %v598, %v1026
    %v1223 = vadd.f32 %v599, %v1027
    %v1224 = vadd.f32 %v600, %v1028
    %v1225 = vadd.f32 %v601, %v1029
    %v1226 = vadd.f32 %v602, %v1030
    %v1227 = vadd.f32 %v603, %v1031
    %v1228 = vadd.f32 %v604, %v1032
    %v1229 = vadd.f32 %v605, %v1033
    %v1230 = vadd.f32 %v606, %v1034
    %v1231 = vadd.f32 %v607, %v1035
    %v1232 = vadd.f32 %v608, %v1036
    %v1233 = vadd.f32 %v609, %v1037
    %v1234 = vadd.f32 %v610, %v1038
    %v1235 = vadd.f32 %v611, %v1039
    %v1236 = vadd.f32 %v612, %v1040
    %v1237 = vadd.f32 %v613, %v1041
    %v1238 = vadd.f32 %v614, %v1042
    %v1239 = vadd.f32 %v615, %v1043
    %v1240 = vadd.f32 %v616, %v1044
    %v1241 = vadd.f32 %v617, %v1045
    %v1242 = vadd.f32 %v618, %v1046
    %v1243 = vadd.f32 %v619, %v1047
    %v1244 = vadd.f32 %v620, %v1048
    %v1245 = vadd.f32 %v621, %v1049
    %v1246 = vadd.f32 %v622, %v1050
    %v1247 = vadd.f32 %v623, %v1051
    %v1248 = vadd.f32 %v624, %v1052
    %v1249 = vadd.f32 %v625, %v1053
    %v1250 = vadd.f32 %v626, %v1054
    %v1251 = vadd.f32 %v627, %v1055
    %v1252 = vadd.f32 %v628, %v1056
    %v1253 = vadd.f32 %v629, %v1057
    %v1254 = vadd.f32 %v630, %v1058
    %v1255 = vadd.f32 %v631, %v1059
    %v1256 = vadd.f32 %v632, %v1060
    %v1257 = vadd.f32 %v633, %v1061
    %v1258 = vadd.f32 %v634, %v1062
    %v1259 = vadd.f32 %v635, %v1063
    %1260 = vset.pattern.permute.xlu0 2
    %1261 = vperm.xlu0 %1260, %v108
    %v1262 = vpop.permute.xlu0 %1261
    %1264 = vset.pattern.permute.xlu0 2
    %1265 = vperm.xlu0 %1264, %v109
    %v1266 = vpop.permute.xlu0 %1265
    %1268 = vset.pattern.permute.xlu0 2
    %1269 = vperm.xlu0 %1268, %v110
    %v1270 = vpop.permute.xlu0 %1269
    %1272 = vset.pattern.permute.xlu0 2
    %1273 = vperm.xlu0 %1272, %v111
    %v1274 = vpop.permute.xlu0 %1273
    %1276 = vset.pattern.permute.xlu0 2
    %1277 = vperm.xlu0 %1276, %v112
    %v1278 = vpop.permute.xlu0 %1277
    %1280 = vset.pattern.permute.xlu0 2
    %1281 = vperm.xlu0 %1280, %v113
    %v1282 = vpop.permute.xlu0 %1281
    %1284 = vset.pattern.permute.xlu0 2
    %1285 = vperm.xlu0 %1284, %v114
    %v1286 = vpop.permute.xlu0 %1285
    %1288 = vset.pattern.permute.xlu0 2
    %1289 = vperm.xlu0 %1288, %v115
    %v1290 = vpop.permute.xlu0 %1289
    %1292 = vset.pattern.permute.xlu0 2
    %1293 = vperm.xlu0 %1292, %v116
    %v1294 = vpop.permute.xlu0 %1293
    %1296 = vset.pattern.permute.xlu0 2
    %1297 = vperm.xlu0 %1296, %v117
    %v1298 = vpop.permute.xlu0 %1297
    %1300 = vset.pattern.permute.xlu0 2
    %1301 = vperm.xlu0 %1300, %v118
    %v1302 = vpop.permute.xlu0 %1301
    %1304 = vset.pattern.permute.xlu0 2
    %1305 = vperm.xlu0 %1304, %v119
    %v1306 = vpop.permute.xlu0 %1305
    %1308 = vset.pattern.permute.xlu0 2
    %1309 = vperm.xlu0 %1308, %v120
    %v1310 = vpop.permute.xlu0 %1309
    %1312 = vset.pattern.permute.xlu0 2
    %1313 = vperm.xlu0 %1312, %v121
    %v1314 = vpop.permute.xlu0 %1313
    %1316 = vset.pattern.permute.xlu0 2
    %1317 = vperm.xlu0 %1316, %v122
    %v1318 = vpop.permute.xlu0 %1317
    %1320 = vset.pattern.permute.xlu0 2
    %1321 = vperm.xlu0 %1320, %v123
    %v1322 = vpop.permute.xlu0 %1321
    %1324 = vset.pattern.permute.xlu0 2
    %1325 = vperm.xlu0 %1324, %v124
    %v1326 = vpop.permute.xlu0 %1325
    %1328 = vset.pattern.permute.xlu0 2
    %1329 = vperm.xlu0 %1328, %v125
    %v1330 = vpop.permute.xlu0 %1329
    %1332 = vset.pattern.permute.xlu0 2
    %1333 = vperm.xlu0 %1332, %v126
    %v1334 = vpop.permute.xlu0 %1333
    %1336 = vset.pattern.permute.xlu0 2
    %1337 = vperm.xlu0 %1336, %v127
    %v1338 = vpop.permute.xlu0 %1337
    %1340 = vset.pattern.permute.xlu0 2
    %1341 = vperm.xlu0 %1340, %v128
    %v1342 = vpop.permute.xlu0 %1341
    %1344 = vset.pattern.permute.xlu0 2
    %1345 = vperm.xlu0 %1344, %v129
    %v1346 = vpop.permute.xlu0 %1345
    %1348 = vset.pattern.permute.xlu0 2
    %1349 = vperm.xlu0 %1348, %v130
    %v1350 = vpop.permute.xlu0 %1349
    %1352 = vset.pattern.permute.xlu0 2
    %1353 = vperm.xlu0 %1352, %v131
    %v1354 = vpop.permute.xlu0 %1353
    %1356 = vset.pattern.permute.xlu0 2
    %1357 = vperm.xlu0 %1356, %v132
    %v1358 = vpop.permute.xlu0 %1357
    %1360 = vset.pattern.permute.xlu0 2
    %1361 = vperm.xlu0 %1360, %v133
    %v1362 = vpop.permute.xlu0 %1361
    %1364 = vset.pattern.permute.xlu0 2
    %1365 = vperm.xlu0 %1364, %v134
    %v1366 = vpop.permute.xlu0 %1365
    %1368 = vset.pattern.permute.xlu0 2
    %1369 = vperm.xlu0 %1368, %v135
    %v1370 = vpop.permute.xlu0 %1369
    %1372 = vset.pattern.permute.xlu0 2
    %1373 = vperm.xlu0 %1372, %v136
    %v1374 = vpop.permute.xlu0 %1373
    %1376 = vset.pattern.permute.xlu0 2
    %1377 = vperm.xlu0 %1376, %v137
    %v1378 = vpop.permute.xlu0 %1377
    %1380 = vset.pattern.permute.xlu0 2
    %1381 = vperm.xlu0 %1380, %v138
    %v1382 = vpop.permute.xlu0 %1381
    %1384 = vset.pattern.permute.xlu0 2
    %1385 = vperm.xlu0 %1384, %v139
    %v1386 = vpop.permute.xlu0 %1385
    %1388 = vset.pattern.permute.xlu0 2
    %1389 = vperm.xlu0 %1388, %v140
    %v1390 = vpop.permute.xlu0 %1389
    %1392 = vset.pattern.permute.xlu0 2
    %1393 = vperm.xlu0 %1392, %v141
    %v1394 = vpop.permute.xlu0 %1393
    %1396 = vset.pattern.permute.xlu0 2
    %1397 = vperm.xlu0 %1396, %v142
    %v1398 = vpop.permute.xlu0 %1397
    %1400 = vset.pattern.permute.xlu0 2
    %1401 = vperm.xlu0 %1400, %v143
    %v1402 = vpop.permute.xlu0 %1401
    %1404 = vset.pattern.permute.xlu0 2
    %1405 = vperm.xlu0 %1404, %v144
    %v1406 = vpop.permute.xlu0 %1405
    %1408 = vset.pattern.permute.xlu0 2
    %1409 = vperm.xlu0 %1408, %v145
    %v1410 = vpop.permute.xlu0 %1409
    %1412 = vset.pattern.permute.xlu0 2
    %1413 = vperm.xlu0 %1412, %v146
    %v1414 = vpop.permute.xlu0 %1413
    %1416 = vset.pattern.permute.xlu0 2
    %1417 = vperm.xlu0 %1416, %v147
    %v1418 = vpop.permute.xlu0 %1417
    %1420 = vset.pattern.permute.xlu0 2
    %1421 = vperm.xlu0 %1420, %v148
    %v1422 = vpop.permute.xlu0 %1421
    %1424 = vset.pattern.permute.xlu0 2
    %1425 = vperm.xlu0 %1424, %v149
    %v1426 = vpop.permute.xlu0 %1425
    %1428 = vset.pattern.permute.xlu0 2
    %1429 = vperm.xlu0 %1428, %v150
    %v1430 = vpop.permute.xlu0 %1429
    %1432 = vset.pattern.permute.xlu0 2
    %1433 = vperm.xlu0 %1432, %v151
    %v1434 = vpop.permute.xlu0 %1433
    %1436 = vset.pattern.permute.xlu0 2
    %1437 = vperm.xlu0 %1436, %v152
    %v1438 = vpop.permute.xlu0 %1437
    %1440 = vset.pattern.permute.xlu0 2
    %1441 = vperm.xlu0 %1440, %v153
    %v1442 = vpop.permute.xlu0 %1441
    %1444 = vset.pattern.permute.xlu0 2
    %1445 = vperm.xlu0 %1444, %v154
    %v1446 = vpop.permute.xlu0 %1445
    %1448 = vset.pattern.permute.xlu0 2
    %1449 = vperm.xlu0 %1448, %v155
    %v1450 = vpop.permute.xlu0 %1449
    %1452 = vset.pattern.permute.xlu0 2
    %1453 = vperm.xlu0 %1452, %v156
    %v1454 = vpop.permute.xlu0 %1453
    %v1456 = vlaneseq
    %v1457 = vshrl.u32 %v1456, 7
    %v1458 = vsub.s32 2, %v1457
    %v1459 = vrot.slane %v105, %v1458
    %v1460 = vlaneseq
    %v1461 = vshrl.u32 %v1460, 7
    %v1462 = vsub.s32 6, %v1461
    %v1463 = vrot.slane %v105, %v1462
    %v1464 = vlaneseq
    %v1465 = vshrl.u32 %v1464, 7
    %v1466 = vsub.s32 2, %v1465
    %v1467 = vrot.slane %v106, %v1466
    %v1468 = vlaneseq
    %v1469 = vshrl.u32 %v1468, 7
    %v1470 = vsub.s32 6, %v1469
    %v1471 = vrot.slane %v106, %v1470
    %v1476 = vlaneseq
    %v1477 = vshrl.u32 %v1476, 7
    %v1478 = vsub.s32 2, %v1477
    %v1479 = vrot.slane %v1459, %v1478
    %v1480 = vlaneseq
    %v1481 = vshrl.u32 %v1480, 7
    %v1482 = vsub.s32 2, %v1481
    %v1483 = vrot.slane %v1463, %v1482
    %v1484 = vlaneseq
    %v1485 = vshrl.u32 %v1484, 7
    %v1486 = vsub.s32 2, %v1485
    %v1487 = vrot.slane %v1467, %v1486
    %v1488 = vlaneseq
    %v1489 = vshrl.u32 %v1488, 7
    %v1490 = vsub.s32 2, %v1489
    %v1491 = vrot.slane %v1471, %v1490
    %v1492 = vmul.f32 %v1262, %v1479
    %v1493 = vmul.f32 %v1262, %v1483
    %v1494 = vmul.f32 %v1262, %v1487
    %v1495 = vmul.f32 %v1262, %v1491
    %v1496 = vmul.f32 %v1266, %v1479
    %v1497 = vmul.f32 %v1266, %v1483
    %v1498 = vmul.f32 %v1266, %v1487
    %v1499 = vmul.f32 %v1266, %v1491
    %v1500 = vmul.f32 %v1270, %v1479
    %v1501 = vmul.f32 %v1270, %v1483
    %v1502 = vmul.f32 %v1270, %v1487
    %v1503 = vmul.f32 %v1270, %v1491
    %v1504 = vmul.f32 %v1274, %v1479
    %v1505 = vmul.f32 %v1274, %v1483
    %v1506 = vmul.f32 %v1274, %v1487
    %v1507 = vmul.f32 %v1274, %v1491
    %v1508 = vmul.f32 %v1278, %v1479
    %v1509 = vmul.f32 %v1278, %v1483
    %v1510 = vmul.f32 %v1278, %v1487
    %v1511 = vmul.f32 %v1278, %v1491
    %v1512 = vmul.f32 %v1282, %v1479
    %v1513 = vmul.f32 %v1282, %v1483
    %v1514 = vmul.f32 %v1282, %v1487
    %v1515 = vmul.f32 %v1282, %v1491
    %v1516 = vmul.f32 %v1286, %v1479
    %v1517 = vmul.f32 %v1286, %v1483
    %v1518 = vmul.f32 %v1286, %v1487
    %v1519 = vmul.f32 %v1286, %v1491
    %v1520 = vmul.f32 %v1290, %v1479
    %v1521 = vmul.f32 %v1290, %v1483
    %v1522 = vmul.f32 %v1290, %v1487
    %v1523 = vmul.f32 %v1290, %v1491
    %v1524 = vmul.f32 %v1294, %v1479
    %v1525 = vmul.f32 %v1294, %v1483
    %v1526 = vmul.f32 %v1294, %v1487
    %v1527 = vmul.f32 %v1294, %v1491
    %v1528 = vmul.f32 %v1298, %v1479
    %v1529 = vmul.f32 %v1298, %v1483
    %v1530 = vmul.f32 %v1298, %v1487
    %v1531 = vmul.f32 %v1298, %v1491
    %v1532 = vmul.f32 %v1302, %v1479
    %v1533 = vmul.f32 %v1302, %v1483
    %v1534 = vmul.f32 %v1302, %v1487
    %v1535 = vmul.f32 %v1302, %v1491
    %v1536 = vmul.f32 %v1306, %v1479
    %v1537 = vmul.f32 %v1306, %v1483
    %v1538 = vmul.f32 %v1306, %v1487
    %v1539 = vmul.f32 %v1306, %v1491
    %v1540 = vmul.f32 %v1310, %v1479
    %v1541 = vmul.f32 %v1310, %v1483
    %v1542 = vmul.f32 %v1310, %v1487
    %v1543 = vmul.f32 %v1310, %v1491
    %v1544 = vmul.f32 %v1314, %v1479
    %v1545 = vmul.f32 %v1314, %v1483
    %v1546 = vmul.f32 %v1314, %v1487
    %v1547 = vmul.f32 %v1314, %v1491
    %v1548 = vmul.f32 %v1318, %v1479
    %v1549 = vmul.f32 %v1318, %v1483
    %v1550 = vmul.f32 %v1318, %v1487
    %v1551 = vmul.f32 %v1318, %v1491
    %v1552 = vmul.f32 %v1322, %v1479
    %v1553 = vmul.f32 %v1322, %v1483
    %v1554 = vmul.f32 %v1322, %v1487
    %v1555 = vmul.f32 %v1322, %v1491
    %v1556 = vmul.f32 %v1326, %v1479
    %v1557 = vmul.f32 %v1326, %v1483
    %v1558 = vmul.f32 %v1326, %v1487
    %v1559 = vmul.f32 %v1326, %v1491
    %v1560 = vmul.f32 %v1330, %v1479
    %v1561 = vmul.f32 %v1330, %v1483
    %v1562 = vmul.f32 %v1330, %v1487
    %v1563 = vmul.f32 %v1330, %v1491
    %v1564 = vmul.f32 %v1334, %v1479
    %v1565 = vmul.f32 %v1334, %v1483
    %v1566 = vmul.f32 %v1334, %v1487
    %v1567 = vmul.f32 %v1334, %v1491
    %v1568 = vmul.f32 %v1338, %v1479
    %v1569 = vmul.f32 %v1338, %v1483
    %v1570 = vmul.f32 %v1338, %v1487
    %v1571 = vmul.f32 %v1338, %v1491
    %v1572 = vmul.f32 %v1342, %v1479
    %v1573 = vmul.f32 %v1342, %v1483
    %v1574 = vmul.f32 %v1342, %v1487
    %v1575 = vmul.f32 %v1342, %v1491
    %v1576 = vmul.f32 %v1346, %v1479
    %v1577 = vmul.f32 %v1346, %v1483
    %v1578 = vmul.f32 %v1346, %v1487
    %v1579 = vmul.f32 %v1346, %v1491
    %v1580 = vmul.f32 %v1350, %v1479
    %v1581 = vmul.f32 %v1350, %v1483
    %v1582 = vmul.f32 %v1350, %v1487
    %v1583 = vmul.f32 %v1350, %v1491
    %v1584 = vmul.f32 %v1354, %v1479
    %v1585 = vmul.f32 %v1354, %v1483
    %v1586 = vmul.f32 %v1354, %v1487
    %v1587 = vmul.f32 %v1354, %v1491
    %v1588 = vmul.f32 %v1358, %v1479
    %v1589 = vmul.f32 %v1358, %v1483
    %v1590 = vmul.f32 %v1358, %v1487
    %v1591 = vmul.f32 %v1358, %v1491
    %v1592 = vmul.f32 %v1362, %v1479
    %v1593 = vmul.f32 %v1362, %v1483
    %v1594 = vmul.f32 %v1362, %v1487
    %v1595 = vmul.f32 %v1362, %v1491
    %v1596 = vmul.f32 %v1366, %v1479
    %v1597 = vmul.f32 %v1366, %v1483
    %v1598 = vmul.f32 %v1366, %v1487
    %v1599 = vmul.f32 %v1366, %v1491
    %v1600 = vmul.f32 %v1370, %v1479
    %v1601 = vmul.f32 %v1370, %v1483
    %v1602 = vmul.f32 %v1370, %v1487
    %v1603 = vmul.f32 %v1370, %v1491
    %v1604 = vmul.f32 %v1374, %v1479
    %v1605 = vmul.f32 %v1374, %v1483
    %v1606 = vmul.f32 %v1374, %v1487
    %v1607 = vmul.f32 %v1374, %v1491
    %v1608 = vmul.f32 %v1378, %v1479
    %v1609 = vmul.f32 %v1378, %v1483
    %v1610 = vmul.f32 %v1378, %v1487
    %v1611 = vmul.f32 %v1378, %v1491
    %v1612 = vmul.f32 %v1382, %v1479
    %v1613 = vmul.f32 %v1382, %v1483
    %v1614 = vmul.f32 %v1382, %v1487
    %v1615 = vmul.f32 %v1382, %v1491
    %v1616 = vmul.f32 %v1386, %v1479
    %v1617 = vmul.f32 %v1386, %v1483
    %v1618 = vmul.f32 %v1386, %v1487
    %v1619 = vmul.f32 %v1386, %v1491
    %v1620 = vmul.f32 %v1390, %v1479
    %v1621 = vmul.f32 %v1390, %v1483
    %v1622 = vmul.f32 %v1390, %v1487
    %v1623 = vmul.f32 %v1390, %v1491
    %v1624 = vmul.f32 %v1394, %v1479
    %v1625 = vmul.f32 %v1394, %v1483
    %v1626 = vmul.f32 %v1394, %v1487
    %v1627 = vmul.f32 %v1394, %v1491
    %v1628 = vmul.f32 %v1398, %v1479
    %v1629 = vmul.f32 %v1398, %v1483
    %v1630 = vmul.f32 %v1398, %v1487
    %v1631 = vmul.f32 %v1398, %v1491
    %v1632 = vmul.f32 %v1402, %v1479
    %v1633 = vmul.f32 %v1402, %v1483
    %v1634 = vmul.f32 %v1402, %v1487
    %v1635 = vmul.f32 %v1402, %v1491
    %v1636 = vmul.f32 %v1406, %v1479
    %v1637 = vmul.f32 %v1406, %v1483
    %v1638 = vmul.f32 %v1406, %v1487
    %v1639 = vmul.f32 %v1406, %v1491
    %v1640 = vmul.f32 %v1410, %v1479
    %v1641 = vmul.f32 %v1410, %v1483
    %v1642 = vmul.f32 %v1410, %v1487
    %v1643 = vmul.f32 %v1410, %v1491
    %v1644 = vmul.f32 %v1414, %v1479
    %v1645 = vmul.f32 %v1414, %v1483
    %v1646 = vmul.f32 %v1414, %v1487
    %v1647 = vmul.f32 %v1414, %v1491
    %v1648 = vmul.f32 %v1418, %v1479
    %v1649 = vmul.f32 %v1418, %v1483
    %v1650 = vmul.f32 %v1418, %v1487
    %v1651 = vmul.f32 %v1418, %v1491
    %v1652 = vmul.f32 %v1422, %v1479
    %v1653 = vmul.f32 %v1422, %v1483
    %v1654 = vmul.f32 %v1422, %v1487
    %v1655 = vmul.f32 %v1422, %v1491
    %v1656 = vmul.f32 %v1426, %v1479
    %v1657 = vmul.f32 %v1426, %v1483
    %v1658 = vmul.f32 %v1426, %v1487
    %v1659 = vmul.f32 %v1426, %v1491
    %v1660 = vmul.f32 %v1430, %v1479
    %v1661 = vmul.f32 %v1430, %v1483
    %v1662 = vmul.f32 %v1430, %v1487
    %v1663 = vmul.f32 %v1430, %v1491
    %v1664 = vmul.f32 %v1434, %v1479
    %v1665 = vmul.f32 %v1434, %v1483
    %v1666 = vmul.f32 %v1434, %v1487
    %v1667 = vmul.f32 %v1434, %v1491
    %v1668 = vmul.f32 %v1438, %v1479
    %v1669 = vmul.f32 %v1438, %v1483
    %v1670 = vmul.f32 %v1438, %v1487
    %v1671 = vmul.f32 %v1438, %v1491
    %v1672 = vmul.f32 %v1442, %v1479
    %v1673 = vmul.f32 %v1442, %v1483
    %v1674 = vmul.f32 %v1442, %v1487
    %v1675 = vmul.f32 %v1442, %v1491
    %v1676 = vmul.f32 %v1446, %v1479
    %v1677 = vmul.f32 %v1446, %v1483
    %v1678 = vmul.f32 %v1446, %v1487
    %v1679 = vmul.f32 %v1446, %v1491
    %v1680 = vmul.f32 %v1450, %v1479
    %v1681 = vmul.f32 %v1450, %v1483
    %v1682 = vmul.f32 %v1450, %v1487
    %v1683 = vmul.f32 %v1450, %v1491
    %v1684 = vmul.f32 %v1454, %v1479
    %v1685 = vmul.f32 %v1454, %v1483
    %v1686 = vmul.f32 %v1454, %v1487
    %v1687 = vmul.f32 %v1454, %v1491
    %v1688 = vadd.f32 %v1064, %v1492
    %v1689 = vadd.f32 %v1065, %v1493
    %v1690 = vadd.f32 %v1066, %v1494
    %v1691 = vadd.f32 %v1067, %v1495
    %v1692 = vadd.f32 %v1068, %v1496
    %v1693 = vadd.f32 %v1069, %v1497
    %v1694 = vadd.f32 %v1070, %v1498
    %v1695 = vadd.f32 %v1071, %v1499
    %v1696 = vadd.f32 %v1072, %v1500
    %v1697 = vadd.f32 %v1073, %v1501
    %v1698 = vadd.f32 %v1074, %v1502
    %v1699 = vadd.f32 %v1075, %v1503
    %v1700 = vadd.f32 %v1076, %v1504
    %v1701 = vadd.f32 %v1077, %v1505
    %v1702 = vadd.f32 %v1078, %v1506
    %v1703 = vadd.f32 %v1079, %v1507
    %v1704 = vadd.f32 %v1080, %v1508
    %v1705 = vadd.f32 %v1081, %v1509
    %v1706 = vadd.f32 %v1082, %v1510
    %v1707 = vadd.f32 %v1083, %v1511
    %v1708 = vadd.f32 %v1084, %v1512
    %v1709 = vadd.f32 %v1085, %v1513
    %v1710 = vadd.f32 %v1086, %v1514
    %v1711 = vadd.f32 %v1087, %v1515
    %v1712 = vadd.f32 %v1088, %v1516
    %v1713 = vadd.f32 %v1089, %v1517
    %v1714 = vadd.f32 %v1090, %v1518
    %v1715 = vadd.f32 %v1091, %v1519
    %v1716 = vadd.f32 %v1092, %v1520
    %v1717 = vadd.f32 %v1093, %v1521
    %v1718 = vadd.f32 %v1094, %v1522
    %v1719 = vadd.f32 %v1095, %v1523
    %v1720 = vadd.f32 %v1096, %v1524
    %v1721 = vadd.f32 %v1097, %v1525
    %v1722 = vadd.f32 %v1098, %v1526
    %v1723 = vadd.f32 %v1099, %v1527
    %v1724 = vadd.f32 %v1100, %v1528
    %v1725 = vadd.f32 %v1101, %v1529
    %v1726 = vadd.f32 %v1102, %v1530
    %v1727 = vadd.f32 %v1103, %v1531
    %v1728 = vadd.f32 %v1104, %v1532
    %v1729 = vadd.f32 %v1105, %v1533
    %v1730 = vadd.f32 %v1106, %v1534
    %v1731 = vadd.f32 %v1107, %v1535
    %v1732 = vadd.f32 %v1108, %v1536
    %v1733 = vadd.f32 %v1109, %v1537
    %v1734 = vadd.f32 %v1110, %v1538
    %v1735 = vadd.f32 %v1111, %v1539
    %v1736 = vadd.f32 %v1112, %v1540
    %v1737 = vadd.f32 %v1113, %v1541
    %v1738 = vadd.f32 %v1114, %v1542
    %v1739 = vadd.f32 %v1115, %v1543
    %v1740 = vadd.f32 %v1116, %v1544
    %v1741 = vadd.f32 %v1117, %v1545
    %v1742 = vadd.f32 %v1118, %v1546
    %v1743 = vadd.f32 %v1119, %v1547
    %v1744 = vadd.f32 %v1120, %v1548
    %v1745 = vadd.f32 %v1121, %v1549
    %v1746 = vadd.f32 %v1122, %v1550
    %v1747 = vadd.f32 %v1123, %v1551
    %v1748 = vadd.f32 %v1124, %v1552
    %v1749 = vadd.f32 %v1125, %v1553
    %v1750 = vadd.f32 %v1126, %v1554
    %v1751 = vadd.f32 %v1127, %v1555
    %v1752 = vadd.f32 %v1128, %v1556
    %v1753 = vadd.f32 %v1129, %v1557
    %v1754 = vadd.f32 %v1130, %v1558
    %v1755 = vadd.f32 %v1131, %v1559
    %v1756 = vadd.f32 %v1132, %v1560
    %v1757 = vadd.f32 %v1133, %v1561
    %v1758 = vadd.f32 %v1134, %v1562
    %v1759 = vadd.f32 %v1135, %v1563
    %v1760 = vadd.f32 %v1136, %v1564
    %v1761 = vadd.f32 %v1137, %v1565
    %v1762 = vadd.f32 %v1138, %v1566
    %v1763 = vadd.f32 %v1139, %v1567
    %v1764 = vadd.f32 %v1140, %v1568
    %v1765 = vadd.f32 %v1141, %v1569
    %v1766 = vadd.f32 %v1142, %v1570
    %v1767 = vadd.f32 %v1143, %v1571
    %v1768 = vadd.f32 %v1144, %v1572
    %v1769 = vadd.f32 %v1145, %v1573
    %v1770 = vadd.f32 %v1146, %v1574
    %v1771 = vadd.f32 %v1147, %v1575
    %v1772 = vadd.f32 %v1148, %v1576
    %v1773 = vadd.f32 %v1149, %v1577
    %v1774 = vadd.f32 %v1150, %v1578
    %v1775 = vadd.f32 %v1151, %v1579
    %v1776 = vadd.f32 %v1152, %v1580
    %v1777 = vadd.f32 %v1153, %v1581
    %v1778 = vadd.f32 %v1154, %v1582
    %v1779 = vadd.f32 %v1155, %v1583
    %v1780 = vadd.f32 %v1156, %v1584
    %v1781 = vadd.f32 %v1157, %v1585
    %v1782 = vadd.f32 %v1158, %v1586
    %v1783 = vadd.f32 %v1159, %v1587
    %v1784 = vadd.f32 %v1160, %v1588
    %v1785 = vadd.f32 %v1161, %v1589
    %v1786 = vadd.f32 %v1162, %v1590
    %v1787 = vadd.f32 %v1163, %v1591
    %v1788 = vadd.f32 %v1164, %v1592
    %v1789 = vadd.f32 %v1165, %v1593
    %v1790 = vadd.f32 %v1166, %v1594
    %v1791 = vadd.f32 %v1167, %v1595
    %v1792 = vadd.f32 %v1168, %v1596
    %v1793 = vadd.f32 %v1169, %v1597
    %v1794 = vadd.f32 %v1170, %v1598
    %v1795 = vadd.f32 %v1171, %v1599
    %v1796 = vadd.f32 %v1172, %v1600
    %v1797 = vadd.f32 %v1173, %v1601
    %v1798 = vadd.f32 %v1174, %v1602
    %v1799 = vadd.f32 %v1175, %v1603
    %v1800 = vadd.f32 %v1176, %v1604
    %v1801 = vadd.f32 %v1177, %v1605
    %v1802 = vadd.f32 %v1178, %v1606
    %v1803 = vadd.f32 %v1179, %v1607
    %v1804 = vadd.f32 %v1180, %v1608
    %v1805 = vadd.f32 %v1181, %v1609
    %v1806 = vadd.f32 %v1182, %v1610
    %v1807 = vadd.f32 %v1183, %v1611
    %v1808 = vadd.f32 %v1184, %v1612
    %v1809 = vadd.f32 %v1185, %v1613
    %v1810 = vadd.f32 %v1186, %v1614
    %v1811 = vadd.f32 %v1187, %v1615
    %v1812 = vadd.f32 %v1188, %v1616
    %v1813 = vadd.f32 %v1189, %v1617
    %v1814 = vadd.f32 %v1190, %v1618
    %v1815 = vadd.f32 %v1191, %v1619
    %v1816 = vadd.f32 %v1192, %v1620
    %v1817 = vadd.f32 %v1193, %v1621
    %v1818 = vadd.f32 %v1194, %v1622
    %v1819 = vadd.f32 %v1195, %v1623
    %v1820 = vadd.f32 %v1196, %v1624
    %v1821 = vadd.f32 %v1197, %v1625
    %v1822 = vadd.f32 %v1198, %v1626
    %v1823 = vadd.f32 %v1199, %v1627
    %v1824 = vadd.f32 %v1200, %v1628
    %v1825 = vadd.f32 %v1201, %v1629
    %v1826 = vadd.f32 %v1202, %v1630
    %v1827 = vadd.f32 %v1203, %v1631
    %v1828 = vadd.f32 %v1204, %v1632
    %v1829 = vadd.f32 %v1205, %v1633
    %v1830 = vadd.f32 %v1206, %v1634
    %v1831 = vadd.f32 %v1207, %v1635
    %v1832 = vadd.f32 %v1208, %v1636
    %v1833 = vadd.f32 %v1209, %v1637
    %v1834 = vadd.f32 %v1210, %v1638
    %v1835 = vadd.f32 %v1211, %v1639
    %v1836 = vadd.f32 %v1212, %v1640
    %v1837 = vadd.f32 %v1213, %v1641
    %v1838 = vadd.f32 %v1214, %v1642
    %v1839 = vadd.f32 %v1215, %v1643
    %v1840 = vadd.f32 %v1216, %v1644
    %v1841 = vadd.f32 %v1217, %v1645
    %v1842 = vadd.f32 %v1218, %v1646
    %v1843 = vadd.f32 %v1219, %v1647
    %v1844 = vadd.f32 %v1220, %v1648
    %v1845 = vadd.f32 %v1221, %v1649
    %v1846 = vadd.f32 %v1222, %v1650
    %v1847 = vadd.f32 %v1223, %v1651
    %v1848 = vadd.f32 %v1224, %v1652
    %v1849 = vadd.f32 %v1225, %v1653
    %v1850 = vadd.f32 %v1226, %v1654
    %v1851 = vadd.f32 %v1227, %v1655
    %v1852 = vadd.f32 %v1228, %v1656
    %v1853 = vadd.f32 %v1229, %v1657
    %v1854 = vadd.f32 %v1230, %v1658
    %v1855 = vadd.f32 %v1231, %v1659
    %v1856 = vadd.f32 %v1232, %v1660
    %v1857 = vadd.f32 %v1233, %v1661
    %v1858 = vadd.f32 %v1234, %v1662
    %v1859 = vadd.f32 %v1235, %v1663
    %v1860 = vadd.f32 %v1236, %v1664
    %v1861 = vadd.f32 %v1237, %v1665
    %v1862 = vadd.f32 %v1238, %v1666
    %v1863 = vadd.f32 %v1239, %v1667
    %v1864 = vadd.f32 %v1240, %v1668
    %v1865 = vadd.f32 %v1241, %v1669
    %v1866 = vadd.f32 %v1242, %v1670
    %v1867 = vadd.f32 %v1243, %v1671
    %v1868 = vadd.f32 %v1244, %v1672
    %v1869 = vadd.f32 %v1245, %v1673
    %v1870 = vadd.f32 %v1246, %v1674
    %v1871 = vadd.f32 %v1247, %v1675
    %v1872 = vadd.f32 %v1248, %v1676
    %v1873 = vadd.f32 %v1249, %v1677
    %v1874 = vadd.f32 %v1250, %v1678
    %v1875 = vadd.f32 %v1251, %v1679
    %v1876 = vadd.f32 %v1252, %v1680
    %v1877 = vadd.f32 %v1253, %v1681
    %v1878 = vadd.f32 %v1254, %v1682
    %v1879 = vadd.f32 %v1255, %v1683
    %v1880 = vadd.f32 %v1256, %v1684
    %v1881 = vadd.f32 %v1257, %v1685
    %v1882 = vadd.f32 %v1258, %v1686
    %v1883 = vadd.f32 %v1259, %v1687
    %v1885 = vlaneseq
    %v1886 = vshrl.u32 %v1885, 7
    %v1887 = vsub.s32 0, %v1886
    %v1888 = vrot.slane %v107, %v1887
    %v1889 = vlaneseq
    %v1890 = vshrl.u32 %v1889, 7
    %v1891 = vsub.s32 1, %v1890
    %v1892 = vrot.slane %v107, %v1891
    %v1893 = vlaneseq
    %v1894 = vshrl.u32 %v1893, 7
    %v1895 = vsub.s32 2, %v1894
    %v1896 = vrot.slane %v107, %v1895
    %v1897 = vlaneseq
    %v1898 = vshrl.u32 %v1897, 7
    %v1899 = vsub.s32 3, %v1898
    %v1900 = vrot.slane %v107, %v1899
    %v1905 = vadd.f32 %v1688, %v1888
    %v1906 = vadd.f32 %v1689, %v1892
    %v1907 = vadd.f32 %v1690, %v1896
    %v1908 = vadd.f32 %v1691, %v1900
    %v1909 = vadd.f32 %v1692, %v1888
    %v1910 = vadd.f32 %v1693, %v1892
    %v1911 = vadd.f32 %v1694, %v1896
    %v1912 = vadd.f32 %v1695, %v1900
    %v1913 = vadd.f32 %v1696, %v1888
    %v1914 = vadd.f32 %v1697, %v1892
    %v1915 = vadd.f32 %v1698, %v1896
    %v1916 = vadd.f32 %v1699, %v1900
    %v1917 = vadd.f32 %v1700, %v1888
    %v1918 = vadd.f32 %v1701, %v1892
    %v1919 = vadd.f32 %v1702, %v1896
    %v1920 = vadd.f32 %v1703, %v1900
    %v1921 = vadd.f32 %v1704, %v1888
    %v1922 = vadd.f32 %v1705, %v1892
    %v1923 = vadd.f32 %v1706, %v1896
    %v1924 = vadd.f32 %v1707, %v1900
    %v1925 = vadd.f32 %v1708, %v1888
    %v1926 = vadd.f32 %v1709, %v1892
    %v1927 = vadd.f32 %v1710, %v1896
    %v1928 = vadd.f32 %v1711, %v1900
    %v1929 = vadd.f32 %v1712, %v1888
    %v1930 = vadd.f32 %v1713, %v1892
    %v1931 = vadd.f32 %v1714, %v1896
    %v1932 = vadd.f32 %v1715, %v1900
    %v1933 = vadd.f32 %v1716, %v1888
    %v1934 = vadd.f32 %v1717, %v1892
    %v1935 = vadd.f32 %v1718, %v1896
    %v1936 = vadd.f32 %v1719, %v1900
    %v1937 = vadd.f32 %v1720, %v1888
    %v1938 = vadd.f32 %v1721, %v1892
    %v1939 = vadd.f32 %v1722, %v1896
    %v1940 = vadd.f32 %v1723, %v1900
    %v1941 = vadd.f32 %v1724, %v1888
    %v1942 = vadd.f32 %v1725, %v1892
    %v1943 = vadd.f32 %v1726, %v1896
    %v1944 = vadd.f32 %v1727, %v1900
    %v1945 = vadd.f32 %v1728, %v1888
    %v1946 = vadd.f32 %v1729, %v1892
    %v1947 = vadd.f32 %v1730, %v1896
    %v1948 = vadd.f32 %v1731, %v1900
    %v1949 = vadd.f32 %v1732, %v1888
    %v1950 = vadd.f32 %v1733, %v1892
    %v1951 = vadd.f32 %v1734, %v1896
    %v1952 = vadd.f32 %v1735, %v1900
    %v1953 = vadd.f32 %v1736, %v1888
    %v1954 = vadd.f32 %v1737, %v1892
    %v1955 = vadd.f32 %v1738, %v1896
    %v1956 = vadd.f32 %v1739, %v1900
    %v1957 = vadd.f32 %v1740, %v1888
    %v1958 = vadd.f32 %v1741, %v1892
    %v1959 = vadd.f32 %v1742, %v1896
    %v1960 = vadd.f32 %v1743, %v1900
    %v1961 = vadd.f32 %v1744, %v1888
    %v1962 = vadd.f32 %v1745, %v1892
    %v1963 = vadd.f32 %v1746, %v1896
    %v1964 = vadd.f32 %v1747, %v1900
    %v1965 = vadd.f32 %v1748, %v1888
    %v1966 = vadd.f32 %v1749, %v1892
    %v1967 = vadd.f32 %v1750, %v1896
    %v1968 = vadd.f32 %v1751, %v1900
    %v1969 = vadd.f32 %v1752, %v1888
    %v1970 = vadd.f32 %v1753, %v1892
    %v1971 = vadd.f32 %v1754, %v1896
    %v1972 = vadd.f32 %v1755, %v1900
    %v1973 = vadd.f32 %v1756, %v1888
    %v1974 = vadd.f32 %v1757, %v1892
    %v1975 = vadd.f32 %v1758, %v1896
    %v1976 = vadd.f32 %v1759, %v1900
    %v1977 = vadd.f32 %v1760, %v1888
    %v1978 = vadd.f32 %v1761, %v1892
    %v1979 = vadd.f32 %v1762, %v1896
    %v1980 = vadd.f32 %v1763, %v1900
    %v1981 = vadd.f32 %v1764, %v1888
    %v1982 = vadd.f32 %v1765, %v1892
    %v1983 = vadd.f32 %v1766, %v1896
    %v1984 = vadd.f32 %v1767, %v1900
    %v1985 = vadd.f32 %v1768, %v1888
    %v1986 = vadd.f32 %v1769, %v1892
    %v1987 = vadd.f32 %v1770, %v1896
    %v1988 = vadd.f32 %v1771, %v1900
    %v1989 = vadd.f32 %v1772, %v1888
    %v1990 = vadd.f32 %v1773, %v1892
    %v1991 = vadd.f32 %v1774, %v1896
    %v1992 = vadd.f32 %v1775, %v1900
    %v1993 = vadd.f32 %v1776, %v1888
    %v1994 = vadd.f32 %v1777, %v1892
    %v1995 = vadd.f32 %v1778, %v1896
    %v1996 = vadd.f32 %v1779, %v1900
    %v1997 = vadd.f32 %v1780, %v1888
    %v1998 = vadd.f32 %v1781, %v1892
    %v1999 = vadd.f32 %v1782, %v1896
    %v2000 = vadd.f32 %v1783, %v1900
    %v2001 = vadd.f32 %v1784, %v1888
    %v2002 = vadd.f32 %v1785, %v1892
    %v2003 = vadd.f32 %v1786, %v1896
    %v2004 = vadd.f32 %v1787, %v1900
    %v2005 = vadd.f32 %v1788, %v1888
    %v2006 = vadd.f32 %v1789, %v1892
    %v2007 = vadd.f32 %v1790, %v1896
    %v2008 = vadd.f32 %v1791, %v1900
    %v2009 = vadd.f32 %v1792, %v1888
    %v2010 = vadd.f32 %v1793, %v1892
    %v2011 = vadd.f32 %v1794, %v1896
    %v2012 = vadd.f32 %v1795, %v1900
    %v2013 = vadd.f32 %v1796, %v1888
    %v2014 = vadd.f32 %v1797, %v1892
    %v2015 = vadd.f32 %v1798, %v1896
    %v2016 = vadd.f32 %v1799, %v1900
    %v2017 = vadd.f32 %v1800, %v1888
    %v2018 = vadd.f32 %v1801, %v1892
    %v2019 = vadd.f32 %v1802, %v1896
    %v2020 = vadd.f32 %v1803, %v1900
    %v2021 = vadd.f32 %v1804, %v1888
    %v2022 = vadd.f32 %v1805, %v1892
    %v2023 = vadd.f32 %v1806, %v1896
    %v2024 = vadd.f32 %v1807, %v1900
    %v2025 = vadd.f32 %v1808, %v1888
    %v2026 = vadd.f32 %v1809, %v1892
    %v2027 = vadd.f32 %v1810, %v1896
    %v2028 = vadd.f32 %v1811, %v1900
    %v2029 = vadd.f32 %v1812, %v1888
    %v2030 = vadd.f32 %v1813, %v1892
    %v2031 = vadd.f32 %v1814, %v1896
    %v2032 = vadd.f32 %v1815, %v1900
    %v2033 = vadd.f32 %v1816, %v1888
    %v2034 = vadd.f32 %v1817, %v1892
    %v2035 = vadd.f32 %v1818, %v1896
    %v2036 = vadd.f32 %v1819, %v1900
    %v2037 = vadd.f32 %v1820, %v1888
    %v2038 = vadd.f32 %v1821, %v1892
    %v2039 = vadd.f32 %v1822, %v1896
    %v2040 = vadd.f32 %v1823, %v1900
    %v2041 = vadd.f32 %v1824, %v1888
    %v2042 = vadd.f32 %v1825, %v1892
    %v2043 = vadd.f32 %v1826, %v1896
    %v2044 = vadd.f32 %v1827, %v1900
    %v2045 = vadd.f32 %v1828, %v1888
    %v2046 = vadd.f32 %v1829, %v1892
    %v2047 = vadd.f32 %v1830, %v1896
    %v2048 = vadd.f32 %v1831, %v1900
    %v2049 = vadd.f32 %v1832, %v1888
    %v2050 = vadd.f32 %v1833, %v1892
    %v2051 = vadd.f32 %v1834, %v1896
    %v2052 = vadd.f32 %v1835, %v1900
    %v2053 = vadd.f32 %v1836, %v1888
    %v2054 = vadd.f32 %v1837, %v1892
    %v2055 = vadd.f32 %v1838, %v1896
    %v2056 = vadd.f32 %v1839, %v1900
    %v2057 = vadd.f32 %v1840, %v1888
    %v2058 = vadd.f32 %v1841, %v1892
    %v2059 = vadd.f32 %v1842, %v1896
    %v2060 = vadd.f32 %v1843, %v1900
    %v2061 = vadd.f32 %v1844, %v1888
    %v2062 = vadd.f32 %v1845, %v1892
    %v2063 = vadd.f32 %v1846, %v1896
    %v2064 = vadd.f32 %v1847, %v1900
    %v2065 = vadd.f32 %v1848, %v1888
    %v2066 = vadd.f32 %v1849, %v1892
    %v2067 = vadd.f32 %v1850, %v1896
    %v2068 = vadd.f32 %v1851, %v1900
    %v2069 = vadd.f32 %v1852, %v1888
    %v2070 = vadd.f32 %v1853, %v1892
    %v2071 = vadd.f32 %v1854, %v1896
    %v2072 = vadd.f32 %v1855, %v1900
    %v2073 = vadd.f32 %v1856, %v1888
    %v2074 = vadd.f32 %v1857, %v1892
    %v2075 = vadd.f32 %v1858, %v1896
    %v2076 = vadd.f32 %v1859, %v1900
    %v2077 = vadd.f32 %v1860, %v1888
    %v2078 = vadd.f32 %v1861, %v1892
    %v2079 = vadd.f32 %v1862, %v1896
    %v2080 = vadd.f32 %v1863, %v1900
    %v2081 = vadd.f32 %v1864, %v1888
    %v2082 = vadd.f32 %v1865, %v1892
    %v2083 = vadd.f32 %v1866, %v1896
    %v2084 = vadd.f32 %v1867, %v1900
    %v2085 = vadd.f32 %v1868, %v1888
    %v2086 = vadd.f32 %v1869, %v1892
    %v2087 = vadd.f32 %v1870, %v1896
    %v2088 = vadd.f32 %v1871, %v1900
    %v2089 = vadd.f32 %v1872, %v1888
    %v2090 = vadd.f32 %v1873, %v1892
    %v2091 = vadd.f32 %v1874, %v1896
    %v2092 = vadd.f32 %v1875, %v1900
    %v2093 = vadd.f32 %v1876, %v1888
    %v2094 = vadd.f32 %v1877, %v1892
    %v2095 = vadd.f32 %v1878, %v1896
    %v2096 = vadd.f32 %v1879, %v1900
    %v2097 = vadd.f32 %v1880, %v1888
    %v2098 = vadd.f32 %v1881, %v1892
    %v2099 = vadd.f32 %v1882, %v1896
    %v2100 = vadd.f32 %v1883, %v1900
    %v2101 = vld [vmem:[%s1] sm:$0xff]
    %2103 = vset.pattern.permute.xlu0 0
    %2104 = vperm.xlu0 %2103, %v2101
    %v2105 = vpop.permute.xlu0 %2104
    %v2107 = vmul.f32 %v2105, %v427
    %v2108 = vmul.f32 %v2105, %v431
    %v2109 = vmul.f32 %v2105, %v435
    %v2110 = vmul.f32 %v2105, %v439
    %2111 = vset.pattern.permute.xlu0 1
    %2112 = vperm.xlu0 %2111, %v2101
    %v2113 = vpop.permute.xlu0 %2112
    %v2115 = vmul.f32 %v2113, %v855
    %v2116 = vmul.f32 %v2113, %v859
    %v2117 = vmul.f32 %v2113, %v863
    %v2118 = vmul.f32 %v2113, %v867
    %v2119 = vadd.f32 %v2107, %v2115
    %v2120 = vadd.f32 %v2108, %v2116
    %v2121 = vadd.f32 %v2109, %v2117
    %v2122 = vadd.f32 %v2110, %v2118
    %2123 = vset.pattern.permute.xlu0 2
    %2124 = vperm.xlu0 %2123, %v2101
    %v2125 = vpop.permute.xlu0 %2124
    %v2127 = vmul.f32 %v2125, %v1479
    %v2128 = vmul.f32 %v2125, %v1483
    %v2129 = vmul.f32 %v2125, %v1487
    %v2130 = vmul.f32 %v2125, %v1491
    %v2131 = vadd.f32 %v2119, %v2127
    %v2132 = vadd.f32 %v2120, %v2128
    %v2133 = vadd.f32 %v2121, %v2129
    %v2134 = vadd.f32 %v2122, %v2130
    %v2135 = vadd.f32 %v2131, %v1888
    %v2136 = vadd.f32 %v2132, %v1892
    %v2137 = vadd.f32 %v2133, %v1896
    %v2138 = vadd.f32 %v2134, %v1900
    %2139 = vst [vmem:[#allocation14] sm:$0xff] %v2135
    %2140 = vst [vmem:[#allocation14 + $0x8] sm:$0xff] %v2136
    %2141 = vst [vmem:[#allocation14 + $0x10] sm:$0xff] %v2137
    %2142 = vst [vmem:[#allocation14 + $0x18] sm:$0xff] %v2138
    %v2143 = vpack.c.bf16 %v1909, %v1905
    %v2144 = vpack.c.bf16 %v1910, %v1906
    %v2145 = vpack.c.bf16 %v1911, %v1907
    %v2146 = vpack.c.bf16 %v1912, %v1908
    %v2147 = vpack.c.bf16 %v1917, %v1913
    %v2148 = vpack.c.bf16 %v1918, %v1914
    %v2149 = vpack.c.bf16 %v1919, %v1915
    %v2150 = vpack.c.bf16 %v1920, %v1916
    %v2151 = vpack.c.bf16 %v1925, %v1921
    %v2152 = vpack.c.bf16 %v1926, %v1922
    %v2153 = vpack.c.bf16 %v1927, %v1923
    %v2154 = vpack.c.bf16 %v1928, %v1924
    %v2155 = vpack.c.bf16 %v1933, %v1929
    %v2156 = vpack.c.bf16 %v1934, %v1930
    %v2157 = vpack.c.bf16 %v1935, %v1931
    %v2158 = vpack.c.bf16 %v1936, %v1932
    %v2159 = vpack.c.bf16 %v1941, %v1937
    %v2160 = vpack.c.bf16 %v1942, %v1938
    %v2161 = vpack.c.bf16 %v1943, %v1939
    %v2162 = vpack.c.bf16 %v1944, %v1940
    %v2163 = vpack.c.bf16 %v1949, %v1945
    %v2164 = vpack.c.bf16 %v1950, %v1946
    %v2165 = vpack.c.bf16 %v1951, %v1947
    %v2166 = vpack.c.bf16 %v1952, %v1948
    %v2167 = vpack.c.bf16 %v1957, %v1953
    %v2168 = vpack.c.bf16 %v1958, %v1954
    %v2169 = vpack.c.bf16 %v1959, %v1955
    %v2170 = vpack.c.bf16 %v1960, %v1956
    %v2171 = vpack.c.bf16 %v1965, %v1961
    %v2172 = vpack.c.bf16 %v1966, %v1962
    %v2173 = vpack.c.bf16 %v1967, %v1963
    %v2174 = vpack.c.bf16 %v1968, %v1964
    %v2175 = vpack.c.bf16 %v1973, %v1969
    %v2176 = vpack.c.bf16 %v1974, %v1970
    %v2177 = vpack.c.bf16 %v1975, %v1971
    %v2178 = vpack.c.bf16 %v1976, %v1972
    %v2179 = vpack.c.bf16 %v1981, %v1977
    %v2180 = vpack.c.bf16 %v1982, %v1978
    %v2181 = vpack.c.bf16 %v1983, %v1979
    %v2182 = vpack.c.bf16 %v1984, %v1980
    %v2183 = vpack.c.bf16 %v1989, %v1985
    %v2184 = vpack.c.bf16 %v1990, %v1986
    %v2185 = vpack.c.bf16 %v1991, %v1987
    %v2186 = vpack.c.bf16 %v1992, %v1988
    %v2187 = vpack.c.bf16 %v1997, %v1993
    %v2188 = vpack.c.bf16 %v1998, %v1994
    %v2189 = vpack.c.bf16 %v1999, %v1995
    %v2190 = vpack.c.bf16 %v2000, %v1996
    %v2191 = vpack.c.bf16 %v2005, %v2001
    %v2192 = vpack.c.bf16 %v2006, %v2002
    %v2193 = vpack.c.bf16 %v2007, %v2003
    %v2194 = vpack.c.bf16 %v2008, %v2004
    %v2195 = vpack.c.bf16 %v2013, %v2009
    %v2196 = vpack.c.bf16 %v2014, %v2010
    %v2197 = vpack.c.bf16 %v2015, %v2011
    %v2198 = vpack.c.bf16 %v2016, %v2012
    %v2199 = vpack.c.bf16 %v2021, %v2017
    %v2200 = vpack.c.bf16 %v2022, %v2018
    %v2201 = vpack.c.bf16 %v2023, %v2019
    %v2202 = vpack.c.bf16 %v2024, %v2020
    %v2203 = vpack.c.bf16 %v2029, %v2025
    %v2204 = vpack.c.bf16 %v2030, %v2026
    %v2205 = vpack.c.bf16 %v2031, %v2027
    %v2206 = vpack.c.bf16 %v2032, %v2028
    %v2207 = vpack.c.bf16 %v2037, %v2033
    %v2208 = vpack.c.bf16 %v2038, %v2034
    %v2209 = vpack.c.bf16 %v2039, %v2035
    %v2210 = vpack.c.bf16 %v2040, %v2036
    %v2211 = vpack.c.bf16 %v2045, %v2041
    %v2212 = vpack.c.bf16 %v2046, %v2042
    %v2213 = vpack.c.bf16 %v2047, %v2043
    %v2214 = vpack.c.bf16 %v2048, %v2044
    %v2215 = vpack.c.bf16 %v2053, %v2049
    %v2216 = vpack.c.bf16 %v2054, %v2050
    %v2217 = vpack.c.bf16 %v2055, %v2051
    %v2218 = vpack.c.bf16 %v2056, %v2052
    %v2219 = vpack.c.bf16 %v2061, %v2057
    %v2220 = vpack.c.bf16 %v2062, %v2058
    %v2221 = vpack.c.bf16 %v2063, %v2059
    %v2222 = vpack.c.bf16 %v2064, %v2060
    %v2223 = vpack.c.bf16 %v2069, %v2065
    %v2224 = vpack.c.bf16 %v2070, %v2066
    %v2225 = vpack.c.bf16 %v2071, %v2067
    %v2226 = vpack.c.bf16 %v2072, %v2068
    %v2227 = vpack.c.bf16 %v2077, %v2073
    %v2228 = vpack.c.bf16 %v2078, %v2074
    %v2229 = vpack.c.bf16 %v2079, %v2075
    %v2230 = vpack.c.bf16 %v2080, %v2076
    %v2231 = vpack.c.bf16 %v2085, %v2081
    %v2232 = vpack.c.bf16 %v2086, %v2082
    %v2233 = vpack.c.bf16 %v2087, %v2083
    %v2234 = vpack.c.bf16 %v2088, %v2084
    %v2235 = vpack.c.bf16 %v2093, %v2089
    %v2236 = vpack.c.bf16 %v2094, %v2090
    %v2237 = vpack.c.bf16 %v2095, %v2091
    %v2238 = vpack.c.bf16 %v2096, %v2092
    %v2239 = vpack.c.bf16 %v2097, %v2097
    %v2240 = vpack.c.bf16 %v2098, %v2098
    %v2241 = vpack.c.bf16 %v2099, %v2099
    %v2242 = vpack.c.bf16 %v2100, %v2100
    %v2243 = vld [vmem:[#allocation7] sm:$0xff]
    %v2244 = vld [vmem:[#allocation7 + $0x8] sm:$0xff]
    %v2245 = vld [vmem:[#allocation7 + $0x10] sm:$0xff]
    %v2246 = vld [vmem:[#allocation7 + $0x18] sm:$0xff]
    %v2247 = vld [vmem:[#allocation7 + $0x20] sm:$0xff]
    %v2248 = vld [vmem:[#allocation7 + $0x28] sm:$0xff]
    %v2249 = vld [vmem:[#allocation7 + $0x30] sm:$0xff]
    %v2250 = vld [vmem:[#allocation7 + $0x38] sm:$0xff]
    %v2251 = vld [vmem:[#allocation7 + $0x40] sm:$0xff]
    %v2252 = vld [vmem:[#allocation7 + $0x48] sm:$0xff]
    %v2253 = vld [vmem:[#allocation7 + $0x50] sm:$0xff]
    %v2254 = vld [vmem:[#allocation7 + $0x58] sm:$0xff]
    %v2255 = vld [vmem:[#allocation7 + $0x60] sm:$0xff]
    %v2256 = vld [vmem:[#allocation7 + $0x68] sm:$0xff]
    %v2257 = vld [vmem:[#allocation7 + $0x70] sm:$0xff]
    %v2258 = vld [vmem:[#allocation7 + $0x78] sm:$0xff]
    %v2259 = vld [vmem:[#allocation7 + $0x80] sm:$0xff]
    %v2260 = vld [vmem:[#allocation7 + $0x88] sm:$0xff]
    %v2261 = vld [vmem:[#allocation7 + $0x90] sm:$0xff]
    %v2262 = vld [vmem:[#allocation7 + $0x98] sm:$0xff]
    %v2263 = vld [vmem:[#allocation7 + $0xa0] sm:$0xff]
    %v2264 = vld [vmem:[#allocation7 + $0xa8] sm:$0xff]
    %v2265 = vld [vmem:[#allocation7 + $0xb0] sm:$0xff]
    %v2266 = vld [vmem:[#allocation7 + $0xb8] sm:$0xff]
    %v2267 = vld [vmem:[#allocation7 + $0xc0] sm:$0xff]
    %v2268 = vld [vmem:[#allocation7 + $0xc8] sm:$0xff]
    %v2269 = vld [vmem:[#allocation7 + $0xd0] sm:$0xff]
    %v2270 = vld [vmem:[#allocation7 + $0xd8] sm:$0xff]
    %v2271 = vld [vmem:[#allocation7 + $0xe0] sm:$0xff]
    %v2272 = vld [vmem:[#allocation7 + $0xe8] sm:$0xff]
    %v2273 = vld [vmem:[#allocation7 + $0xf0] sm:$0xff]
    %v2274 = vld [vmem:[#allocation7 + $0xf8] sm:$0xff]
    %v2275 = vld [vmem:[#allocation7 + $0x100] sm:$0xff]
    %v2276 = vld [vmem:[#allocation7 + $0x108] sm:$0xff]
    %v2277 = vld [vmem:[#allocation7 + $0x110] sm:$0xff]
    %v2278 = vld [vmem:[#allocation7 + $0x118] sm:$0xff]
    %v2279 = vld [vmem:[#allocation7 + $0x120] sm:$0xff]
    %v2280 = vld [vmem:[#allocation7 + $0x128] sm:$0xff]
    %v2281 = vld [vmem:[#allocation7 + $0x130] sm:$0xff]
    %v2282 = vld [vmem:[#allocation7 + $0x138] sm:$0xff]
    %v2283 = vld [vmem:[#allocation7 + $0x140] sm:$0xff]
    %v2284 = vld [vmem:[#allocation7 + $0x148] sm:$0xff]
    %v2285 = vld [vmem:[#allocation7 + $0x150] sm:$0xff]
    %v2286 = vld [vmem:[#allocation7 + $0x158] sm:$0xff]
    %v2287 = vld [vmem:[#allocation7 + $0x160] sm:$0xff]
    %v2288 = vld [vmem:[#allocation7 + $0x168] sm:$0xff]
    %v2289 = vld [vmem:[#allocation7 + $0x170] sm:$0xff]
    %v2290 = vld [vmem:[#allocation7 + $0x178] sm:$0xff]
    %v2291 = vld [vmem:[#allocation7 + $0x180] sm:$0xff]
    %v2292 = vld [vmem:[#allocation7 + $0x188] sm:$0xff]
    %v2293 = vld [vmem:[#allocation7 + $0x190] sm:$0xff]
    %v2294 = vld [vmem:[#allocation7 + $0x198] sm:$0xff]
    %v2295 = vld [vmem:[#allocation7 + $0x1a0] sm:$0xff]
    %v2296 = vld [vmem:[#allocation7 + $0x1a8] sm:$0xff]
    %v2297 = vld [vmem:[#allocation7 + $0x1b0] sm:$0xff]
    %v2298 = vld [vmem:[#allocation7 + $0x1b8] sm:$0xff]
    %v2299 = vld [vmem:[#allocation7 + $0x1c0] sm:$0xff]
    %v2300 = vld [vmem:[#allocation7 + $0x1c8] sm:$0xff]
    %v2301 = vld [vmem:[#allocation7 + $0x1d0] sm:$0xff]
    %v2302 = vld [vmem:[#allocation7 + $0x1d8] sm:$0xff]
    %v2303 = vld [vmem:[#allocation7 + $0x1e0] sm:$0xff]
    %v2304 = vld [vmem:[#allocation7 + $0x1e8] sm:$0xff]
    %v2305 = vld [vmem:[#allocation7 + $0x1f0] sm:$0xff]
    %v2306 = vld [vmem:[#allocation7 + $0x1f8] sm:$0xff]
    %v2307 = vld [vmem:[#allocation7 + $0x200] sm:$0xff]
    %v2308 = vld [vmem:[#allocation7 + $0x208] sm:$0xff]
    %v2309 = vld [vmem:[#allocation7 + $0x210] sm:$0xff]
    %v2310 = vld [vmem:[#allocation7 + $0x218] sm:$0xff]
    %v2311 = vld [vmem:[#allocation7 + $0x220] sm:$0xff]
    %v2312 = vld [vmem:[#allocation7 + $0x228] sm:$0xff]
    %v2313 = vld [vmem:[#allocation7 + $0x230] sm:$0xff]
    %v2314 = vld [vmem:[#allocation7 + $0x238] sm:$0xff]
    %v2315 = vld [vmem:[#allocation7 + $0x240] sm:$0xff]
    %v2316 = vld [vmem:[#allocation7 + $0x248] sm:$0xff]
    %v2317 = vld [vmem:[#allocation7 + $0x250] sm:$0xff]
    %v2318 = vld [vmem:[#allocation7 + $0x258] sm:$0xff]
    %v2319 = vld [vmem:[#allocation7 + $0x260] sm:$0xff]
    %v2320 = vld [vmem:[#allocation7 + $0x268] sm:$0xff]
    %v2321 = vld [vmem:[#allocation7 + $0x270] sm:$0xff]
    %v2322 = vld [vmem:[#allocation7 + $0x278] sm:$0xff]
    %v2323 = vld [vmem:[#allocation7 + $0x280] sm:$0xff]
    %v2324 = vld [vmem:[#allocation7 + $0x288] sm:$0xff]
    %v2325 = vld [vmem:[#allocation7 + $0x290] sm:$0xff]
    %v2326 = vld [vmem:[#allocation7 + $0x298] sm:$0xff]
    %v2327 = vld [vmem:[#allocation7 + $0x2a0] sm:$0xff]
    %v2328 = vld [vmem:[#allocation7 + $0x2a8] sm:$0xff]
    %v2329 = vld [vmem:[#allocation7 + $0x2b0] sm:$0xff]
    %v2330 = vld [vmem:[#allocation7 + $0x2b8] sm:$0xff]
    %v2331 = vld [vmem:[#allocation7 + $0x2c0] sm:$0xff]
    %v2332 = vld [vmem:[#allocation7 + $0x2c8] sm:$0xff]
    %v2333 = vld [vmem:[#allocation7 + $0x2d0] sm:$0xff]
    %v2334 = vld [vmem:[#allocation7 + $0x2d8] sm:$0xff]
    %v2335 = vld [vmem:[#allocation7 + $0x2e0] sm:$0xff]
    %v2336 = vld [vmem:[#allocation7 + $0x2e8] sm:$0xff]
    %v2337 = vld [vmem:[#allocation7 + $0x2f0] sm:$0xff]
    %v2338 = vld [vmem:[#allocation7 + $0x2f8] sm:$0xff]
    %v2339 = vld [vmem:[#allocation7 + $0x300] sm:$0xff]
    %v2340 = vld [vmem:[#allocation7 + $0x308] sm:$0xff]
    %v2341 = vld [vmem:[#allocation7 + $0x310] sm:$0xff]
    %v2342 = vld [vmem:[#allocation7 + $0x318] sm:$0xff]
    %v2343 = vld [vmem:[#allocation7 + $0x320] sm:$0xff]
    %v2344 = vld [vmem:[#allocation7 + $0x328] sm:$0xff]
    %v2345 = vld [vmem:[#allocation7 + $0x330] sm:$0xff]
    %v2346 = vld [vmem:[#allocation7 + $0x338] sm:$0xff]
    %v2347 = vld [vmem:[#allocation7 + $0x340] sm:$0xff]
    %v2348 = vld [vmem:[#allocation7 + $0x348] sm:$0xff]
    %v2349 = vld [vmem:[#allocation7 + $0x350] sm:$0xff]
    %v2350 = vld [vmem:[#allocation7 + $0x358] sm:$0xff]
    %v2351 = vld [vmem:[#allocation7 + $0x360] sm:$0xff]
    %v2352 = vld [vmem:[#allocation7 + $0x368] sm:$0xff]
    %v2353 = vld [vmem:[#allocation7 + $0x370] sm:$0xff]
    %v2354 = vld [vmem:[#allocation7 + $0x378] sm:$0xff]
    %v2355 = vld [vmem:[#allocation7 + $0x380] sm:$0xff]
    %v2356 = vld [vmem:[#allocation7 + $0x388] sm:$0xff]
    %v2357 = vld [vmem:[#allocation7 + $0x390] sm:$0xff]
    %v2358 = vld [vmem:[#allocation7 + $0x398] sm:$0xff]
    %v2359 = vld [vmem:[#allocation7 + $0x3a0] sm:$0xff]
    %v2360 = vld [vmem:[#allocation7 + $0x3a8] sm:$0xff]
    %v2361 = vld [vmem:[#allocation7 + $0x3b0] sm:$0xff]
    %v2362 = vld [vmem:[#allocation7 + $0x3b8] sm:$0xff]
    %v2363 = vld [vmem:[#allocation7 + $0x3c0] sm:$0xff]
    %v2364 = vld [vmem:[#allocation7 + $0x3c8] sm:$0xff]
    %v2365 = vld [vmem:[#allocation7 + $0x3d0] sm:$0xff]
    %v2366 = vld [vmem:[#allocation7 + $0x3d8] sm:$0xff]
    %v2367 = vld [vmem:[#allocation7 + $0x3e0] sm:$0xff]
    %v2368 = vld [vmem:[#allocation7 + $0x3e8] sm:$0xff]
    %v2369 = vld [vmem:[#allocation7 + $0x3f0] sm:$0xff]
    %v2370 = vld [vmem:[#allocation7 + $0x3f8] sm:$0xff]
    %v2371 = vld [vmem:[#allocation7 + $0x400] sm:$0xff]
    %v2372 = vld [vmem:[#allocation7 + $0x408] sm:$0xff]
    %v2373 = vld [vmem:[#allocation7 + $0x410] sm:$0xff]
    %v2374 = vld [vmem:[#allocation7 + $0x418] sm:$0xff]
    %v2375 = vld [vmem:[#allocation7 + $0x420] sm:$0xff]
    %v2376 = vld [vmem:[#allocation7 + $0x428] sm:$0xff]
    %v2377 = vld [vmem:[#allocation7 + $0x430] sm:$0xff]
    %v2378 = vld [vmem:[#allocation7 + $0x438] sm:$0xff]
    %v2379 = vld [vmem:[#allocation7 + $0x440] sm:$0xff]
    %v2380 = vld [vmem:[#allocation7 + $0x448] sm:$0xff]
    %v2381 = vld [vmem:[#allocation7 + $0x450] sm:$0xff]
    %v2382 = vld [vmem:[#allocation7 + $0x458] sm:$0xff]
    %v2383 = vld [vmem:[#allocation7 + $0x460] sm:$0xff]
    %v2384 = vld [vmem:[#allocation7 + $0x468] sm:$0xff]
    %v2385 = vld [vmem:[#allocation7 + $0x470] sm:$0xff]
    %v2386 = vld [vmem:[#allocation7 + $0x478] sm:$0xff]
    %v2387 = vld [vmem:[#allocation7 + $0x480] sm:$0xff]
    %v2388 = vld [vmem:[#allocation7 + $0x488] sm:$0xff]
    %v2389 = vld [vmem:[#allocation7 + $0x490] sm:$0xff]
    %v2390 = vld [vmem:[#allocation7 + $0x498] sm:$0xff]
    %v2391 = vld [vmem:[#allocation7 + $0x4a0] sm:$0xff]
    %v2392 = vld [vmem:[#allocation7 + $0x4a8] sm:$0xff]
    %v2393 = vld [vmem:[#allocation7 + $0x4b0] sm:$0xff]
    %v2394 = vld [vmem:[#allocation7 + $0x4b8] sm:$0xff]
    %v2395 = vld [vmem:[#allocation7 + $0x4c0] sm:$0xff]
    %v2396 = vld [vmem:[#allocation7 + $0x4c8] sm:$0xff]
    %v2397 = vld [vmem:[#allocation7 + $0x4d0] sm:$0xff]
    %v2398 = vld [vmem:[#allocation7 + $0x4d8] sm:$0xff]
    %v2399 = vld [vmem:[#allocation7 + $0x4e0] sm:$0xff]
    %v2400 = vld [vmem:[#allocation7 + $0x4e8] sm:$0xff]
    %v2401 = vld [vmem:[#allocation7 + $0x4f0] sm:$0xff]
    %v2402 = vld [vmem:[#allocation7 + $0x4f8] sm:$0xff]
    %v2403 = vld [vmem:[#allocation7 + $0x500] sm:$0xff]
    %v2404 = vld [vmem:[#allocation7 + $0x508] sm:$0xff]
    %v2405 = vld [vmem:[#allocation7 + $0x510] sm:$0xff]
    %v2406 = vld [vmem:[#allocation7 + $0x518] sm:$0xff]
    %v2407 = vld [vmem:[#allocation7 + $0x520] sm:$0xff]
    %v2408 = vld [vmem:[#allocation7 + $0x528] sm:$0xff]
    %v2409 = vld [vmem:[#allocation7 + $0x530] sm:$0xff]
    %v2410 = vld [vmem:[#allocation7 + $0x538] sm:$0xff]
    %v2411 = vld [vmem:[#allocation7 + $0x540] sm:$0xff]
    %v2412 = vld [vmem:[#allocation7 + $0x548] sm:$0xff]
    %v2413 = vld [vmem:[#allocation7 + $0x550] sm:$0xff]
    %v2414 = vld [vmem:[#allocation7 + $0x558] sm:$0xff]
    %v2415 = vld [vmem:[#allocation7 + $0x560] sm:$0xff]
    %v2416 = vld [vmem:[#allocation7 + $0x568] sm:$0xff]
    %v2417 = vld [vmem:[#allocation7 + $0x570] sm:$0xff]
    %v2418 = vld [vmem:[#allocation7 + $0x578] sm:$0xff]
    %v2419 = vld [vmem:[#allocation7 + $0x580] sm:$0xff]
    %v2420 = vld [vmem:[#allocation7 + $0x588] sm:$0xff]
    %v2421 = vld [vmem:[#allocation7 + $0x590] sm:$0xff]
    %v2422 = vld [vmem:[#allocation7 + $0x598] sm:$0xff]
    %v2423 = vld [vmem:[#allocation7 + $0x5a0] sm:$0xff]
    %v2424 = vld [vmem:[#allocation7 + $0x5a8] sm:$0xff]
    %v2425 = vld [vmem:[#allocation7 + $0x5b0] sm:$0xff]
    %v2426 = vld [vmem:[#allocation7 + $0x5b8] sm:$0xff]
    %v2427 = vld [vmem:[#allocation7 + $0x5c0] sm:$0xff]
    %v2428 = vld [vmem:[#allocation7 + $0x5c8] sm:$0xff]
    %v2429 = vld [vmem:[#allocation7 + $0x5d0] sm:$0xff]
    %v2430 = vld [vmem:[#allocation7 + $0x5d8] sm:$0xff]
    %v2431 = vld [vmem:[#allocation7 + $0x5e0] sm:$0xff]
    %v2432 = vld [vmem:[#allocation7 + $0x5e8] sm:$0xff]
    %v2433 = vld [vmem:[#allocation7 + $0x5f0] sm:$0xff]
    %v2434 = vld [vmem:[#allocation7 + $0x5f8] sm:$0xff]
    %v2435 = vld [vmem:[#allocation7 + $0x600] sm:$0xff]
    %v2436 = vld [vmem:[#allocation7 + $0x608] sm:$0xff]
    %v2437 = vld [vmem:[#allocation7 + $0x610] sm:$0xff]
    %v2438 = vld [vmem:[#allocation7 + $0x618] sm:$0xff]
    %v2439 = vld [vmem:[#allocation7 + $0x620] sm:$0xff]
    %v2440 = vld [vmem:[#allocation7 + $0x628] sm:$0xff]
    %v2441 = vld [vmem:[#allocation7 + $0x630] sm:$0xff]
    %v2442 = vld [vmem:[#allocation7 + $0x638] sm:$0xff]
    %v2443 = vld [vmem:[#allocation7 + $0x640] sm:$0xff]
    %v2444 = vld [vmem:[#allocation7 + $0x648] sm:$0xff]
    %v2445 = vld [vmem:[#allocation7 + $0x650] sm:$0xff]
    %v2446 = vld [vmem:[#allocation7 + $0x658] sm:$0xff]
    %v2447 = vld [vmem:[#allocation7 + $0x660] sm:$0xff]
    %v2448 = vld [vmem:[#allocation7 + $0x668] sm:$0xff]
    %v2449 = vld [vmem:[#allocation7 + $0x670] sm:$0xff]
    %v2450 = vld [vmem:[#allocation7 + $0x678] sm:$0xff]
    %v2451 = vld [vmem:[#allocation7 + $0x680] sm:$0xff]
    %v2452 = vld [vmem:[#allocation7 + $0x688] sm:$0xff]
    %v2453 = vld [vmem:[#allocation7 + $0x690] sm:$0xff]
    %v2454 = vld [vmem:[#allocation7 + $0x698] sm:$0xff]
    %v2455 = vld [vmem:[#allocation7 + $0x6a0] sm:$0xff]
    %v2456 = vld [vmem:[#allocation7 + $0x6a8] sm:$0xff]
    %v2457 = vld [vmem:[#allocation7 + $0x6b0] sm:$0xff]
    %v2458 = vld [vmem:[#allocation7 + $0x6b8] sm:$0xff]
    %v2459 = vld [vmem:[#allocation7 + $0x6c0] sm:$0xff]
    %v2460 = vld [vmem:[#allocation7 + $0x6c8] sm:$0xff]
    %v2461 = vld [vmem:[#allocation7 + $0x6d0] sm:$0xff]
    %v2462 = vld [vmem:[#allocation7 + $0x6d8] sm:$0xff]
    %v2463 = vld [vmem:[#allocation7 + $0x6e0] sm:$0xff]
    %v2464 = vld [vmem:[#allocation7 + $0x6e8] sm:$0xff]
    %v2465 = vld [vmem:[#allocation7 + $0x6f0] sm:$0xff]
    %v2466 = vld [vmem:[#allocation7 + $0x6f8] sm:$0xff]
    %v2467 = vld [vmem:[#allocation7 + $0x700] sm:$0xff]
    %v2468 = vld [vmem:[#allocation7 + $0x708] sm:$0xff]
    %v2469 = vld [vmem:[#allocation7 + $0x710] sm:$0xff]
    %v2470 = vld [vmem:[#allocation7 + $0x718] sm:$0xff]
    %v2471 = vld [vmem:[#allocation7 + $0x720] sm:$0xff]
    %v2472 = vld [vmem:[#allocation7 + $0x728] sm:$0xff]
    %v2473 = vld [vmem:[#allocation7 + $0x730] sm:$0xff]
    %v2474 = vld [vmem:[#allocation7 + $0x738] sm:$0xff]
    %v2475 = vld [vmem:[#allocation7 + $0x740] sm:$0xff]
    %v2476 = vld [vmem:[#allocation7 + $0x748] sm:$0xff]
    %v2477 = vld [vmem:[#allocation7 + $0x750] sm:$0xff]
    %v2478 = vld [vmem:[#allocation7 + $0x758] sm:$0xff]
    %v2479 = vld [vmem:[#allocation7 + $0x760] sm:$0xff]
    %v2480 = vld [vmem:[#allocation7 + $0x768] sm:$0xff]
    %v2481 = vld [vmem:[#allocation7 + $0x770] sm:$0xff]
    %v2482 = vld [vmem:[#allocation7 + $0x778] sm:$0xff]
    %v2483 = vld [vmem:[#allocation7 + $0x780] sm:$0xff]
    %v2484 = vld [vmem:[#allocation7 + $0x788] sm:$0xff]
    %v2485 = vld [vmem:[#allocation7 + $0x790] sm:$0xff]
    %v2486 = vld [vmem:[#allocation7 + $0x798] sm:$0xff]
    %v2487 = vld [vmem:[#allocation7 + $0x7a0] sm:$0xff]
    %v2488 = vld [vmem:[#allocation7 + $0x7a8] sm:$0xff]
    %v2489 = vld [vmem:[#allocation7 + $0x7b0] sm:$0xff]
    %v2490 = vld [vmem:[#allocation7 + $0x7b8] sm:$0xff]
    %v2491 = vld [vmem:[#allocation7 + $0x7c0] sm:$0xff]
    %v2492 = vld [vmem:[#allocation7 + $0x7c8] sm:$0xff]
    %v2493 = vld [vmem:[#allocation7 + $0x7d0] sm:$0xff]
    %v2494 = vld [vmem:[#allocation7 + $0x7d8] sm:$0xff]
    %v2495 = vld [vmem:[#allocation7 + $0x7e0] sm:$0xff]
    %v2496 = vld [vmem:[#allocation7 + $0x7e8] sm:$0xff]
    %v2497 = vld [vmem:[#allocation7 + $0x7f0] sm:$0xff]
    %v2498 = vld [vmem:[#allocation7 + $0x7f8] sm:$0xff]
    %v2499 = vld [vmem:[#allocation8] sm:$0xff]
    %v2501 = vlaneseq
    %v2502 = vshrl.u32 %v2501, 7
    %v2503 = vsub.s32 0, %v2502
    %v2504 = vrot.slane %v2499, %v2503
    %v2505 = vlaneseq
    %v2506 = vshrl.u32 %v2505, 7
    %v2507 = vsub.s32 1, %v2506
    %v2508 = vrot.slane %v2499, %v2507
    %v2509 = vlaneseq
    %v2510 = vshrl.u32 %v2509, 7
    %v2511 = vsub.s32 2, %v2510
    %v2512 = vrot.slane %v2499, %v2511
    %v2513 = vlaneseq
    %v2514 = vshrl.u32 %v2513, 7
    %v2515 = vsub.s32 3, %v2514
    %v2516 = vrot.slane %v2499, %v2515
    %v2517 = vlaneseq
    %v2518 = vshrl.u32 %v2517, 7
    %v2519 = vsub.s32 4, %v2518
    %v2520 = vrot.slane %v2499, %v2519
    %v2521 = vlaneseq
    %v2522 = vshrl.u32 %v2521, 7
    %v2523 = vsub.s32 5, %v2522
    %v2524 = vrot.slane %v2499, %v2523
    %v2525 = vlaneseq
    %v2526 = vshrl.u32 %v2525, 7
    %v2527 = vsub.s32 6, %v2526
    %v2528 = vrot.slane %v2499, %v2527
    %v2529 = vlaneseq
    %v2530 = vshrl.u32 %v2529, 7
    %v2531 = vsub.s32 7, %v2530
    %v2532 = vrot.slane %v2499, %v2531
    %v2797 = vunpack.c.l.b16 %v2243
    %v2798 = vunpack.c.h.b16 %v2243
    %v2799 = vunpack.c.l.b16 %v2244
    %v2800 = vunpack.c.h.b16 %v2244
    %v2801 = vunpack.c.l.b16 %v2245
    %v2802 = vunpack.c.h.b16 %v2245
    %v2803 = vunpack.c.l.b16 %v2246
    %v2804 = vunpack.c.h.b16 %v2246
    %v2805 = vunpack.c.l.b16 %v2247
    %v2806 = vunpack.c.h.b16 %v2247
    %v2807 = vunpack.c.l.b16 %v2248
    %v2808 = vunpack.c.h.b16 %v2248
    %v2809 = vunpack.c.l.b16 %v2249
    %v2810 = vunpack.c.h.b16 %v2249
    %v2811 = vunpack.c.l.b16 %v2250
    %v2812 = vunpack.c.h.b16 %v2250
    %v2813 = vunpack.c.l.b16 %v2251
    %v2814 = vunpack.c.h.b16 %v2251
    %v2815 = vunpack.c.l.b16 %v2252
    %v2816 = vunpack.c.h.b16 %v2252
    %v2817 = vunpack.c.l.b16 %v2253
    %v2818 = vunpack.c.h.b16 %v2253
    %v2819 = vunpack.c.l.b16 %v2254
    %v2820 = vunpack.c.h.b16 %v2254
    %v2821 = vunpack.c.l.b16 %v2255
    %v2822 = vunpack.c.h.b16 %v2255
    %v2823 = vunpack.c.l.b16 %v2256
    %v2824 = vunpack.c.h.b16 %v2256
    %v2825 = vunpack.c.l.b16 %v2257
    %v2826 = vunpack.c.h.b16 %v2257
    %v2827 = vunpack.c.l.b16 %v2258
    %v2828 = vunpack.c.h.b16 %v2258
    %v2829 = vunpack.c.l.b16 %v2259
    %v2830 = vunpack.c.h.b16 %v2259
    %v2831 = vunpack.c.l.b16 %v2260
    %v2832 = vunpack.c.h.b16 %v2260
    %v2833 = vunpack.c.l.b16 %v2261
    %v2834 = vunpack.c.h.b16 %v2261
    %v2835 = vunpack.c.l.b16 %v2262
    %v2836 = vunpack.c.h.b16 %v2262
    %v2837 = vunpack.c.l.b16 %v2263
    %v2838 = vunpack.c.h.b16 %v2263
    %v2839 = vunpack.c.l.b16 %v2264
    %v2840 = vunpack.c.h.b16 %v2264
    %v2841 = vunpack.c.l.b16 %v2265
    %v2842 = vunpack.c.h.b16 %v2265
    %v2843 = vunpack.c.l.b16 %v2266
    %v2844 = vunpack.c.h.b16 %v2266
    %v2845 = vunpack.c.l.b16 %v2267
    %v2846 = vunpack.c.h.b16 %v2267
    %v2847 = vunpack.c.l.b16 %v2268
    %v2848 = vunpack.c.h.b16 %v2268
    %v2849 = vunpack.c.l.b16 %v2269
    %v2850 = vunpack.c.h.b16 %v2269
    %v2851 = vunpack.c.l.b16 %v2270
    %v2852 = vunpack.c.h.b16 %v2270
    %v2853 = vunpack.c.l.b16 %v2271
    %v2854 = vunpack.c.h.b16 %v2271
    %v2855 = vunpack.c.l.b16 %v2272
    %v2856 = vunpack.c.h.b16 %v2272
    %v2857 = vunpack.c.l.b16 %v2273
    %v2858 = vunpack.c.h.b16 %v2273
    %v2859 = vunpack.c.l.b16 %v2274
    %v2860 = vunpack.c.h.b16 %v2274
    %v2861 = vunpack.c.l.b16 %v2275
    %v2862 = vunpack.c.h.b16 %v2275
    %v2863 = vunpack.c.l.b16 %v2276
    %v2864 = vunpack.c.h.b16 %v2276
    %v2865 = vunpack.c.l.b16 %v2277
    %v2866 = vunpack.c.h.b16 %v2277
    %v2867 = vunpack.c.l.b16 %v2278
    %v2868 = vunpack.c.h.b16 %v2278
    %v2869 = vunpack.c.l.b16 %v2279
    %v2870 = vunpack.c.h.b16 %v2279
    %v2871 = vunpack.c.l.b16 %v2280
    %v2872 = vunpack.c.h.b16 %v2280
    %v2873 = vunpack.c.l.b16 %v2281
    %v2874 = vunpack.c.h.b16 %v2281
    %v2875 = vunpack.c.l.b16 %v2282
    %v2876 = vunpack.c.h.b16 %v2282
    %v2877 = vunpack.c.l.b16 %v2283
    %v2878 = vunpack.c.h.b16 %v2283
    %v2879 = vunpack.c.l.b16 %v2284
    %v2880 = vunpack.c.h.b16 %v2284
    %v2881 = vunpack.c.l.b16 %v2285
    %v2882 = vunpack.c.h.b16 %v2285
    %v2883 = vunpack.c.l.b16 %v2286
    %v2884 = vunpack.c.h.b16 %v2286
    %v2885 = vunpack.c.l.b16 %v2287
    %v2886 = vunpack.c.h.b16 %v2287
    %v2887 = vunpack.c.l.b16 %v2288
    %v2888 = vunpack.c.h.b16 %v2288
    %v2889 = vunpack.c.l.b16 %v2289
    %v2890 = vunpack.c.h.b16 %v2289
    %v2891 = vunpack.c.l.b16 %v2290
    %v2892 = vunpack.c.h.b16 %v2290
    %v2893 = vunpack.c.l.b16 %v2291
    %v2894 = vunpack.c.h.b16 %v2291
    %v2895 = vunpack.c.l.b16 %v2292
    %v2896 = vunpack.c.h.b16 %v2292
    %v2897 = vunpack.c.l.b16 %v2293
    %v2898 = vunpack.c.h.b16 %v2293
    %v2899 = vunpack.c.l.b16 %v2294
    %v2900 = vunpack.c.h.b16 %v2294
    %v2901 = vunpack.c.l.b16 %v2295
    %v2902 = vunpack.c.h.b16 %v2295
    %v2903 = vunpack.c.l.b16 %v2296
    %v2904 = vunpack.c.h.b16 %v2296
    %v2905 = vunpack.c.l.b16 %v2297
    %v2906 = vunpack.c.h.b16 %v2297
    %v2907 = vunpack.c.l.b16 %v2298
    %v2908 = vunpack.c.h.b16 %v2298
    %v2909 = vunpack.c.l.b16 %v2299
    %v2910 = vunpack.c.h.b16 %v2299
    %v2911 = vunpack.c.l.b16 %v2300
    %v2912 = vunpack.c.h.b16 %v2300
    %v2913 = vunpack.c.l.b16 %v2301
    %v2914 = vunpack.c.h.b16 %v2301
    %v2915 = vunpack.c.l.b16 %v2302
    %v2916 = vunpack.c.h.b16 %v2302
    %v2917 = vunpack.c.l.b16 %v2303
    %v2918 = vunpack.c.h.b16 %v2303
    %v2919 = vunpack.c.l.b16 %v2304
    %v2920 = vunpack.c.h.b16 %v2304
    %v2921 = vunpack.c.l.b16 %v2305
    %v2922 = vunpack.c.h.b16 %v2305
    %v2923 = vunpack.c.l.b16 %v2306
    %v2924 = vunpack.c.h.b16 %v2306
    %v2925 = vunpack.c.l.b16 %v2307
    %v2926 = vunpack.c.h.b16 %v2307
    %v2927 = vunpack.c.l.b16 %v2308
    %v2928 = vunpack.c.h.b16 %v2308
    %v2929 = vunpack.c.l.b16 %v2309
    %v2930 = vunpack.c.h.b16 %v2309
    %v2931 = vunpack.c.l.b16 %v2310
    %v2932 = vunpack.c.h.b16 %v2310
    %v2933 = vunpack.c.l.b16 %v2311
    %v2934 = vunpack.c.h.b16 %v2311
    %v2935 = vunpack.c.l.b16 %v2312
    %v2936 = vunpack.c.h.b16 %v2312
    %v2937 = vunpack.c.l.b16 %v2313
    %v2938 = vunpack.c.h.b16 %v2313
    %v2939 = vunpack.c.l.b16 %v2314
    %v2940 = vunpack.c.h.b16 %v2314
    %v2941 = vunpack.c.l.b16 %v2315
    %v2942 = vunpack.c.h.b16 %v2315
    %v2943 = vunpack.c.l.b16 %v2316
    %v2944 = vunpack.c.h.b16 %v2316
    %v2945 = vunpack.c.l.b16 %v2317
    %v2946 = vunpack.c.h.b16 %v2317
    %v2947 = vunpack.c.l.b16 %v2318
    %v2948 = vunpack.c.h.b16 %v2318
    %v2949 = vunpack.c.l.b16 %v2319
    %v2950 = vunpack.c.h.b16 %v2319
    %v2951 = vunpack.c.l.b16 %v2320
    %v2952 = vunpack.c.h.b16 %v2320
    %v2953 = vunpack.c.l.b16 %v2321
    %v2954 = vunpack.c.h.b16 %v2321
    %v2955 = vunpack.c.l.b16 %v2322
    %v2956 = vunpack.c.h.b16 %v2322
    %v2957 = vunpack.c.l.b16 %v2323
    %v2958 = vunpack.c.h.b16 %v2323
    %v2959 = vunpack.c.l.b16 %v2324
    %v2960 = vunpack.c.h.b16 %v2324
    %v2961 = vunpack.c.l.b16 %v2325
    %v2962 = vunpack.c.h.b16 %v2325
    %v2963 = vunpack.c.l.b16 %v2326
    %v2964 = vunpack.c.h.b16 %v2326
    %v2965 = vunpack.c.l.b16 %v2327
    %v2966 = vunpack.c.h.b16 %v2327
    %v2967 = vunpack.c.l.b16 %v2328
    %v2968 = vunpack.c.h.b16 %v2328
    %v2969 = vunpack.c.l.b16 %v2329
    %v2970 = vunpack.c.h.b16 %v2329
    %v2971 = vunpack.c.l.b16 %v2330
    %v2972 = vunpack.c.h.b16 %v2330
    %v2973 = vunpack.c.l.b16 %v2331
    %v2974 = vunpack.c.h.b16 %v2331
    %v2975 = vunpack.c.l.b16 %v2332
    %v2976 = vunpack.c.h.b16 %v2332
    %v2977 = vunpack.c.l.b16 %v2333
    %v2978 = vunpack.c.h.b16 %v2333
    %v2979 = vunpack.c.l.b16 %v2334
    %v2980 = vunpack.c.h.b16 %v2334
    %v2981 = vunpack.c.l.b16 %v2335
    %v2982 = vunpack.c.h.b16 %v2335
    %v2983 = vunpack.c.l.b16 %v2336
    %v2984 = vunpack.c.h.b16 %v2336
    %v2985 = vunpack.c.l.b16 %v2337
    %v2986 = vunpack.c.h.b16 %v2337
    %v2987 = vunpack.c.l.b16 %v2338
    %v2988 = vunpack.c.h.b16 %v2338
    %v2989 = vunpack.c.l.b16 %v2339
    %v2990 = vunpack.c.h.b16 %v2339
    %v2991 = vunpack.c.l.b16 %v2340
    %v2992 = vunpack.c.h.b16 %v2340
    %v2993 = vunpack.c.l.b16 %v2341
    %v2994 = vunpack.c.h.b16 %v2341
    %v2995 = vunpack.c.l.b16 %v2342
    %v2996 = vunpack.c.h.b16 %v2342
    %v2997 = vunpack.c.l.b16 %v2343
    %v2998 = vunpack.c.h.b16 %v2343
    %v2999 = vunpack.c.l.b16 %v2344
    %v3000 = vunpack.c.h.b16 %v2344
    %v3001 = vunpack.c.l.b16 %v2345
    %v3002 = vunpack.c.h.b16 %v2345
    %v3003 = vunpack.c.l.b16 %v2346
    %v3004 = vunpack.c.h.b16 %v2346
    %v3005 = vunpack.c.l.b16 %v2347
    %v3006 = vunpack.c.h.b16 %v2347
    %v3007 = vunpack.c.l.b16 %v2348
    %v3008 = vunpack.c.h.b16 %v2348
    %v3009 = vunpack.c.l.b16 %v2349
    %v3010 = vunpack.c.h.b16 %v2349
    %v3011 = vunpack.c.l.b16 %v2350
    %v3012 = vunpack.c.h.b16 %v2350
    %v3013 = vunpack.c.l.b16 %v2351
    %v3014 = vunpack.c.h.b16 %v2351
    %v3015 = vunpack.c.l.b16 %v2352
    %v3016 = vunpack.c.h.b16 %v2352
    %v3017 = vunpack.c.l.b16 %v2353
    %v3018 = vunpack.c.h.b16 %v2353
    %v3019 = vunpack.c.l.b16 %v2354
    %v3020 = vunpack.c.h.b16 %v2354
    %v3021 = vunpack.c.l.b16 %v2355
    %v3022 = vunpack.c.h.b16 %v2355
    %v3023 = vunpack.c.l.b16 %v2356
    %v3024 = vunpack.c.h.b16 %v2356
    %v3025 = vunpack.c.l.b16 %v2357
    %v3026 = vunpack.c.h.b16 %v2357
    %v3027 = vunpack.c.l.b16 %v2358
    %v3028 = vunpack.c.h.b16 %v2358
    %v3029 = vunpack.c.l.b16 %v2359
    %v3030 = vunpack.c.h.b16 %v2359
    %v3031 = vunpack.c.l.b16 %v2360
    %v3032 = vunpack.c.h.b16 %v2360
    %v3033 = vunpack.c.l.b16 %v2361
    %v3034 = vunpack.c.h.b16 %v2361
    %v3035 = vunpack.c.l.b16 %v2362
    %v3036 = vunpack.c.h.b16 %v2362
    %v3037 = vunpack.c.l.b16 %v2363
    %v3038 = vunpack.c.h.b16 %v2363
    %v3039 = vunpack.c.l.b16 %v2364
    %v3040 = vunpack.c.h.b16 %v2364
    %v3041 = vunpack.c.l.b16 %v2365
    %v3042 = vunpack.c.h.b16 %v2365
    %v3043 = vunpack.c.l.b16 %v2366
    %v3044 = vunpack.c.h.b16 %v2366
    %v3045 = vunpack.c.l.b16 %v2367
    %v3046 = vunpack.c.h.b16 %v2367
    %v3047 = vunpack.c.l.b16 %v2368
    %v3048 = vunpack.c.h.b16 %v2368
    %v3049 = vunpack.c.l.b16 %v2369
    %v3050 = vunpack.c.h.b16 %v2369
    %v3051 = vunpack.c.l.b16 %v2370
    %v3052 = vunpack.c.h.b16 %v2370
    %v3053 = vunpack.c.l.b16 %v2371
    %v3054 = vunpack.c.h.b16 %v2371
    %v3055 = vunpack.c.l.b16 %v2372
    %v3056 = vunpack.c.h.b16 %v2372
    %v3057 = vunpack.c.l.b16 %v2373
    %v3058 = vunpack.c.h.b16 %v2373
    %v3059 = vunpack.c.l.b16 %v2374
    %v3060 = vunpack.c.h.b16 %v2374
    %v3061 = vunpack.c.l.b16 %v2375
    %v3062 = vunpack.c.h.b16 %v2375
    %v3063 = vunpack.c.l.b16 %v2376
    %v3064 = vunpack.c.h.b16 %v2376
    %v3065 = vunpack.c.l.b16 %v2377
    %v3066 = vunpack.c.h.b16 %v2377
    %v3067 = vunpack.c.l.b16 %v2378
    %v3068 = vunpack.c.h.b16 %v2378
    %v3069 = vunpack.c.l.b16 %v2379
    %v3070 = vunpack.c.h.b16 %v2379
    %v3071 = vunpack.c.l.b16 %v2380
    %v3072 = vunpack.c.h.b16 %v2380
    %v3073 = vunpack.c.l.b16 %v2381
    %v3074 = vunpack.c.h.b16 %v2381
    %v3075 = vunpack.c.l.b16 %v2382
    %v3076 = vunpack.c.h.b16 %v2382
    %v3077 = vunpack.c.l.b16 %v2383
    %v3078 = vunpack.c.h.b16 %v2383
    %v3079 = vunpack.c.l.b16 %v2384
    %v3080 = vunpack.c.h.b16 %v2384
    %v3081 = vunpack.c.l.b16 %v2385
    %v3082 = vunpack.c.h.b16 %v2385
    %v3083 = vunpack.c.l.b16 %v2386
    %v3084 = vunpack.c.h.b16 %v2386
    %v3085 = vunpack.c.l.b16 %v2387
    %v3086 = vunpack.c.h.b16 %v2387
    %v3087 = vunpack.c.l.b16 %v2388
    %v3088 = vunpack.c.h.b16 %v2388
    %v3089 = vunpack.c.l.b16 %v2389
    %v3090 = vunpack.c.h.b16 %v2389
    %v3091 = vunpack.c.l.b16 %v2390
    %v3092 = vunpack.c.h.b16 %v2390
    %v3093 = vunpack.c.l.b16 %v2391
    %v3094 = vunpack.c.h.b16 %v2391
    %v3095 = vunpack.c.l.b16 %v2392
    %v3096 = vunpack.c.h.b16 %v2392
    %v3097 = vunpack.c.l.b16 %v2393
    %v3098 = vunpack.c.h.b16 %v2393
    %v3099 = vunpack.c.l.b16 %v2394
    %v3100 = vunpack.c.h.b16 %v2394
    %v3101 = vunpack.c.l.b16 %v2395
    %v3102 = vunpack.c.h.b16 %v2395
    %v3103 = vunpack.c.l.b16 %v2396
    %v3104 = vunpack.c.h.b16 %v2396
    %v3105 = vunpack.c.l.b16 %v2397
    %v3106 = vunpack.c.h.b16 %v2397
    %v3107 = vunpack.c.l.b16 %v2398
    %v3108 = vunpack.c.h.b16 %v2398
    %v3109 = vunpack.c.l.b16 %v2399
    %v3110 = vunpack.c.h.b16 %v2399
    %v3111 = vunpack.c.l.b16 %v2400
    %v3112 = vunpack.c.h.b16 %v2400
    %v3113 = vunpack.c.l.b16 %v2401
    %v3114 = vunpack.c.h.b16 %v2401
    %v3115 = vunpack.c.l.b16 %v2402
    %v3116 = vunpack.c.h.b16 %v2402
    %v3117 = vunpack.c.l.b16 %v2403
    %v3118 = vunpack.c.h.b16 %v2403
    %v3119 = vunpack.c.l.b16 %v2404
    %v3120 = vunpack.c.h.b16 %v2404
    %v3121 = vunpack.c.l.b16 %v2405
    %v3122 = vunpack.c.h.b16 %v2405
    %v3123 = vunpack.c.l.b16 %v2406
    %v3124 = vunpack.c.h.b16 %v2406
    %v3125 = vunpack.c.l.b16 %v2407
    %v3126 = vunpack.c.h.b16 %v2407
    %v3127 = vunpack.c.l.b16 %v2408
    %v3128 = vunpack.c.h.b16 %v2408
    %v3129 = vunpack.c.l.b16 %v2409
    %v3130 = vunpack.c.h.b16 %v2409
    %v3131 = vunpack.c.l.b16 %v2410
    %v3132 = vunpack.c.h.b16 %v2410
    %v3133 = vunpack.c.l.b16 %v2411
    %v3134 = vunpack.c.h.b16 %v2411
    %v3135 = vunpack.c.l.b16 %v2412
    %v3136 = vunpack.c.h.b16 %v2412
    %v3137 = vunpack.c.l.b16 %v2413
    %v3138 = vunpack.c.h.b16 %v2413
    %v3139 = vunpack.c.l.b16 %v2414
    %v3140 = vunpack.c.h.b16 %v2414
    %v3141 = vunpack.c.l.b16 %v2415
    %v3142 = vunpack.c.h.b16 %v2415
    %v3143 = vunpack.c.l.b16 %v2416
    %v3144 = vunpack.c.h.b16 %v2416
    %v3145 = vunpack.c.l.b16 %v2417
    %v3146 = vunpack.c.h.b16 %v2417
    %v3147 = vunpack.c.l.b16 %v2418
    %v3148 = vunpack.c.h.b16 %v2418
    %v3149 = vunpack.c.l.b16 %v2419
    %v3150 = vunpack.c.h.b16 %v2419
    %v3151 = vunpack.c.l.b16 %v2420
    %v3152 = vunpack.c.h.b16 %v2420
    %v3153 = vunpack.c.l.b16 %v2421
    %v3154 = vunpack.c.h.b16 %v2421
    %v3155 = vunpack.c.l.b16 %v2422
    %v3156 = vunpack.c.h.b16 %v2422
    %v3157 = vunpack.c.l.b16 %v2423
    %v3158 = vunpack.c.h.b16 %v2423
    %v3159 = vunpack.c.l.b16 %v2424
    %v3160 = vunpack.c.h.b16 %v2424
    %v3161 = vunpack.c.l.b16 %v2425
    %v3162 = vunpack.c.h.b16 %v2425
    %v3163 = vunpack.c.l.b16 %v2426
    %v3164 = vunpack.c.h.b16 %v2426
    %v3165 = vunpack.c.l.b16 %v2427
    %v3166 = vunpack.c.h.b16 %v2427
    %v3167 = vunpack.c.l.b16 %v2428
    %v3168 = vunpack.c.h.b16 %v2428
    %v3169 = vunpack.c.l.b16 %v2429
    %v3170 = vunpack.c.h.b16 %v2429
    %v3171 = vunpack.c.l.b16 %v2430
    %v3172 = vunpack.c.h.b16 %v2430
    %v3173 = vunpack.c.l.b16 %v2431
    %v3174 = vunpack.c.h.b16 %v2431
    %v3175 = vunpack.c.l.b16 %v2432
    %v3176 = vunpack.c.h.b16 %v2432
    %v3177 = vunpack.c.l.b16 %v2433
    %v3178 = vunpack.c.h.b16 %v2433
    %v3179 = vunpack.c.l.b16 %v2434
    %v3180 = vunpack.c.h.b16 %v2434
    %v3181 = vunpack.c.l.b16 %v2435
    %v3182 = vunpack.c.h.b16 %v2435
    %v3183 = vunpack.c.l.b16 %v2436
    %v3184 = vunpack.c.h.b16 %v2436
    %v3185 = vunpack.c.l.b16 %v2437
    %v3186 = vunpack.c.h.b16 %v2437
    %v3187 = vunpack.c.l.b16 %v2438
    %v3188 = vunpack.c.h.b16 %v2438
    %v3189 = vunpack.c.l.b16 %v2439
    %v3190 = vunpack.c.h.b16 %v2439
    %v3191 = vunpack.c.l.b16 %v2440
    %v3192 = vunpack.c.h.b16 %v2440
    %v3193 = vunpack.c.l.b16 %v2441
    %v3194 = vunpack.c.h.b16 %v2441
    %v3195 = vunpack.c.l.b16 %v2442
    %v3196 = vunpack.c.h.b16 %v2442
    %v3197 = vunpack.c.l.b16 %v2443
    %v3198 = vunpack.c.h.b16 %v2443
    %v3199 = vunpack.c.l.b16 %v2444
    %v3200 = vunpack.c.h.b16 %v2444
    %v3201 = vunpack.c.l.b16 %v2445
    %v3202 = vunpack.c.h.b16 %v2445
    %v3203 = vunpack.c.l.b16 %v2446
    %v3204 = vunpack.c.h.b16 %v2446
    %v3205 = vunpack.c.l.b16 %v2447
    %v3206 = vunpack.c.h.b16 %v2447
    %v3207 = vunpack.c.l.b16 %v2448
    %v3208 = vunpack.c.h.b16 %v2448
    %v3209 = vunpack.c.l.b16 %v2449
    %v3210 = vunpack.c.h.b16 %v2449
    %v3211 = vunpack.c.l.b16 %v2450
    %v3212 = vunpack.c.h.b16 %v2450
    %v3213 = vunpack.c.l.b16 %v2451
    %v3214 = vunpack.c.h.b16 %v2451
    %v3215 = vunpack.c.l.b16 %v2452
    %v3216 = vunpack.c.h.b16 %v2452
    %v3217 = vunpack.c.l.b16 %v2453
    %v3218 = vunpack.c.h.b16 %v2453
    %v3219 = vunpack.c.l.b16 %v2454
    %v3220 = vunpack.c.h.b16 %v2454
    %v3221 = vunpack.c.l.b16 %v2455
    %v3222 = vunpack.c.h.b16 %v2455
    %v3223 = vunpack.c.l.b16 %v2456
    %v3224 = vunpack.c.h.b16 %v2456
    %v3225 = vunpack.c.l.b16 %v2457
    %v3226 = vunpack.c.h.b16 %v2457
    %v3227 = vunpack.c.l.b16 %v2458
    %v3228 = vunpack.c.h.b16 %v2458
    %v3229 = vunpack.c.l.b16 %v2459
    %v3230 = vunpack.c.h.b16 %v2459
    %v3231 = vunpack.c.l.b16 %v2460
    %v3232 = vunpack.c.h.b16 %v2460
    %v3233 = vunpack.c.l.b16 %v2461
    %v3234 = vunpack.c.h.b16 %v2461
    %v3235 = vunpack.c.l.b16 %v2462
    %v3236 = vunpack.c.h.b16 %v2462
    %v3237 = vunpack.c.l.b16 %v2463
    %v3238 = vunpack.c.h.b16 %v2463
    %v3239 = vunpack.c.l.b16 %v2464
    %v3240 = vunpack.c.h.b16 %v2464
    %v3241 = vunpack.c.l.b16 %v2465
    %v3242 = vunpack.c.h.b16 %v2465
    %v3243 = vunpack.c.l.b16 %v2466
    %v3244 = vunpack.c.h.b16 %v2466
    %v3245 = vunpack.c.l.b16 %v2467
    %v3246 = vunpack.c.h.b16 %v2467
    %v3247 = vunpack.c.l.b16 %v2468
    %v3248 = vunpack.c.h.b16 %v2468
    %v3249 = vunpack.c.l.b16 %v2469
    %v3250 = vunpack.c.h.b16 %v2469
    %v3251 = vunpack.c.l.b16 %v2470
    %v3252 = vunpack.c.h.b16 %v2470
    %v3253 = vunpack.c.l.b16 %v2471
    %v3254 = vunpack.c.h.b16 %v2471
    %v3255 = vunpack.c.l.b16 %v2472
    %v3256 = vunpack.c.h.b16 %v2472
    %v3257 = vunpack.c.l.b16 %v2473
    %v3258 = vunpack.c.h.b16 %v2473
    %v3259 = vunpack.c.l.b16 %v2474
    %v3260 = vunpack.c.h.b16 %v2474
    %v3261 = vunpack.c.l.b16 %v2475
    %v3262 = vunpack.c.h.b16 %v2475
    %v3263 = vunpack.c.l.b16 %v2476
    %v3264 = vunpack.c.h.b16 %v2476
    %v3265 = vunpack.c.l.b16 %v2477
    %v3266 = vunpack.c.h.b16 %v2477
    %v3267 = vunpack.c.l.b16 %v2478
    %v3268 = vunpack.c.h.b16 %v2478
    %v3269 = vunpack.c.l.b16 %v2479
    %v3270 = vunpack.c.h.b16 %v2479
    %v3271 = vunpack.c.l.b16 %v2480
    %v3272 = vunpack.c.h.b16 %v2480
    %v3273 = vunpack.c.l.b16 %v2481
    %v3274 = vunpack.c.h.b16 %v2481
    %v3275 = vunpack.c.l.b16 %v2482
    %v3276 = vunpack.c.h.b16 %v2482
    %v3277 = vunpack.c.l.b16 %v2483
    %v3278 = vunpack.c.h.b16 %v2483
    %v3279 = vunpack.c.l.b16 %v2484
    %v3280 = vunpack.c.h.b16 %v2484
    %v3281 = vunpack.c.l.b16 %v2485
    %v3282 = vunpack.c.h.b16 %v2485
    %v3283 = vunpack.c.l.b16 %v2486
    %v3284 = vunpack.c.h.b16 %v2486
    %v3285 = vunpack.c.l.b16 %v2487
    %v3286 = vunpack.c.h.b16 %v2487
    %v3287 = vunpack.c.l.b16 %v2488
    %v3288 = vunpack.c.h.b16 %v2488
    %v3289 = vunpack.c.l.b16 %v2489
    %v3290 = vunpack.c.h.b16 %v2489
    %v3291 = vunpack.c.l.b16 %v2490
    %v3292 = vunpack.c.h.b16 %v2490
    %v3293 = vunpack.c.l.b16 %v2491
    %v3294 = vunpack.c.h.b16 %v2491
    %v3295 = vunpack.c.l.b16 %v2492
    %v3296 = vunpack.c.h.b16 %v2492
    %v3297 = vunpack.c.l.b16 %v2493
    %v3298 = vunpack.c.h.b16 %v2493
    %v3299 = vunpack.c.l.b16 %v2494
    %v3300 = vunpack.c.h.b16 %v2494
    %v3301 = vunpack.c.l.b16 %v2495
    %v3302 = vunpack.c.h.b16 %v2495
    %v3303 = vunpack.c.l.b16 %v2496
    %v3304 = vunpack.c.h.b16 %v2496
    %v3305 = vunpack.c.l.b16 %v2497
    %v3306 = vunpack.c.h.b16 %v2497
    %v3307 = vunpack.c.l.b16 %v2498
    %v3308 = vunpack.c.h.b16 %v2498
    %v3309 = vpack.c.b16 %v2805, %v2797
    %v3310 = vpack.c.b16 %v2806, %v2798
    %v3311 = vpack.c.b16 %v2807, %v2799
    %v3312 = vpack.c.b16 %v2808, %v2800
    %v3313 = vpack.c.b16 %v2809, %v2801
    %v3314 = vpack.c.b16 %v2810, %v2802
    %v3315 = vpack.c.b16 %v2811, %v2803
    %v3316 = vpack.c.b16 %v2812, %v2804
    %v3317 = vpack.c.b16 %v2821, %v2813
    %v3318 = vpack.c.b16 %v2822, %v2814
    %v3319 = vpack.c.b16 %v2823, %v2815
    %v3320 = vpack.c.b16 %v2824, %v2816
    %v3321 = vpack.c.b16 %v2825, %v2817
    %v3322 = vpack.c.b16 %v2826, %v2818
    %v3323 = vpack.c.b16 %v2827, %v2819
    %v3324 = vpack.c.b16 %v2828, %v2820
    %v3325 = vpack.c.b16 %v2837, %v2829
    %v3326 = vpack.c.b16 %v2838, %v2830
    %v3327 = vpack.c.b16 %v2839, %v2831
    %v3328 = vpack.c.b16 %v2840, %v2832
    %v3329 = vpack.c.b16 %v2841, %v2833
    %v3330 = vpack.c.b16 %v2842, %v2834
    %v3331 = vpack.c.b16 %v2843, %v2835
    %v3332 = vpack.c.b16 %v2844, %v2836
    %v3333 = vpack.c.b16 %v2853, %v2845
    %v3334 = vpack.c.b16 %v2854, %v2846
    %v3335 = vpack.c.b16 %v2855, %v2847
    %v3336 = vpack.c.b16 %v2856, %v2848
    %v3337 = vpack.c.b16 %v2857, %v2849
    %v3338 = vpack.c.b16 %v2858, %v2850
    %v3339 = vpack.c.b16 %v2859, %v2851
    %v3340 = vpack.c.b16 %v2860, %v2852
    %v3341 = vpack.c.b16 %v2869, %v2861
    %v3342 = vpack.c.b16 %v2870, %v2862
    %v3343 = vpack.c.b16 %v2871, %v2863
    %v3344 = vpack.c.b16 %v2872, %v2864
    %v3345 = vpack.c.b16 %v2873, %v2865
    %v3346 = vpack.c.b16 %v2874, %v2866
    %v3347 = vpack.c.b16 %v2875, %v2867
    %v3348 = vpack.c.b16 %v2876, %v2868
    %v3349 = vpack.c.b16 %v2885, %v2877
    %v3350 = vpack.c.b16 %v2886, %v2878
    %v3351 = vpack.c.b16 %v2887, %v2879
    %v3352 = vpack.c.b16 %v2888, %v2880
    %v3353 = vpack.c.b16 %v2889, %v2881
    %v3354 = vpack.c.b16 %v2890, %v2882
    %v3355 = vpack.c.b16 %v2891, %v2883
    %v3356 = vpack.c.b16 %v2892, %v2884
    %v3357 = vpack.c.b16 %v2901, %v2893
    %v3358 = vpack.c.b16 %v2902, %v2894
    %v3359 = vpack.c.b16 %v2903, %v2895
    %v3360 = vpack.c.b16 %v2904, %v2896
    %v3361 = vpack.c.b16 %v2905, %v2897
    %v3362 = vpack.c.b16 %v2906, %v2898
    %v3363 = vpack.c.b16 %v2907, %v2899
    %v3364 = vpack.c.b16 %v2908, %v2900
    %v3365 = vpack.c.b16 %v2917, %v2909
    %v3366 = vpack.c.b16 %v2918, %v2910
    %v3367 = vpack.c.b16 %v2919, %v2911
    %v3368 = vpack.c.b16 %v2920, %v2912
    %v3369 = vpack.c.b16 %v2921, %v2913
    %v3370 = vpack.c.b16 %v2922, %v2914
    %v3371 = vpack.c.b16 %v2923, %v2915
    %v3372 = vpack.c.b16 %v2924, %v2916
    %v3373 = vpack.c.b16 %v2933, %v2925
    %v3374 = vpack.c.b16 %v2934, %v2926
    %v3375 = vpack.c.b16 %v2935, %v2927
    %v3376 = vpack.c.b16 %v2936, %v2928
    %v3377 = vpack.c.b16 %v2937, %v2929
    %v3378 = vpack.c.b16 %v2938, %v2930
    %v3379 = vpack.c.b16 %v2939, %v2931
    %v3380 = vpack.c.b16 %v2940, %v2932
    %v3381 = vpack.c.b16 %v2949, %v2941
    %v3382 = vpack.c.b16 %v2950, %v2942
    %v3383 = vpack.c.b16 %v2951, %v2943
    %v3384 = vpack.c.b16 %v2952, %v2944
    %v3385 = vpack.c.b16 %v2953, %v2945
    %v3386 = vpack.c.b16 %v2954, %v2946
    %v3387 = vpack.c.b16 %v2955, %v2947
    %v3388 = vpack.c.b16 %v2956, %v2948
    %v3389 = vpack.c.b16 %v2965, %v2957
    %v3390 = vpack.c.b16 %v2966, %v2958
    %v3391 = vpack.c.b16 %v2967, %v2959
    %v3392 = vpack.c.b16 %v2968, %v2960
    %v3393 = vpack.c.b16 %v2969, %v2961
    %v3394 = vpack.c.b16 %v2970, %v2962
    %v3395 = vpack.c.b16 %v2971, %v2963
    %v3396 = vpack.c.b16 %v2972, %v2964
    %v3397 = vpack.c.b16 %v2981, %v2973
    %v3398 = vpack.c.b16 %v2982, %v2974
    %v3399 = vpack.c.b16 %v2983, %v2975
    %v3400 = vpack.c.b16 %v2984, %v2976
    %v3401 = vpack.c.b16 %v2985, %v2977
    %v3402 = vpack.c.b16 %v2986, %v2978
    %v3403 = vpack.c.b16 %v2987, %v2979
    %v3404 = vpack.c.b16 %v2988, %v2980
    %v3405 = vpack.c.b16 %v2997, %v2989
    %v3406 = vpack.c.b16 %v2998, %v2990
    %v3407 = vpack.c.b16 %v2999, %v2991
    %v3408 = vpack.c.b16 %v3000, %v2992
    %v3409 = vpack.c.b16 %v3001, %v2993
    %v3410 = vpack.c.b16 %v3002, %v2994
    %v3411 = vpack.c.b16 %v3003, %v2995
    %v3412 = vpack.c.b16 %v3004, %v2996
    %v3413 = vpack.c.b16 %v3013, %v3005
    %v3414 = vpack.c.b16 %v3014, %v3006
    %v3415 = vpack.c.b16 %v3015, %v3007
    %v3416 = vpack.c.b16 %v3016, %v3008
    %v3417 = vpack.c.b16 %v3017, %v3009
    %v3418 = vpack.c.b16 %v3018, %v3010
    %v3419 = vpack.c.b16 %v3019, %v3011
    %v3420 = vpack.c.b16 %v3020, %v3012
    %v3421 = vpack.c.b16 %v3029, %v3021
    %v3422 = vpack.c.b16 %v3030, %v3022
    %v3423 = vpack.c.b16 %v3031, %v3023
    %v3424 = vpack.c.b16 %v3032, %v3024
    %v3425 = vpack.c.b16 %v3033, %v3025
    %v3426 = vpack.c.b16 %v3034, %v3026
    %v3427 = vpack.c.b16 %v3035, %v3027
    %v3428 = vpack.c.b16 %v3036, %v3028
    %v3429 = vpack.c.b16 %v3045, %v3037
    %v3430 = vpack.c.b16 %v3046, %v3038
    %v3431 = vpack.c.b16 %v3047, %v3039
    %v3432 = vpack.c.b16 %v3048, %v3040
    %v3433 = vpack.c.b16 %v3049, %v3041
    %v3434 = vpack.c.b16 %v3050, %v3042
    %v3435 = vpack.c.b16 %v3051, %v3043
    %v3436 = vpack.c.b16 %v3052, %v3044
    %v3437 = vpack.c.b16 %v3061, %v3053
    %v3438 = vpack.c.b16 %v3062, %v3054
    %v3439 = vpack.c.b16 %v3063, %v3055
    %v3440 = vpack.c.b16 %v3064, %v3056
    %v3441 = vpack.c.b16 %v3065, %v3057
    %v3442 = vpack.c.b16 %v3066, %v3058
    %v3443 = vpack.c.b16 %v3067, %v3059
    %v3444 = vpack.c.b16 %v3068, %v3060
    %v3445 = vpack.c.b16 %v3077, %v3069
    %v3446 = vpack.c.b16 %v3078, %v3070
    %v3447 = vpack.c.b16 %v3079, %v3071
    %v3448 = vpack.c.b16 %v3080, %v3072
    %v3449 = vpack.c.b16 %v3081, %v3073
    %v3450 = vpack.c.b16 %v3082, %v3074
    %v3451 = vpack.c.b16 %v3083, %v3075
    %v3452 = vpack.c.b16 %v3084, %v3076
    %v3453 = vpack.c.b16 %v3093, %v3085
    %v3454 = vpack.c.b16 %v3094, %v3086
    %v3455 = vpack.c.b16 %v3095, %v3087
    %v3456 = vpack.c.b16 %v3096, %v3088
    %v3457 = vpack.c.b16 %v3097, %v3089
    %v3458 = vpack.c.b16 %v3098, %v3090
    %v3459 = vpack.c.b16 %v3099, %v3091
    %v3460 = vpack.c.b16 %v3100, %v3092
    %v3461 = vpack.c.b16 %v3109, %v3101
    %v3462 = vpack.c.b16 %v3110, %v3102
    %v3463 = vpack.c.b16 %v3111, %v3103
    %v3464 = vpack.c.b16 %v3112, %v3104
    %v3465 = vpack.c.b16 %v3113, %v3105
    %v3466 = vpack.c.b16 %v3114, %v3106
    %v3467 = vpack.c.b16 %v3115, %v3107
    %v3468 = vpack.c.b16 %v3116, %v3108
    %v3469 = vpack.c.b16 %v3125, %v3117
    %v3470 = vpack.c.b16 %v3126, %v3118
    %v3471 = vpack.c.b16 %v3127, %v3119
    %v3472 = vpack.c.b16 %v3128, %v3120
    %v3473 = vpack.c.b16 %v3129, %v3121
    %v3474 = vpack.c.b16 %v3130, %v3122
    %v3475 = vpack.c.b16 %v3131, %v3123
    %v3476 = vpack.c.b16 %v3132, %v3124
    %v3477 = vpack.c.b16 %v3141, %v3133
    %v3478 = vpack.c.b16 %v3142, %v3134
    %v3479 = vpack.c.b16 %v3143, %v3135
    %v3480 = vpack.c.b16 %v3144, %v3136
    %v3481 = vpack.c.b16 %v3145, %v3137
    %v3482 = vpack.c.b16 %v3146, %v3138
    %v3483 = vpack.c.b16 %v3147, %v3139
    %v3484 = vpack.c.b16 %v3148, %v3140
    %v3485 = vpack.c.b16 %v3157, %v3149
    %v3486 = vpack.c.b16 %v3158, %v3150
    %v3487 = vpack.c.b16 %v3159, %v3151
    %v3488 = vpack.c.b16 %v3160, %v3152
    %v3489 = vpack.c.b16 %v3161, %v3153
    %v3490 = vpack.c.b16 %v3162, %v3154
    %v3491 = vpack.c.b16 %v3163, %v3155
    %v3492 = vpack.c.b16 %v3164, %v3156
    %v3493 = vpack.c.b16 %v3173, %v3165
    %v3494 = vpack.c.b16 %v3174, %v3166
    %v3495 = vpack.c.b16 %v3175, %v3167
    %v3496 = vpack.c.b16 %v3176, %v3168
    %v3497 = vpack.c.b16 %v3177, %v3169
    %v3498 = vpack.c.b16 %v3178, %v3170
    %v3499 = vpack.c.b16 %v3179, %v3171
    %v3500 = vpack.c.b16 %v3180, %v3172
    %v3501 = vpack.c.b16 %v3189, %v3181
    %v3502 = vpack.c.b16 %v3190, %v3182
    %v3503 = vpack.c.b16 %v3191, %v3183
    %v3504 = vpack.c.b16 %v3192, %v3184
    %v3505 = vpack.c.b16 %v3193, %v3185
    %v3506 = vpack.c.b16 %v3194, %v3186
    %v3507 = vpack.c.b16 %v3195, %v3187
    %v3508 = vpack.c.b16 %v3196, %v3188
    %v3509 = vpack.c.b16 %v3205, %v3197
    %v3510 = vpack.c.b16 %v3206, %v3198
    %v3511 = vpack.c.b16 %v3207, %v3199
    %v3512 = vpack.c.b16 %v3208, %v3200
    %v3513 = vpack.c.b16 %v3209, %v3201
    %v3514 = vpack.c.b16 %v3210, %v3202
    %v3515 = vpack.c.b16 %v3211, %v3203
    %v3516 = vpack.c.b16 %v3212, %v3204
    %v3517 = vpack.c.b16 %v3221, %v3213
    %v3518 = vpack.c.b16 %v3222, %v3214
    %v3519 = vpack.c.b16 %v3223, %v3215
    %v3520 = vpack.c.b16 %v3224, %v3216
    %v3521 = vpack.c.b16 %v3225, %v3217
    %v3522 = vpack.c.b16 %v3226, %v3218
    %v3523 = vpack.c.b16 %v3227, %v3219
    %v3524 = vpack.c.b16 %v3228, %v3220
    %v3525 = vpack.c.b16 %v3237, %v3229
    %v3526 = vpack.c.b16 %v3238, %v3230
    %v3527 = vpack.c.b16 %v3239, %v3231
    %v3528 = vpack.c.b16 %v3240, %v3232
    %v3529 = vpack.c.b16 %v3241, %v3233
    %v3530 = vpack.c.b16 %v3242, %v3234
    %v3531 = vpack.c.b16 %v3243, %v3235
    %v3532 = vpack.c.b16 %v3244, %v3236
    %v3533 = vpack.c.b16 %v3253, %v3245
    %v3534 = vpack.c.b16 %v3254, %v3246
    %v3535 = vpack.c.b16 %v3255, %v3247
    %v3536 = vpack.c.b16 %v3256, %v3248
    %v3537 = vpack.c.b16 %v3257, %v3249
    %v3538 = vpack.c.b16 %v3258, %v3250
    %v3539 = vpack.c.b16 %v3259, %v3251
    %v3540 = vpack.c.b16 %v3260, %v3252
    %v3541 = vpack.c.b16 %v3269, %v3261
    %v3542 = vpack.c.b16 %v3270, %v3262
    %v3543 = vpack.c.b16 %v3271, %v3263
    %v3544 = vpack.c.b16 %v3272, %v3264
    %v3545 = vpack.c.b16 %v3273, %v3265
    %v3546 = vpack.c.b16 %v3274, %v3266
    %v3547 = vpack.c.b16 %v3275, %v3267
    %v3548 = vpack.c.b16 %v3276, %v3268
    %v3549 = vpack.c.b16 %v3285, %v3277
    %v3550 = vpack.c.b16 %v3286, %v3278
    %v3551 = vpack.c.b16 %v3287, %v3279
    %v3552 = vpack.c.b16 %v3288, %v3280
    %v3553 = vpack.c.b16 %v3289, %v3281
    %v3554 = vpack.c.b16 %v3290, %v3282
    %v3555 = vpack.c.b16 %v3291, %v3283
    %v3556 = vpack.c.b16 %v3292, %v3284
    %v3557 = vpack.c.b16 %v3301, %v3293
    %v3558 = vpack.c.b16 %v3302, %v3294
    %v3559 = vpack.c.b16 %v3303, %v3295
    %v3560 = vpack.c.b16 %v3304, %v3296
    %v3561 = vpack.c.b16 %v3305, %v3297
    %v3562 = vpack.c.b16 %v3306, %v3298
    %v3563 = vpack.c.b16 %v3307, %v3299
    %v3564 = vpack.c.b16 %v3308, %v3300
    %3821 = vmatprep.subr.bf16.mxu0 %v3310
    %3822 = vmatpush1.bf16.msra.mxu0 %v3309
    %3823 = vmatprep.subr.bf16.mxu0 %v3318
    %3824 = vmatpush1.bf16.msra.mxu0 %v3317
    %3825 = vmatprep.subr.bf16.mxu0 %v3326
    %3826 = vmatpush1.bf16.msra.mxu0 %v3325
    %3827 = vmatprep.subr.bf16.mxu0 %v3334
    %3828 = vmatpush1.bf16.msra.mxu0 %v3333
    %3829 = vmatprep.subr.bf16.mxu0 %v3342
    %3830 = vmatpush1.bf16.msra.mxu0 %v3341
    %3831 = vmatprep.subr.bf16.mxu0 %v3350
    %3832 = vmatpush1.bf16.msra.mxu0 %v3349
    %3833 = vmatprep.subr.bf16.mxu0 %v3358
    %3834 = vmatpush1.bf16.msra.mxu0 %v3357
    %3835 = vmatprep.subr.bf16.mxu0 %v3366
    %3836 = vmatpush1.bf16.msra.mxu0 %v3365
    %3837 = vmatprep.subr.bf16.mxu0 %v3374
    %3838 = vmatpush1.bf16.msra.mxu0 %v3373
    %3839 = vmatprep.subr.bf16.mxu0 %v3382
    %3840 = vmatpush1.bf16.msra.mxu0 %v3381
    %3841 = vmatprep.subr.bf16.mxu0 %v3390
    %3842 = vmatpush1.bf16.msra.mxu0 %v3389
    %3843 = vmatprep.subr.bf16.mxu0 %v3398
    %3844 = vmatpush1.bf16.msra.mxu0 %v3397
    %3845 = vmatprep.subr.bf16.mxu0 %v3406
    %3846 = vmatpush1.bf16.msra.mxu0 %v3405
    %3847 = vmatprep.subr.bf16.mxu0 %v3414
    %3848 = vmatpush1.bf16.msra.mxu0 %v3413
    %3849 = vmatprep.subr.bf16.mxu0 %v3422
    %3850 = vmatpush1.bf16.msra.mxu0 %v3421
    %3851 = vmatprep.subr.bf16.mxu0 %v3430
    %3852 = vmatpush1.bf16.msra.mxu0 %v3429
    %3853 = vmatprep.mubr.bf16.mxu0 %v2144
    %3854 = vmatmul.mubr.bf16.gmra.mrb[0].mxu0 %v2143
    %v3855 = vpop.f32.mrb[0].mxu0
    %v3856 = vadd.f32 %v2504, %v3855
    %v3857 = vpop.f32.mrb[0].mxu0
    %v3858 = vadd.f32 %v2508, %v3857
    %v3859 = vpop.f32.mrb[0].mxu0
    %v3860 = vadd.f32 %v2504, %v3859
    %v3861 = vpop.f32.mrb[0].mxu0
    %v3862 = vadd.f32 %v2508, %v3861
    %3863 = vmatprep.mubr.bf16.mxu0 %v2148
    %3864 = vmatmul.mubr.bf16.gmra.mrb[0].mxu0 %v2147
    %v3865 = vpop.f32.mrb[0].mxu0
    %v3866 = vadd.f32 %v2504, %v3865
    %v3867 = vpop.f32.mrb[0].mxu0
    %v3868 = vadd.f32 %v2508, %v3867
    %v3869 = vpop.f32.mrb[0].mxu0
    %v3870 = vadd.f32 %v2504, %v3869
    %v3871 = vpop.f32.mrb[0].mxu0
    %v3872 = vadd.f32 %v2508, %v3871
    %3873 = vmatprep.mubr.bf16.mxu0 %v2152
    %3874 = vmatmul.mubr.bf16.gmra.mrb[0].mxu0 %v2151
    %v3875 = vpop.f32.mrb[0].mxu0
    %v3876 = vadd.f32 %v2504, %v3875
    %v3877 = vpop.f32.mrb[0].mxu0
    %v3878 = vadd.f32 %v2508, %v3877
    %v3879 = vpop.f32.mrb[0].mxu0
    %v3880 = vadd.f32 %v2504, %v3879
    %v3881 = vpop.f32.mrb[0].mxu0
    %v3882 = vadd.f32 %v2508, %v3881
    %3883 = vmatprep.mubr.bf16.mxu0 %v2156
    %3884 = vmatmul.mubr.bf16.gmra.mrb[0].mxu0 %v2155
    %v3885 = vpop.f32.mrb[0].mxu0
    %v3886 = vadd.f32 %v2504, %v3885
    %v3887 = vpop.f32.mrb[0].mxu0
    %v3888 = vadd.f32 %v2508, %v3887
    %v3889 = vpop.f32.mrb[0].mxu0
    %v3890 = vadd.f32 %v2504, %v3889
    %v3891 = vpop.f32.mrb[0].mxu0
    %v3892 = vadd.f32 %v2508, %v3891
    %3893 = vmatprep.mubr.bf16.mxu0 %v2160
    %3894 = vmatmul.mubr.bf16.gmra.mrb[0].mxu0 %v2159
    %v3895 = vpop.f32.mrb[0].mxu0
    %v3896 = vadd.f32 %v2504, %v3895
    %v3897 = vpop.f32.mrb[0].mxu0
    %v3898 = vadd.f32 %v2508, %v3897
    %v3899 = vpop.f32.mrb[0].mxu0
    %v3900 = vadd.f32 %v2504, %v3899
    %v3901 = vpop.f32.mrb[0].mxu0
    %v3902 = vadd.f32 %v2508, %v3901
    %3903 = vmatprep.mubr.bf16.mxu0 %v2164
    %3904 = vmatmul.mubr.bf16.gmra.mrb[0].mxu0 %v2163
    %v3905 = vpop.f32.mrb[0].mxu0
    %v3906 = vadd.f32 %v2504, %v3905
    %v3907 = vpop.f32.mrb[0].mxu0
    %v3908 = vadd.f32 %v2508, %v3907
    %v3909 = vpop.f32.mrb[0].mxu0
    %v3910 = vadd.f32 %v2504, %v3909
    %v3911 = vpop.f32.mrb[0].mxu0
    %v3912 = vadd.f32 %v2508, %v3911
    %3913 = vmatprep.mubr.bf16.mxu0 %v2168
    %3914 = vmatmul.mubr.bf16.gmra.mrb[0].mxu0 %v2167
    %v3915 = vpop.f32.mrb[0].mxu0
    %v3916 = vadd.f32 %v2504, %v3915
    %v3917 = vpop.f32.mrb[0].mxu0
    %v3918 = vadd.f32 %v2508, %v3917
    %v3919 = vpop.f32.mrb[0].mxu0
    %v3920 = vadd.f32 %v2504, %v3919
    %v3921 = vpop.f32.mrb[0].mxu0
    %v3922 = vadd.f32 %v2508, %v3921
    %3923 = vmatprep.mubr.bf16.mxu0 %v2172
    %3924 = vmatmul.mubr.bf16.gmra.mrb[0].mxu0 %v2171
    %v3925 = vpop.f32.mrb[0].mxu0
    %v3926 = vadd.f32 %v2504, %v3925
    %v3927 = vpop.f32.mrb[0].mxu0
    %v3928 = vadd.f32 %v2508, %v3927
    %v3929 = vpop.f32.mrb[0].mxu0
    %v3930 = vadd.f32 %v2504, %v3929
    %v3931 = vpop.f32.mrb[0].mxu0
    %v3932 = vadd.f32 %v2508, %v3931
    %3933 = vmatprep.mubr.bf16.mxu0 %v2176
    %3934 = vmatmul.mubr.bf16.gmra.mrb[0].mxu0 %v2175
    %v3935 = vpop.f32.mrb[0].mxu0
    %v3936 = vadd.f32 %v2504, %v3935
    %v3937 = vpop.f32.mrb[0].mxu0
    %v3938 = vadd.f32 %v2508, %v3937
    %v3939 = vpop.f32.mrb[0].mxu0
    %v3940 = vadd.f32 %v2504, %v3939
    %v3941 = vpop.f32.mrb[0].mxu0
    %v3942 = vadd.f32 %v2508, %v3941
    %3943 = vmatprep.mubr.bf16.mxu0 %v2180
    %3944 = vmatmul.mubr.bf16.gmra.mrb[0].mxu0 %v2179
    %v3945 = vpop.f32.mrb[0].mxu0
    %v3946 = vadd.f32 %v2504, %v3945
    %v3947 = vpop.f32.mrb[0].mxu0
    %v3948 = vadd.f32 %v2508, %v3947
    %v3949 = vpop.f32.mrb[0].mxu0
    %v3950 = vadd.f32 %v2504, %v3949
    %v3951 = vpop.f32.mrb[0].mxu0
    %v3952 = vadd.f32 %v2508, %v3951
    %3953 = vmatprep.mubr.bf16.mxu0 %v2184
    %3954 = vmatmul.mubr.bf16.gmra.mrb[0].mxu0 %v2183
    %v3955 = vpop.f32.mrb[0].mxu0
    %v3956 = vadd.f32 %v2504, %v3955
    %v3957 = vpop.f32.mrb[0].mxu0
    %v3958 = vadd.f32 %v2508, %v3957
    %v3959 = vpop.f32.mrb[0].mxu0
    %v3960 = vadd.f32 %v2504, %v3959
    %v3961 = vpop.f32.mrb[0].mxu0
    %v3962 = vadd.f32 %v2508, %v3961
    %3963 = vmatprep.mubr.bf16.mxu0 %v2188
    %3964 = vmatmul.mubr.bf16.gmra.mrb[0].mxu0 %v2187
    %v3965 = vpop.f32.mrb[0].mxu0
    %v3966 = vadd.f32 %v2504, %v3965
    %v3967 = vpop.f32.mrb[0].mxu0
    %v3968 = vadd.f32 %v2508, %v3967
    %v3969 = vpop.f32.mrb[0].mxu0
    %v3970 = vadd.f32 %v2504, %v3969
    %v3971 = vpop.f32.mrb[0].mxu0
    %v3972 = vadd.f32 %v2508, %v3971
    %3973 = vmatprep.mubr.bf16.mxu0 %v2192
    %3974 = vmatmul.mubr.bf16.gmra.mrb[0].mxu0 %v2191
    %v3975 = vpop.f32.mrb[0].mxu0
    %v3976 = vadd.f32 %v2504, %v3975
    %v3977 = vpop.f32.mrb[0].mxu0
    %v3978 = vadd.f32 %v2508, %v3977
    %v3979 = vpop.f32.mrb[0].mxu0
    %v3980 = vadd.f32 %v2504, %v3979
    %v3981 = vpop.f32.mrb[0].mxu0
    %v3982 = vadd.f32 %v2508, %v3981
    %3983 = vmatprep.mubr.bf16.mxu0 %v2196
    %3984 = vmatmul.mubr.bf16.gmra.mrb[0].mxu0 %v2195
    %v3985 = vpop.f32.mrb[0].mxu0
    %v3986 = vadd.f32 %v2504, %v3985
    %v3987 = vpop.f32.mrb[0].mxu0
    %v3988 = vadd.f32 %v2508, %v3987
    %v3989 = vpop.f32.mrb[0].mxu0
    %v3990 = vadd.f32 %v2504, %v3989
    %v3991 = vpop.f32.mrb[0].mxu0
    %v3992 = vadd.f32 %v2508, %v3991
    %3993 = vmatprep.mubr.bf16.mxu0 %v2200
    %3994 = vmatmul.mubr.bf16.gmra.mrb[0].mxu0 %v2199
    %v3995 = vpop.f32.mrb[0].mxu0
    %v3996 = vadd.f32 %v2504, %v3995
    %v3997 = vpop.f32.mrb[0].mxu0
    %v3998 = vadd.f32 %v2508, %v3997
    %v3999 = vpop.f32.mrb[0].mxu0
    %v4000 = vadd.f32 %v2504, %v3999
    %v4001 = vpop.f32.mrb[0].mxu0
    %v4002 = vadd.f32 %v2508, %v4001
    %4003 = vmatprep.mubr.bf16.mxu0 %v2204
    %4004 = vmatmul.mubr.bf16.gmra.mrb[0].mxu0 %v2203
    %v4005 = vpop.f32.mrb[0].mxu0
    %v4006 = vadd.f32 %v2504, %v4005
    %v4007 = vpop.f32.mrb[0].mxu0
    %v4008 = vadd.f32 %v2508, %v4007
    %v4009 = vpop.f32.mrb[0].mxu0
    %v4010 = vadd.f32 %v2504, %v4009
    %v4011 = vpop.f32.mrb[0].mxu0
    %v4012 = vadd.f32 %v2508, %v4011
    %4013 = vmatprep.mubr.bf16.mxu0 %v2208
    %4014 = vmatmul.mubr.bf16.gmra.mrb[0].mxu0 %v2207
    %v4015 = vpop.f32.mrb[0].mxu0
    %v4016 = vadd.f32 %v2504, %v4015
    %v4017 = vpop.f32.mrb[0].mxu0
    %v4018 = vadd.f32 %v2508, %v4017
    %v4019 = vpop.f32.mrb[0].mxu0
    %v4020 = vadd.f32 %v2504, %v4019
    %v4021 = vpop.f32.mrb[0].mxu0
    %v4022 = vadd.f32 %v2508, %v4021
    %4023 = vmatprep.mubr.bf16.mxu0 %v2212
    %4024 = vmatmul.mubr.bf16.gmra.mrb[0].mxu0 %v2211
    %v4025 = vpop.f32.mrb[0].mxu0
    %v4026 = vadd.f32 %v2504, %v4025
    %v4027 = vpop.f32.mrb[0].mxu0
    %v4028 = vadd.f32 %v2508, %v4027
    %v4029 = vpop.f32.mrb[0].mxu0
    %v4030 = vadd.f32 %v2504, %v4029
    %v4031 = vpop.f32.mrb[0].mxu0
    %v4032 = vadd.f32 %v2508, %v4031
    %4033 = vmatprep.mubr.bf16.mxu0 %v2216
    %4034 = vmatmul.mubr.bf16.gmra.mrb[0].mxu0 %v2215
    %v4035 = vpop.f32.mrb[0].mxu0
    %v4036 = vadd.f32 %v2504, %v4035
    %v4037 = vpop.f32.mrb[0].mxu0
    %v4038 = vadd.f32 %v2508, %v4037
    %v4039 = vpop.f32.mrb[0].mxu0
    %v4040 = vadd.f32 %v2504, %v4039
    %v4041 = vpop.f32.mrb[0].mxu0
    %v4042 = vadd.f32 %v2508, %v4041
    %4043 = vmatprep.mubr.bf16.mxu0 %v2220
    %4044 = vmatmul.mubr.bf16.gmra.mrb[0].mxu0 %v2219
    %v4045 = vpop.f32.mrb[0].mxu0
    %v4046 = vadd.f32 %v2504, %v4045
    %v4047 = vpop.f32.mrb[0].mxu0
    %v4048 = vadd.f32 %v2508, %v4047
    %v4049 = vpop.f32.mrb[0].mxu0
    %v4050 = vadd.f32 %v2504, %v4049
    %v4051 = vpop.f32.mrb[0].mxu0
    %v4052 = vadd.f32 %v2508, %v4051
    %4053 = vmatprep.mubr.bf16.mxu0 %v2224
    %4054 = vmatmul.mubr.bf16.gmra.mrb[0].mxu0 %v2223
    %v4055 = vpop.f32.mrb[0].mxu0
    %v4056 = vadd.f32 %v2504, %v4055
    %v4057 = vpop.f32.mrb[0].mxu0
    %v4058 = vadd.f32 %v2508, %v4057
    %v4059 = vpop.f32.mrb[0].mxu0
    %v4060 = vadd.f32 %v2504, %v4059
    %v4061 = vpop.f32.mrb[0].mxu0
    %v4062 = vadd.f32 %v2508, %v4061
    %4063 = vmatprep.mubr.bf16.mxu0 %v2228
    %4064 = vmatmul.mubr.bf16.gmra.mrb[0].mxu0 %v2227
    %v4065 = vpop.f32.mrb[0].mxu0
    %v4066 = vadd.f32 %v2504, %v4065
    %v4067 = vpop.f32.mrb[0].mxu0
    %v4068 = vadd.f32 %v2508, %v4067
    %v4069 = vpop.f32.mrb[0].mxu0
    %v4070 = vadd.f32 %v2504, %v4069
    %v4071 = vpop.f32.mrb[0].mxu0
    %v4072 = vadd.f32 %v2508, %v4071
    %4073 = vmatprep.mubr.bf16.mxu0 %v2232
    %4074 = vmatmul.mubr.bf16.gmra.mrb[0].mxu0 %v2231
    %v4075 = vpop.f32.mrb[0].mxu0
    %v4076 = vadd.f32 %v2504, %v4075
    %v4077 = vpop.f32.mrb[0].mxu0
    %v4078 = vadd.f32 %v2508, %v4077
    %v4079 = vpop.f32.mrb[0].mxu0
    %v4080 = vadd.f32 %v2504, %v4079
    %v4081 = vpop.f32.mrb[0].mxu0
    %v4082 = vadd.f32 %v2508, %v4081
    %4083 = vmatprep.mubr.bf16.mxu0 %v2236
    %4084 = vmatmul.mubr.bf16.gmra.mrb[0].mxu0 %v2235
    %v4085 = vpop.f32.mrb[0].mxu0
    %v4086 = vadd.f32 %v2504, %v4085
    %v4087 = vpop.f32.mrb[0].mxu0
    %v4088 = vadd.f32 %v2508, %v4087
    %v4089 = vpop.f32.mrb[0].mxu0
    %v4090 = vadd.f32 %v2504, %v4089
    %v4091 = vpop.f32.mrb[0].mxu0
    %v4092 = vadd.f32 %v2508, %v4091
    %4093 = vmatprep.mubr.bf16.mxu0 %v2240
    %4094 = vmatmul.mubr.bf16.gmra.mrb[0].mxu0 %v2239
    %v4095 = vpop.f32.mrb[0].mxu0
    %v4096 = vadd.f32 %v2504, %v4095
    %v4097 = vpop.f32.mrb[0].mxu0
    %v4098 = vadd.f32 %v2508, %v4097
    %v4099 = vpop.f32.mrb[0].mxu0
    %v4100 = vpop.f32.mrb[0].mxu0
    %4101 = vdwg.mxu0
    %4102 = vmatprep.subr.bf16.mxu0 %v3438
    %4103 = vmatpush1.bf16.msra.mxu0 %v3437
    %4104 = vmatprep.subr.bf16.mxu0 %v3446
    %4105 = vmatpush1.bf16.msra.mxu0 %v3445
    %4106 = vmatprep.subr.bf16.mxu0 %v3454
    %4107 = vmatpush1.bf16.msra.mxu0 %v3453
    %4108 = vmatprep.subr.bf16.mxu0 %v3462
    %4109 = vmatpush1.bf16.msra.mxu0 %v3461
    %4110 = vmatprep.subr.bf16.mxu0 %v3470
    %4111 = vmatpush1.bf16.msra.mxu0 %v3469
    %4112 = vmatprep.subr.bf16.mxu0 %v3478
    %4113 = vmatpush1.bf16.msra.mxu0 %v3477
    %4114 = vmatprep.subr.bf16.mxu0 %v3486
    %4115 = vmatpush1.bf16.msra.mxu0 %v3485
    %4116 = vmatprep.subr.bf16.mxu0 %v3494
    %4117 = vmatpush1.bf16.msra.mxu0 %v3493
    %4118 = vmatprep.subr.bf16.mxu0 %v3502
    %4119 = vmatpush1.bf16.msra.mxu0 %v3501
    %4120 = vmatprep.subr.bf16.mxu0 %v3510
    %4121 = vmatpush1.bf16.msra.mxu0 %v3509
    %4122 = vmatprep.subr.bf16.mxu0 %v3518
    %4123 = vmatpush1.bf16.msra.mxu0 %v3517
    %4124 = vmatprep.subr.bf16.mxu0 %v3526
    %4125 = vmatpush1.bf16.msra.mxu0 %v3525
    %4126 = vmatprep.subr.bf16.mxu0 %v3534
    %4127 = vmatpush1.bf16.msra.mxu0 %v3533
    %4128 = vmatprep.subr.bf16.mxu0 %v3542
    %4129 = vmatpush1.bf16.msra.mxu0 %v3541
    %4130 = vmatprep.subr.bf16.mxu0 %v3550
    %4131 = vmatpush1.bf16.msra.mxu0 %v3549
    %4132 = vmatprep.subr.bf16.mxu0 %v3558
    %4133 = vmatpush1.bf16.msra.mxu0 %v3557
    %4134 = vmatprep.mubr.bf16.mxu0 %v2146
    %4135 = vmatmul.mubr.bf16.gmra.mrb[0].mxu0 %v2145
    %v4136 = vpop.f32.mrb[0].mxu0
    %v4137 = vadd.f32 %v3856, %v4136
    %v4138 = vpop.f32.mrb[0].mxu0
    %v4139 = vadd.f32 %v3858, %v4138
    %v4140 = vpop.f32.mrb[0].mxu0
    %v4141 = vadd.f32 %v3860, %v4140
    %v4142 = vpop.f32.mrb[0].mxu0
    %v4143 = vadd.f32 %v3862, %v4142
    %4144 = vmatprep.mubr.bf16.mxu0 %v2150
    %4145 = vmatmul.mubr.bf16.gmra.mrb[0].mxu0 %v2149
    %v4146 = vpop.f32.mrb[0].mxu0
    %v4147 = vadd.f32 %v3866, %v4146
    %v4148 = vpop.f32.mrb[0].mxu0
    %v4149 = vadd.f32 %v3868, %v4148
    %v4150 = vpop.f32.mrb[0].mxu0
    %v4151 = vadd.f32 %v3870, %v4150
    %v4152 = vpop.f32.mrb[0].mxu0
    %v4153 = vadd.f32 %v3872, %v4152
    %4154 = vmatprep.mubr.bf16.mxu0 %v2154
    %4155 = vmatmul.mubr.bf16.gmra.mrb[0].mxu0 %v2153
    %v4156 = vpop.f32.mrb[0].mxu0
    %v4157 = vadd.f32 %v3876, %v4156
    %v4158 = vpop.f32.mrb[0].mxu0
    %v4159 = vadd.f32 %v3878, %v4158
    %v4160 = vpop.f32.mrb[0].mxu0
    %v4161 = vadd.f32 %v3880, %v4160
    %v4162 = vpop.f32.mrb[0].mxu0
    %v4163 = vadd.f32 %v3882, %v4162
    %4164 = vmatprep.mubr.bf16.mxu0 %v2158
    %4165 = vmatmul.mubr.bf16.gmra.mrb[0].mxu0 %v2157
    %v4166 = vpop.f32.mrb[0].mxu0
    %v4167 = vadd.f32 %v3886, %v4166
    %v4168 = vpop.f32.mrb[0].mxu0
    %v4169 = vadd.f32 %v3888, %v4168
    %v4170 = vpop.f32.mrb[0].mxu0
    %v4171 = vadd.f32 %v3890, %v4170
    %v4172 = vpop.f32.mrb[0].mxu0
    %v4173 = vadd.f32 %v3892, %v4172
    %4174 = vmatprep.mubr.bf16.mxu0 %v2162
    %4175 = vmatmul.mubr.bf16.gmra.mrb[0].mxu0 %v2161
    %v4176 = vpop.f32.mrb[0].mxu0
    %v4177 = vadd.f32 %v3896, %v4176
    %v4178 = vpop.f32.mrb[0].mxu0
    %v4179 = vadd.f32 %v3898, %v4178
    %v4180 = vpop.f32.mrb[0].mxu0
    %v4181 = vadd.f32 %v3900, %v4180
    %v4182 = vpop.f32.mrb[0].mxu0
    %v4183 = vadd.f32 %v3902, %v4182
    %4184 = vmatprep.mubr.bf16.mxu0 %v2166
    %4185 = vmatmul.mubr.bf16.gmra.mrb[0].mxu0 %v2165
    %v4186 = vpop.f32.mrb[0].mxu0
    %v4187 = vadd.f32 %v3906, %v4186
    %v4188 = vpop.f32.mrb[0].mxu0
    %v4189 = vadd.f32 %v3908, %v4188
    %v4190 = vpop.f32.mrb[0].mxu0
    %v4191 = vadd.f32 %v3910, %v4190
    %v4192 = vpop.f32.mrb[0].mxu0
    %v4193 = vadd.f32 %v3912, %v4192
    %4194 = vmatprep.mubr.bf16.mxu0 %v2170
    %4195 = vmatmul.mubr.bf16.gmra.mrb[0].mxu0 %v2169
    %v4196 = vpop.f32.mrb[0].mxu0
    %v4197 = vadd.f32 %v3916, %v4196
    %v4198 = vpop.f32.mrb[0].mxu0
    %v4199 = vadd.f32 %v3918, %v4198
    %v4200 = vpop.f32.mrb[0].mxu0
    %v4201 = vadd.f32 %v3920, %v4200
    %v4202 = vpop.f32.mrb[0].mxu0
    %v4203 = vadd.f32 %v3922, %v4202
    %4204 = vmatprep.mubr.bf16.mxu0 %v2174
    %4205 = vmatmul.mubr.bf16.gmra.mrb[0].mxu0 %v2173
    %v4206 = vpop.f32.mrb[0].mxu0
    %v4207 = vadd.f32 %v3926, %v4206
    %v4208 = vpop.f32.mrb[0].mxu0
    %v4209 = vadd.f32 %v3928, %v4208
    %v4210 = vpop.f32.mrb[0].mxu0
    %v4211 = vadd.f32 %v3930, %v4210
    %v4212 = vpop.f32.mrb[0].mxu0
    %v4213 = vadd.f32 %v3932, %v4212
    %4214 = vmatprep.mubr.bf16.mxu0 %v2178
    %4215 = vmatmul.mubr.bf16.gmra.mrb[0].mxu0 %v2177
    %v4216 = vpop.f32.mrb[0].mxu0
    %v4217 = vadd.f32 %v3936, %v4216
    %v4218 = vpop.f32.mrb[0].mxu0
    %v4219 = vadd.f32 %v3938, %v4218
    %v4220 = vpop.f32.mrb[0].mxu0
    %v4221 = vadd.f32 %v3940, %v4220
    %v4222 = vpop.f32.mrb[0].mxu0
    %v4223 = vadd.f32 %v3942, %v4222
    %4224 = vmatprep.mubr.bf16.mxu0 %v2182
    %4225 = vmatmul.mubr.bf16.gmra.mrb[0].mxu0 %v2181
    %v4226 = vpop.f32.mrb[0].mxu0
    %v4227 = vadd.f32 %v3946, %v4226
    %v4228 = vpop.f32.mrb[0].mxu0
    %v4229 = vadd.f32 %v3948, %v4228
    %v4230 = vpop.f32.mrb[0].mxu0
    %v4231 = vadd.f32 %v3950, %v4230
    %v4232 = vpop.f32.mrb[0].mxu0
    %v4233 = vadd.f32 %v3952, %v4232
    %4234 = vmatprep.mubr.bf16.mxu0 %v2186
    %4235 = vmatmul.mubr.bf16.gmra.mrb[0].mxu0 %v2185
    %v4236 = vpop.f32.mrb[0].mxu0
    %v4237 = vadd.f32 %v3956, %v4236
    %v4238 = vpop.f32.mrb[0].mxu0
    %v4239 = vadd.f32 %v3958, %v4238
    %v4240 = vpop.f32.mrb[0].mxu0
    %v4241 = vadd.f32 %v3960, %v4240
    %v4242 = vpop.f32.mrb[0].mxu0
    %v4243 = vadd.f32 %v3962, %v4242
    %4244 = vmatprep.mubr.bf16.mxu0 %v2190
    %4245 = vmatmul.mubr.bf16.gmra.mrb[0].mxu0 %v2189
    %v4246 = vpop.f32.mrb[0].mxu0
    %v4247 = vadd.f32 %v3966, %v4246
    %v4248 = vpop.f32.mrb[0].mxu0
    %v4249 = vadd.f32 %v3968, %v4248
    %v4250 = vpop.f32.mrb[0].mxu0
    %v4251 = vadd.f32 %v3970, %v4250
    %v4252 = vpop.f32.mrb[0].mxu0
    %v4253 = vadd.f32 %v3972, %v4252
    %4254 = vmatprep.mubr.bf16.mxu0 %v2194
    %4255 = vmatmul.mubr.bf16.gmra.mrb[0].mxu0 %v2193
    %v4256 = vpop.f32.mrb[0].mxu0
    %v4257 = vadd.f32 %v3976, %v4256
    %v4258 = vpop.f32.mrb[0].mxu0
    %v4259 = vadd.f32 %v3978, %v4258
    %v4260 = vpop.f32.mrb[0].mxu0
    %v4261 = vadd.f32 %v3980, %v4260
    %v4262 = vpop.f32.mrb[0].mxu0
    %v4263 = vadd.f32 %v3982, %v4262
    %4264 = vmatprep.mubr.bf16.mxu0 %v2198
    %4265 = vmatmul.mubr.bf16.gmra.mrb[0].mxu0 %v2197
    %v4266 = vpop.f32.mrb[0].mxu0
    %v4267 = vadd.f32 %v3986, %v4266
    %v4268 = vpop.f32.mrb[0].mxu0
    %v4269 = vadd.f32 %v3988, %v4268
    %v4270 = vpop.f32.mrb[0].mxu0
    %v4271 = vadd.f32 %v3990, %v4270
    %v4272 = vpop.f32.mrb[0].mxu0
    %v4273 = vadd.f32 %v3992, %v4272
    %4274 = vmatprep.mubr.bf16.mxu0 %v2202
    %4275 = vmatmul.mubr.bf16.gmra.mrb[0].mxu0 %v2201
    %v4276 = vpop.f32.mrb[0].mxu0
    %v4277 = vadd.f32 %v3996, %v4276
    %v4278 = vpop.f32.mrb[0].mxu0
    %v4279 = vadd.f32 %v3998, %v4278
    %v4280 = vpop.f32.mrb[0].mxu0
    %v4281 = vadd.f32 %v4000, %v4280
    %v4282 = vpop.f32.mrb[0].mxu0
    %v4283 = vadd.f32 %v4002, %v4282
    %4284 = vmatprep.mubr.bf16.mxu0 %v2206
    %4285 = vmatmul.mubr.bf16.gmra.mrb[0].mxu0 %v2205
    %v4286 = vpop.f32.mrb[0].mxu0
    %v4287 = vadd.f32 %v4006, %v4286
    %v4288 = vpop.f32.mrb[0].mxu0
    %v4289 = vadd.f32 %v4008, %v4288
    %v4290 = vpop.f32.mrb[0].mxu0
    %v4291 = vadd.f32 %v4010, %v4290
    %v4292 = vpop.f32.mrb[0].mxu0
    %v4293 = vadd.f32 %v4012, %v4292
    %4294 = vmatprep.mubr.bf16.mxu0 %v2210
    %4295 = vmatmul.mubr.bf16.gmra.mrb[0].mxu0 %v2209
    %v4296 = vpop.f32.mrb[0].mxu0
    %v4297 = vadd.f32 %v4016, %v4296
    %v4298 = vpop.f32.mrb[0].mxu0
    %v4299 = vadd.f32 %v4018, %v4298
    %v4300 = vpop.f32.mrb[0].mxu0
    %v4301 = vadd.f32 %v4020, %v4300
    %v4302 = vpop.f32.mrb[0].mxu0
    %v4303 = vadd.f32 %v4022, %v4302
    %4304 = vmatprep.mubr.bf16.mxu0 %v2214
    %4305 = vmatmul.mubr.bf16.gmra.mrb[0].mxu0 %v2213
    %v4306 = vpop.f32.mrb[0].mxu0
    %v4307 = vadd.f32 %v4026, %v4306
    %v4308 = vpop.f32.mrb[0].mxu0
    %v4309 = vadd.f32 %v4028, %v4308
    %v4310 = vpop.f32.mrb[0].mxu0
    %v4311 = vadd.f32 %v4030, %v4310
    %v4312 = vpop.f32.mrb[0].mxu0
    %v4313 = vadd.f32 %v4032, %v4312
    %4314 = vmatprep.mubr.bf16.mxu0 %v2218
    %4315 = vmatmul.mubr.bf16.gmra.mrb[0].mxu0 %v2217
    %v4316 = vpop.f32.mrb[0].mxu0
    %v4317 = vadd.f32 %v4036, %v4316
    %v4318 = vpop.f32.mrb[0].mxu0
    %v4319 = vadd.f32 %v4038, %v4318
    %v4320 = vpop.f32.mrb[0].mxu0
    %v4321 = vadd.f32 %v4040, %v4320
    %v4322 = vpop.f32.mrb[0].mxu0
    %v4323 = vadd.f32 %v4042, %v4322
    %4324 = vmatprep.mubr.bf16.mxu0 %v2222
    %4325 = vmatmul.mubr.bf16.gmra.mrb[0].mxu0 %v2221
    %v4326 = vpop.f32.mrb[0].mxu0
    %v4327 = vadd.f32 %v4046, %v4326
    %v4328 = vpop.f32.mrb[0].mxu0
    %v4329 = vadd.f32 %v4048, %v4328
    %v4330 = vpop.f32.mrb[0].mxu0
    %v4331 = vadd.f32 %v4050, %v4330
    %v4332 = vpop.f32.mrb[0].mxu0
    %v4333 = vadd.f32 %v4052, %v4332
    %4334 = vmatprep.mubr.bf16.mxu0 %v2226
    %4335 = vmatmul.mubr.bf16.gmra.mrb[0].mxu0 %v2225
    %v4336 = vpop.f32.mrb[0].mxu0
    %v4337 = vadd.f32 %v4056, %v4336
    %v4338 = vpop.f32.mrb[0].mxu0
    %v4339 = vadd.f32 %v4058, %v4338
    %v4340 = vpop.f32.mrb[0].mxu0
    %v4341 = vadd.f32 %v4060, %v4340
    %v4342 = vpop.f32.mrb[0].mxu0
    %v4343 = vadd.f32 %v4062, %v4342
    %4344 = vmatprep.mubr.bf16.mxu0 %v2230
    %4345 = vmatmul.mubr.bf16.gmra.mrb[0].mxu0 %v2229
    %v4346 = vpop.f32.mrb[0].mxu0
    %v4347 = vadd.f32 %v4066, %v4346
    %v4348 = vpop.f32.mrb[0].mxu0
    %v4349 = vadd.f32 %v4068, %v4348
    %v4350 = vpop.f32.mrb[0].mxu0
    %v4351 = vadd.f32 %v4070, %v4350
    %v4352 = vpop.f32.mrb[0].mxu0
    %v4353 = vadd.f32 %v4072, %v4352
    %4354 = vmatprep.mubr.bf16.mxu0 %v2234
    %4355 = vmatmul.mubr.bf16.gmra.mrb[0].mxu0 %v2233
    %v4356 = vpop.f32.mrb[0].mxu0
    %v4357 = vadd.f32 %v4076, %v4356
    %v4358 = vpop.f32.mrb[0].mxu0
    %v4359 = vadd.f32 %v4078, %v4358
    %v4360 = vpop.f32.mrb[0].mxu0
    %v4361 = vadd.f32 %v4080, %v4360
    %v4362 = vpop.f32.mrb[0].mxu0
    %v4363 = vadd.f32 %v4082, %v4362
    %4364 = vmatprep.mubr.bf16.mxu0 %v2238
    %4365 = vmatmul.mubr.bf16.gmra.mrb[0].mxu0 %v2237
    %v4366 = vpop.f32.mrb[0].mxu0
    %v4367 = vadd.f32 %v4086, %v4366
    %v4368 = vpop.f32.mrb[0].mxu0
    %v4369 = vadd.f32 %v4088, %v4368
    %v4370 = vpop.f32.mrb[0].mxu0
    %v4371 = vadd.f32 %v4090, %v4370
    %v4372 = vpop.f32.mrb[0].mxu0
    %v4373 = vadd.f32 %v4092, %v4372
    %4374 = vmatprep.mubr.bf16.mxu0 %v2242
    %4375 = vmatmul.mubr.bf16.gmra.mrb[0].mxu0 %v2241
    %v4376 = vpop.f32.mrb[0].mxu0
    %v4377 = vadd.f32 %v4096, %v4376
    %v4378 = vpop.f32.mrb[0].mxu0
    %v4379 = vadd.f32 %v4098, %v4378
    %v4380 = vpop.f32.mrb[0].mxu0
    %v4381 = vpop.f32.mrb[0].mxu0
    %4382 = vdwg.mxu0
    %4383 = vmatprep.subr.bf16.mxu0 %v3312
    %4384 = vmatpush1.bf16.msra.mxu0 %v3311
    %4385 = vmatprep.subr.bf16.mxu0 %v3320
    %4386 = vmatpush1.bf16.msra.mxu0 %v3319
    %4387 = vmatprep.subr.bf16.mxu0 %v3328
    %4388 = vmatpush1.bf16.msra.mxu0 %v3327
    %4389 = vmatprep.subr.bf16.mxu0 %v3336
    %4390 = vmatpush1.bf16.msra.mxu0 %v3335
    %4391 = vmatprep.subr.bf16.mxu0 %v3344
    %4392 = vmatpush1.bf16.msra.mxu0 %v3343
    %4393 = vmatprep.subr.bf16.mxu0 %v3352
    %4394 = vmatpush1.bf16.msra.mxu0 %v3351
    %4395 = vmatprep.subr.bf16.mxu0 %v3360
    %4396 = vmatpush1.bf16.msra.mxu0 %v3359
    %4397 = vmatprep.subr.bf16.mxu0 %v3368
    %4398 = vmatpush1.bf16.msra.mxu0 %v3367
    %4399 = vmatprep.subr.bf16.mxu0 %v3376
    %4400 = vmatpush1.bf16.msra.mxu0 %v3375
    %4401 = vmatprep.subr.bf16.mxu0 %v3384
    %4402 = vmatpush1.bf16.msra.mxu0 %v3383
    %4403 = vmatprep.subr.bf16.mxu0 %v3392
    %4404 = vmatpush1.bf16.msra.mxu0 %v3391
    %4405 = vmatprep.subr.bf16.mxu0 %v3400
    %4406 = vmatpush1.bf16.msra.mxu0 %v3399
    %4407 = vmatprep.subr.bf16.mxu0 %v3408
    %4408 = vmatpush1.bf16.msra.mxu0 %v3407
    %4409 = vmatprep.subr.bf16.mxu0 %v3416
    %4410 = vmatpush1.bf16.msra.mxu0 %v3415
    %4411 = vmatprep.subr.bf16.mxu0 %v3424
    %4412 = vmatpush1.bf16.msra.mxu0 %v3423
    %4413 = vmatprep.subr.bf16.mxu0 %v3432
    %4414 = vmatpush1.bf16.msra.mxu0 %v3431
    %4415 = vmatprep.mubr.bf16.mxu0 %v2144
    %4416 = vmatmul.mubr.bf16.gmra.mrb[0].mxu0 %v2143
    %v4417 = vpop.f32.mrb[0].mxu0
    %v4418 = vadd.f32 %v2512, %v4417
    %v4419 = vpop.f32.mrb[0].mxu0
    %v4420 = vadd.f32 %v2516, %v4419
    %v4421 = vpop.f32.mrb[0].mxu0
    %v4422 = vadd.f32 %v2512, %v4421
    %v4423 = vpop.f32.mrb[0].mxu0
    %v4424 = vadd.f32 %v2516, %v4423
    %4425 = vmatprep.mubr.bf16.mxu0 %v2148
    %4426 = vmatmul.mubr.bf16.gmra.mrb[0].mxu0 %v2147
    %v4427 = vpop.f32.mrb[0].mxu0
    %v4428 = vadd.f32 %v2512, %v4427
    %v4429 = vpop.f32.mrb[0].mxu0
    %v4430 = vadd.f32 %v2516, %v4429
    %v4431 = vpop.f32.mrb[0].mxu0
    %v4432 = vadd.f32 %v2512, %v4431
    %v4433 = vpop.f32.mrb[0].mxu0
    %v4434 = vadd.f32 %v2516, %v4433
    %4435 = vmatprep.mubr.bf16.mxu0 %v2152
    %4436 = vmatmul.mubr.bf16.gmra.mrb[0].mxu0 %v2151
    %v4437 = vpop.f32.mrb[0].mxu0
    %v4438 = vadd.f32 %v2512, %v4437
    %v4439 = vpop.f32.mrb[0].mxu0
    %v4440 = vadd.f32 %v2516, %v4439
    %v4441 = vpop.f32.mrb[0].mxu0
    %v4442 = vadd.f32 %v2512, %v4441
    %v4443 = vpop.f32.mrb[0].mxu0
    %v4444 = vadd.f32 %v2516, %v4443
    %4445 = vmatprep.mubr.bf16.mxu0 %v2156
    %4446 = vmatmul.mubr.bf16.gmra.mrb[0].mxu0 %v2155
    %v4447 = vpop.f32.mrb[0].mxu0
    %v4448 = vadd.f32 %v2512, %v4447
    %v4449 = vpop.f32.mrb[0].mxu0
    %v4450 = vadd.f32 %v2516, %v4449
    %v4451 = vpop.f32.mrb[0].mxu0
    %v4452 = vadd.f32 %v2512, %v4451
    %v4453 = vpop.f32.mrb[0].mxu0
    %v4454 = vadd.f32 %v2516, %v4453
    %4455 = vmatprep.mubr.bf16.mxu0 %v2160
    %4456 = vmatmul.mubr.bf16.gmra.mrb[0].mxu0 %v2159
    %v4457 = vpop.f32.mrb[0].mxu0
    %v4458 = vadd.f32 %v2512, %v4457
    %v4459 = vpop.f32.mrb[0].mxu0
    %v4460 = vadd.f32 %v2516, %v4459
    %v4461 = vpop.f32.mrb[0].mxu0
    %v4462 = vadd.f32 %v2512, %v4461
    %v4463 = vpop.f32.mrb[0].mxu0
    %v4464 = vadd.f32 %v2516, %v4463
    %4465 = vmatprep.mubr.bf16.mxu0 %v2164
    %4466 = vmatmul.mubr.bf16.gmra.mrb[0].mxu0 %v2163
    %v4467 = vpop.f32.mrb[0].mxu0
    %v4468 = vadd.f32 %v2512, %v4467
    %v4469 = vpop.f32.mrb[0].mxu0
    %v4470 = vadd.f32 %v2516, %v4469
    %v4471 = vpop.f32.mrb[0].mxu0
    %v4472 = vadd.f32 %v2512, %v4471
    %v4473 = vpop.f32.mrb[0].mxu0
    %v4474 = vadd.f32 %v2516, %v4473
    %4475 = vmatprep.mubr.bf16.mxu0 %v2168
    %4476 = vmatmul.mubr.bf16.gmra.mrb[0].mxu0 %v2167
    %v4477 = vpop.f32.mrb[0].mxu0
    %v4478 = vadd.f32 %v2512, %v4477
    %v4479 = vpop.f32.mrb[0].mxu0
    %v4480 = vadd.f32 %v2516, %v4479
    %v4481 = vpop.f32.mrb[0].mxu0
    %v4482 = vadd.f32 %v2512, %v4481
    %v4483 = vpop.f32.mrb[0].mxu0
    %v4484 = vadd.f32 %v2516, %v4483
    %4485 = vmatprep.mubr.bf16.mxu0 %v2172
    %4486 = vmatmul.mubr.bf16.gmra.mrb[0].mxu0 %v2171
    %v4487 = vpop.f32.mrb[0].mxu0
    %v4488 = vadd.f32 %v2512, %v4487
    %v4489 = vpop.f32.mrb[0].mxu0
    %v4490 = vadd.f32 %v2516, %v4489
    %v4491 = vpop.f32.mrb[0].mxu0
    %v4492 = vadd.f32 %v2512, %v4491
    %v4493 = vpop.f32.mrb[0].mxu0
    %v4494 = vadd.f32 %v2516, %v4493
    %4495 = vmatprep.mubr.bf16.mxu0 %v2176
    %4496 = vmatmul.mubr.bf16.gmra.mrb[0].mxu0 %v2175
    %v4497 = vpop.f32.mrb[0].mxu0
    %v4498 = vadd.f32 %v2512, %v4497
    %v4499 = vpop.f32.mrb[0].mxu0
    %v4500 = vadd.f32 %v2516, %v4499
    %v4501 = vpop.f32.mrb[0].mxu0
    %v4502 = vadd.f32 %v2512, %v4501
    %v4503 = vpop.f32.mrb[0].mxu0
    %v4504 = vadd.f32 %v2516, %v4503
    %4505 = vmatprep.mubr.bf16.mxu0 %v2180
    %4506 = vmatmul.mubr.bf16.gmra.mrb[0].mxu0 %v2179
    %v4507 = vpop.f32.mrb[0].mxu0
    %v4508 = vadd.f32 %v2512, %v4507
    %v4509 = vpop.f32.mrb[0].mxu0
    %v4510 = vadd.f32 %v2516, %v4509
    %v4511 = vpop.f32.mrb[0].mxu0
    %v4512 = vadd.f32 %v2512, %v4511
    %v4513 = vpop.f32.mrb[0].mxu0
    %v4514 = vadd.f32 %v2516, %v4513
    %4515 = vmatprep.mubr.bf16.mxu0 %v2184
    %4516 = vmatmul.mubr.bf16.gmra.mrb[0].mxu0 %v2183
    %v4517 = vpop.f32.mrb[0].mxu0
    %v4518 = vadd.f32 %v2512, %v4517
    %v4519 = vpop.f32.mrb[0].mxu0
    %v4520 = vadd.f32 %v2516, %v4519
    %v4521 = vpop.f32.mrb[0].mxu0
    %v4522 = vadd.f32 %v2512, %v4521
    %v4523 = vpop.f32.mrb[0].mxu0
    %v4524 = vadd.f32 %v2516, %v4523
    %4525 = vmatprep.mubr.bf16.mxu0 %v2188
    %4526 = vmatmul.mubr.bf16.gmra.mrb[0].mxu0 %v2187
    %v4527 = vpop.f32.mrb[0].mxu0
    %v4528 = vadd.f32 %v2512, %v4527
    %v4529 = vpop.f32.mrb[0].mxu0
    %v4530 = vadd.f32 %v2516, %v4529
    %v4531 = vpop.f32.mrb[0].mxu0
    %v4532 = vadd.f32 %v2512, %v4531
    %v4533 = vpop.f32.mrb[0].mxu0
    %v4534 = vadd.f32 %v2516, %v4533
    %4535 = vmatprep.mubr.bf16.mxu0 %v2192
    %4536 = vmatmul.mubr.bf16.gmra.mrb[0].mxu0 %v2191
    %v4537 = vpop.f32.mrb[0].mxu0
    %v4538 = vadd.f32 %v2512, %v4537
    %v4539 = vpop.f32.mrb[0].mxu0
    %v4540 = vadd.f32 %v2516, %v4539
    %v4541 = vpop.f32.mrb[0].mxu0
    %v4542 = vadd.f32 %v2512, %v4541
    %v4543 = vpop.f32.mrb[0].mxu0
    %v4544 = vadd.f32 %v2516, %v4543
    %4545 = vmatprep.mubr.bf16.mxu0 %v2196
    %4546 = vmatmul.mubr.bf16.gmra.mrb[0].mxu0 %v2195
    %v4547 = vpop.f32.mrb[0].mxu0
    %v4548 = vadd.f32 %v2512, %v4547
    %v4549 = vpop.f32.mrb[0].mxu0
    %v4550 = vadd.f32 %v2516, %v4549
    %v4551 = vpop.f32.mrb[0].mxu0
    %v4552 = vadd.f32 %v2512, %v4551
    %v4553 = vpop.f32.mrb[0].mxu0
    %v4554 = vadd.f32 %v2516, %v4553
    %4555 = vmatprep.mubr.bf16.mxu0 %v2200
    %4556 = vmatmul.mubr.bf16.gmra.mrb[0].mxu0 %v2199
    %v4557 = vpop.f32.mrb[0].mxu0
    %v4558 = vadd.f32 %v2512, %v4557
    %v4559 = vpop.f32.mrb[0].mxu0
    %v4560 = vadd.f32 %v2516, %v4559
    %v4561 = vpop.f32.mrb[0].mxu0
    %v4562 = vadd.f32 %v2512, %v4561
    %v4563 = vpop.f32.mrb[0].mxu0
    %v4564 = vadd.f32 %v2516, %v4563
    %4565 = vmatprep.mubr.bf16.mxu0 %v2204
    %4566 = vmatmul.mubr.bf16.gmra.mrb[0].mxu0 %v2203
    %v4567 = vpop.f32.mrb[0].mxu0
    %v4568 = vadd.f32 %v2512, %v4567
    %v4569 = vpop.f32.mrb[0].mxu0
    %v4570 = vadd.f32 %v2516, %v4569
    %v4571 = vpop.f32.mrb[0].mxu0
    %v4572 = vadd.f32 %v2512, %v4571
    %v4573 = vpop.f32.mrb[0].mxu0
    %v4574 = vadd.f32 %v2516, %v4573
    %4575 = vmatprep.mubr.bf16.mxu0 %v2208
    %4576 = vmatmul.mubr.bf16.gmra.mrb[0].mxu0 %v2207
    %v4577 = vpop.f32.mrb[0].mxu0
    %v4578 = vadd.f32 %v2512, %v4577
    %v4579 = vpop.f32.mrb[0].mxu0
    %v4580 = vadd.f32 %v2516, %v4579
    %v4581 = vpop.f32.mrb[0].mxu0
    %v4582 = vadd.f32 %v2512, %v4581
    %v4583 = vpop.f32.mrb[0].mxu0
    %v4584 = vadd.f32 %v2516, %v4583
    %4585 = vmatprep.mubr.bf16.mxu0 %v2212
    %4586 = vmatmul.mubr.bf16.gmra.mrb[0].mxu0 %v2211
    %v4587 = vpop.f32.mrb[0].mxu0
    %v4588 = vadd.f32 %v2512, %v4587
    %v4589 = vpop.f32.mrb[0].mxu0
    %v4590 = vadd.f32 %v2516, %v4589
    %v4591 = vpop.f32.mrb[0].mxu0
    %v4592 = vadd.f32 %v2512, %v4591
    %v4593 = vpop.f32.mrb[0].mxu0
    %v4594 = vadd.f32 %v2516, %v4593
    %4595 = vmatprep.mubr.bf16.mxu0 %v2216
    %4596 = vmatmul.mubr.bf16.gmra.mrb[0].mxu0 %v2215
    %v4597 = vpop.f32.mrb[0].mxu0
    %v4598 = vadd.f32 %v2512, %v4597
    %v4599 = vpop.f32.mrb[0].mxu0
    %v4600 = vadd.f32 %v2516, %v4599
    %v4601 = vpop.f32.mrb[0].mxu0
    %v4602 = vadd.f32 %v2512, %v4601
    %v4603 = vpop.f32.mrb[0].mxu0
    %v4604 = vadd.f32 %v2516, %v4603
    %4605 = vmatprep.mubr.bf16.mxu0 %v2220
    %4606 = vmatmul.mubr.bf16.gmra.mrb[0].mxu0 %v2219
    %v4607 = vpop.f32.mrb[0].mxu0
    %v4608 = vadd.f32 %v2512, %v4607
    %v4609 = vpop.f32.mrb[0].mxu0
    %v4610 = vadd.f32 %v2516, %v4609
    %v4611 = vpop.f32.mrb[0].mxu0
    %v4612 = vadd.f32 %v2512, %v4611
    %v4613 = vpop.f32.mrb[0].mxu0
    %v4614 = vadd.f32 %v2516, %v4613
    %4615 = vmatprep.mubr.bf16.mxu0 %v2224
    %4616 = vmatmul.mubr.bf16.gmra.mrb[0].mxu0 %v2223
    %v4617 = vpop.f32.mrb[0].mxu0
    %v4618 = vadd.f32 %v2512, %v4617
    %v4619 = vpop.f32.mrb[0].mxu0
    %v4620 = vadd.f32 %v2516, %v4619
    %v4621 = vpop.f32.mrb[0].mxu0
    %v4622 = vadd.f32 %v2512, %v4621
    %v4623 = vpop.f32.mrb[0].mxu0
    %v4624 = vadd.f32 %v2516, %v4623
    %4625 = vmatprep.mubr.bf16.mxu0 %v2228
    %4626 = vmatmul.mubr.bf16.gmra.mrb[0].mxu0 %v2227
    %v4627 = vpop.f32.mrb[0].mxu0
    %v4628 = vadd.f32 %v2512, %v4627
    %v4629 = vpop.f32.mrb[0].mxu0
    %v4630 = vadd.f32 %v2516, %v4629
    %v4631 = vpop.f32.mrb[0].mxu0
    %v4632 = vadd.f32 %v2512, %v4631
    %v4633 = vpop.f32.mrb[0].mxu0
    %v4634 = vadd.f32 %v2516, %v4633
    %4635 = vmatprep.mubr.bf16.mxu0 %v2232
    %4636 = vmatmul.mubr.bf16.gmra.mrb[0].mxu0 %v2231
    %v4637 = vpop.f32.mrb[0].mxu0
    %v4638 = vadd.f32 %v2512, %v4637
    %v4639 = vpop.f32.mrb[0].mxu0
    %v4640 = vadd.f32 %v2516, %v4639
    %v4641 = vpop.f32.mrb[0].mxu0
    %v4642 = vadd.f32 %v2512, %v4641
    %v4643 = vpop.f32.mrb[0].mxu0
    %v4644 = vadd.f32 %v2516, %v4643
    %4645 = vmatprep.mubr.bf16.mxu0 %v2236
    %4646 = vmatmul.mubr.bf16.gmra.mrb[0].mxu0 %v2235
    %v4647 = vpop.f32.mrb[0].mxu0
    %v4648 = vadd.f32 %v2512, %v4647
    %v4649 = vpop.f32.mrb[0].mxu0
    %v4650 = vadd.f32 %v2516, %v4649
    %v4651 = vpop.f32.mrb[0].mxu0
    %v4652 = vadd.f32 %v2512, %v4651
    %v4653 = vpop.f32.mrb[0].mxu0
    %v4654 = vadd.f32 %v2516, %v4653
    %4655 = vmatprep.mubr.bf16.mxu0 %v2240
    %4656 = vmatmul.mubr.bf16.gmra.mrb[0].mxu0 %v2239
    %v4657 = vpop.f32.mrb[0].mxu0
    %v4658 = vadd.f32 %v2512, %v4657
    %v4659 = vpop.f32.mrb[0].mxu0
    %v4660 = vadd.f32 %v2516, %v4659
    %v4661 = vpop.f32.mrb[0].mxu0
    %v4662 = vpop.f32.mrb[0].mxu0
    %4663 = vdwg.mxu0
    %4664 = vmatprep.subr.bf16.mxu0 %v3440
    %4665 = vmatpush1.bf16.msra.mxu0 %v3439
    %4666 = vmatprep.subr.bf16.mxu0 %v3448
    %4667 = vmatpush1.bf16.msra.mxu0 %v3447
    %4668 = vmatprep.subr.bf16.mxu0 %v3456
    %4669 = vmatpush1.bf16.msra.mxu0 %v3455
    %4670 = vmatprep.subr.bf16.mxu0 %v3464
    %4671 = vmatpush1.bf16.msra.mxu0 %v3463
    %4672 = vmatprep.subr.bf16.mxu0 %v3472
    %4673 = vmatpush1.bf16.msra.mxu0 %v3471
    %4674 = vmatprep.subr.bf16.mxu0 %v3480
    %4675 = vmatpush1.bf16.msra.mxu0 %v3479
    %4676 = vmatprep.subr.bf16.mxu0 %v3488
    %4677 = vmatpush1.bf16.msra.mxu0 %v3487
    %4678 = vmatprep.subr.bf16.mxu0 %v3496
    %4679 = vmatpush1.bf16.msra.mxu0 %v3495
    %4680 = vmatprep.subr.bf16.mxu0 %v3504
    %4681 = vmatpush1.bf16.msra.mxu0 %v3503
    %4682 = vmatprep.subr.bf16.mxu0 %v3512
    %4683 = vmatpush1.bf16.msra.mxu0 %v3511
    %4684 = vmatprep.subr.bf16.mxu0 %v3520
    %4685 = vmatpush1.bf16.msra.mxu0 %v3519
    %4686 = vmatprep.subr.bf16.mxu0 %v3528
    %4687 = vmatpush1.bf16.msra.mxu0 %v3527
    %4688 = vmatprep.subr.bf16.mxu0 %v3536
    %4689 = vmatpush1.bf16.msra.mxu0 %v3535
    %4690 = vmatprep.subr.bf16.mxu0 %v3544
    %4691 = vmatpush1.bf16.msra.mxu0 %v3543
    %4692 = vmatprep.subr.bf16.mxu0 %v3552
    %4693 = vmatpush1.bf16.msra.mxu0 %v3551
    %4694 = vmatprep.subr.bf16.mxu0 %v3560
    %4695 = vmatpush1.bf16.msra.mxu0 %v3559
    %4696 = vmatprep.mubr.bf16.mxu0 %v2146
    %4697 = vmatmul.mubr.bf16.gmra.mrb[0].mxu0 %v2145
    %v4698 = vpop.f32.mrb[0].mxu0
    %v4699 = vadd.f32 %v4418, %v4698
    %v4700 = vpop.f32.mrb[0].mxu0
    %v4701 = vadd.f32 %v4420, %v4700
    %v4702 = vpop.f32.mrb[0].mxu0
    %v4703 = vadd.f32 %v4422, %v4702
    %v4704 = vpop.f32.mrb[0].mxu0
    %v4705 = vadd.f32 %v4424, %v4704
    %4706 = vmatprep.mubr.bf16.mxu0 %v2150
    %4707 = vmatmul.mubr.bf16.gmra.mrb[0].mxu0 %v2149
    %v4708 = vpop.f32.mrb[0].mxu0
    %v4709 = vadd.f32 %v4428, %v4708
    %v4710 = vpop.f32.mrb[0].mxu0
    %v4711 = vadd.f32 %v4430, %v4710
    %v4712 = vpop.f32.mrb[0].mxu0
    %v4713 = vadd.f32 %v4432, %v4712
    %v4714 = vpop.f32.mrb[0].mxu0
    %v4715 = vadd.f32 %v4434, %v4714
    %4716 = vmatprep.mubr.bf16.mxu0 %v2154
    %4717 = vmatmul.mubr.bf16.gmra.mrb[0].mxu0 %v2153
    %v4718 = vpop.f32.mrb[0].mxu0
    %v4719 = vadd.f32 %v4438, %v4718
    %v4720 = vpop.f32.mrb[0].mxu0
    %v4721 = vadd.f32 %v4440, %v4720
    %v4722 = vpop.f32.mrb[0].mxu0
    %v4723 = vadd.f32 %v4442, %v4722
    %v4724 = vpop.f32.mrb[0].mxu0
    %v4725 = vadd.f32 %v4444, %v4724
    %4726 = vmatprep.mubr.bf16.mxu0 %v2158
    %4727 = vmatmul.mubr.bf16.gmra.mrb[0].mxu0 %v2157
    %v4728 = vpop.f32.mrb[0].mxu0
    %v4729 = vadd.f32 %v4448, %v4728
    %v4730 = vpop.f32.mrb[0].mxu0
    %v4731 = vadd.f32 %v4450, %v4730
    %v4732 = vpop.f32.mrb[0].mxu0
    %v4733 = vadd.f32 %v4452, %v4732
    %v4734 = vpop.f32.mrb[0].mxu0
    %v4735 = vadd.f32 %v4454, %v4734
    %4736 = vmatprep.mubr.bf16.mxu0 %v2162
    %4737 = vmatmul.mubr.bf16.gmra.mrb[0].mxu0 %v2161
    %v4738 = vpop.f32.mrb[0].mxu0
    %v4739 = vadd.f32 %v4458, %v4738
    %v4740 = vpop.f32.mrb[0].mxu0
    %v4741 = vadd.f32 %v4460, %v4740
    %v4742 = vpop.f32.mrb[0].mxu0
    %v4743 = vadd.f32 %v4462, %v4742
    %v4744 = vpop.f32.mrb[0].mxu0
    %v4745 = vadd.f32 %v4464, %v4744
    %4746 = vmatprep.mubr.bf16.mxu0 %v2166
    %4747 = vmatmul.mubr.bf16.gmra.mrb[0].mxu0 %v2165
    %v4748 = vpop.f32.mrb[0].mxu0
    %v4749 = vadd.f32 %v4468, %v4748
    %v4750 = vpop.f32.mrb[0].mxu0
    %v4751 = vadd.f32 %v4470, %v4750
    %v4752 = vpop.f32.mrb[0].mxu0
    %v4753 = vadd.f32 %v4472, %v4752
    %v4754 = vpop.f32.mrb[0].mxu0
    %v4755 = vadd.f32 %v4474, %v4754
    %4756 = vmatprep.mubr.bf16.mxu0 %v2170
    %4757 = vmatmul.mubr.bf16.gmra.mrb[0].mxu0 %v2169
    %v4758 = vpop.f32.mrb[0].mxu0
    %v4759 = vadd.f32 %v4478, %v4758
    %v4760 = vpop.f32.mrb[0].mxu0
    %v4761 = vadd.f32 %v4480, %v4760
    %v4762 = vpop.f32.mrb[0].mxu0
    %v4763 = vadd.f32 %v4482, %v4762
    %v4764 = vpop.f32.mrb[0].mxu0
    %v4765 = vadd.f32 %v4484, %v4764
    %4766 = vmatprep.mubr.bf16.mxu0 %v2174
    %4767 = vmatmul.mubr.bf16.gmra.mrb[0].mxu0 %v2173
    %v4768 = vpop.f32.mrb[0].mxu0
    %v4769 = vadd.f32 %v4488, %v4768
    %v4770 = vpop.f32.mrb[0].mxu0
    %v4771 = vadd.f32 %v4490, %v4770
    %v4772 = vpop.f32.mrb[0].mxu0
    %v4773 = vadd.f32 %v4492, %v4772
    %v4774 = vpop.f32.mrb[0].mxu0
    %v4775 = vadd.f32 %v4494, %v4774
    %4776 = vmatprep.mubr.bf16.mxu0 %v2178
    %4777 = vmatmul.mubr.bf16.gmra.mrb[0].mxu0 %v2177
    %v4778 = vpop.f32.mrb[0].mxu0
    %v4779 = vadd.f32 %v4498, %v4778
    %v4780 = vpop.f32.mrb[0].mxu0
    %v4781 = vadd.f32 %v4500, %v4780
    %v4782 = vpop.f32.mrb[0].mxu0
    %v4783 = vadd.f32 %v4502, %v4782
    %v4784 = vpop.f32.mrb[0].mxu0
    %v4785 = vadd.f32 %v4504, %v4784
    %4786 = vmatprep.mubr.bf16.mxu0 %v2182
    %4787 = vmatmul.mubr.bf16.gmra.mrb[0].mxu0 %v2181
    %v4788 = vpop.f32.mrb[0].mxu0
    %v4789 = vadd.f32 %v4508, %v4788
    %v4790 = vpop.f32.mrb[0].mxu0
    %v4791 = vadd.f32 %v4510, %v4790
    %v4792 = vpop.f32.mrb[0].mxu0
    %v4793 = vadd.f32 %v4512, %v4792
    %v4794 = vpop.f32.mrb[0].mxu0
    %v4795 = vadd.f32 %v4514, %v4794
    %4796 = vmatprep.mubr.bf16.mxu0 %v2186
    %4797 = vmatmul.mubr.bf16.gmra.mrb[0].mxu0 %v2185
    %v4798 = vpop.f32.mrb[0].mxu0
    %v4799 = vadd.f32 %v4518, %v4798
    %v4800 = vpop.f32.mrb[0].mxu0
    %v4801 = vadd.f32 %v4520, %v4800
    %v4802 = vpop.f32.mrb[0].mxu0
    %v4803 = vadd.f32 %v4522, %v4802
    %v4804 = vpop.f32.mrb[0].mxu0
    %v4805 = vadd.f32 %v4524, %v4804
    %4806 = vmatprep.mubr.bf16.mxu0 %v2190
    %4807 = vmatmul.mubr.bf16.gmra.mrb[0].mxu0 %v2189
    %v4808 = vpop.f32.mrb[0].mxu0
    %v4809 = vadd.f32 %v4528, %v4808
    %v4810 = vpop.f32.mrb[0].mxu0
    %v4811 = vadd.f32 %v4530, %v4810
    %v4812 = vpop.f32.mrb[0].mxu0
    %v4813 = vadd.f32 %v4532, %v4812
    %v4814 = vpop.f32.mrb[0].mxu0
    %v4815 = vadd.f32 %v4534, %v4814
    %4816 = vmatprep.mubr.bf16.mxu0 %v2194
    %4817 = vmatmul.mubr.bf16.gmra.mrb[0].mxu0 %v2193
    %v4818 = vpop.f32.mrb[0].mxu0
    %v4819 = vadd.f32 %v4538, %v4818
    %v4820 = vpop.f32.mrb[0].mxu0
    %v4821 = vadd.f32 %v4540, %v4820
    %v4822 = vpop.f32.mrb[0].mxu0
    %v4823 = vadd.f32 %v4542, %v4822
    %v4824 = vpop.f32.mrb[0].mxu0
    %v4825 = vadd.f32 %v4544, %v4824
    %4826 = vmatprep.mubr.bf16.mxu0 %v2198
    %4827 = vmatmul.mubr.bf16.gmra.mrb[0].mxu0 %v2197
    %v4828 = vpop.f32.mrb[0].mxu0
    %v4829 = vadd.f32 %v4548, %v4828
    %v4830 = vpop.f32.mrb[0].mxu0
    %v4831 = vadd.f32 %v4550, %v4830
    %v4832 = vpop.f32.mrb[0].mxu0
    %v4833 = vadd.f32 %v4552, %v4832
    %v4834 = vpop.f32.mrb[0].mxu0
    %v4835 = vadd.f32 %v4554, %v4834
    %4836 = vmatprep.mubr.bf16.mxu0 %v2202
    %4837 = vmatmul.mubr.bf16.gmra.mrb[0].mxu0 %v2201
    %v4838 = vpop.f32.mrb[0].mxu0
    %v4839 = vadd.f32 %v4558, %v4838
    %v4840 = vpop.f32.mrb[0].mxu0
    %v4841 = vadd.f32 %v4560, %v4840
    %v4842 = vpop.f32.mrb[0].mxu0
    %v4843 = vadd.f32 %v4562, %v4842
    %v4844 = vpop.f32.mrb[0].mxu0
    %v4845 = vadd.f32 %v4564, %v4844
    %4846 = vmatprep.mubr.bf16.mxu0 %v2206
    %4847 = vmatmul.mubr.bf16.gmra.mrb[0].mxu0 %v2205
    %v4848 = vpop.f32.mrb[0].mxu0
    %v4849 = vadd.f32 %v4568, %v4848
    %v4850 = vpop.f32.mrb[0].mxu0
    %v4851 = vadd.f32 %v4570, %v4850
    %v4852 = vpop.f32.mrb[0].mxu0
    %v4853 = vadd.f32 %v4572, %v4852
    %v4854 = vpop.f32.mrb[0].mxu0
    %v4855 = vadd.f32 %v4574, %v4854
    %4856 = vmatprep.mubr.bf16.mxu0 %v2210
    %4857 = vmatmul.mubr.bf16.gmra.mrb[0].mxu0 %v2209
    %v4858 = vpop.f32.mrb[0].mxu0
    %v4859 = vadd.f32 %v4578, %v4858
    %v4860 = vpop.f32.mrb[0].mxu0
    %v4861 = vadd.f32 %v4580, %v4860
    %v4862 = vpop.f32.mrb[0].mxu0
    %v4863 = vadd.f32 %v4582, %v4862
    %v4864 = vpop.f32.mrb[0].mxu0
    %v4865 = vadd.f32 %v4584, %v4864
    %4866 = vmatprep.mubr.bf16.mxu0 %v2214
    %4867 = vmatmul.mubr.bf16.gmra.mrb[0].mxu0 %v2213
    %v4868 = vpop.f32.mrb[0].mxu0
    %v4869 = vadd.f32 %v4588, %v4868
    %v4870 = vpop.f32.mrb[0].mxu0
    %v4871 = vadd.f32 %v4590, %v4870
    %v4872 = vpop.f32.mrb[0].mxu0
    %v4873 = vadd.f32 %v4592, %v4872
    %v4874 = vpop.f32.mrb[0].mxu0
    %v4875 = vadd.f32 %v4594, %v4874
    %4876 = vmatprep.mubr.bf16.mxu0 %v2218
    %4877 = vmatmul.mubr.bf16.gmra.mrb[0].mxu0 %v2217
    %v4878 = vpop.f32.mrb[0].mxu0
    %v4879 = vadd.f32 %v4598, %v4878
    %v4880 = vpop.f32.mrb[0].mxu0
    %v4881 = vadd.f32 %v4600, %v4880
    %v4882 = vpop.f32.mrb[0].mxu0
    %v4883 = vadd.f32 %v4602, %v4882
    %v4884 = vpop.f32.mrb[0].mxu0
    %v4885 = vadd.f32 %v4604, %v4884
    %4886 = vmatprep.mubr.bf16.mxu0 %v2222
    %4887 = vmatmul.mubr.bf16.gmra.mrb[0].mxu0 %v2221
    %v4888 = vpop.f32.mrb[0].mxu0
    %v4889 = vadd.f32 %v4608, %v4888
    %v4890 = vpop.f32.mrb[0].mxu0
    %v4891 = vadd.f32 %v4610, %v4890
    %v4892 = vpop.f32.mrb[0].mxu0
    %v4893 = vadd.f32 %v4612, %v4892
    %v4894 = vpop.f32.mrb[0].mxu0
    %v4895 = vadd.f32 %v4614, %v4894
    %4896 = vmatprep.mubr.bf16.mxu0 %v2226
    %4897 = vmatmul.mubr.bf16.gmra.mrb[0].mxu0 %v2225
    %v4898 = vpop.f32.mrb[0].mxu0
    %v4899 = vadd.f32 %v4618, %v4898
    %v4900 = vpop.f32.mrb[0].mxu0
    %v4901 = vadd.f32 %v4620, %v4900
    %v4902 = vpop.f32.mrb[0].mxu0
    %v4903 = vadd.f32 %v4622, %v4902
    %v4904 = vpop.f32.mrb[0].mxu0
    %v4905 = vadd.f32 %v4624, %v4904
    %4906 = vmatprep.mubr.bf16.mxu0 %v2230
    %4907 = vmatmul.mubr.bf16.gmra.mrb[0].mxu0 %v2229
    %v4908 = vpop.f32.mrb[0].mxu0
    %v4909 = vadd.f32 %v4628, %v4908
    %v4910 = vpop.f32.mrb[0].mxu0
    %v4911 = vadd.f32 %v4630, %v4910
    %v4912 = vpop.f32.mrb[0].mxu0
    %v4913 = vadd.f32 %v4632, %v4912
    %v4914 = vpop.f32.mrb[0].mxu0
    %v4915 = vadd.f32 %v4634, %v4914
    %4916 = vmatprep.mubr.bf16.mxu0 %v2234
    %4917 = vmatmul.mubr.bf16.gmra.mrb[0].mxu0 %v2233
    %v4918 = vpop.f32.mrb[0].mxu0
    %v4919 = vadd.f32 %v4638, %v4918
    %v4920 = vpop.f32.mrb[0].mxu0
    %v4921 = vadd.f32 %v4640, %v4920
    %v4922 = vpop.f32.mrb[0].mxu0
    %v4923 = vadd.f32 %v4642, %v4922
    %v4924 = vpop.f32.mrb[0].mxu0
    %v4925 = vadd.f32 %v4644, %v4924
    %4926 = vmatprep.mubr.bf16.mxu0 %v2238
    %4927 = vmatmul.mubr.bf16.gmra.mrb[0].mxu0 %v2237
    %v4928 = vpop.f32.mrb[0].mxu0
    %v4929 = vadd.f32 %v4648, %v4928
    %v4930 = vpop.f32.mrb[0].mxu0
    %v4931 = vadd.f32 %v4650, %v4930
    %v4932 = vpop.f32.mrb[0].mxu0
    %v4933 = vadd.f32 %v4652, %v4932
    %v4934 = vpop.f32.mrb[0].mxu0
    %v4935 = vadd.f32 %v4654, %v4934
    %4936 = vmatprep.mubr.bf16.mxu0 %v2242
    %4937 = vmatmul.mubr.bf16.gmra.mrb[0].mxu0 %v2241
    %v4938 = vpop.f32.mrb[0].mxu0
    %v4939 = vadd.f32 %v4658, %v4938
    %v4940 = vpop.f32.mrb[0].mxu0
    %v4941 = vadd.f32 %v4660, %v4940
    %v4942 = vpop.f32.mrb[0].mxu0
    %v4943 = vpop.f32.mrb[0].mxu0
    %4944 = vdwg.mxu0
    %4945 = vmatprep.subr.bf16.mxu0 %v3314
    %4946 = vmatpush1.bf16.msra.mxu0 %v3313
    %4947 = vmatprep.subr.bf16.mxu0 %v3322
    %4948 = vmatpush1.bf16.msra.mxu0 %v3321
    %4949 = vmatprep.subr.bf16.mxu0 %v3330
    %4950 = vmatpush1.bf16.msra.mxu0 %v3329
    %4951 = vmatprep.subr.bf16.mxu0 %v3338
    %4952 = vmatpush1.bf16.msra.mxu0 %v3337
    %4953 = vmatprep.subr.bf16.mxu0 %v3346
    %4954 = vmatpush1.bf16.msra.mxu0 %v3345
    %4955 = vmatprep.subr.bf16.mxu0 %v3354
    %4956 = vmatpush1.bf16.msra.mxu0 %v3353
    %4957 = vmatprep.subr.bf16.mxu0 %v3362
    %4958 = vmatpush1.bf16.msra.mxu0 %v3361
    %4959 = vmatprep.subr.bf16.mxu0 %v3370
    %4960 = vmatpush1.bf16.msra.mxu0 %v3369
    %4961 = vmatprep.subr.bf16.mxu0 %v3378
    %4962 = vmatpush1.bf16.msra.mxu0 %v3377
    %4963 = vmatprep.subr.bf16.mxu0 %v3386
    %4964 = vmatpush1.bf16.msra.mxu0 %v3385
    %4965 = vmatprep.subr.bf16.mxu0 %v3394
    %4966 = vmatpush1.bf16.msra.mxu0 %v3393
    %4967 = vmatprep.subr.bf16.mxu0 %v3402
    %4968 = vmatpush1.bf16.msra.mxu0 %v3401
    %4969 = vmatprep.subr.bf16.mxu0 %v3410
    %4970 = vmatpush1.bf16.msra.mxu0 %v3409
    %4971 = vmatprep.subr.bf16.mxu0 %v3418
    %4972 = vmatpush1.bf16.msra.mxu0 %v3417
    %4973 = vmatprep.subr.bf16.mxu0 %v3426
    %4974 = vmatpush1.bf16.msra.mxu0 %v3425
    %4975 = vmatprep.subr.bf16.mxu0 %v3434
    %4976 = vmatpush1.bf16.msra.mxu0 %v3433
    %4977 = vmatprep.mubr.bf16.mxu0 %v2144
    %4978 = vmatmul.mubr.bf16.gmra.mrb[0].mxu0 %v2143
    %v4979 = vpop.f32.mrb[0].mxu0
    %v4980 = vadd.f32 %v2520, %v4979
    %v4981 = vpop.f32.mrb[0].mxu0
    %v4982 = vadd.f32 %v2524, %v4981
    %v4983 = vpop.f32.mrb[0].mxu0
    %v4984 = vadd.f32 %v2520, %v4983
    %v4985 = vpop.f32.mrb[0].mxu0
    %v4986 = vadd.f32 %v2524, %v4985
    %4987 = vmatprep.mubr.bf16.mxu0 %v2148
    %4988 = vmatmul.mubr.bf16.gmra.mrb[0].mxu0 %v2147
    %v4989 = vpop.f32.mrb[0].mxu0
    %v4990 = vadd.f32 %v2520, %v4989
    %v4991 = vpop.f32.mrb[0].mxu0
    %v4992 = vadd.f32 %v2524, %v4991
    %v4993 = vpop.f32.mrb[0].mxu0
    %v4994 = vadd.f32 %v2520, %v4993
    %v4995 = vpop.f32.mrb[0].mxu0
    %v4996 = vadd.f32 %v2524, %v4995
    %4997 = vmatprep.mubr.bf16.mxu0 %v2152
    %4998 = vmatmul.mubr.bf16.gmra.mrb[0].mxu0 %v2151
    %v4999 = vpop.f32.mrb[0].mxu0
    %v5000 = vadd.f32 %v2520, %v4999
    %v5001 = vpop.f32.mrb[0].mxu0
    %v5002 = vadd.f32 %v2524, %v5001
    %v5003 = vpop.f32.mrb[0].mxu0
    %v5004 = vadd.f32 %v2520, %v5003
    %v5005 = vpop.f32.mrb[0].mxu0
    %v5006 = vadd.f32 %v2524, %v5005
    %5007 = vmatprep.mubr.bf16.mxu0 %v2156
    %5008 = vmatmul.mubr.bf16.gmra.mrb[0].mxu0 %v2155
    %v5009 = vpop.f32.mrb[0].mxu0
    %v5010 = vadd.f32 %v2520, %v5009
    %v5011 = vpop.f32.mrb[0].mxu0
    %v5012 = vadd.f32 %v2524, %v5011
    %v5013 = vpop.f32.mrb[0].mxu0
    %v5014 = vadd.f32 %v2520, %v5013
    %v5015 = vpop.f32.mrb[0].mxu0
    %v5016 = vadd.f32 %v2524, %v5015
    %5017 = vmatprep.mubr.bf16.mxu0 %v2160
    %5018 = vmatmul.mubr.bf16.gmra.mrb[0].mxu0 %v2159
    %v5019 = vpop.f32.mrb[0].mxu0
    %v5020 = vadd.f32 %v2520, %v5019
    %v5021 = vpop.f32.mrb[0].mxu0
    %v5022 = vadd.f32 %v2524, %v5021
    %v5023 = vpop.f32.mrb[0].mxu0
    %v5024 = vadd.f32 %v2520, %v5023
    %v5025 = vpop.f32.mrb[0].mxu0
    %v5026 = vadd.f32 %v2524, %v5025
    %5027 = vmatprep.mubr.bf16.mxu0 %v2164
    %5028 = vmatmul.mubr.bf16.gmra.mrb[0].mxu0 %v2163
    %v5029 = vpop.f32.mrb[0].mxu0
    %v5030 = vadd.f32 %v2520, %v5029
    %v5031 = vpop.f32.mrb[0].mxu0
    %v5032 = vadd.f32 %v2524, %v5031
    %v5033 = vpop.f32.mrb[0].mxu0
    %v5034 = vadd.f32 %v2520, %v5033
    %v5035 = vpop.f32.mrb[0].mxu0
    %v5036 = vadd.f32 %v2524, %v5035
    %5037 = vmatprep.mubr.bf16.mxu0 %v2168
    %5038 = vmatmul.mubr.bf16.gmra.mrb[0].mxu0 %v2167
    %v5039 = vpop.f32.mrb[0].mxu0
    %v5040 = vadd.f32 %v2520, %v5039
    %v5041 = vpop.f32.mrb[0].mxu0
    %v5042 = vadd.f32 %v2524, %v5041
    %v5043 = vpop.f32.mrb[0].mxu0
    %v5044 = vadd.f32 %v2520, %v5043
    %v5045 = vpop.f32.mrb[0].mxu0
    %v5046 = vadd.f32 %v2524, %v5045
    %5047 = vmatprep.mubr.bf16.mxu0 %v2172
    %5048 = vmatmul.mubr.bf16.gmra.mrb[0].mxu0 %v2171
    %v5049 = vpop.f32.mrb[0].mxu0
    %v5050 = vadd.f32 %v2520, %v5049
    %v5051 = vpop.f32.mrb[0].mxu0
    %v5052 = vadd.f32 %v2524, %v5051
    %v5053 = vpop.f32.mrb[0].mxu0
    %v5054 = vadd.f32 %v2520, %v5053
    %v5055 = vpop.f32.mrb[0].mxu0
    %v5056 = vadd.f32 %v2524, %v5055
    %5057 = vmatprep.mubr.bf16.mxu0 %v2176
    %5058 = vmatmul.mubr.bf16.gmra.mrb[0].mxu0 %v2175
    %v5059 = vpop.f32.mrb[0].mxu0
    %v5060 = vadd.f32 %v2520, %v5059
    %v5061 = vpop.f32.mrb[0].mxu0
    %v5062 = vadd.f32 %v2524, %v5061
    %v5063 = vpop.f32.mrb[0].mxu0
    %v5064 = vadd.f32 %v2520, %v5063
    %v5065 = vpop.f32.mrb[0].mxu0
    %v5066 = vadd.f32 %v2524, %v5065
    %5067 = vmatprep.mubr.bf16.mxu0 %v2180
    %5068 = vmatmul.mubr.bf16.gmra.mrb[0].mxu0 %v2179
    %v5069 = vpop.f32.mrb[0].mxu0
    %v5070 = vadd.f32 %v2520, %v5069
    %v5071 = vpop.f32.mrb[0].mxu0
    %v5072 = vadd.f32 %v2524, %v5071
    %v5073 = vpop.f32.mrb[0].mxu0
    %v5074 = vadd.f32 %v2520, %v5073
    %v5075 = vpop.f32.mrb[0].mxu0
    %v5076 = vadd.f32 %v2524, %v5075
    %5077 = vmatprep.mubr.bf16.mxu0 %v2184
    %5078 = vmatmul.mubr.bf16.gmra.mrb[0].mxu0 %v2183
    %v5079 = vpop.f32.mrb[0].mxu0
    %v5080 = vadd.f32 %v2520, %v5079
    %v5081 = vpop.f32.mrb[0].mxu0
    %v5082 = vadd.f32 %v2524, %v5081
    %v5083 = vpop.f32.mrb[0].mxu0
    %v5084 = vadd.f32 %v2520, %v5083
    %v5085 = vpop.f32.mrb[0].mxu0
    %v5086 = vadd.f32 %v2524, %v5085
    %5087 = vmatprep.mubr.bf16.mxu0 %v2188
    %5088 = vmatmul.mubr.bf16.gmra.mrb[0].mxu0 %v2187
    %v5089 = vpop.f32.mrb[0].mxu0
    %v5090 = vadd.f32 %v2520, %v5089
    %v5091 = vpop.f32.mrb[0].mxu0
    %v5092 = vadd.f32 %v2524, %v5091
    %v5093 = vpop.f32.mrb[0].mxu0
    %v5094 = vadd.f32 %v2520, %v5093
    %v5095 = vpop.f32.mrb[0].mxu0
    %v5096 = vadd.f32 %v2524, %v5095
    %5097 = vmatprep.mubr.bf16.mxu0 %v2192
    %5098 = vmatmul.mubr.bf16.gmra.mrb[0].mxu0 %v2191
    %v5099 = vpop.f32.mrb[0].mxu0
    %v5100 = vadd.f32 %v2520, %v5099
    %v5101 = vpop.f32.mrb[0].mxu0
    %v5102 = vadd.f32 %v2524, %v5101
    %v5103 = vpop.f32.mrb[0].mxu0
    %v5104 = vadd.f32 %v2520, %v5103
    %v5105 = vpop.f32.mrb[0].mxu0
    %v5106 = vadd.f32 %v2524, %v5105
    %5107 = vmatprep.mubr.bf16.mxu0 %v2196
    %5108 = vmatmul.mubr.bf16.gmra.mrb[0].mxu0 %v2195
    %v5109 = vpop.f32.mrb[0].mxu0
    %v5110 = vadd.f32 %v2520, %v5109
    %v5111 = vpop.f32.mrb[0].mxu0
    %v5112 = vadd.f32 %v2524, %v5111
    %v5113 = vpop.f32.mrb[0].mxu0
    %v5114 = vadd.f32 %v2520, %v5113
    %v5115 = vpop.f32.mrb[0].mxu0
    %v5116 = vadd.f32 %v2524, %v5115
    %5117 = vmatprep.mubr.bf16.mxu0 %v2200
    %5118 = vmatmul.mubr.bf16.gmra.mrb[0].mxu0 %v2199
    %v5119 = vpop.f32.mrb[0].mxu0
    %v5120 = vadd.f32 %v2520, %v5119
    %v5121 = vpop.f32.mrb[0].mxu0
    %v5122 = vadd.f32 %v2524, %v5121
    %v5123 = vpop.f32.mrb[0].mxu0
    %v5124 = vadd.f32 %v2520, %v5123
    %v5125 = vpop.f32.mrb[0].mxu0
    %v5126 = vadd.f32 %v2524, %v5125
    %5127 = vmatprep.mubr.bf16.mxu0 %v2204
    %5128 = vmatmul.mubr.bf16.gmra.mrb[0].mxu0 %v2203
    %v5129 = vpop.f32.mrb[0].mxu0
    %v5130 = vadd.f32 %v2520, %v5129
    %v5131 = vpop.f32.mrb[0].mxu0
    %v5132 = vadd.f32 %v2524, %v5131
    %v5133 = vpop.f32.mrb[0].mxu0
    %v5134 = vadd.f32 %v2520, %v5133
    %v5135 = vpop.f32.mrb[0].mxu0
    %v5136 = vadd.f32 %v2524, %v5135
    %5137 = vmatprep.mubr.bf16.mxu0 %v2208
    %5138 = vmatmul.mubr.bf16.gmra.mrb[0].mxu0 %v2207
    %v5139 = vpop.f32.mrb[0].mxu0
    %v5140 = vadd.f32 %v2520, %v5139
    %v5141 = vpop.f32.mrb[0].mxu0
    %v5142 = vadd.f32 %v2524, %v5141
    %v5143 = vpop.f32.mrb[0].mxu0
    %v5144 = vadd.f32 %v2520, %v5143
    %v5145 = vpop.f32.mrb[0].mxu0
    %v5146 = vadd.f32 %v2524, %v5145
    %5147 = vmatprep.mubr.bf16.mxu0 %v2212
    %5148 = vmatmul.mubr.bf16.gmra.mrb[0].mxu0 %v2211
    %v5149 = vpop.f32.mrb[0].mxu0
    %v5150 = vadd.f32 %v2520, %v5149
    %v5151 = vpop.f32.mrb[0].mxu0
    %v5152 = vadd.f32 %v2524, %v5151
    %v5153 = vpop.f32.mrb[0].mxu0
    %v5154 = vadd.f32 %v2520, %v5153
    %v5155 = vpop.f32.mrb[0].mxu0
    %v5156 = vadd.f32 %v2524, %v5155
    %5157 = vmatprep.mubr.bf16.mxu0 %v2216
    %5158 = vmatmul.mubr.bf16.gmra.mrb[0].mxu0 %v2215
    %v5159 = vpop.f32.mrb[0].mxu0
    %v5160 = vadd.f32 %v2520, %v5159
    %v5161 = vpop.f32.mrb[0].mxu0
    %v5162 = vadd.f32 %v2524, %v5161
    %v5163 = vpop.f32.mrb[0].mxu0
    %v5164 = vadd.f32 %v2520, %v5163
    %v5165 = vpop.f32.mrb[0].mxu0
    %v5166 = vadd.f32 %v2524, %v5165
    %5167 = vmatprep.mubr.bf16.mxu0 %v2220
    %5168 = vmatmul.mubr.bf16.gmra.mrb[0].mxu0 %v2219
    %v5169 = vpop.f32.mrb[0].mxu0
    %v5170 = vadd.f32 %v2520, %v5169
    %v5171 = vpop.f32.mrb[0].mxu0
    %v5172 = vadd.f32 %v2524, %v5171
    %v5173 = vpop.f32.mrb[0].mxu0
    %v5174 = vadd.f32 %v2520, %v5173
    %v5175 = vpop.f32.mrb[0].mxu0
    %v5176 = vadd.f32 %v2524, %v5175
    %5177 = vmatprep.mubr.bf16.mxu0 %v2224
    %5178 = vmatmul.mubr.bf16.gmra.mrb[0].mxu0 %v2223
    %v5179 = vpop.f32.mrb[0].mxu0
    %v5180 = vadd.f32 %v2520, %v5179
    %v5181 = vpop.f32.mrb[0].mxu0
    %v5182 = vadd.f32 %v2524, %v5181
    %v5183 = vpop.f32.mrb[0].mxu0
    %v5184 = vadd.f32 %v2520, %v5183
    %v5185 = vpop.f32.mrb[0].mxu0
    %v5186 = vadd.f32 %v2524, %v5185
    %5187 = vmatprep.mubr.bf16.mxu0 %v2228
    %5188 = vmatmul.mubr.bf16.gmra.mrb[0].mxu0 %v2227
    %v5189 = vpop.f32.mrb[0].mxu0
    %v5190 = vadd.f32 %v2520, %v5189
    %v5191 = vpop.f32.mrb[0].mxu0
    %v5192 = vadd.f32 %v2524, %v5191
    %v5193 = vpop.f32.mrb[0].mxu0
    %v5194 = vadd.f32 %v2520, %v5193
    %v5195 = vpop.f32.mrb[0].mxu0
    %v5196 = vadd.f32 %v2524, %v5195
    %5197 = vmatprep.mubr.bf16.mxu0 %v2232
    %5198 = vmatmul.mubr.bf16.gmra.mrb[0].mxu0 %v2231
    %v5199 = vpop.f32.mrb[0].mxu0
    %v5200 = vadd.f32 %v2520, %v5199
    %v5201 = vpop.f32.mrb[0].mxu0
    %v5202 = vadd.f32 %v2524, %v5201
    %v5203 = vpop.f32.mrb[0].mxu0
    %v5204 = vadd.f32 %v2520, %v5203
    %v5205 = vpop.f32.mrb[0].mxu0
    %v5206 = vadd.f32 %v2524, %v5205
    %5207 = vmatprep.mubr.bf16.mxu0 %v2236
    %5208 = vmatmul.mubr.bf16.gmra.mrb[0].mxu0 %v2235
    %v5209 = vpop.f32.mrb[0].mxu0
    %v5210 = vadd.f32 %v2520, %v5209
    %v5211 = vpop.f32.mrb[0].mxu0
    %v5212 = vadd.f32 %v2524, %v5211
    %v5213 = vpop.f32.mrb[0].mxu0
    %v5214 = vadd.f32 %v2520, %v5213
    %v5215 = vpop.f32.mrb[0].mxu0
    %v5216 = vadd.f32 %v2524, %v5215
    %5217 = vmatprep.mubr.bf16.mxu0 %v2240
    %5218 = vmatmul.mubr.bf16.gmra.mrb[0].mxu0 %v2239
    %v5219 = vpop.f32.mrb[0].mxu0
    %v5220 = vadd.f32 %v2520, %v5219
    %v5221 = vpop.f32.mrb[0].mxu0
    %v5222 = vadd.f32 %v2524, %v5221
    %v5223 = vpop.f32.mrb[0].mxu0
    %v5224 = vpop.f32.mrb[0].mxu0
    %5225 = vdwg.mxu0
    %5226 = vmatprep.subr.bf16.mxu0 %v3442
    %5227 = vmatpush1.bf16.msra.mxu0 %v3441
    %5228 = vmatprep.subr.bf16.mxu0 %v3450
    %5229 = vmatpush1.bf16.msra.mxu0 %v3449
    %5230 = vmatprep.subr.bf16.mxu0 %v3458
    %5231 = vmatpush1.bf16.msra.mxu0 %v3457
    %5232 = vmatprep.subr.bf16.mxu0 %v3466
    %5233 = vmatpush1.bf16.msra.mxu0 %v3465
    %5234 = vmatprep.subr.bf16.mxu0 %v3474
    %5235 = vmatpush1.bf16.msra.mxu0 %v3473
    %5236 = vmatprep.subr.bf16.mxu0 %v3482
    %5237 = vmatpush1.bf16.msra.mxu0 %v3481
    %5238 = vmatprep.subr.bf16.mxu0 %v3490
    %5239 = vmatpush1.bf16.msra.mxu0 %v3489
    %5240 = vmatprep.subr.bf16.mxu0 %v3498
    %5241 = vmatpush1.bf16.msra.mxu0 %v3497
    %5242 = vmatprep.subr.bf16.mxu0 %v3506
    %5243 = vmatpush1.bf16.msra.mxu0 %v3505
    %5244 = vmatprep.subr.bf16.mxu0 %v3514
    %5245 = vmatpush1.bf16.msra.mxu0 %v3513
    %5246 = vmatprep.subr.bf16.mxu0 %v3522
    %5247 = vmatpush1.bf16.msra.mxu0 %v3521
    %5248 = vmatprep.subr.bf16.mxu0 %v3530
    %5249 = vmatpush1.bf16.msra.mxu0 %v3529
    %5250 = vmatprep.subr.bf16.mxu0 %v3538
    %5251 = vmatpush1.bf16.msra.mxu0 %v3537
    %5252 = vmatprep.subr.bf16.mxu0 %v3546
    %5253 = vmatpush1.bf16.msra.mxu0 %v3545
    %5254 = vmatprep.subr.bf16.mxu0 %v3554
    %5255 = vmatpush1.bf16.msra.mxu0 %v3553
    %5256 = vmatprep.subr.bf16.mxu0 %v3562
    %5257 = vmatpush1.bf16.msra.mxu0 %v3561
    %5258 = vmatprep.mubr.bf16.mxu0 %v2146
    %5259 = vmatmul.mubr.bf16.gmra.mrb[0].mxu0 %v2145
    %v5260 = vpop.f32.mrb[0].mxu0
    %v5261 = vadd.f32 %v4980, %v5260
    %v5262 = vpop.f32.mrb[0].mxu0
    %v5263 = vadd.f32 %v4982, %v5262
    %v5264 = vpop.f32.mrb[0].mxu0
    %v5265 = vadd.f32 %v4984, %v5264
    %v5266 = vpop.f32.mrb[0].mxu0
    %v5267 = vadd.f32 %v4986, %v5266
    %5268 = vmatprep.mubr.bf16.mxu0 %v2150
    %5269 = vmatmul.mubr.bf16.gmra.mrb[0].mxu0 %v2149
    %v5270 = vpop.f32.mrb[0].mxu0
    %v5271 = vadd.f32 %v4990, %v5270
    %v5272 = vpop.f32.mrb[0].mxu0
    %v5273 = vadd.f32 %v4992, %v5272
    %v5274 = vpop.f32.mrb[0].mxu0
    %v5275 = vadd.f32 %v4994, %v5274
    %v5276 = vpop.f32.mrb[0].mxu0
    %v5277 = vadd.f32 %v4996, %v5276
    %5278 = vmatprep.mubr.bf16.mxu0 %v2154
    %5279 = vmatmul.mubr.bf16.gmra.mrb[0].mxu0 %v2153
    %v5280 = vpop.f32.mrb[0].mxu0
    %v5281 = vadd.f32 %v5000, %v5280
    %v5282 = vpop.f32.mrb[0].mxu0
    %v5283 = vadd.f32 %v5002, %v5282
    %v5284 = vpop.f32.mrb[0].mxu0
    %v5285 = vadd.f32 %v5004, %v5284
    %v5286 = vpop.f32.mrb[0].mxu0
    %v5287 = vadd.f32 %v5006, %v5286
    %5288 = vmatprep.mubr.bf16.mxu0 %v2158
    %5289 = vmatmul.mubr.bf16.gmra.mrb[0].mxu0 %v2157
    %v5290 = vpop.f32.mrb[0].mxu0
    %v5291 = vadd.f32 %v5010, %v5290
    %v5292 = vpop.f32.mrb[0].mxu0
    %v5293 = vadd.f32 %v5012, %v5292
    %v5294 = vpop.f32.mrb[0].mxu0
    %v5295 = vadd.f32 %v5014, %v5294
    %v5296 = vpop.f32.mrb[0].mxu0
    %v5297 = vadd.f32 %v5016, %v5296
    %5298 = vmatprep.mubr.bf16.mxu0 %v2162
    %5299 = vmatmul.mubr.bf16.gmra.mrb[0].mxu0 %v2161
    %v5300 = vpop.f32.mrb[0].mxu0
    %v5301 = vadd.f32 %v5020, %v5300
    %v5302 = vpop.f32.mrb[0].mxu0
    %v5303 = vadd.f32 %v5022, %v5302
    %v5304 = vpop.f32.mrb[0].mxu0
    %v5305 = vadd.f32 %v5024, %v5304
    %v5306 = vpop.f32.mrb[0].mxu0
    %v5307 = vadd.f32 %v5026, %v5306
    %5308 = vmatprep.mubr.bf16.mxu0 %v2166
    %5309 = vmatmul.mubr.bf16.gmra.mrb[0].mxu0 %v2165
    %v5310 = vpop.f32.mrb[0].mxu0
    %v5311 = vadd.f32 %v5030, %v5310
    %v5312 = vpop.f32.mrb[0].mxu0
    %v5313 = vadd.f32 %v5032, %v5312
    %v5314 = vpop.f32.mrb[0].mxu0
    %v5315 = vadd.f32 %v5034, %v5314
    %v5316 = vpop.f32.mrb[0].mxu0
    %v5317 = vadd.f32 %v5036, %v5316
    %5318 = vmatprep.mubr.bf16.mxu0 %v2170
    %5319 = vmatmul.mubr.bf16.gmra.mrb[0].mxu0 %v2169
    %v5320 = vpop.f32.mrb[0].mxu0
    %v5321 = vadd.f32 %v5040, %v5320
    %v5322 = vpop.f32.mrb[0].mxu0
    %v5323 = vadd.f32 %v5042, %v5322
    %v5324 = vpop.f32.mrb[0].mxu0
    %v5325 = vadd.f32 %v5044, %v5324
    %v5326 = vpop.f32.mrb[0].mxu0
    %v5327 = vadd.f32 %v5046, %v5326
    %5328 = vmatprep.mubr.bf16.mxu0 %v2174
    %5329 = vmatmul.mubr.bf16.gmra.mrb[0].mxu0 %v2173
    %v5330 = vpop.f32.mrb[0].mxu0
    %v5331 = vadd.f32 %v5050, %v5330
    %v5332 = vpop.f32.mrb[0].mxu0
    %v5333 = vadd.f32 %v5052, %v5332
    %v5334 = vpop.f32.mrb[0].mxu0
    %v5335 = vadd.f32 %v5054, %v5334
    %v5336 = vpop.f32.mrb[0].mxu0
    %v5337 = vadd.f32 %v5056, %v5336
    %5338 = vmatprep.mubr.bf16.mxu0 %v2178
    %5339 = vmatmul.mubr.bf16.gmra.mrb[0].mxu0 %v2177
    %v5340 = vpop.f32.mrb[0].mxu0
    %v5341 = vadd.f32 %v5060, %v5340
    %v5342 = vpop.f32.mrb[0].mxu0
    %v5343 = vadd.f32 %v5062, %v5342
    %v5344 = vpop.f32.mrb[0].mxu0
    %v5345 = vadd.f32 %v5064, %v5344
    %v5346 = vpop.f32.mrb[0].mxu0
    %v5347 = vadd.f32 %v5066, %v5346
    %5348 = vmatprep.mubr.bf16.mxu0 %v2182
    %5349 = vmatmul.mubr.bf16.gmra.mrb[0].mxu0 %v2181
    %v5350 = vpop.f32.mrb[0].mxu0
    %v5351 = vadd.f32 %v5070, %v5350
    %v5352 = vpop.f32.mrb[0].mxu0
    %v5353 = vadd.f32 %v5072, %v5352
    %v5354 = vpop.f32.mrb[0].mxu0
    %v5355 = vadd.f32 %v5074, %v5354
    %v5356 = vpop.f32.mrb[0].mxu0
    %v5357 = vadd.f32 %v5076, %v5356
    %5358 = vmatprep.mubr.bf16.mxu0 %v2186
    %5359 = vmatmul.mubr.bf16.gmra.mrb[0].mxu0 %v2185
    %v5360 = vpop.f32.mrb[0].mxu0
    %v5361 = vadd.f32 %v5080, %v5360
    %v5362 = vpop.f32.mrb[0].mxu0
    %v5363 = vadd.f32 %v5082, %v5362
    %v5364 = vpop.f32.mrb[0].mxu0
    %v5365 = vadd.f32 %v5084, %v5364
    %v5366 = vpop.f32.mrb[0].mxu0
    %v5367 = vadd.f32 %v5086, %v5366
    %5368 = vmatprep.mubr.bf16.mxu0 %v2190
    %5369 = vmatmul.mubr.bf16.gmra.mrb[0].mxu0 %v2189
    %v5370 = vpop.f32.mrb[0].mxu0
    %v5371 = vadd.f32 %v5090, %v5370
    %v5372 = vpop.f32.mrb[0].mxu0
    %v5373 = vadd.f32 %v5092, %v5372
    %v5374 = vpop.f32.mrb[0].mxu0
    %v5375 = vadd.f32 %v5094, %v5374
    %v5376 = vpop.f32.mrb[0].mxu0
    %v5377 = vadd.f32 %v5096, %v5376
    %5378 = vmatprep.mubr.bf16.mxu0 %v2194
    %5379 = vmatmul.mubr.bf16.gmra.mrb[0].mxu0 %v2193
    %v5380 = vpop.f32.mrb[0].mxu0
    %v5381 = vadd.f32 %v5100, %v5380
    %v5382 = vpop.f32.mrb[0].mxu0
    %v5383 = vadd.f32 %v5102, %v5382
    %v5384 = vpop.f32.mrb[0].mxu0
    %v5385 = vadd.f32 %v5104, %v5384
    %v5386 = vpop.f32.mrb[0].mxu0
    %v5387 = vadd.f32 %v5106, %v5386
    %5388 = vmatprep.mubr.bf16.mxu0 %v2198
    %5389 = vmatmul.mubr.bf16.gmra.mrb[0].mxu0 %v2197
    %v5390 = vpop.f32.mrb[0].mxu0
    %v5391 = vadd.f32 %v5110, %v5390
    %v5392 = vpop.f32.mrb[0].mxu0
    %v5393 = vadd.f32 %v5112, %v5392
    %v5394 = vpop.f32.mrb[0].mxu0
    %v5395 = vadd.f32 %v5114, %v5394
    %v5396 = vpop.f32.mrb[0].mxu0
    %v5397 = vadd.f32 %v5116, %v5396
    %5398 = vmatprep.mubr.bf16.mxu0 %v2202
    %5399 = vmatmul.mubr.bf16.gmra.mrb[0].mxu0 %v2201
    %v5400 = vpop.f32.mrb[0].mxu0
    %v5401 = vadd.f32 %v5120, %v5400
    %v5402 = vpop.f32.mrb[0].mxu0
    %v5403 = vadd.f32 %v5122, %v5402
    %v5404 = vpop.f32.mrb[0].mxu0
    %v5405 = vadd.f32 %v5124, %v5404
    %v5406 = vpop.f32.mrb[0].mxu0
    %v5407 = vadd.f32 %v5126, %v5406
    %5408 = vmatprep.mubr.bf16.mxu0 %v2206
    %5409 = vmatmul.mubr.bf16.gmra.mrb[0].mxu0 %v2205
    %v5410 = vpop.f32.mrb[0].mxu0
    %v5411 = vadd.f32 %v5130, %v5410
    %v5412 = vpop.f32.mrb[0].mxu0
    %v5413 = vadd.f32 %v5132, %v5412
    %v5414 = vpop.f32.mrb[0].mxu0
    %v5415 = vadd.f32 %v5134, %v5414
    %v5416 = vpop.f32.mrb[0].mxu0
    %v5417 = vadd.f32 %v5136, %v5416
    %5418 = vmatprep.mubr.bf16.mxu0 %v2210
    %5419 = vmatmul.mubr.bf16.gmra.mrb[0].mxu0 %v2209
    %v5420 = vpop.f32.mrb[0].mxu0
    %v5421 = vadd.f32 %v5140, %v5420
    %v5422 = vpop.f32.mrb[0].mxu0
    %v5423 = vadd.f32 %v5142, %v5422
    %v5424 = vpop.f32.mrb[0].mxu0
    %v5425 = vadd.f32 %v5144, %v5424
    %v5426 = vpop.f32.mrb[0].mxu0
    %v5427 = vadd.f32 %v5146, %v5426
    %5428 = vmatprep.mubr.bf16.mxu0 %v2214
    %5429 = vmatmul.mubr.bf16.gmra.mrb[0].mxu0 %v2213
    %v5430 = vpop.f32.mrb[0].mxu0
    %v5431 = vadd.f32 %v5150, %v5430
    %v5432 = vpop.f32.mrb[0].mxu0
    %v5433 = vadd.f32 %v5152, %v5432
    %v5434 = vpop.f32.mrb[0].mxu0
    %v5435 = vadd.f32 %v5154, %v5434
    %v5436 = vpop.f32.mrb[0].mxu0
    %v5437 = vadd.f32 %v5156, %v5436
    %5438 = vmatprep.mubr.bf16.mxu0 %v2218
    %5439 = vmatmul.mubr.bf16.gmra.mrb[0].mxu0 %v2217
    %v5440 = vpop.f32.mrb[0].mxu0
    %v5441 = vadd.f32 %v5160, %v5440
    %v5442 = vpop.f32.mrb[0].mxu0
    %v5443 = vadd.f32 %v5162, %v5442
    %v5444 = vpop.f32.mrb[0].mxu0
    %v5445 = vadd.f32 %v5164, %v5444
    %v5446 = vpop.f32.mrb[0].mxu0
    %v5447 = vadd.f32 %v5166, %v5446
    %5448 = vmatprep.mubr.bf16.mxu0 %v2222
    %5449 = vmatmul.mubr.bf16.gmra.mrb[0].mxu0 %v2221
    %v5450 = vpop.f32.mrb[0].mxu0
    %v5451 = vadd.f32 %v5170, %v5450
    %v5452 = vpop.f32.mrb[0].mxu0
    %v5453 = vadd.f32 %v5172, %v5452
    %v5454 = vpop.f32.mrb[0].mxu0
    %v5455 = vadd.f32 %v5174, %v5454
    %v5456 = vpop.f32.mrb[0].mxu0
    %v5457 = vadd.f32 %v5176, %v5456
    %5458 = vmatprep.mubr.bf16.mxu0 %v2226
    %5459 = vmatmul.mubr.bf16.gmra.mrb[0].mxu0 %v2225
    %v5460 = vpop.f32.mrb[0].mxu0
    %v5461 = vadd.f32 %v5180, %v5460
    %v5462 = vpop.f32.mrb[0].mxu0
    %v5463 = vadd.f32 %v5182, %v5462
    %v5464 = vpop.f32.mrb[0].mxu0
    %v5465 = vadd.f32 %v5184, %v5464
    %v5466 = vpop.f32.mrb[0].mxu0
    %v5467 = vadd.f32 %v5186, %v5466
    %5468 = vmatprep.mubr.bf16.mxu0 %v2230
    %5469 = vmatmul.mubr.bf16.gmra.mrb[0].mxu0 %v2229
    %v5470 = vpop.f32.mrb[0].mxu0
    %v5471 = vadd.f32 %v5190, %v5470
    %v5472 = vpop.f32.mrb[0].mxu0
    %v5473 = vadd.f32 %v5192, %v5472
    %v5474 = vpop.f32.mrb[0].mxu0
    %v5475 = vadd.f32 %v5194, %v5474
    %v5476 = vpop.f32.mrb[0].mxu0
    %v5477 = vadd.f32 %v5196, %v5476
    %5478 = vmatprep.mubr.bf16.mxu0 %v2234
    %5479 = vmatmul.mubr.bf16.gmra.mrb[0].mxu0 %v2233
    %v5480 = vpop.f32.mrb[0].mxu0
    %v5481 = vadd.f32 %v5200, %v5480
    %v5482 = vpop.f32.mrb[0].mxu0
    %v5483 = vadd.f32 %v5202, %v5482
    %v5484 = vpop.f32.mrb[0].mxu0
    %v5485 = vadd.f32 %v5204, %v5484
    %v5486 = vpop.f32.mrb[0].mxu0
    %v5487 = vadd.f32 %v5206, %v5486
    %5488 = vmatprep.mubr.bf16.mxu0 %v2238
    %5489 = vmatmul.mubr.bf16.gmra.mrb[0].mxu0 %v2237
    %v5490 = vpop.f32.mrb[0].mxu0
    %v5491 = vadd.f32 %v5210, %v5490
    %v5492 = vpop.f32.mrb[0].mxu0
    %v5493 = vadd.f32 %v5212, %v5492
    %v5494 = vpop.f32.mrb[0].mxu0
    %v5495 = vadd.f32 %v5214, %v5494
    %v5496 = vpop.f32.mrb[0].mxu0
    %v5497 = vadd.f32 %v5216, %v5496
    %5498 = vmatprep.mubr.bf16.mxu0 %v2242
    %5499 = vmatmul.mubr.bf16.gmra.mrb[0].mxu0 %v2241
    %v5500 = vpop.f32.mrb[0].mxu0
    %v5501 = vadd.f32 %v5220, %v5500
    %v5502 = vpop.f32.mrb[0].mxu0
    %v5503 = vadd.f32 %v5222, %v5502
    %v5504 = vpop.f32.mrb[0].mxu0
    %v5505 = vpop.f32.mrb[0].mxu0
    %5506 = vdwg.mxu0
    %5507 = vmatprep.subr.bf16.mxu0 %v3316
    %5508 = vmatpush1.bf16.msra.mxu0 %v3315
    %5509 = vmatprep.subr.bf16.mxu0 %v3324
    %5510 = vmatpush1.bf16.msra.mxu0 %v3323
    %5511 = vmatprep.subr.bf16.mxu0 %v3332
    %5512 = vmatpush1.bf16.msra.mxu0 %v3331
    %5513 = vmatprep.subr.bf16.mxu0 %v3340
    %5514 = vmatpush1.bf16.msra.mxu0 %v3339
    %5515 = vmatprep.subr.bf16.mxu0 %v3348
    %5516 = vmatpush1.bf16.msra.mxu0 %v3347
    %5517 = vmatprep.subr.bf16.mxu0 %v3356
    %5518 = vmatpush1.bf16.msra.mxu0 %v3355
    %5519 = vmatprep.subr.bf16.mxu0 %v3364
    %5520 = vmatpush1.bf16.msra.mxu0 %v3363
    %5521 = vmatprep.subr.bf16.mxu0 %v3372
    %5522 = vmatpush1.bf16.msra.mxu0 %v3371
    %5523 = vmatprep.subr.bf16.mxu0 %v3380
    %5524 = vmatpush1.bf16.msra.mxu0 %v3379
    %5525 = vmatprep.subr.bf16.mxu0 %v3388
    %5526 = vmatpush1.bf16.msra.mxu0 %v3387
    %5527 = vmatprep.subr.bf16.mxu0 %v3396
    %5528 = vmatpush1.bf16.msra.mxu0 %v3395
    %5529 = vmatprep.subr.bf16.mxu0 %v3404
    %5530 = vmatpush1.bf16.msra.mxu0 %v3403
    %5531 = vmatprep.subr.bf16.mxu0 %v3412
    %5532 = vmatpush1.bf16.msra.mxu0 %v3411
    %5533 = vmatprep.subr.bf16.mxu0 %v3420
    %5534 = vmatpush1.bf16.msra.mxu0 %v3419
    %5535 = vmatprep.subr.bf16.mxu0 %v3428
    %5536 = vmatpush1.bf16.msra.mxu0 %v3427
    %5537 = vmatprep.subr.bf16.mxu0 %v3436
    %5538 = vmatpush1.bf16.msra.mxu0 %v3435
    %5539 = vmatprep.mubr.bf16.mxu0 %v2144
    %5540 = vmatmul.mubr.bf16.gmra.mrb[0].mxu0 %v2143
    %v5541 = vpop.f32.mrb[0].mxu0
    %v5542 = vadd.f32 %v2528, %v5541
    %v5543 = vpop.f32.mrb[0].mxu0
    %v5544 = vadd.f32 %v2532, %v5543
    %v5545 = vpop.f32.mrb[0].mxu0
    %v5546 = vadd.f32 %v2528, %v5545
    %v5547 = vpop.f32.mrb[0].mxu0
    %v5548 = vadd.f32 %v2532, %v5547
    %5549 = vmatprep.mubr.bf16.mxu0 %v2148
    %5550 = vmatmul.mubr.bf16.gmra.mrb[0].mxu0 %v2147
    %v5551 = vpop.f32.mrb[0].mxu0
    %v5552 = vadd.f32 %v2528, %v5551
    %v5553 = vpop.f32.mrb[0].mxu0
    %v5554 = vadd.f32 %v2532, %v5553
    %v5555 = vpop.f32.mrb[0].mxu0
    %v5556 = vadd.f32 %v2528, %v5555
    %v5557 = vpop.f32.mrb[0].mxu0
    %v5558 = vadd.f32 %v2532, %v5557
    %5559 = vmatprep.mubr.bf16.mxu0 %v2152
    %5560 = vmatmul.mubr.bf16.gmra.mrb[0].mxu0 %v2151
    %v5561 = vpop.f32.mrb[0].mxu0
    %v5562 = vadd.f32 %v2528, %v5561
    %v5563 = vpop.f32.mrb[0].mxu0
    %v5564 = vadd.f32 %v2532, %v5563
    %v5565 = vpop.f32.mrb[0].mxu0
    %v5566 = vadd.f32 %v2528, %v5565
    %v5567 = vpop.f32.mrb[0].mxu0
    %v5568 = vadd.f32 %v2532, %v5567
    %5569 = vmatprep.mubr.bf16.mxu0 %v2156
    %5570 = vmatmul.mubr.bf16.gmra.mrb[0].mxu0 %v2155
    %v5571 = vpop.f32.mrb[0].mxu0
    %v5572 = vadd.f32 %v2528, %v5571
    %v5573 = vpop.f32.mrb[0].mxu0
    %v5574 = vadd.f32 %v2532, %v5573
    %v5575 = vpop.f32.mrb[0].mxu0
    %v5576 = vadd.f32 %v2528, %v5575
    %v5577 = vpop.f32.mrb[0].mxu0
    %v5578 = vadd.f32 %v2532, %v5577
    %5579 = vmatprep.mubr.bf16.mxu0 %v2160
    %5580 = vmatmul.mubr.bf16.gmra.mrb[0].mxu0 %v2159
    %v5581 = vpop.f32.mrb[0].mxu0
    %v5582 = vadd.f32 %v2528, %v5581
    %v5583 = vpop.f32.mrb[0].mxu0
    %v5584 = vadd.f32 %v2532, %v5583
    %v5585 = vpop.f32.mrb[0].mxu0
    %v5586 = vadd.f32 %v2528, %v5585
    %v5587 = vpop.f32.mrb[0].mxu0
    %v5588 = vadd.f32 %v2532, %v5587
    %5589 = vmatprep.mubr.bf16.mxu0 %v2164
    %5590 = vmatmul.mubr.bf16.gmra.mrb[0].mxu0 %v2163
    %v5591 = vpop.f32.mrb[0].mxu0
    %v5592 = vadd.f32 %v2528, %v5591
    %v5593 = vpop.f32.mrb[0].mxu0
    %v5594 = vadd.f32 %v2532, %v5593
    %v5595 = vpop.f32.mrb[0].mxu0
    %v5596 = vadd.f32 %v2528, %v5595
    %v5597 = vpop.f32.mrb[0].mxu0
    %v5598 = vadd.f32 %v2532, %v5597
    %5599 = vmatprep.mubr.bf16.mxu0 %v2168
    %5600 = vmatmul.mubr.bf16.gmra.mrb[0].mxu0 %v2167
    %v5601 = vpop.f32.mrb[0].mxu0
    %v5602 = vadd.f32 %v2528, %v5601
    %v5603 = vpop.f32.mrb[0].mxu0
    %v5604 = vadd.f32 %v2532, %v5603
    %v5605 = vpop.f32.mrb[0].mxu0
    %v5606 = vadd.f32 %v2528, %v5605
    %v5607 = vpop.f32.mrb[0].mxu0
    %v5608 = vadd.f32 %v2532, %v5607
    %5609 = vmatprep.mubr.bf16.mxu0 %v2172
    %5610 = vmatmul.mubr.bf16.gmra.mrb[0].mxu0 %v2171
    %v5611 = vpop.f32.mrb[0].mxu0
    %v5612 = vadd.f32 %v2528, %v5611
    %v5613 = vpop.f32.mrb[0].mxu0
    %v5614 = vadd.f32 %v2532, %v5613
    %v5615 = vpop.f32.mrb[0].mxu0
    %v5616 = vadd.f32 %v2528, %v5615
    %v5617 = vpop.f32.mrb[0].mxu0
    %v5618 = vadd.f32 %v2532, %v5617
    %5619 = vmatprep.mubr.bf16.mxu0 %v2176
    %5620 = vmatmul.mubr.bf16.gmra.mrb[0].mxu0 %v2175
    %v5621 = vpop.f32.mrb[0].mxu0
    %v5622 = vadd.f32 %v2528, %v5621
    %v5623 = vpop.f32.mrb[0].mxu0
    %v5624 = vadd.f32 %v2532, %v5623
    %v5625 = vpop.f32.mrb[0].mxu0
    %v5626 = vadd.f32 %v2528, %v5625
    %v5627 = vpop.f32.mrb[0].mxu0
    %v5628 = vadd.f32 %v2532, %v5627
    %5629 = vmatprep.mubr.bf16.mxu0 %v2180
    %5630 = vmatmul.mubr.bf16.gmra.mrb[0].mxu0 %v2179
    %v5631 = vpop.f32.mrb[0].mxu0
    %v5632 = vadd.f32 %v2528, %v5631
    %v5633 = vpop.f32.mrb[0].mxu0
    %v5634 = vadd.f32 %v2532, %v5633
    %v5635 = vpop.f32.mrb[0].mxu0
    %v5636 = vadd.f32 %v2528, %v5635
    %v5637 = vpop.f32.mrb[0].mxu0
    %v5638 = vadd.f32 %v2532, %v5637
    %5639 = vmatprep.mubr.bf16.mxu0 %v2184
    %5640 = vmatmul.mubr.bf16.gmra.mrb[0].mxu0 %v2183
    %v5641 = vpop.f32.mrb[0].mxu0
    %v5642 = vadd.f32 %v2528, %v5641
    %v5643 = vpop.f32.mrb[0].mxu0
    %v5644 = vadd.f32 %v2532, %v5643
    %v5645 = vpop.f32.mrb[0].mxu0
    %v5646 = vadd.f32 %v2528, %v5645
    %v5647 = vpop.f32.mrb[0].mxu0
    %v5648 = vadd.f32 %v2532, %v5647
    %5649 = vmatprep.mubr.bf16.mxu0 %v2188
    %5650 = vmatmul.mubr.bf16.gmra.mrb[0].mxu0 %v2187
    %v5651 = vpop.f32.mrb[0].mxu0
    %v5652 = vadd.f32 %v2528, %v5651
    %v5653 = vpop.f32.mrb[0].mxu0
    %v5654 = vadd.f32 %v2532, %v5653
    %v5655 = vpop.f32.mrb[0].mxu0
    %v5656 = vadd.f32 %v2528, %v5655
    %v5657 = vpop.f32.mrb[0].mxu0
    %v5658 = vadd.f32 %v2532, %v5657
    %5659 = vmatprep.mubr.bf16.mxu0 %v2192
    %5660 = vmatmul.mubr.bf16.gmra.mrb[0].mxu0 %v2191
    %v5661 = vpop.f32.mrb[0].mxu0
    %v5662 = vadd.f32 %v2528, %v5661
    %v5663 = vpop.f32.mrb[0].mxu0
    %v5664 = vadd.f32 %v2532, %v5663
    %v5665 = vpop.f32.mrb[0].mxu0
    %v5666 = vadd.f32 %v2528, %v5665
    %v5667 = vpop.f32.mrb[0].mxu0
    %v5668 = vadd.f32 %v2532, %v5667
    %5669 = vmatprep.mubr.bf16.mxu0 %v2196
    %5670 = vmatmul.mubr.bf16.gmra.mrb[0].mxu0 %v2195
    %v5671 = vpop.f32.mrb[0].mxu0
    %v5672 = vadd.f32 %v2528, %v5671
    %v5673 = vpop.f32.mrb[0].mxu0
    %v5674 = vadd.f32 %v2532, %v5673
    %v5675 = vpop.f32.mrb[0].mxu0
    %v5676 = vadd.f32 %v2528, %v5675
    %v5677 = vpop.f32.mrb[0].mxu0
    %v5678 = vadd.f32 %v2532, %v5677
    %5679 = vmatprep.mubr.bf16.mxu0 %v2200
    %5680 = vmatmul.mubr.bf16.gmra.mrb[0].mxu0 %v2199
    %v5681 = vpop.f32.mrb[0].mxu0
    %v5682 = vadd.f32 %v2528, %v5681
    %v5683 = vpop.f32.mrb[0].mxu0
    %v5684 = vadd.f32 %v2532, %v5683
    %v5685 = vpop.f32.mrb[0].mxu0
    %v5686 = vadd.f32 %v2528, %v5685
    %v5687 = vpop.f32.mrb[0].mxu0
    %v5688 = vadd.f32 %v2532, %v5687
    %5689 = vmatprep.mubr.bf16.mxu0 %v2204
    %5690 = vmatmul.mubr.bf16.gmra.mrb[0].mxu0 %v2203
    %v5691 = vpop.f32.mrb[0].mxu0
    %v5692 = vadd.f32 %v2528, %v5691
    %v5693 = vpop.f32.mrb[0].mxu0
    %v5694 = vadd.f32 %v2532, %v5693
    %v5695 = vpop.f32.mrb[0].mxu0
    %v5696 = vadd.f32 %v2528, %v5695
    %v5697 = vpop.f32.mrb[0].mxu0
    %v5698 = vadd.f32 %v2532, %v5697
    %5699 = vmatprep.mubr.bf16.mxu0 %v2208
    %5700 = vmatmul.mubr.bf16.gmra.mrb[0].mxu0 %v2207
    %v5701 = vpop.f32.mrb[0].mxu0
    %v5702 = vadd.f32 %v2528, %v5701
    %v5703 = vpop.f32.mrb[0].mxu0
    %v5704 = vadd.f32 %v2532, %v5703
    %v5705 = vpop.f32.mrb[0].mxu0
    %v5706 = vadd.f32 %v2528, %v5705
    %v5707 = vpop.f32.mrb[0].mxu0
    %v5708 = vadd.f32 %v2532, %v5707
    %5709 = vmatprep.mubr.bf16.mxu0 %v2212
    %5710 = vmatmul.mubr.bf16.gmra.mrb[0].mxu0 %v2211
    %v5711 = vpop.f32.mrb[0].mxu0
    %v5712 = vadd.f32 %v2528, %v5711
    %v5713 = vpop.f32.mrb[0].mxu0
    %v5714 = vadd.f32 %v2532, %v5713
    %v5715 = vpop.f32.mrb[0].mxu0
    %v5716 = vadd.f32 %v2528, %v5715
    %v5717 = vpop.f32.mrb[0].mxu0
    %v5718 = vadd.f32 %v2532, %v5717
    %5719 = vmatprep.mubr.bf16.mxu0 %v2216
    %5720 = vmatmul.mubr.bf16.gmra.mrb[0].mxu0 %v2215
    %v5721 = vpop.f32.mrb[0].mxu0
    %v5722 = vadd.f32 %v2528, %v5721
    %v5723 = vpop.f32.mrb[0].mxu0
    %v5724 = vadd.f32 %v2532, %v5723
    %v5725 = vpop.f32.mrb[0].mxu0
    %v5726 = vadd.f32 %v2528, %v5725
    %v5727 = vpop.f32.mrb[0].mxu0
    %v5728 = vadd.f32 %v2532, %v5727
    %5729 = vmatprep.mubr.bf16.mxu0 %v2220
    %5730 = vmatmul.mubr.bf16.gmra.mrb[0].mxu0 %v2219
    %v5731 = vpop.f32.mrb[0].mxu0
    %v5732 = vadd.f32 %v2528, %v5731
    %v5733 = vpop.f32.mrb[0].mxu0
    %v5734 = vadd.f32 %v2532, %v5733
    %v5735 = vpop.f32.mrb[0].mxu0
    %v5736 = vadd.f32 %v2528, %v5735
    %v5737 = vpop.f32.mrb[0].mxu0
    %v5738 = vadd.f32 %v2532, %v5737
    %5739 = vmatprep.mubr.bf16.mxu0 %v2224
    %5740 = vmatmul.mubr.bf16.gmra.mrb[0].mxu0 %v2223
    %v5741 = vpop.f32.mrb[0].mxu0
    %v5742 = vadd.f32 %v2528, %v5741
    %v5743 = vpop.f32.mrb[0].mxu0
    %v5744 = vadd.f32 %v2532, %v5743
    %v5745 = vpop.f32.mrb[0].mxu0
    %v5746 = vadd.f32 %v2528, %v5745
    %v5747 = vpop.f32.mrb[0].mxu0
    %v5748 = vadd.f32 %v2532, %v5747
    %5749 = vmatprep.mubr.bf16.mxu0 %v2228
    %5750 = vmatmul.mubr.bf16.gmra.mrb[0].mxu0 %v2227
    %v5751 = vpop.f32.mrb[0].mxu0
    %v5752 = vadd.f32 %v2528, %v5751
    %v5753 = vpop.f32.mrb[0].mxu0
    %v5754 = vadd.f32 %v2532, %v5753
    %v5755 = vpop.f32.mrb[0].mxu0
    %v5756 = vadd.f32 %v2528, %v5755
    %v5757 = vpop.f32.mrb[0].mxu0
    %v5758 = vadd.f32 %v2532, %v5757
    %5759 = vmatprep.mubr.bf16.mxu0 %v2232
    %5760 = vmatmul.mubr.bf16.gmra.mrb[0].mxu0 %v2231
    %v5761 = vpop.f32.mrb[0].mxu0
    %v5762 = vadd.f32 %v2528, %v5761
    %v5763 = vpop.f32.mrb[0].mxu0
    %v5764 = vadd.f32 %v2532, %v5763
    %v5765 = vpop.f32.mrb[0].mxu0
    %v5766 = vadd.f32 %v2528, %v5765
    %v5767 = vpop.f32.mrb[0].mxu0
    %v5768 = vadd.f32 %v2532, %v5767
    %5769 = vmatprep.mubr.bf16.mxu0 %v2236
    %5770 = vmatmul.mubr.bf16.gmra.mrb[0].mxu0 %v2235
    %v5771 = vpop.f32.mrb[0].mxu0
    %v5772 = vadd.f32 %v2528, %v5771
    %v5773 = vpop.f32.mrb[0].mxu0
    %v5774 = vadd.f32 %v2532, %v5773
    %v5775 = vpop.f32.mrb[0].mxu0
    %v5776 = vadd.f32 %v2528, %v5775
    %v5777 = vpop.f32.mrb[0].mxu0
    %v5778 = vadd.f32 %v2532, %v5777
    %5779 = vmatprep.mubr.bf16.mxu0 %v2240
    %5780 = vmatmul.mubr.bf16.gmra.mrb[0].mxu0 %v2239
    %v5781 = vpop.f32.mrb[0].mxu0
    %v5782 = vadd.f32 %v2528, %v5781
    %v5783 = vpop.f32.mrb[0].mxu0
    %v5784 = vadd.f32 %v2532, %v5783
    %v5785 = vpop.f32.mrb[0].mxu0
    %v5786 = vpop.f32.mrb[0].mxu0
    %5787 = vdwg.mxu0
    %5788 = vmatprep.subr.bf16.mxu0 %v3444
    %5789 = vmatpush1.bf16.msra.mxu0 %v3443
    %5790 = vmatprep.subr.bf16.mxu0 %v3452
    %5791 = vmatpush1.bf16.msra.mxu0 %v3451
    %5792 = vmatprep.subr.bf16.mxu0 %v3460
    %5793 = vmatpush1.bf16.msra.mxu0 %v3459
    %5794 = vmatprep.subr.bf16.mxu0 %v3468
    %5795 = vmatpush1.bf16.msra.mxu0 %v3467
    %5796 = vmatprep.subr.bf16.mxu0 %v3476
    %5797 = vmatpush1.bf16.msra.mxu0 %v3475
    %5798 = vmatprep.subr.bf16.mxu0 %v3484
    %5799 = vmatpush1.bf16.msra.mxu0 %v3483
    %5800 = vmatprep.subr.bf16.mxu0 %v3492
    %5801 = vmatpush1.bf16.msra.mxu0 %v3491
    %5802 = vmatprep.subr.bf16.mxu0 %v3500
    %5803 = vmatpush1.bf16.msra.mxu0 %v3499
    %5804 = vmatprep.subr.bf16.mxu0 %v3508
    %5805 = vmatpush1.bf16.msra.mxu0 %v3507
    %5806 = vmatprep.subr.bf16.mxu0 %v3516
    %5807 = vmatpush1.bf16.msra.mxu0 %v3515
    %5808 = vmatprep.subr.bf16.mxu0 %v3524
    %5809 = vmatpush1.bf16.msra.mxu0 %v3523
    %5810 = vmatprep.subr.bf16.mxu0 %v3532
    %5811 = vmatpush1.bf16.msra.mxu0 %v3531
    %5812 = vmatprep.subr.bf16.mxu0 %v3540
    %5813 = vmatpush1.bf16.msra.mxu0 %v3539
    %5814 = vmatprep.subr.bf16.mxu0 %v3548
    %5815 = vmatpush1.bf16.msra.mxu0 %v3547
    %5816 = vmatprep.subr.bf16.mxu0 %v3556
    %5817 = vmatpush1.bf16.msra.mxu0 %v3555
    %5818 = vmatprep.subr.bf16.mxu0 %v3564
    %5819 = vmatpush1.bf16.msra.mxu0 %v3563
    %5820 = vmatprep.mubr.bf16.mxu0 %v2146
    %5821 = vmatmul.mubr.bf16.gmra.mrb[0].mxu0 %v2145
    %v5822 = vpop.f32.mrb[0].mxu0
    %v5823 = vadd.f32 %v5542, %v5822
    %v5824 = vpop.f32.mrb[0].mxu0
    %v5825 = vadd.f32 %v5544, %v5824
    %v5826 = vpop.f32.mrb[0].mxu0
    %v5827 = vadd.f32 %v5546, %v5826
    %v5828 = vpop.f32.mrb[0].mxu0
    %v5829 = vadd.f32 %v5548, %v5828
    %5830 = vmatprep.mubr.bf16.mxu0 %v2150
    %5831 = vmatmul.mubr.bf16.gmra.mrb[0].mxu0 %v2149
    %v5832 = vpop.f32.mrb[0].mxu0
    %v5833 = vadd.f32 %v5552, %v5832
    %v5834 = vpop.f32.mrb[0].mxu0
    %v5835 = vadd.f32 %v5554, %v5834
    %v5836 = vpop.f32.mrb[0].mxu0
    %v5837 = vadd.f32 %v5556, %v5836
    %v5838 = vpop.f32.mrb[0].mxu0
    %v5839 = vadd.f32 %v5558, %v5838
    %5840 = vmatprep.mubr.bf16.mxu0 %v2154
    %5841 = vmatmul.mubr.bf16.gmra.mrb[0].mxu0 %v2153
    %v5842 = vpop.f32.mrb[0].mxu0
    %v5843 = vadd.f32 %v5562, %v5842
    %v5844 = vpop.f32.mrb[0].mxu0
    %v5845 = vadd.f32 %v5564, %v5844
    %v5846 = vpop.f32.mrb[0].mxu0
    %v5847 = vadd.f32 %v5566, %v5846
    %v5848 = vpop.f32.mrb[0].mxu0
    %v5849 = vadd.f32 %v5568, %v5848
    %5850 = vmatprep.mubr.bf16.mxu0 %v2158
    %5851 = vmatmul.mubr.bf16.gmra.mrb[0].mxu0 %v2157
    %v5852 = vpop.f32.mrb[0].mxu0
    %v5853 = vadd.f32 %v5572, %v5852
    %v5854 = vpop.f32.mrb[0].mxu0
    %v5855 = vadd.f32 %v5574, %v5854
    %v5856 = vpop.f32.mrb[0].mxu0
    %v5857 = vadd.f32 %v5576, %v5856
    %v5858 = vpop.f32.mrb[0].mxu0
    %v5859 = vadd.f32 %v5578, %v5858
    %5860 = vmatprep.mubr.bf16.mxu0 %v2162
    %5861 = vmatmul.mubr.bf16.gmra.mrb[0].mxu0 %v2161
    %v5862 = vpop.f32.mrb[0].mxu0
    %v5863 = vadd.f32 %v5582, %v5862
    %v5864 = vpop.f32.mrb[0].mxu0
    %v5865 = vadd.f32 %v5584, %v5864
    %v5866 = vpop.f32.mrb[0].mxu0
    %v5867 = vadd.f32 %v5586, %v5866
    %v5868 = vpop.f32.mrb[0].mxu0
    %v5869 = vadd.f32 %v5588, %v5868
    %5870 = vmatprep.mubr.bf16.mxu0 %v2166
    %5871 = vmatmul.mubr.bf16.gmra.mrb[0].mxu0 %v2165
    %v5872 = vpop.f32.mrb[0].mxu0
    %v5873 = vadd.f32 %v5592, %v5872
    %v5874 = vpop.f32.mrb[0].mxu0
    %v5875 = vadd.f32 %v5594, %v5874
    %v5876 = vpop.f32.mrb[0].mxu0
    %v5877 = vadd.f32 %v5596, %v5876
    %v5878 = vpop.f32.mrb[0].mxu0
    %v5879 = vadd.f32 %v5598, %v5878
    %5880 = vmatprep.mubr.bf16.mxu0 %v2170
    %5881 = vmatmul.mubr.bf16.gmra.mrb[0].mxu0 %v2169
    %v5882 = vpop.f32.mrb[0].mxu0
    %v5883 = vadd.f32 %v5602, %v5882
    %v5884 = vpop.f32.mrb[0].mxu0
    %v5885 = vadd.f32 %v5604, %v5884
    %v5886 = vpop.f32.mrb[0].mxu0
    %v5887 = vadd.f32 %v5606, %v5886
    %v5888 = vpop.f32.mrb[0].mxu0
    %v5889 = vadd.f32 %v5608, %v5888
    %5890 = vmatprep.mubr.bf16.mxu0 %v2174
    %5891 = vmatmul.mubr.bf16.gmra.mrb[0].mxu0 %v2173
    %v5892 = vpop.f32.mrb[0].mxu0
    %v5893 = vadd.f32 %v5612, %v5892
    %v5894 = vpop.f32.mrb[0].mxu0
    %v5895 = vadd.f32 %v5614, %v5894
    %v5896 = vpop.f32.mrb[0].mxu0
    %v5897 = vadd.f32 %v5616, %v5896
    %v5898 = vpop.f32.mrb[0].mxu0
    %v5899 = vadd.f32 %v5618, %v5898
    %5900 = vmatprep.mubr.bf16.mxu0 %v2178
    %5901 = vmatmul.mubr.bf16.gmra.mrb[0].mxu0 %v2177
    %v5902 = vpop.f32.mrb[0].mxu0
    %v5903 = vadd.f32 %v5622, %v5902
    %v5904 = vpop.f32.mrb[0].mxu0
    %v5905 = vadd.f32 %v5624, %v5904
    %v5906 = vpop.f32.mrb[0].mxu0
    %v5907 = vadd.f32 %v5626, %v5906
    %v5908 = vpop.f32.mrb[0].mxu0
    %v5909 = vadd.f32 %v5628, %v5908
    %5910 = vmatprep.mubr.bf16.mxu0 %v2182
    %5911 = vmatmul.mubr.bf16.gmra.mrb[0].mxu0 %v2181
    %v5912 = vpop.f32.mrb[0].mxu0
    %v5913 = vadd.f32 %v5632, %v5912
    %v5914 = vpop.f32.mrb[0].mxu0
    %v5915 = vadd.f32 %v5634, %v5914
    %v5916 = vpop.f32.mrb[0].mxu0
    %v5917 = vadd.f32 %v5636, %v5916
    %v5918 = vpop.f32.mrb[0].mxu0
    %v5919 = vadd.f32 %v5638, %v5918
    %5920 = vmatprep.mubr.bf16.mxu0 %v2186
    %5921 = vmatmul.mubr.bf16.gmra.mrb[0].mxu0 %v2185
    %v5922 = vpop.f32.mrb[0].mxu0
    %v5923 = vadd.f32 %v5642, %v5922
    %v5924 = vpop.f32.mrb[0].mxu0
    %v5925 = vadd.f32 %v5644, %v5924
    %v5926 = vpop.f32.mrb[0].mxu0
    %v5927 = vadd.f32 %v5646, %v5926
    %v5928 = vpop.f32.mrb[0].mxu0
    %v5929 = vadd.f32 %v5648, %v5928
    %5930 = vmatprep.mubr.bf16.mxu0 %v2190
    %5931 = vmatmul.mubr.bf16.gmra.mrb[0].mxu0 %v2189
    %v5932 = vpop.f32.mrb[0].mxu0
    %v5933 = vadd.f32 %v5652, %v5932
    %v5934 = vpop.f32.mrb[0].mxu0
    %v5935 = vadd.f32 %v5654, %v5934
    %v5936 = vpop.f32.mrb[0].mxu0
    %v5937 = vadd.f32 %v5656, %v5936
    %v5938 = vpop.f32.mrb[0].mxu0
    %v5939 = vadd.f32 %v5658, %v5938
    %5940 = vmatprep.mubr.bf16.mxu0 %v2194
    %5941 = vmatmul.mubr.bf16.gmra.mrb[0].mxu0 %v2193
    %v5942 = vpop.f32.mrb[0].mxu0
    %v5943 = vadd.f32 %v5662, %v5942
    %v5944 = vpop.f32.mrb[0].mxu0
    %v5945 = vadd.f32 %v5664, %v5944
    %v5946 = vpop.f32.mrb[0].mxu0
    %v5947 = vadd.f32 %v5666, %v5946
    %v5948 = vpop.f32.mrb[0].mxu0
    %v5949 = vadd.f32 %v5668, %v5948
    %5950 = vmatprep.mubr.bf16.mxu0 %v2198
    %5951 = vmatmul.mubr.bf16.gmra.mrb[0].mxu0 %v2197
    %v5952 = vpop.f32.mrb[0].mxu0
    %v5953 = vadd.f32 %v5672, %v5952
    %v5954 = vpop.f32.mrb[0].mxu0
    %v5955 = vadd.f32 %v5674, %v5954
    %v5956 = vpop.f32.mrb[0].mxu0
    %v5957 = vadd.f32 %v5676, %v5956
    %v5958 = vpop.f32.mrb[0].mxu0
    %v5959 = vadd.f32 %v5678, %v5958
    %5960 = vmatprep.mubr.bf16.mxu0 %v2202
    %5961 = vmatmul.mubr.bf16.gmra.mrb[0].mxu0 %v2201
    %v5962 = vpop.f32.mrb[0].mxu0
    %v5963 = vadd.f32 %v5682, %v5962
    %v5964 = vpop.f32.mrb[0].mxu0
    %v5965 = vadd.f32 %v5684, %v5964
    %v5966 = vpop.f32.mrb[0].mxu0
    %v5967 = vadd.f32 %v5686, %v5966
    %v5968 = vpop.f32.mrb[0].mxu0
    %v5969 = vadd.f32 %v5688, %v5968
    %5970 = vmatprep.mubr.bf16.mxu0 %v2206
    %5971 = vmatmul.mubr.bf16.gmra.mrb[0].mxu0 %v2205
    %v5972 = vpop.f32.mrb[0].mxu0
    %v5973 = vadd.f32 %v5692, %v5972
    %v5974 = vpop.f32.mrb[0].mxu0
    %v5975 = vadd.f32 %v5694, %v5974
    %v5976 = vpop.f32.mrb[0].mxu0
    %v5977 = vadd.f32 %v5696, %v5976
    %v5978 = vpop.f32.mrb[0].mxu0
    %v5979 = vadd.f32 %v5698, %v5978
    %5980 = vmatprep.mubr.bf16.mxu0 %v2210
    %5981 = vmatmul.mubr.bf16.gmra.mrb[0].mxu0 %v2209
    %v5982 = vpop.f32.mrb[0].mxu0
    %v5983 = vadd.f32 %v5702, %v5982
    %v5984 = vpop.f32.mrb[0].mxu0
    %v5985 = vadd.f32 %v5704, %v5984
    %v5986 = vpop.f32.mrb[0].mxu0
    %v5987 = vadd.f32 %v5706, %v5986
    %v5988 = vpop.f32.mrb[0].mxu0
    %v5989 = vadd.f32 %v5708, %v5988
    %5990 = vmatprep.mubr.bf16.mxu0 %v2214
    %5991 = vmatmul.mubr.bf16.gmra.mrb[0].mxu0 %v2213
    %v5992 = vpop.f32.mrb[0].mxu0
    %v5993 = vadd.f32 %v5712, %v5992
    %v5994 = vpop.f32.mrb[0].mxu0
    %v5995 = vadd.f32 %v5714, %v5994
    %v5996 = vpop.f32.mrb[0].mxu0
    %v5997 = vadd.f32 %v5716, %v5996
    %v5998 = vpop.f32.mrb[0].mxu0
    %v5999 = vadd.f32 %v5718, %v5998
    %6000 = vmatprep.mubr.bf16.mxu0 %v2218
    %6001 = vmatmul.mubr.bf16.gmra.mrb[0].mxu0 %v2217
    %v6002 = vpop.f32.mrb[0].mxu0
    %v6003 = vadd.f32 %v5722, %v6002
    %v6004 = vpop.f32.mrb[0].mxu0
    %v6005 = vadd.f32 %v5724, %v6004
    %v6006 = vpop.f32.mrb[0].mxu0
    %v6007 = vadd.f32 %v5726, %v6006
    %v6008 = vpop.f32.mrb[0].mxu0
    %v6009 = vadd.f32 %v5728, %v6008
    %6010 = vmatprep.mubr.bf16.mxu0 %v2222
    %6011 = vmatmul.mubr.bf16.gmra.mrb[0].mxu0 %v2221
    %v6012 = vpop.f32.mrb[0].mxu0
    %v6013 = vadd.f32 %v5732, %v6012
    %v6014 = vpop.f32.mrb[0].mxu0
    %v6015 = vadd.f32 %v5734, %v6014
    %v6016 = vpop.f32.mrb[0].mxu0
    %v6017 = vadd.f32 %v5736, %v6016
    %v6018 = vpop.f32.mrb[0].mxu0
    %v6019 = vadd.f32 %v5738, %v6018
    %6020 = vmatprep.mubr.bf16.mxu0 %v2226
    %6021 = vmatmul.mubr.bf16.gmra.mrb[0].mxu0 %v2225
    %v6022 = vpop.f32.mrb[0].mxu0
    %v6023 = vadd.f32 %v5742, %v6022
    %v6024 = vpop.f32.mrb[0].mxu0
    %v6025 = vadd.f32 %v5744, %v6024
    %v6026 = vpop.f32.mrb[0].mxu0
    %v6027 = vadd.f32 %v5746, %v6026
    %v6028 = vpop.f32.mrb[0].mxu0
    %v6029 = vadd.f32 %v5748, %v6028
    %6030 = vmatprep.mubr.bf16.mxu0 %v2230
    %6031 = vmatmul.mubr.bf16.gmra.mrb[0].mxu0 %v2229
    %v6032 = vpop.f32.mrb[0].mxu0
    %v6033 = vadd.f32 %v5752, %v6032
    %v6034 = vpop.f32.mrb[0].mxu0
    %v6035 = vadd.f32 %v5754, %v6034
    %v6036 = vpop.f32.mrb[0].mxu0
    %v6037 = vadd.f32 %v5756, %v6036
    %v6038 = vpop.f32.mrb[0].mxu0
    %v6039 = vadd.f32 %v5758, %v6038
    %6040 = vmatprep.mubr.bf16.mxu0 %v2234
    %6041 = vmatmul.mubr.bf16.gmra.mrb[0].mxu0 %v2233
    %v6042 = vpop.f32.mrb[0].mxu0
    %v6043 = vadd.f32 %v5762, %v6042
    %v6044 = vpop.f32.mrb[0].mxu0
    %v6045 = vadd.f32 %v5764, %v6044
    %v6046 = vpop.f32.mrb[0].mxu0
    %v6047 = vadd.f32 %v5766, %v6046
    %v6048 = vpop.f32.mrb[0].mxu0
    %v6049 = vadd.f32 %v5768, %v6048
    %6050 = vmatprep.mubr.bf16.mxu0 %v2238
    %6051 = vmatmul.mubr.bf16.gmra.mrb[0].mxu0 %v2237
    %v6052 = vpop.f32.mrb[0].mxu0
    %v6053 = vadd.f32 %v5772, %v6052
    %v6054 = vpop.f32.mrb[0].mxu0
    %v6055 = vadd.f32 %v5774, %v6054
    %v6056 = vpop.f32.mrb[0].mxu0
    %v6057 = vadd.f32 %v5776, %v6056
    %v6058 = vpop.f32.mrb[0].mxu0
    %v6059 = vadd.f32 %v5778, %v6058
    %6060 = vmatprep.mubr.bf16.mxu0 %v2242
    %6061 = vmatmul.mubr.bf16.gmra.mrb[0].mxu0 %v2241
    %v6062 = vpop.f32.mrb[0].mxu0
    %v6063 = vadd.f32 %v5782, %v6062
    %v6064 = vpop.f32.mrb[0].mxu0
    %v6065 = vadd.f32 %v5784, %v6064
    %v6066 = vpop.f32.mrb[0].mxu0
    %v6067 = vpop.f32.mrb[0].mxu0
    %6068 = vdwg.mxu0
    %v6069 = vadd.f32 %v4137, %v4139
    %v6070 = vadd.f32 %v6069, %v4699
    %v6071 = vadd.f32 %v6070, %v4701
    %v6072 = vadd.f32 %v6071, %v5261
    %v6073 = vadd.f32 %v6072, %v5263
    %v6074 = vadd.f32 %v6073, %v5823
    %v6075 = vadd.f32 %v6074, %v5825
    %6076 = vadd.xlane.f32.xlu0 %v6075
    %v6077 = vpop.xlane.xlu0 %6076
    %v6078 = vadd.f32 %v4141, %v4143
    %v6079 = vadd.f32 %v6078, %v4703
    %v6080 = vadd.f32 %v6079, %v4705
    %v6081 = vadd.f32 %v6080, %v5265
    %v6082 = vadd.f32 %v6081, %v5267
    %v6083 = vadd.f32 %v6082, %v5827
    %v6084 = vadd.f32 %v6083, %v5829
    %6085 = vadd.xlane.f32.xlu0 %v6084
    %v6086 = vpop.xlane.xlu0 %6085
    %v6087 = vadd.f32 %v4147, %v4149
    %v6088 = vadd.f32 %v6087, %v4709
    %v6089 = vadd.f32 %v6088, %v4711
    %v6090 = vadd.f32 %v6089, %v5271
    %v6091 = vadd.f32 %v6090, %v5273
    %v6092 = vadd.f32 %v6091, %v5833
    %v6093 = vadd.f32 %v6092, %v5835
    %6094 = vadd.xlane.f32.xlu0 %v6093
    %v6095 = vpop.xlane.xlu0 %6094
    %v6096 = vadd.f32 %v4151, %v4153
    %v6097 = vadd.f32 %v6096, %v4713
    %v6098 = vadd.f32 %v6097, %v4715
    %v6099 = vadd.f32 %v6098, %v5275
    %v6100 = vadd.f32 %v6099, %v5277
    %v6101 = vadd.f32 %v6100, %v5837
    %v6102 = vadd.f32 %v6101, %v5839
    %6103 = vadd.xlane.f32.xlu0 %v6102
    %v6104 = vpop.xlane.xlu0 %6103
    %v6105 = vadd.f32 %v4157, %v4159
    %v6106 = vadd.f32 %v6105, %v4719
    %v6107 = vadd.f32 %v6106, %v4721
    %v6108 = vadd.f32 %v6107, %v5281
    %v6109 = vadd.f32 %v6108, %v5283
    %v6110 = vadd.f32 %v6109, %v5843
    %v6111 = vadd.f32 %v6110, %v5845
    %6112 = vadd.xlane.f32.xlu0 %v6111
    %v6113 = vpop.xlane.xlu0 %6112
    %v6114 = vadd.f32 %v4161, %v4163
    %v6115 = vadd.f32 %v6114, %v4723
    %v6116 = vadd.f32 %v6115, %v4725
    %v6117 = vadd.f32 %v6116, %v5285
    %v6118 = vadd.f32 %v6117, %v5287
    %v6119 = vadd.f32 %v6118, %v5847
    %v6120 = vadd.f32 %v6119, %v5849
    %6121 = vadd.xlane.f32.xlu0 %v6120
    %v6122 = vpop.xlane.xlu0 %6121
    %v6123 = vadd.f32 %v4167, %v4169
    %v6124 = vadd.f32 %v6123, %v4729
    %v6125 = vadd.f32 %v6124, %v4731
    %v6126 = vadd.f32 %v6125, %v5291
    %v6127 = vadd.f32 %v6126, %v5293
    %v6128 = vadd.f32 %v6127, %v5853
    %v6129 = vadd.f32 %v6128, %v5855
    %6130 = vadd.xlane.f32.xlu0 %v6129
    %v6131 = vpop.xlane.xlu0 %6130
    %v6132 = vadd.f32 %v4171, %v4173
    %v6133 = vadd.f32 %v6132, %v4733
    %v6134 = vadd.f32 %v6133, %v4735
    %v6135 = vadd.f32 %v6134, %v5295
    %v6136 = vadd.f32 %v6135, %v5297
    %v6137 = vadd.f32 %v6136, %v5857
    %v6138 = vadd.f32 %v6137, %v5859
    %6139 = vadd.xlane.f32.xlu0 %v6138
    %v6140 = vpop.xlane.xlu0 %6139
    %v6141 = vadd.f32 %v4177, %v4179
    %v6142 = vadd.f32 %v6141, %v4739
    %v6143 = vadd.f32 %v6142, %v4741
    %v6144 = vadd.f32 %v6143, %v5301
    %v6145 = vadd.f32 %v6144, %v5303
    %v6146 = vadd.f32 %v6145, %v5863
    %v6147 = vadd.f32 %v6146, %v5865
    %6148 = vadd.xlane.f32.xlu0 %v6147
    %v6149 = vpop.xlane.xlu0 %6148
    %v6150 = vadd.f32 %v4181, %v4183
    %v6151 = vadd.f32 %v6150, %v4743
    %v6152 = vadd.f32 %v6151, %v4745
    %v6153 = vadd.f32 %v6152, %v5305
    %v6154 = vadd.f32 %v6153, %v5307
    %v6155 = vadd.f32 %v6154, %v5867
    %v6156 = vadd.f32 %v6155, %v5869
    %6157 = vadd.xlane.f32.xlu0 %v6156
    %v6158 = vpop.xlane.xlu0 %6157
    %v6159 = vadd.f32 %v4187, %v4189
    %v6160 = vadd.f32 %v6159, %v4749
    %v6161 = vadd.f32 %v6160, %v4751
    %v6162 = vadd.f32 %v6161, %v5311
    %v6163 = vadd.f32 %v6162, %v5313
    %v6164 = vadd.f32 %v6163, %v5873
    %v6165 = vadd.f32 %v6164, %v5875
    %6166 = vadd.xlane.f32.xlu0 %v6165
    %v6167 = vpop.xlane.xlu0 %6166
    %v6168 = vadd.f32 %v4191, %v4193
    %v6169 = vadd.f32 %v6168, %v4753
    %v6170 = vadd.f32 %v6169, %v4755
    %v6171 = vadd.f32 %v6170, %v5315
    %v6172 = vadd.f32 %v6171, %v5317
    %v6173 = vadd.f32 %v6172, %v5877
    %v6174 = vadd.f32 %v6173, %v5879
    %6175 = vadd.xlane.f32.xlu0 %v6174
    %v6176 = vpop.xlane.xlu0 %6175
    %v6177 = vadd.f32 %v4197, %v4199
    %v6178 = vadd.f32 %v6177, %v4759
    %v6179 = vadd.f32 %v6178, %v4761
    %v6180 = vadd.f32 %v6179, %v5321
    %v6181 = vadd.f32 %v6180, %v5323
    %v6182 = vadd.f32 %v6181, %v5883
    %v6183 = vadd.f32 %v6182, %v5885
    %6184 = vadd.xlane.f32.xlu0 %v6183
    %v6185 = vpop.xlane.xlu0 %6184
    %v6186 = vadd.f32 %v4201, %v4203
    %v6187 = vadd.f32 %v6186, %v4763
    %v6188 = vadd.f32 %v6187, %v4765
    %v6189 = vadd.f32 %v6188, %v5325
    %v6190 = vadd.f32 %v6189, %v5327
    %v6191 = vadd.f32 %v6190, %v5887
    %v6192 = vadd.f32 %v6191, %v5889
    %6193 = vadd.xlane.f32.xlu0 %v6192
    %v6194 = vpop.xlane.xlu0 %6193
    %v6195 = vadd.f32 %v4207, %v4209
    %v6196 = vadd.f32 %v6195, %v4769
    %v6197 = vadd.f32 %v6196, %v4771
    %v6198 = vadd.f32 %v6197, %v5331
    %v6199 = vadd.f32 %v6198, %v5333
    %v6200 = vadd.f32 %v6199, %v5893
    %v6201 = vadd.f32 %v6200, %v5895
    %6202 = vadd.xlane.f32.xlu0 %v6201
    %v6203 = vpop.xlane.xlu0 %6202
    %v6204 = vadd.f32 %v4211, %v4213
    %v6205 = vadd.f32 %v6204, %v4773
    %v6206 = vadd.f32 %v6205, %v4775
    %v6207 = vadd.f32 %v6206, %v5335
    %v6208 = vadd.f32 %v6207, %v5337
    %v6209 = vadd.f32 %v6208, %v5897
    %v6210 = vadd.f32 %v6209, %v5899
    %6211 = vadd.xlane.f32.xlu0 %v6210
    %v6212 = vpop.xlane.xlu0 %6211
    %v6213 = vadd.f32 %v4217, %v4219
    %v6214 = vadd.f32 %v6213, %v4779
    %v6215 = vadd.f32 %v6214, %v4781
    %v6216 = vadd.f32 %v6215, %v5341
    %v6217 = vadd.f32 %v6216, %v5343
    %v6218 = vadd.f32 %v6217, %v5903
    %v6219 = vadd.f32 %v6218, %v5905
    %6220 = vadd.xlane.f32.xlu0 %v6219
    %v6221 = vpop.xlane.xlu0 %6220
    %v6222 = vadd.f32 %v4221, %v4223
    %v6223 = vadd.f32 %v6222, %v4783
    %v6224 = vadd.f32 %v6223, %v4785
    %v6225 = vadd.f32 %v6224, %v5345
    %v6226 = vadd.f32 %v6225, %v5347
    %v6227 = vadd.f32 %v6226, %v5907
    %v6228 = vadd.f32 %v6227, %v5909
    %6229 = vadd.xlane.f32.xlu0 %v6228
    %v6230 = vpop.xlane.xlu0 %6229
    %v6231 = vadd.f32 %v4227, %v4229
    %v6232 = vadd.f32 %v6231, %v4789
    %v6233 = vadd.f32 %v6232, %v4791
    %v6234 = vadd.f32 %v6233, %v5351
    %v6235 = vadd.f32 %v6234, %v5353
    %v6236 = vadd.f32 %v6235, %v5913
    %v6237 = vadd.f32 %v6236, %v5915
    %6238 = vadd.xlane.f32.xlu0 %v6237
    %v6239 = vpop.xlane.xlu0 %6238
    %v6240 = vadd.f32 %v4231, %v4233
    %v6241 = vadd.f32 %v6240, %v4793
    %v6242 = vadd.f32 %v6241, %v4795
    %v6243 = vadd.f32 %v6242, %v5355
    %v6244 = vadd.f32 %v6243, %v5357
    %v6245 = vadd.f32 %v6244, %v5917
    %v6246 = vadd.f32 %v6245, %v5919
    %6247 = vadd.xlane.f32.xlu0 %v6246
    %v6248 = vpop.xlane.xlu0 %6247
    %v6249 = vadd.f32 %v4237, %v4239
    %v6250 = vadd.f32 %v6249, %v4799
    %v6251 = vadd.f32 %v6250, %v4801
    %v6252 = vadd.f32 %v6251, %v5361
    %v6253 = vadd.f32 %v6252, %v5363
    %v6254 = vadd.f32 %v6253, %v5923
    %v6255 = vadd.f32 %v6254, %v5925
    %6256 = vadd.xlane.f32.xlu0 %v6255
    %v6257 = vpop.xlane.xlu0 %6256
    %v6258 = vadd.f32 %v4241, %v4243
    %v6259 = vadd.f32 %v6258, %v4803
    %v6260 = vadd.f32 %v6259, %v4805
    %v6261 = vadd.f32 %v6260, %v5365
    %v6262 = vadd.f32 %v6261, %v5367
    %v6263 = vadd.f32 %v6262, %v5927
    %v6264 = vadd.f32 %v6263, %v5929
    %6265 = vadd.xlane.f32.xlu0 %v6264
    %v6266 = vpop.xlane.xlu0 %6265
    %v6267 = vadd.f32 %v4247, %v4249
    %v6268 = vadd.f32 %v6267, %v4809
    %v6269 = vadd.f32 %v6268, %v4811
    %v6270 = vadd.f32 %v6269, %v5371
    %v6271 = vadd.f32 %v6270, %v5373
    %v6272 = vadd.f32 %v6271, %v5933
    %v6273 = vadd.f32 %v6272, %v5935
    %6274 = vadd.xlane.f32.xlu0 %v6273
    %v6275 = vpop.xlane.xlu0 %6274
    %v6276 = vadd.f32 %v4251, %v4253
    %v6277 = vadd.f32 %v6276, %v4813
    %v6278 = vadd.f32 %v6277, %v4815
    %v6279 = vadd.f32 %v6278, %v5375
    %v6280 = vadd.f32 %v6279, %v5377
    %v6281 = vadd.f32 %v6280, %v5937
    %v6282 = vadd.f32 %v6281, %v5939
    %6283 = vadd.xlane.f32.xlu0 %v6282
    %v6284 = vpop.xlane.xlu0 %6283
    %v6285 = vadd.f32 %v4257, %v4259
    %v6286 = vadd.f32 %v6285, %v4819
    %v6287 = vadd.f32 %v6286, %v4821
    %v6288 = vadd.f32 %v6287, %v5381
    %v6289 = vadd.f32 %v6288, %v5383
    %v6290 = vadd.f32 %v6289, %v5943
    %v6291 = vadd.f32 %v6290, %v5945
    %6292 = vadd.xlane.f32.xlu0 %v6291
    %v6293 = vpop.xlane.xlu0 %6292
    %v6294 = vadd.f32 %v4261, %v4263
    %v6295 = vadd.f32 %v6294, %v4823
    %v6296 = vadd.f32 %v6295, %v4825
    %v6297 = vadd.f32 %v6296, %v5385
    %v6298 = vadd.f32 %v6297, %v5387
    %v6299 = vadd.f32 %v6298, %v5947
    %v6300 = vadd.f32 %v6299, %v5949
    %6301 = vadd.xlane.f32.xlu0 %v6300
    %v6302 = vpop.xlane.xlu0 %6301
    %v6303 = vadd.f32 %v4267, %v4269
    %v6304 = vadd.f32 %v6303, %v4829
    %v6305 = vadd.f32 %v6304, %v4831
    %v6306 = vadd.f32 %v6305, %v5391
    %v6307 = vadd.f32 %v6306, %v5393
    %v6308 = vadd.f32 %v6307, %v5953
    %v6309 = vadd.f32 %v6308, %v5955
    %6310 = vadd.xlane.f32.xlu0 %v6309
    %v6311 = vpop.xlane.xlu0 %6310
    %v6312 = vadd.f32 %v4271, %v4273
    %v6313 = vadd.f32 %v6312, %v4833
    %v6314 = vadd.f32 %v6313, %v4835
    %v6315 = vadd.f32 %v6314, %v5395
    %v6316 = vadd.f32 %v6315, %v5397
    %v6317 = vadd.f32 %v6316, %v5957
    %v6318 = vadd.f32 %v6317, %v5959
    %6319 = vadd.xlane.f32.xlu0 %v6318
    %v6320 = vpop.xlane.xlu0 %6319
    %v6321 = vadd.f32 %v4277, %v4279
    %v6322 = vadd.f32 %v6321, %v4839
    %v6323 = vadd.f32 %v6322, %v4841
    %v6324 = vadd.f32 %v6323, %v5401
    %v6325 = vadd.f32 %v6324, %v5403
    %v6326 = vadd.f32 %v6325, %v5963
    %v6327 = vadd.f32 %v6326, %v5965
    %6328 = vadd.xlane.f32.xlu0 %v6327
    %v6329 = vpop.xlane.xlu0 %6328
    %v6330 = vadd.f32 %v4281, %v4283
    %v6331 = vadd.f32 %v6330, %v4843
    %v6332 = vadd.f32 %v6331, %v4845
    %v6333 = vadd.f32 %v6332, %v5405
    %v6334 = vadd.f32 %v6333, %v5407
    %v6335 = vadd.f32 %v6334, %v5967
    %v6336 = vadd.f32 %v6335, %v5969
    %6337 = vadd.xlane.f32.xlu0 %v6336
    %v6338 = vpop.xlane.xlu0 %6337
    %v6339 = vadd.f32 %v4287, %v4289
    %v6340 = vadd.f32 %v6339, %v4849
    %v6341 = vadd.f32 %v6340, %v4851
    %v6342 = vadd.f32 %v6341, %v5411
    %v6343 = vadd.f32 %v6342, %v5413
    %v6344 = vadd.f32 %v6343, %v5973
    %v6345 = vadd.f32 %v6344, %v5975
    %6346 = vadd.xlane.f32.xlu0 %v6345
    %v6347 = vpop.xlane.xlu0 %6346
    %v6348 = vadd.f32 %v4291, %v4293
    %v6349 = vadd.f32 %v6348, %v4853
    %v6350 = vadd.f32 %v6349, %v4855
    %v6351 = vadd.f32 %v6350, %v5415
    %v6352 = vadd.f32 %v6351, %v5417
    %v6353 = vadd.f32 %v6352, %v5977
    %v6354 = vadd.f32 %v6353, %v5979
    %6355 = vadd.xlane.f32.xlu0 %v6354
    %v6356 = vpop.xlane.xlu0 %6355
    %v6357 = vadd.f32 %v4297, %v4299
    %v6358 = vadd.f32 %v6357, %v4859
    %v6359 = vadd.f32 %v6358, %v4861
    %v6360 = vadd.f32 %v6359, %v5421
    %v6361 = vadd.f32 %v6360, %v5423
    %v6362 = vadd.f32 %v6361, %v5983
    %v6363 = vadd.f32 %v6362, %v5985
    %6364 = vadd.xlane.f32.xlu0 %v6363
    %v6365 = vpop.xlane.xlu0 %6364
    %v6366 = vadd.f32 %v4301, %v4303
    %v6367 = vadd.f32 %v6366, %v4863
    %v6368 = vadd.f32 %v6367, %v4865
    %v6369 = vadd.f32 %v6368, %v5425
    %v6370 = vadd.f32 %v6369, %v5427
    %v6371 = vadd.f32 %v6370, %v5987
    %v6372 = vadd.f32 %v6371, %v5989
    %6373 = vadd.xlane.f32.xlu0 %v6372
    %v6374 = vpop.xlane.xlu0 %6373
    %v6375 = vadd.f32 %v4307, %v4309
    %v6376 = vadd.f32 %v6375, %v4869
    %v6377 = vadd.f32 %v6376, %v4871
    %v6378 = vadd.f32 %v6377, %v5431
    %v6379 = vadd.f32 %v6378, %v5433
    %v6380 = vadd.f32 %v6379, %v5993
    %v6381 = vadd.f32 %v6380, %v5995
    %6382 = vadd.xlane.f32.xlu0 %v6381
    %v6383 = vpop.xlane.xlu0 %6382
    %v6384 = vadd.f32 %v4311, %v4313
    %v6385 = vadd.f32 %v6384, %v4873
    %v6386 = vadd.f32 %v6385, %v4875
    %v6387 = vadd.f32 %v6386, %v5435
    %v6388 = vadd.f32 %v6387, %v5437
    %v6389 = vadd.f32 %v6388, %v5997
    %v6390 = vadd.f32 %v6389, %v5999
    %6391 = vadd.xlane.f32.xlu0 %v6390
    %v6392 = vpop.xlane.xlu0 %6391
    %v6393 = vadd.f32 %v4317, %v4319
    %v6394 = vadd.f32 %v6393, %v4879
    %v6395 = vadd.f32 %v6394, %v4881
    %v6396 = vadd.f32 %v6395, %v5441
    %v6397 = vadd.f32 %v6396, %v5443
    %v6398 = vadd.f32 %v6397, %v6003
    %v6399 = vadd.f32 %v6398, %v6005
    %6400 = vadd.xlane.f32.xlu0 %v6399
    %v6401 = vpop.xlane.xlu0 %6400
    %v6402 = vadd.f32 %v4321, %v4323
    %v6403 = vadd.f32 %v6402, %v4883
    %v6404 = vadd.f32 %v6403, %v4885
    %v6405 = vadd.f32 %v6404, %v5445
    %v6406 = vadd.f32 %v6405, %v5447
    %v6407 = vadd.f32 %v6406, %v6007
    %v6408 = vadd.f32 %v6407, %v6009
    %6409 = vadd.xlane.f32.xlu0 %v6408
    %v6410 = vpop.xlane.xlu0 %6409
    %v6411 = vadd.f32 %v4327, %v4329
    %v6412 = vadd.f32 %v6411, %v4889
    %v6413 = vadd.f32 %v6412, %v4891
    %v6414 = vadd.f32 %v6413, %v5451
    %v6415 = vadd.f32 %v6414, %v5453
    %v6416 = vadd.f32 %v6415, %v6013
    %v6417 = vadd.f32 %v6416, %v6015
    %6418 = vadd.xlane.f32.xlu0 %v6417
    %v6419 = vpop.xlane.xlu0 %6418
    %v6420 = vadd.f32 %v4331, %v4333
    %v6421 = vadd.f32 %v6420, %v4893
    %v6422 = vadd.f32 %v6421, %v4895
    %v6423 = vadd.f32 %v6422, %v5455
    %v6424 = vadd.f32 %v6423, %v5457
    %v6425 = vadd.f32 %v6424, %v6017
    %v6426 = vadd.f32 %v6425, %v6019
    %6427 = vadd.xlane.f32.xlu0 %v6426
    %v6428 = vpop.xlane.xlu0 %6427
    %v6429 = vadd.f32 %v4337, %v4339
    %v6430 = vadd.f32 %v6429, %v4899
    %v6431 = vadd.f32 %v6430, %v4901
    %v6432 = vadd.f32 %v6431, %v5461
    %v6433 = vadd.f32 %v6432, %v5463
    %v6434 = vadd.f32 %v6433, %v6023
    %v6435 = vadd.f32 %v6434, %v6025
    %6436 = vadd.xlane.f32.xlu0 %v6435
    %v6437 = vpop.xlane.xlu0 %6436
    %v6438 = vadd.f32 %v4341, %v4343
    %v6439 = vadd.f32 %v6438, %v4903
    %v6440 = vadd.f32 %v6439, %v4905
    %v6441 = vadd.f32 %v6440, %v5465
    %v6442 = vadd.f32 %v6441, %v5467
    %v6443 = vadd.f32 %v6442, %v6027
    %v6444 = vadd.f32 %v6443, %v6029
    %6445 = vadd.xlane.f32.xlu0 %v6444
    %v6446 = vpop.xlane.xlu0 %6445
    %v6447 = vadd.f32 %v4347, %v4349
    %v6448 = vadd.f32 %v6447, %v4909
    %v6449 = vadd.f32 %v6448, %v4911
    %v6450 = vadd.f32 %v6449, %v5471
    %v6451 = vadd.f32 %v6450, %v5473
    %v6452 = vadd.f32 %v6451, %v6033
    %v6453 = vadd.f32 %v6452, %v6035
    %6454 = vadd.xlane.f32.xlu0 %v6453
    %v6455 = vpop.xlane.xlu0 %6454
    %v6456 = vadd.f32 %v4351, %v4353
    %v6457 = vadd.f32 %v6456, %v4913
    %v6458 = vadd.f32 %v6457, %v4915
    %v6459 = vadd.f32 %v6458, %v5475
    %v6460 = vadd.f32 %v6459, %v5477
    %v6461 = vadd.f32 %v6460, %v6037
    %v6462 = vadd.f32 %v6461, %v6039
    %6463 = vadd.xlane.f32.xlu0 %v6462
    %v6464 = vpop.xlane.xlu0 %6463
    %v6465 = vadd.f32 %v4357, %v4359
    %v6466 = vadd.f32 %v6465, %v4919
    %v6467 = vadd.f32 %v6466, %v4921
    %v6468 = vadd.f32 %v6467, %v5481
    %v6469 = vadd.f32 %v6468, %v5483
    %v6470 = vadd.f32 %v6469, %v6043
    %v6471 = vadd.f32 %v6470, %v6045
    %6472 = vadd.xlane.f32.xlu0 %v6471
    %v6473 = vpop.xlane.xlu0 %6472
    %v6474 = vadd.f32 %v4361, %v4363
    %v6475 = vadd.f32 %v6474, %v4923
    %v6476 = vadd.f32 %v6475, %v4925
    %v6477 = vadd.f32 %v6476, %v5485
    %v6478 = vadd.f32 %v6477, %v5487
    %v6479 = vadd.f32 %v6478, %v6047
    %v6480 = vadd.f32 %v6479, %v6049
    %6481 = vadd.xlane.f32.xlu0 %v6480
    %v6482 = vpop.xlane.xlu0 %6481
    %v6483 = vadd.f32 %v4367, %v4369
    %v6484 = vadd.f32 %v6483, %v4929
    %v6485 = vadd.f32 %v6484, %v4931
    %v6486 = vadd.f32 %v6485, %v5491
    %v6487 = vadd.f32 %v6486, %v5493
    %v6488 = vadd.f32 %v6487, %v6053
    %v6489 = vadd.f32 %v6488, %v6055
    %6490 = vadd.xlane.f32.xlu0 %v6489
    %v6491 = vpop.xlane.xlu0 %6490
    %v6492 = vadd.f32 %v4371, %v4373
    %v6493 = vadd.f32 %v6492, %v4933
    %v6494 = vadd.f32 %v6493, %v4935
    %v6495 = vadd.f32 %v6494, %v5495
    %v6496 = vadd.f32 %v6495, %v5497
    %v6497 = vadd.f32 %v6496, %v6057
    %v6498 = vadd.f32 %v6497, %v6059
    %6499 = vadd.xlane.f32.xlu0 %v6498
    %v6500 = vpop.xlane.xlu0 %6499
    %v6501 = vadd.f32 %v4377, %v4379
    %v6502 = vadd.f32 %v6501, %v4939
    %v6503 = vadd.f32 %v6502, %v4941
    %v6504 = vadd.f32 %v6503, %v5501
    %v6505 = vadd.f32 %v6504, %v5503
    %v6506 = vadd.f32 %v6505, %v6063
    %v6507 = vadd.f32 %v6506, %v6065
    %6508 = vadd.xlane.f32.xlu0 %v6507
    %v6509 = vpop.xlane.xlu0 %6508
    %v6510 = vrcp.pop 1024.0
    %v6511 = vmul.f32 %v6077, %v6510
    %v6512 = vmul.f32 %v6086, %v6510
    %v6513 = vmul.f32 %v6095, %v6510
    %v6514 = vmul.f32 %v6104, %v6510
    %v6515 = vmul.f32 %v6113, %v6510
    %v6516 = vmul.f32 %v6122, %v6510
    %v6517 = vmul.f32 %v6131, %v6510
    %v6518 = vmul.f32 %v6140, %v6510
    %v6519 = vmul.f32 %v6149, %v6510
    %v6520 = vmul.f32 %v6158, %v6510
    %v6521 = vmul.f32 %v6167, %v6510
    %v6522 = vmul.f32 %v6176, %v6510
    %v6523 = vmul.f32 %v6185, %v6510
    %v6524 = vmul.f32 %v6194, %v6510
    %v6525 = vmul.f32 %v6203, %v6510
    %v6526 = vmul.f32 %v6212, %v6510
    %v6527 = vmul.f32 %v6221, %v6510
    %v6528 = vmul.f32 %v6230, %v6510
    %v6529 = vmul.f32 %v6239, %v6510
    %v6530 = vmul.f32 %v6248, %v6510
    %v6531 = vmul.f32 %v6257, %v6510
    %v6532 = vmul.f32 %v6266, %v6510
    %v6533 = vmul.f32 %v6275, %v6510
    %v6534 = vmul.f32 %v6284, %v6510
    %v6535 = vmul.f32 %v6293, %v6510
    %v6536 = vmul.f32 %v6302, %v6510
    %v6537 = vmul.f32 %v6311, %v6510
    %v6538 = vmul.f32 %v6320, %v6510
    %v6539 = vmul.f32 %v6329, %v6510
    %v6540 = vmul.f32 %v6338, %v6510
    %v6541 = vmul.f32 %v6347, %v6510
    %v6542 = vmul.f32 %v6356, %v6510
    %v6543 = vmul.f32 %v6365, %v6510
    %v6544 = vmul.f32 %v6374, %v6510
    %v6545 = vmul.f32 %v6383, %v6510
    %v6546 = vmul.f32 %v6392, %v6510
    %v6547 = vmul.f32 %v6401, %v6510
    %v6548 = vmul.f32 %v6410, %v6510
    %v6549 = vmul.f32 %v6419, %v6510
    %v6550 = vmul.f32 %v6428, %v6510
    %v6551 = vmul.f32 %v6437, %v6510
    %v6552 = vmul.f32 %v6446, %v6510
    %v6553 = vmul.f32 %v6455, %v6510
    %v6554 = vmul.f32 %v6464, %v6510
    %v6555 = vmul.f32 %v6473, %v6510
    %v6556 = vmul.f32 %v6482, %v6510
    %v6557 = vmul.f32 %v6491, %v6510
    %v6558 = vmul.f32 %v6500, %v6510
    %v6559 = vmul.f32 %v6509, %v6510
    %v6560 = vsub.f32 %v4137, %v6511
    %v6561 = vsub.f32 %v4139, %v6511
    %v6562 = vsub.f32 %v4699, %v6511
    %v6563 = vsub.f32 %v4701, %v6511
    %v6564 = vsub.f32 %v5261, %v6511
    %v6565 = vsub.f32 %v5263, %v6511
    %v6566 = vsub.f32 %v5823, %v6511
    %v6567 = vsub.f32 %v5825, %v6511
    %v6568 = vsub.f32 %v4141, %v6512
    %v6569 = vsub.f32 %v4143, %v6512
    %v6570 = vsub.f32 %v4703, %v6512
    %v6571 = vsub.f32 %v4705, %v6512
    %v6572 = vsub.f32 %v5265, %v6512
    %v6573 = vsub.f32 %v5267, %v6512
    %v6574 = vsub.f32 %v5827, %v6512
    %v6575 = vsub.f32 %v5829, %v6512
    %v6576 = vsub.f32 %v4147, %v6513
    %v6577 = vsub.f32 %v4149, %v6513
    %v6578 = vsub.f32 %v4709, %v6513
    %v6579 = vsub.f32 %v4711, %v6513
    %v6580 = vsub.f32 %v5271, %v6513
    %v6581 = vsub.f32 %v5273, %v6513
    %v6582 = vsub.f32 %v5833, %v6513
    %v6583 = vsub.f32 %v5835, %v6513
    %v6584 = vsub.f32 %v4151, %v6514
    %v6585 = vsub.f32 %v4153, %v6514
    %v6586 = vsub.f32 %v4713, %v6514
    %v6587 = vsub.f32 %v4715, %v6514
    %v6588 = vsub.f32 %v5275, %v6514
    %v6589 = vsub.f32 %v5277, %v6514
    %v6590 = vsub.f32 %v5837, %v6514
    %v6591 = vsub.f32 %v5839, %v6514
    %v6592 = vsub.f32 %v4157, %v6515
    %v6593 = vsub.f32 %v4159, %v6515
    %v6594 = vsub.f32 %v4719, %v6515
    %v6595 = vsub.f32 %v4721, %v6515
    %v6596 = vsub.f32 %v5281, %v6515
    %v6597 = vsub.f32 %v5283, %v6515
    %v6598 = vsub.f32 %v5843, %v6515
    %v6599 = vsub.f32 %v5845, %v6515
    %v6600 = vsub.f32 %v4161, %v6516
    %v6601 = vsub.f32 %v4163, %v6516
    %v6602 = vsub.f32 %v4723, %v6516
    %v6603 = vsub.f32 %v4725, %v6516
    %v6604 = vsub.f32 %v5285, %v6516
    %v6605 = vsub.f32 %v5287, %v6516
    %v6606 = vsub.f32 %v5847, %v6516
    %v6607 = vsub.f32 %v5849, %v6516
    %v6608 = vsub.f32 %v4167, %v6517
    %v6609 = vsub.f32 %v4169, %v6517
    %v6610 = vsub.f32 %v4729, %v6517
    %v6611 = vsub.f32 %v4731, %v6517
    %v6612 = vsub.f32 %v5291, %v6517
    %v6613 = vsub.f32 %v5293, %v6517
    %v6614 = vsub.f32 %v5853, %v6517
    %v6615 = vsub.f32 %v5855, %v6517
    %v6616 = vsub.f32 %v4171, %v6518
    %v6617 = vsub.f32 %v4173, %v6518
    %v6618 = vsub.f32 %v4733, %v6518
    %v6619 = vsub.f32 %v4735, %v6518
    %v6620 = vsub.f32 %v5295, %v6518
    %v6621 = vsub.f32 %v5297, %v6518
    %v6622 = vsub.f32 %v5857, %v6518
    %v6623 = vsub.f32 %v5859, %v6518
    %v6624 = vsub.f32 %v4177, %v6519
    %v6625 = vsub.f32 %v4179, %v6519
    %v6626 = vsub.f32 %v4739, %v6519
    %v6627 = vsub.f32 %v4741, %v6519
    %v6628 = vsub.f32 %v5301, %v6519
    %v6629 = vsub.f32 %v5303, %v6519
    %v6630 = vsub.f32 %v5863, %v6519
    %v6631 = vsub.f32 %v5865, %v6519
    %v6632 = vsub.f32 %v4181, %v6520
    %v6633 = vsub.f32 %v4183, %v6520
    %v6634 = vsub.f32 %v4743, %v6520
    %v6635 = vsub.f32 %v4745, %v6520
    %v6636 = vsub.f32 %v5305, %v6520
    %v6637 = vsub.f32 %v5307, %v6520
    %v6638 = vsub.f32 %v5867, %v6520
    %v6639 = vsub.f32 %v5869, %v6520
    %v6640 = vsub.f32 %v4187, %v6521
    %v6641 = vsub.f32 %v4189, %v6521
    %v6642 = vsub.f32 %v4749, %v6521
    %v6643 = vsub.f32 %v4751, %v6521
    %v6644 = vsub.f32 %v5311, %v6521
    %v6645 = vsub.f32 %v5313, %v6521
    %v6646 = vsub.f32 %v5873, %v6521
    %v6647 = vsub.f32 %v5875, %v6521
    %v6648 = vsub.f32 %v4191, %v6522
    %v6649 = vsub.f32 %v4193, %v6522
    %v6650 = vsub.f32 %v4753, %v6522
    %v6651 = vsub.f32 %v4755, %v6522
    %v6652 = vsub.f32 %v5315, %v6522
    %v6653 = vsub.f32 %v5317, %v6522
    %v6654 = vsub.f32 %v5877, %v6522
    %v6655 = vsub.f32 %v5879, %v6522
    %v6656 = vsub.f32 %v4197, %v6523
    %v6657 = vsub.f32 %v4199, %v6523
    %v6658 = vsub.f32 %v4759, %v6523
    %v6659 = vsub.f32 %v4761, %v6523
    %v6660 = vsub.f32 %v5321, %v6523
    %v6661 = vsub.f32 %v5323, %v6523
    %v6662 = vsub.f32 %v5883, %v6523
    %v6663 = vsub.f32 %v5885, %v6523
    %v6664 = vsub.f32 %v4201, %v6524
    %v6665 = vsub.f32 %v4203, %v6524
    %v6666 = vsub.f32 %v4763, %v6524
    %v6667 = vsub.f32 %v4765, %v6524
    %v6668 = vsub.f32 %v5325, %v6524
    %v6669 = vsub.f32 %v5327, %v6524
    %v6670 = vsub.f32 %v5887, %v6524
    %v6671 = vsub.f32 %v5889, %v6524
    %v6672 = vsub.f32 %v4207, %v6525
    %v6673 = vsub.f32 %v4209, %v6525
    %v6674 = vsub.f32 %v4769, %v6525
    %v6675 = vsub.f32 %v4771, %v6525
    %v6676 = vsub.f32 %v5331, %v6525
    %v6677 = vsub.f32 %v5333, %v6525
    %v6678 = vsub.f32 %v5893, %v6525
    %v6679 = vsub.f32 %v5895, %v6525
    %v6680 = vsub.f32 %v4211, %v6526
    %v6681 = vsub.f32 %v4213, %v6526
    %v6682 = vsub.f32 %v4773, %v6526
    %v6683 = vsub.f32 %v4775, %v6526
    %v6684 = vsub.f32 %v5335, %v6526
    %v6685 = vsub.f32 %v5337, %v6526
    %v6686 = vsub.f32 %v5897, %v6526
    %v6687 = vsub.f32 %v5899, %v6526
    %v6688 = vsub.f32 %v4217, %v6527
    %v6689 = vsub.f32 %v4219, %v6527
    %v6690 = vsub.f32 %v4779, %v6527
    %v6691 = vsub.f32 %v4781, %v6527
    %v6692 = vsub.f32 %v5341, %v6527
    %v6693 = vsub.f32 %v5343, %v6527
    %v6694 = vsub.f32 %v5903, %v6527
    %v6695 = vsub.f32 %v5905, %v6527
    %v6696 = vsub.f32 %v4221, %v6528
    %v6697 = vsub.f32 %v4223, %v6528
    %v6698 = vsub.f32 %v4783, %v6528
    %v6699 = vsub.f32 %v4785, %v6528
    %v6700 = vsub.f32 %v5345, %v6528
    %v6701 = vsub.f32 %v5347, %v6528
    %v6702 = vsub.f32 %v5907, %v6528
    %v6703 = vsub.f32 %v5909, %v6528
    %v6704 = vsub.f32 %v4227, %v6529
    %v6705 = vsub.f32 %v4229, %v6529
    %v6706 = vsub.f32 %v4789, %v6529
    %v6707 = vsub.f32 %v4791, %v6529
    %v6708 = vsub.f32 %v5351, %v6529
    %v6709 = vsub.f32 %v5353, %v6529
    %v6710 = vsub.f32 %v5913, %v6529
    %v6711 = vsub.f32 %v5915, %v6529
    %v6712 = vsub.f32 %v4231, %v6530
    %v6713 = vsub.f32 %v4233, %v6530
    %v6714 = vsub.f32 %v4793, %v6530
    %v6715 = vsub.f32 %v4795, %v6530
    %v6716 = vsub.f32 %v5355, %v6530
    %v6717 = vsub.f32 %v5357, %v6530
    %v6718 = vsub.f32 %v5917, %v6530
    %v6719 = vsub.f32 %v5919, %v6530
    %v6720 = vsub.f32 %v4237, %v6531
    %v6721 = vsub.f32 %v4239, %v6531
    %v6722 = vsub.f32 %v4799, %v6531
    %v6723 = vsub.f32 %v4801, %v6531
    %v6724 = vsub.f32 %v5361, %v6531
    %v6725 = vsub.f32 %v5363, %v6531
    %v6726 = vsub.f32 %v5923, %v6531
    %v6727 = vsub.f32 %v5925, %v6531
    %v6728 = vsub.f32 %v4241, %v6532
    %v6729 = vsub.f32 %v4243, %v6532
    %v6730 = vsub.f32 %v4803, %v6532
    %v6731 = vsub.f32 %v4805, %v6532
    %v6732 = vsub.f32 %v5365, %v6532
    %v6733 = vsub.f32 %v5367, %v6532
    %v6734 = vsub.f32 %v5927, %v6532
    %v6735 = vsub.f32 %v5929, %v6532
    %v6736 = vsub.f32 %v4247, %v6533
    %v6737 = vsub.f32 %v4249, %v6533
    %v6738 = vsub.f32 %v4809, %v6533
    %v6739 = vsub.f32 %v4811, %v6533
    %v6740 = vsub.f32 %v5371, %v6533
    %v6741 = vsub.f32 %v5373, %v6533
    %v6742 = vsub.f32 %v5933, %v6533
    %v6743 = vsub.f32 %v5935, %v6533
    %v6744 = vsub.f32 %v4251, %v6534
    %v6745 = vsub.f32 %v4253, %v6534
    %v6746 = vsub.f32 %v4813, %v6534
    %v6747 = vsub.f32 %v4815, %v6534
    %v6748 = vsub.f32 %v5375, %v6534
    %v6749 = vsub.f32 %v5377, %v6534
    %v6750 = vsub.f32 %v5937, %v6534
    %v6751 = vsub.f32 %v5939, %v6534
    %v6752 = vsub.f32 %v4257, %v6535
    %v6753 = vsub.f32 %v4259, %v6535
    %v6754 = vsub.f32 %v4819, %v6535
    %v6755 = vsub.f32 %v4821, %v6535
    %v6756 = vsub.f32 %v5381, %v6535
    %v6757 = vsub.f32 %v5383, %v6535
    %v6758 = vsub.f32 %v5943, %v6535
    %v6759 = vsub.f32 %v5945, %v6535
    %v6760 = vsub.f32 %v4261, %v6536
    %v6761 = vsub.f32 %v4263, %v6536
    %v6762 = vsub.f32 %v4823, %v6536
    %v6763 = vsub.f32 %v4825, %v6536
    %v6764 = vsub.f32 %v5385, %v6536
    %v6765 = vsub.f32 %v5387, %v6536
    %v6766 = vsub.f32 %v5947, %v6536
    %v6767 = vsub.f32 %v5949, %v6536
    %v6768 = vsub.f32 %v4267, %v6537
    %v6769 = vsub.f32 %v4269, %v6537
    %v6770 = vsub.f32 %v4829, %v6537
    %v6771 = vsub.f32 %v4831, %v6537
    %v6772 = vsub.f32 %v5391, %v6537
    %v6773 = vsub.f32 %v5393, %v6537
    %v6774 = vsub.f32 %v5953, %v6537
    %v6775 = vsub.f32 %v5955, %v6537
    %v6776 = vsub.f32 %v4271, %v6538
    %v6777 = vsub.f32 %v4273, %v6538
    %v6778 = vsub.f32 %v4833, %v6538
    %v6779 = vsub.f32 %v4835, %v6538
    %v6780 = vsub.f32 %v5395, %v6538
    %v6781 = vsub.f32 %v5397, %v6538
    %v6782 = vsub.f32 %v5957, %v6538
    %v6783 = vsub.f32 %v5959, %v6538
    %v6784 = vsub.f32 %v4277, %v6539
    %v6785 = vsub.f32 %v4279, %v6539
    %v6786 = vsub.f32 %v4839, %v6539
    %v6787 = vsub.f32 %v4841, %v6539
    %v6788 = vsub.f32 %v5401, %v6539
    %v6789 = vsub.f32 %v5403, %v6539
    %v6790 = vsub.f32 %v5963, %v6539
    %v6791 = vsub.f32 %v5965, %v6539
    %v6792 = vsub.f32 %v4281, %v6540
    %v6793 = vsub.f32 %v4283, %v6540
    %v6794 = vsub.f32 %v4843, %v6540
    %v6795 = vsub.f32 %v4845, %v6540
    %v6796 = vsub.f32 %v5405, %v6540
    %v6797 = vsub.f32 %v5407, %v6540
    %v6798 = vsub.f32 %v5967, %v6540
    %v6799 = vsub.f32 %v5969, %v6540
    %v6800 = vsub.f32 %v4287, %v6541
    %v6801 = vsub.f32 %v4289, %v6541
    %v6802 = vsub.f32 %v4849, %v6541
    %v6803 = vsub.f32 %v4851, %v6541
    %v6804 = vsub.f32 %v5411, %v6541
    %v6805 = vsub.f32 %v5413, %v6541
    %v6806 = vsub.f32 %v5973, %v6541
    %v6807 = vsub.f32 %v5975, %v6541
    %v6808 = vsub.f32 %v4291, %v6542
    %v6809 = vsub.f32 %v4293, %v6542
    %v6810 = vsub.f32 %v4853, %v6542
    %v6811 = vsub.f32 %v4855, %v6542
    %v6812 = vsub.f32 %v5415, %v6542
    %v6813 = vsub.f32 %v5417, %v6542
    %v6814 = vsub.f32 %v5977, %v6542
    %v6815 = vsub.f32 %v5979, %v6542
    %v6816 = vsub.f32 %v4297, %v6543
    %v6817 = vsub.f32 %v4299, %v6543
    %v6818 = vsub.f32 %v4859, %v6543
    %v6819 = vsub.f32 %v4861, %v6543
    %v6820 = vsub.f32 %v5421, %v6543
    %v6821 = vsub.f32 %v5423, %v6543
    %v6822 = vsub.f32 %v5983, %v6543
    %v6823 = vsub.f32 %v5985, %v6543
    %v6824 = vsub.f32 %v4301, %v6544
    %v6825 = vsub.f32 %v4303, %v6544
    %v6826 = vsub.f32 %v4863, %v6544
    %v6827 = vsub.f32 %v4865, %v6544
    %v6828 = vsub.f32 %v5425, %v6544
    %v6829 = vsub.f32 %v5427, %v6544
    %v6830 = vsub.f32 %v5987, %v6544
    %v6831 = vsub.f32 %v5989, %v6544
    %v6832 = vsub.f32 %v4307, %v6545
    %v6833 = vsub.f32 %v4309, %v6545
    %v6834 = vsub.f32 %v4869, %v6545
    %v6835 = vsub.f32 %v4871, %v6545
    %v6836 = vsub.f32 %v5431, %v6545
    %v6837 = vsub.f32 %v5433, %v6545
    %v6838 = vsub.f32 %v5993, %v6545
    %v6839 = vsub.f32 %v5995, %v6545
    %v6840 = vsub.f32 %v4311, %v6546
    %v6841 = vsub.f32 %v4313, %v6546
    %v6842 = vsub.f32 %v4873, %v6546
    %v6843 = vsub.f32 %v4875, %v6546
    %v6844 = vsub.f32 %v5435, %v6546
    %v6845 = vsub.f32 %v5437, %v6546
    %v6846 = vsub.f32 %v5997, %v6546
    %v6847 = vsub.f32 %v5999, %v6546
    %v6848 = vsub.f32 %v4317, %v6547
    %v6849 = vsub.f32 %v4319, %v6547
    %v6850 = vsub.f32 %v4879, %v6547
    %v6851 = vsub.f32 %v4881, %v6547
    %v6852 = vsub.f32 %v5441, %v6547
    %v6853 = vsub.f32 %v5443, %v6547
    %v6854 = vsub.f32 %v6003, %v6547
    %v6855 = vsub.f32 %v6005, %v6547
    %v6856 = vsub.f32 %v4321, %v6548
    %v6857 = vsub.f32 %v4323, %v6548
    %v6858 = vsub.f32 %v4883, %v6548
    %v6859 = vsub.f32 %v4885, %v6548
    %v6860 = vsub.f32 %v5445, %v6548
    %v6861 = vsub.f32 %v5447, %v6548
    %v6862 = vsub.f32 %v6007, %v6548
    %v6863 = vsub.f32 %v6009, %v6548
    %v6864 = vsub.f32 %v4327, %v6549
    %v6865 = vsub.f32 %v4329, %v6549
    %v6866 = vsub.f32 %v4889, %v6549
    %v6867 = vsub.f32 %v4891, %v6549
    %v6868 = vsub.f32 %v5451, %v6549
    %v6869 = vsub.f32 %v5453, %v6549
    %v6870 = vsub.f32 %v6013, %v6549
    %v6871 = vsub.f32 %v6015, %v6549
    %v6872 = vsub.f32 %v4331, %v6550
    %v6873 = vsub.f32 %v4333, %v6550
    %v6874 = vsub.f32 %v4893, %v6550
    %v6875 = vsub.f32 %v4895, %v6550
    %v6876 = vsub.f32 %v5455, %v6550
    %v6877 = vsub.f32 %v5457, %v6550
    %v6878 = vsub.f32 %v6017, %v6550
    %v6879 = vsub.f32 %v6019, %v6550
    %v6880 = vsub.f32 %v4337, %v6551
    %v6881 = vsub.f32 %v4339, %v6551
    %v6882 = vsub.f32 %v4899, %v6551
    %v6883 = vsub.f32 %v4901, %v6551
    %v6884 = vsub.f32 %v5461, %v6551
    %v6885 = vsub.f32 %v5463, %v6551
    %v6886 = vsub.f32 %v6023, %v6551
    %v6887 = vsub.f32 %v6025, %v6551
    %v6888 = vsub.f32 %v4341, %v6552
    %v6889 = vsub.f32 %v4343, %v6552
    %v6890 = vsub.f32 %v4903, %v6552
    %v6891 = vsub.f32 %v4905, %v6552
    %v6892 = vsub.f32 %v5465, %v6552
    %v6893 = vsub.f32 %v5467, %v6552
    %v6894 = vsub.f32 %v6027, %v6552
    %v6895 = vsub.f32 %v6029, %v6552
    %v6896 = vsub.f32 %v4347, %v6553
    %v6897 = vsub.f32 %v4349, %v6553
    %v6898 = vsub.f32 %v4909, %v6553
    %v6899 = vsub.f32 %v4911, %v6553
    %v6900 = vsub.f32 %v5471, %v6553
    %v6901 = vsub.f32 %v5473, %v6553
    %v6902 = vsub.f32 %v6033, %v6553
    %v6903 = vsub.f32 %v6035, %v6553
    %v6904 = vsub.f32 %v4351, %v6554
    %v6905 = vsub.f32 %v4353, %v6554
    %v6906 = vsub.f32 %v4913, %v6554
    %v6907 = vsub.f32 %v4915, %v6554
    %v6908 = vsub.f32 %v5475, %v6554
    %v6909 = vsub.f32 %v5477, %v6554
    %v6910 = vsub.f32 %v6037, %v6554
    %v6911 = vsub.f32 %v6039, %v6554
    %v6912 = vsub.f32 %v4357, %v6555
    %v6913 = vsub.f32 %v4359, %v6555
    %v6914 = vsub.f32 %v4919, %v6555
    %v6915 = vsub.f32 %v4921, %v6555
    %v6916 = vsub.f32 %v5481, %v6555
    %v6917 = vsub.f32 %v5483, %v6555
    %v6918 = vsub.f32 %v6043, %v6555
    %v6919 = vsub.f32 %v6045, %v6555
    %v6920 = vsub.f32 %v4361, %v6556
    %v6921 = vsub.f32 %v4363, %v6556
    %v6922 = vsub.f32 %v4923, %v6556
    %v6923 = vsub.f32 %v4925, %v6556
    %v6924 = vsub.f32 %v5485, %v6556
    %v6925 = vsub.f32 %v5487, %v6556
    %v6926 = vsub.f32 %v6047, %v6556
    %v6927 = vsub.f32 %v6049, %v6556
    %v6928 = vsub.f32 %v4367, %v6557
    %v6929 = vsub.f32 %v4369, %v6557
    %v6930 = vsub.f32 %v4929, %v6557
    %v6931 = vsub.f32 %v4931, %v6557
    %v6932 = vsub.f32 %v5491, %v6557
    %v6933 = vsub.f32 %v5493, %v6557
    %v6934 = vsub.f32 %v6053, %v6557
    %v6935 = vsub.f32 %v6055, %v6557
    %v6936 = vsub.f32 %v4371, %v6558
    %v6937 = vsub.f32 %v4373, %v6558
    %v6938 = vsub.f32 %v4933, %v6558
    %v6939 = vsub.f32 %v4935, %v6558
    %v6940 = vsub.f32 %v5495, %v6558
    %v6941 = vsub.f32 %v5497, %v6558
    %v6942 = vsub.f32 %v6057, %v6558
    %v6943 = vsub.f32 %v6059, %v6558
    %v6944 = vsub.f32 %v4377, %v6559
    %v6945 = vsub.f32 %v4379, %v6559
    %v6946 = vsub.f32 %v4939, %v6559
    %v6947 = vsub.f32 %v4941, %v6559
    %v6948 = vsub.f32 %v5501, %v6559
    %v6949 = vsub.f32 %v5503, %v6559
    %v6950 = vsub.f32 %v6063, %v6559
    %v6951 = vsub.f32 %v6065, %v6559
    %v6952 = vmul.f32 %v6560, %v6560
    %v6953 = vmul.f32 %v6561, %v6561
    %v6954 = vmul.f32 %v6562, %v6562
    %v6955 = vmul.f32 %v6563, %v6563
    %v6956 = vmul.f32 %v6564, %v6564
    %v6957 = vmul.f32 %v6565, %v6565
    %v6958 = vmul.f32 %v6566, %v6566
    %v6959 = vmul.f32 %v6567, %v6567
    %v6960 = vmul.f32 %v6568, %v6568
    %v6961 = vmul.f32 %v6569, %v6569
    %v6962 = vmul.f32 %v6570, %v6570
    %v6963 = vmul.f32 %v6571, %v6571
    %v6964 = vmul.f32 %v6572, %v6572
    %v6965 = vmul.f32 %v6573, %v6573
    %v6966 = vmul.f32 %v6574, %v6574
    %v6967 = vmul.f32 %v6575, %v6575
    %v6968 = vmul.f32 %v6576, %v6576
    %v6969 = vmul.f32 %v6577, %v6577
    %v6970 = vmul.f32 %v6578, %v6578
    %v6971 = vmul.f32 %v6579, %v6579
    %v6972 = vmul.f32 %v6580, %v6580
    %v6973 = vmul.f32 %v6581, %v6581
    %v6974 = vmul.f32 %v6582, %v6582
    %v6975 = vmul.f32 %v6583, %v6583
    %v6976 = vmul.f32 %v6584, %v6584
    %v6977 = vmul.f32 %v6585, %v6585
    %v6978 = vmul.f32 %v6586, %v6586
    %v6979 = vmul.f32 %v6587, %v6587
    %v6980 = vmul.f32 %v6588, %v6588
    %v6981 = vmul.f32 %v6589, %v6589
    %v6982 = vmul.f32 %v6590, %v6590
    %v6983 = vmul.f32 %v6591, %v6591
    %v6984 = vmul.f32 %v6592, %v6592
    %v6985 = vmul.f32 %v6593, %v6593
    %v6986 = vmul.f32 %v6594, %v6594
    %v6987 = vmul.f32 %v6595, %v6595
    %v6988 = vmul.f32 %v6596, %v6596
    %v6989 = vmul.f32 %v6597, %v6597
    %v6990 = vmul.f32 %v6598, %v6598
    %v6991 = vmul.f32 %v6599, %v6599
    %v6992 = vmul.f32 %v6600, %v6600
    %v6993 = vmul.f32 %v6601, %v6601
    %v6994 = vmul.f32 %v6602, %v6602
    %v6995 = vmul.f32 %v6603, %v6603
    %v6996 = vmul.f32 %v6604, %v6604
    %v6997 = vmul.f32 %v6605, %v6605
    %v6998 = vmul.f32 %v6606, %v6606
    %v6999 = vmul.f32 %v6607, %v6607
    %v7000 = vmul.f32 %v6608, %v6608
    %v7001 = vmul.f32 %v6609, %v6609
    %v7002 = vmul.f32 %v6610, %v6610
    %v7003 = vmul.f32 %v6611, %v6611
    %v7004 = vmul.f32 %v6612, %v6612
    %v7005 = vmul.f32 %v6613, %v6613
    %v7006 = vmul.f32 %v6614, %v6614
    %v7007 = vmul.f32 %v6615, %v6615
    %v7008 = vmul.f32 %v6616, %v6616
    %v7009 = vmul.f32 %v6617, %v6617
    %v7010 = vmul.f32 %v6618, %v6618
    %v7011 = vmul.f32 %v6619, %v6619
    %v7012 = vmul.f32 %v6620, %v6620
    %v7013 = vmul.f32 %v6621, %v6621
    %v7014 = vmul.f32 %v6622, %v6622
    %v7015 = vmul.f32 %v6623, %v6623
    %v7016 = vmul.f32 %v6624, %v6624
    %v7017 = vmul.f32 %v6625, %v6625
    %v7018 = vmul.f32 %v6626, %v6626
    %v7019 = vmul.f32 %v6627, %v6627
    %v7020 = vmul.f32 %v6628, %v6628
    %v7021 = vmul.f32 %v6629, %v6629
    %v7022 = vmul.f32 %v6630, %v6630
    %v7023 = vmul.f32 %v6631, %v6631
    %v7024 = vmul.f32 %v6632, %v6632
    %v7025 = vmul.f32 %v6633, %v6633
    %v7026 = vmul.f32 %v6634, %v6634
    %v7027 = vmul.f32 %v6635, %v6635
    %v7028 = vmul.f32 %v6636, %v6636
    %v7029 = vmul.f32 %v6637, %v6637
    %v7030 = vmul.f32 %v6638, %v6638
    %v7031 = vmul.f32 %v6639, %v6639
    %v7032 = vmul.f32 %v6640, %v6640
    %v7033 = vmul.f32 %v6641, %v6641
    %v7034 = vmul.f32 %v6642, %v6642
    %v7035 = vmul.f32 %v6643, %v6643
    %v7036 = vmul.f32 %v6644, %v6644
    %v7037 = vmul.f32 %v6645, %v6645
    %v7038 = vmul.f32 %v6646, %v6646
    %v7039 = vmul.f32 %v6647, %v6647
    %v7040 = vmul.f32 %v6648, %v6648
    %v7041 = vmul.f32 %v6649, %v6649
    %v7042 = vmul.f32 %v6650, %v6650
    %v7043 = vmul.f32 %v6651, %v6651
    %v7044 = vmul.f32 %v6652, %v6652
    %v7045 = vmul.f32 %v6653, %v6653
    %v7046 = vmul.f32 %v6654, %v6654
    %v7047 = vmul.f32 %v6655, %v6655
    %v7048 = vmul.f32 %v6656, %v6656
    %v7049 = vmul.f32 %v6657, %v6657
    %v7050 = vmul.f32 %v6658, %v6658
    %v7051 = vmul.f32 %v6659, %v6659
    %v7052 = vmul.f32 %v6660, %v6660
    %v7053 = vmul.f32 %v6661, %v6661
    %v7054 = vmul.f32 %v6662, %v6662
    %v7055 = vmul.f32 %v6663, %v6663
    %v7056 = vmul.f32 %v6664, %v6664
    %v7057 = vmul.f32 %v6665, %v6665
    %v7058 = vmul.f32 %v6666, %v6666
    %v7059 = vmul.f32 %v6667, %v6667
    %v7060 = vmul.f32 %v6668, %v6668
    %v7061 = vmul.f32 %v6669, %v6669
    %v7062 = vmul.f32 %v6670, %v6670
    %v7063 = vmul.f32 %v6671, %v6671
    %v7064 = vmul.f32 %v6672, %v6672
    %v7065 = vmul.f32 %v6673, %v6673
    %v7066 = vmul.f32 %v6674, %v6674
    %v7067 = vmul.f32 %v6675, %v6675
    %v7068 = vmul.f32 %v6676, %v6676
    %v7069 = vmul.f32 %v6677, %v6677
    %v7070 = vmul.f32 %v6678, %v6678
    %v7071 = vmul.f32 %v6679, %v6679
    %v7072 = vmul.f32 %v6680, %v6680
    %v7073 = vmul.f32 %v6681, %v6681
    %v7074 = vmul.f32 %v6682, %v6682
    %v7075 = vmul.f32 %v6683, %v6683
    %v7076 = vmul.f32 %v6684, %v6684
    %v7077 = vmul.f32 %v6685, %v6685
    %v7078 = vmul.f32 %v6686, %v6686
    %v7079 = vmul.f32 %v6687, %v6687
    %v7080 = vmul.f32 %v6688, %v6688
    %v7081 = vmul.f32 %v6689, %v6689
    %v7082 = vmul.f32 %v6690, %v6690
    %v7083 = vmul.f32 %v6691, %v6691
    %v7084 = vmul.f32 %v6692, %v6692
    %v7085 = vmul.f32 %v6693, %v6693
    %v7086 = vmul.f32 %v6694, %v6694
    %v7087 = vmul.f32 %v6695, %v6695
    %v7088 = vmul.f32 %v6696, %v6696
    %v7089 = vmul.f32 %v6697, %v6697
    %v7090 = vmul.f32 %v6698, %v6698
    %v7091 = vmul.f32 %v6699, %v6699
    %v7092 = vmul.f32 %v6700, %v6700
    %v7093 = vmul.f32 %v6701, %v6701
    %v7094 = vmul.f32 %v6702, %v6702
    %v7095 = vmul.f32 %v6703, %v6703
    %v7096 = vmul.f32 %v6704, %v6704
    %v7097 = vmul.f32 %v6705, %v6705
    %v7098 = vmul.f32 %v6706, %v6706
    %v7099 = vmul.f32 %v6707, %v6707
    %v7100 = vmul.f32 %v6708, %v6708
    %v7101 = vmul.f32 %v6709, %v6709
    %v7102 = vmul.f32 %v6710, %v6710
    %v7103 = vmul.f32 %v6711, %v6711
    %v7104 = vmul.f32 %v6712, %v6712
    %v7105 = vmul.f32 %v6713, %v6713
    %v7106 = vmul.f32 %v6714, %v6714
    %v7107 = vmul.f32 %v6715, %v6715
    %v7108 = vmul.f32 %v6716, %v6716
    %v7109 = vmul.f32 %v6717, %v6717
    %v7110 = vmul.f32 %v6718, %v6718
    %v7111 = vmul.f32 %v6719, %v6719
    %v7112 = vmul.f32 %v6720, %v6720
    %v7113 = vmul.f32 %v6721, %v6721
    %v7114 = vmul.f32 %v6722, %v6722
    %v7115 = vmul.f32 %v6723, %v6723
    %v7116 = vmul.f32 %v6724, %v6724
    %v7117 = vmul.f32 %v6725, %v6725
    %v7118 = vmul.f32 %v6726, %v6726
    %v7119 = vmul.f32 %v6727, %v6727
    %v7120 = vmul.f32 %v6728, %v6728
    %v7121 = vmul.f32 %v6729, %v6729
    %v7122 = vmul.f32 %v6730, %v6730
    %v7123 = vmul.f32 %v6731, %v6731
    %v7124 = vmul.f32 %v6732, %v6732
    %v7125 = vmul.f32 %v6733, %v6733
    %v7126 = vmul.f32 %v6734, %v6734
    %v7127 = vmul.f32 %v6735, %v6735
    %v7128 = vmul.f32 %v6736, %v6736
    %v7129 = vmul.f32 %v6737, %v6737
    %v7130 = vmul.f32 %v6738, %v6738
    %v7131 = vmul.f32 %v6739, %v6739
    %v7132 = vmul.f32 %v6740, %v6740
    %v7133 = vmul.f32 %v6741, %v6741
    %v7134 = vmul.f32 %v6742, %v6742
    %v7135 = vmul.f32 %v6743, %v6743
    %v7136 = vmul.f32 %v6744, %v6744
    %v7137 = vmul.f32 %v6745, %v6745
    %v7138 = vmul.f32 %v6746, %v6746
    %v7139 = vmul.f32 %v6747, %v6747
    %v7140 = vmul.f32 %v6748, %v6748
    %v7141 = vmul.f32 %v6749, %v6749
    %v7142 = vmul.f32 %v6750, %v6750
    %v7143 = vmul.f32 %v6751, %v6751
    %v7144 = vmul.f32 %v6752, %v6752
    %v7145 = vmul.f32 %v6753, %v6753
    %v7146 = vmul.f32 %v6754, %v6754
    %v7147 = vmul.f32 %v6755, %v6755
    %v7148 = vmul.f32 %v6756, %v6756
    %v7149 = vmul.f32 %v6757, %v6757
    %v7150 = vmul.f32 %v6758, %v6758
    %v7151 = vmul.f32 %v6759, %v6759
    %v7152 = vmul.f32 %v6760, %v6760
    %v7153 = vmul.f32 %v6761, %v6761
    %v7154 = vmul.f32 %v6762, %v6762
    %v7155 = vmul.f32 %v6763, %v6763
    %v7156 = vmul.f32 %v6764, %v6764
    %v7157 = vmul.f32 %v6765, %v6765
    %v7158 = vmul.f32 %v6766, %v6766
    %v7159 = vmul.f32 %v6767, %v6767
    %v7160 = vmul.f32 %v6768, %v6768
    %v7161 = vmul.f32 %v6769, %v6769
    %v7162 = vmul.f32 %v6770, %v6770
    %v7163 = vmul.f32 %v6771, %v6771
    %v7164 = vmul.f32 %v6772, %v6772
    %v7165 = vmul.f32 %v6773, %v6773
    %v7166 = vmul.f32 %v6774, %v6774
    %v7167 = vmul.f32 %v6775, %v6775
    %v7168 = vmul.f32 %v6776, %v6776
    %v7169 = vmul.f32 %v6777, %v6777
    %v7170 = vmul.f32 %v6778, %v6778
    %v7171 = vmul.f32 %v6779, %v6779
    %v7172 = vmul.f32 %v6780, %v6780
    %v7173 = vmul.f32 %v6781, %v6781
    %v7174 = vmul.f32 %v6782, %v6782
    %v7175 = vmul.f32 %v6783, %v6783
    %v7176 = vmul.f32 %v6784, %v6784
    %v7177 = vmul.f32 %v6785, %v6785
    %v7178 = vmul.f32 %v6786, %v6786
    %v7179 = vmul.f32 %v6787, %v6787
    %v7180 = vmul.f32 %v6788, %v6788
    %v7181 = vmul.f32 %v6789, %v6789
    %v7182 = vmul.f32 %v6790, %v6790
    %v7183 = vmul.f32 %v6791, %v6791
    %v7184 = vmul.f32 %v6792, %v6792
    %v7185 = vmul.f32 %v6793, %v6793
    %v7186 = vmul.f32 %v6794, %v6794
    %v7187 = vmul.f32 %v6795, %v6795
    %v7188 = vmul.f32 %v6796, %v6796
    %v7189 = vmul.f32 %v6797, %v6797
    %v7190 = vmul.f32 %v6798, %v6798
    %v7191 = vmul.f32 %v6799, %v6799
    %v7192 = vmul.f32 %v6800, %v6800
    %v7193 = vmul.f32 %v6801, %v6801
    %v7194 = vmul.f32 %v6802, %v6802
    %v7195 = vmul.f32 %v6803, %v6803
    %v7196 = vmul.f32 %v6804, %v6804
    %v7197 = vmul.f32 %v6805, %v6805
    %v7198 = vmul.f32 %v6806, %v6806
    %v7199 = vmul.f32 %v6807, %v6807
    %v7200 = vmul.f32 %v6808, %v6808
    %v7201 = vmul.f32 %v6809, %v6809
    %v7202 = vmul.f32 %v6810, %v6810
    %v7203 = vmul.f32 %v6811, %v6811
    %v7204 = vmul.f32 %v6812, %v6812
    %v7205 = vmul.f32 %v6813, %v6813
    %v7206 = vmul.f32 %v6814, %v6814
    %v7207 = vmul.f32 %v6815, %v6815
    %v7208 = vmul.f32 %v6816, %v6816
    %v7209 = vmul.f32 %v6817, %v6817
    %v7210 = vmul.f32 %v6818, %v6818
    %v7211 = vmul.f32 %v6819, %v6819
    %v7212 = vmul.f32 %v6820, %v6820
    %v7213 = vmul.f32 %v6821, %v6821
    %v7214 = vmul.f32 %v6822, %v6822
    %v7215 = vmul.f32 %v6823, %v6823
    %v7216 = vmul.f32 %v6824, %v6824
    %v7217 = vmul.f32 %v6825, %v6825
    %v7218 = vmul.f32 %v6826, %v6826
    %v7219 = vmul.f32 %v6827, %v6827
    %v7220 = vmul.f32 %v6828, %v6828
    %v7221 = vmul.f32 %v6829, %v6829
    %v7222 = vmul.f32 %v6830, %v6830
    %v7223 = vmul.f32 %v6831, %v6831
    %v7224 = vmul.f32 %v6832, %v6832
    %v7225 = vmul.f32 %v6833, %v6833
    %v7226 = vmul.f32 %v6834, %v6834
    %v7227 = vmul.f32 %v6835, %v6835
    %v7228 = vmul.f32 %v6836, %v6836
    %v7229 = vmul.f32 %v6837, %v6837
    %v7230 = vmul.f32 %v6838, %v6838
    %v7231 = vmul.f32 %v6839, %v6839
    %v7232 = vmul.f32 %v6840, %v6840
    %v7233 = vmul.f32 %v6841, %v6841
    %v7234 = vmul.f32 %v6842, %v6842
    %v7235 = vmul.f32 %v6843, %v6843
    %v7236 = vmul.f32 %v6844, %v6844
    %v7237 = vmul.f32 %v6845, %v6845
    %v7238 = vmul.f32 %v6846, %v6846
    %v7239 = vmul.f32 %v6847, %v6847
    %v7240 = vmul.f32 %v6848, %v6848
    %v7241 = vmul.f32 %v6849, %v6849
    %v7242 = vmul.f32 %v6850, %v6850
    %v7243 = vmul.f32 %v6851, %v6851
    %v7244 = vmul.f32 %v6852, %v6852
    %v7245 = vmul.f32 %v6853, %v6853
    %v7246 = vmul.f32 %v6854, %v6854
    %v7247 = vmul.f32 %v6855, %v6855
    %v7248 = vmul.f32 %v6856, %v6856
    %v7249 = vmul.f32 %v6857, %v6857
    %v7250 = vmul.f32 %v6858, %v6858
    %v7251 = vmul.f32 %v6859, %v6859
    %v7252 = vmul.f32 %v6860, %v6860
    %v7253 = vmul.f32 %v6861, %v6861
    %v7254 = vmul.f32 %v6862, %v6862
    %v7255 = vmul.f32 %v6863, %v6863
    %v7256 = vmul.f32 %v6864, %v6864
    %v7257 = vmul.f32 %v6865, %v6865
    %v7258 = vmul.f32 %v6866, %v6866
    %v7259 = vmul.f32 %v6867, %v6867
    %v7260 = vmul.f32 %v6868, %v6868
    %v7261 = vmul.f32 %v6869, %v6869
    %v7262 = vmul.f32 %v6870, %v6870
    %v7263 = vmul.f32 %v6871, %v6871
    %v7264 = vmul.f32 %v6872, %v6872
    %v7265 = vmul.f32 %v6873, %v6873
    %v7266 = vmul.f32 %v6874, %v6874
    %v7267 = vmul.f32 %v6875, %v6875
    %v7268 = vmul.f32 %v6876, %v6876
    %v7269 = vmul.f32 %v6877, %v6877
    %v7270 = vmul.f32 %v6878, %v6878
    %v7271 = vmul.f32 %v6879, %v6879
    %v7272 = vmul.f32 %v6880, %v6880
    %v7273 = vmul.f32 %v6881, %v6881
    %v7274 = vmul.f32 %v6882, %v6882
    %v7275 = vmul.f32 %v6883, %v6883
    %v7276 = vmul.f32 %v6884, %v6884
    %v7277 = vmul.f32 %v6885, %v6885
    %v7278 = vmul.f32 %v6886, %v6886
    %v7279 = vmul.f32 %v6887, %v6887
    %v7280 = vmul.f32 %v6888, %v6888
    %v7281 = vmul.f32 %v6889, %v6889
    %v7282 = vmul.f32 %v6890, %v6890
    %v7283 = vmul.f32 %v6891, %v6891
    %v7284 = vmul.f32 %v6892, %v6892
    %v7285 = vmul.f32 %v6893, %v6893
    %v7286 = vmul.f32 %v6894, %v6894
    %v7287 = vmul.f32 %v6895, %v6895
    %v7288 = vmul.f32 %v6896, %v6896
    %v7289 = vmul.f32 %v6897, %v6897
    %v7290 = vmul.f32 %v6898, %v6898
    %v7291 = vmul.f32 %v6899, %v6899
    %v7292 = vmul.f32 %v6900, %v6900
    %v7293 = vmul.f32 %v6901, %v6901
    %v7294 = vmul.f32 %v6902, %v6902
    %v7295 = vmul.f32 %v6903, %v6903
    %v7296 = vmul.f32 %v6904, %v6904
    %v7297 = vmul.f32 %v6905, %v6905
    %v7298 = vmul.f32 %v6906, %v6906
    %v7299 = vmul.f32 %v6907, %v6907
    %v7300 = vmul.f32 %v6908, %v6908
    %v7301 = vmul.f32 %v6909, %v6909
    %v7302 = vmul.f32 %v6910, %v6910
    %v7303 = vmul.f32 %v6911, %v6911
    %v7304 = vmul.f32 %v6912, %v6912
    %v7305 = vmul.f32 %v6913, %v6913
    %v7306 = vmul.f32 %v6914, %v6914
    %v7307 = vmul.f32 %v6915, %v6915
    %v7308 = vmul.f32 %v6916, %v6916
    %v7309 = vmul.f32 %v6917, %v6917
    %v7310 = vmul.f32 %v6918, %v6918
    %v7311 = vmul.f32 %v6919, %v6919
    %v7312 = vmul.f32 %v6920, %v6920
    %v7313 = vmul.f32 %v6921, %v6921
    %v7314 = vmul.f32 %v6922, %v6922
    %v7315 = vmul.f32 %v6923, %v6923
    %v7316 = vmul.f32 %v6924, %v6924
    %v7317 = vmul.f32 %v6925, %v6925
    %v7318 = vmul.f32 %v6926, %v6926
    %v7319 = vmul.f32 %v6927, %v6927
    %v7320 = vmul.f32 %v6928, %v6928
    %v7321 = vmul.f32 %v6929, %v6929
    %v7322 = vmul.f32 %v6930, %v6930
    %v7323 = vmul.f32 %v6931, %v6931
    %v7324 = vmul.f32 %v6932, %v6932
    %v7325 = vmul.f32 %v6933, %v6933
    %v7326 = vmul.f32 %v6934, %v6934
    %v7327 = vmul.f32 %v6935, %v6935
    %v7328 = vmul.f32 %v6936, %v6936
    %v7329 = vmul.f32 %v6937, %v6937
    %v7330 = vmul.f32 %v6938, %v6938
    %v7331 = vmul.f32 %v6939, %v6939
    %v7332 = vmul.f32 %v6940, %v6940
    %v7333 = vmul.f32 %v6941, %v6941
    %v7334 = vmul.f32 %v6942, %v6942
    %v7335 = vmul.f32 %v6943, %v6943
    %v7336 = vmul.f32 %v6944, %v6944
    %v7337 = vmul.f32 %v6945, %v6945
    %v7338 = vmul.f32 %v6946, %v6946
    %v7339 = vmul.f32 %v6947, %v6947
    %v7340 = vmul.f32 %v6948, %v6948
    %v7341 = vmul.f32 %v6949, %v6949
    %v7342 = vmul.f32 %v6950, %v6950
    %v7343 = vmul.f32 %v6951, %v6951
    %v7344 = vadd.f32 %v6952, %v6953
    %v7345 = vadd.f32 %v7344, %v6954
    %v7346 = vadd.f32 %v7345, %v6955
    %v7347 = vadd.f32 %v7346, %v6956
    %v7348 = vadd.f32 %v7347, %v6957
    %v7349 = vadd.f32 %v7348, %v6958
    %v7350 = vadd.f32 %v7349, %v6959
    %7351 = vadd.xlane.f32.xlu0 %v7350
    %v7352 = vpop.xlane.xlu0 %7351
    %v7353 = vadd.f32 %v6960, %v6961
    %v7354 = vadd.f32 %v7353, %v6962
    %v7355 = vadd.f32 %v7354, %v6963
    %v7356 = vadd.f32 %v7355, %v6964
    %v7357 = vadd.f32 %v7356, %v6965
    %v7358 = vadd.f32 %v7357, %v6966
    %v7359 = vadd.f32 %v7358, %v6967
    %7360 = vadd.xlane.f32.xlu0 %v7359
    %v7361 = vpop.xlane.xlu0 %7360
    %v7362 = vadd.f32 %v6968, %v6969
    %v7363 = vadd.f32 %v7362, %v6970
    %v7364 = vadd.f32 %v7363, %v6971
    %v7365 = vadd.f32 %v7364, %v6972
    %v7366 = vadd.f32 %v7365, %v6973
    %v7367 = vadd.f32 %v7366, %v6974
    %v7368 = vadd.f32 %v7367, %v6975
    %7369 = vadd.xlane.f32.xlu0 %v7368
    %v7370 = vpop.xlane.xlu0 %7369
    %v7371 = vadd.f32 %v6976, %v6977
    %v7372 = vadd.f32 %v7371, %v6978
    %v7373 = vadd.f32 %v7372, %v6979
    %v7374 = vadd.f32 %v7373, %v6980
    %v7375 = vadd.f32 %v7374, %v6981
    %v7376 = vadd.f32 %v7375, %v6982
    %v7377 = vadd.f32 %v7376, %v6983
    %7378 = vadd.xlane.f32.xlu0 %v7377
    %v7379 = vpop.xlane.xlu0 %7378
    %v7380 = vadd.f32 %v6984, %v6985
    %v7381 = vadd.f32 %v7380, %v6986
    %v7382 = vadd.f32 %v7381, %v6987
    %v7383 = vadd.f32 %v7382, %v6988
    %v7384 = vadd.f32 %v7383, %v6989
    %v7385 = vadd.f32 %v7384, %v6990
    %v7386 = vadd.f32 %v7385, %v6991
    %7387 = vadd.xlane.f32.xlu0 %v7386
    %v7388 = vpop.xlane.xlu0 %7387
    %v7389 = vadd.f32 %v6992, %v6993
    %v7390 = vadd.f32 %v7389, %v6994
    %v7391 = vadd.f32 %v7390, %v6995
    %v7392 = vadd.f32 %v7391, %v6996
    %v7393 = vadd.f32 %v7392, %v6997
    %v7394 = vadd.f32 %v7393, %v6998
    %v7395 = vadd.f32 %v7394, %v6999
    %7396 = vadd.xlane.f32.xlu0 %v7395
    %v7397 = vpop.xlane.xlu0 %7396
    %v7398 = vadd.f32 %v7000, %v7001
    %v7399 = vadd.f32 %v7398, %v7002
    %v7400 = vadd.f32 %v7399, %v7003
    %v7401 = vadd.f32 %v7400, %v7004
    %v7402 = vadd.f32 %v7401, %v7005
    %v7403 = vadd.f32 %v7402, %v7006
    %v7404 = vadd.f32 %v7403, %v7007
    %7405 = vadd.xlane.f32.xlu0 %v7404
    %v7406 = vpop.xlane.xlu0 %7405
    %v7407 = vadd.f32 %v7008, %v7009
    %v7408 = vadd.f32 %v7407, %v7010
    %v7409 = vadd.f32 %v7408, %v7011
    %v7410 = vadd.f32 %v7409, %v7012
    %v7411 = vadd.f32 %v7410, %v7013
    %v7412 = vadd.f32 %v7411, %v7014
    %v7413 = vadd.f32 %v7412, %v7015
    %7414 = vadd.xlane.f32.xlu0 %v7413
    %v7415 = vpop.xlane.xlu0 %7414
    %v7416 = vadd.f32 %v7016, %v7017
    %v7417 = vadd.f32 %v7416, %v7018
    %v7418 = vadd.f32 %v7417, %v7019
    %v7419 = vadd.f32 %v7418, %v7020
    %v7420 = vadd.f32 %v7419, %v7021
    %v7421 = vadd.f32 %v7420, %v7022
    %v7422 = vadd.f32 %v7421, %v7023
    %7423 = vadd.xlane.f32.xlu0 %v7422
    %v7424 = vpop.xlane.xlu0 %7423
    %v7425 = vadd.f32 %v7024, %v7025
    %v7426 = vadd.f32 %v7425, %v7026
    %v7427 = vadd.f32 %v7426, %v7027
    %v7428 = vadd.f32 %v7427, %v7028
    %v7429 = vadd.f32 %v7428, %v7029
    %v7430 = vadd.f32 %v7429, %v7030
    %v7431 = vadd.f32 %v7430, %v7031
    %7432 = vadd.xlane.f32.xlu0 %v7431
    %v7433 = vpop.xlane.xlu0 %7432
    %v7434 = vadd.f32 %v7032, %v7033
    %v7435 = vadd.f32 %v7434, %v7034
    %v7436 = vadd.f32 %v7435, %v7035
    %v7437 = vadd.f32 %v7436, %v7036
    %v7438 = vadd.f32 %v7437, %v7037
    %v7439 = vadd.f32 %v7438, %v7038
    %v7440 = vadd.f32 %v7439, %v7039
    %7441 = vadd.xlane.f32.xlu0 %v7440
    %v7442 = vpop.xlane.xlu0 %7441
    %v7443 = vadd.f32 %v7040, %v7041
    %v7444 = vadd.f32 %v7443, %v7042
    %v7445 = vadd.f32 %v7444, %v7043
    %v7446 = vadd.f32 %v7445, %v7044
    %v7447 = vadd.f32 %v7446, %v7045
    %v7448 = vadd.f32 %v7447, %v7046
    %v7449 = vadd.f32 %v7448, %v7047
    %7450 = vadd.xlane.f32.xlu0 %v7449
    %v7451 = vpop.xlane.xlu0 %7450
    %v7452 = vadd.f32 %v7048, %v7049
    %v7453 = vadd.f32 %v7452, %v7050
    %v7454 = vadd.f32 %v7453, %v7051
    %v7455 = vadd.f32 %v7454, %v7052
    %v7456 = vadd.f32 %v7455, %v7053
    %v7457 = vadd.f32 %v7456, %v7054
    %v7458 = vadd.f32 %v7457, %v7055
    %7459 = vadd.xlane.f32.xlu0 %v7458
    %v7460 = vpop.xlane.xlu0 %7459
    %v7461 = vadd.f32 %v7056, %v7057
    %v7462 = vadd.f32 %v7461, %v7058
    %v7463 = vadd.f32 %v7462, %v7059
    %v7464 = vadd.f32 %v7463, %v7060
    %v7465 = vadd.f32 %v7464, %v7061
    %v7466 = vadd.f32 %v7465, %v7062
    %v7467 = vadd.f32 %v7466, %v7063
    %7468 = vadd.xlane.f32.xlu0 %v7467
    %v7469 = vpop.xlane.xlu0 %7468
    %v7470 = vadd.f32 %v7064, %v7065
    %v7471 = vadd.f32 %v7470, %v7066
    %v7472 = vadd.f32 %v7471, %v7067
    %v7473 = vadd.f32 %v7472, %v7068
    %v7474 = vadd.f32 %v7473, %v7069
    %v7475 = vadd.f32 %v7474, %v7070
    %v7476 = vadd.f32 %v7475, %v7071
    %7477 = vadd.xlane.f32.xlu0 %v7476
    %v7478 = vpop.xlane.xlu0 %7477
    %v7479 = vadd.f32 %v7072, %v7073
    %v7480 = vadd.f32 %v7479, %v7074
    %v7481 = vadd.f32 %v7480, %v7075
    %v7482 = vadd.f32 %v7481, %v7076
    %v7483 = vadd.f32 %v7482, %v7077
    %v7484 = vadd.f32 %v7483, %v7078
    %v7485 = vadd.f32 %v7484, %v7079
    %7486 = vadd.xlane.f32.xlu0 %v7485
    %v7487 = vpop.xlane.xlu0 %7486
    %v7488 = vadd.f32 %v7080, %v7081
    %v7489 = vadd.f32 %v7488, %v7082
    %v7490 = vadd.f32 %v7489, %v7083
    %v7491 = vadd.f32 %v7490, %v7084
    %v7492 = vadd.f32 %v7491, %v7085
    %v7493 = vadd.f32 %v7492, %v7086
    %v7494 = vadd.f32 %v7493, %v7087
    %7495 = vadd.xlane.f32.xlu0 %v7494
    %v7496 = vpop.xlane.xlu0 %7495
    %v7497 = vadd.f32 %v7088, %v7089
    %v7498 = vadd.f32 %v7497, %v7090
    %v7499 = vadd.f32 %v7498, %v7091
    %v7500 = vadd.f32 %v7499, %v7092
    %v7501 = vadd.f32 %v7500, %v7093
    %v7502 = vadd.f32 %v7501, %v7094
    %v7503 = vadd.f32 %v7502, %v7095
    %7504 = vadd.xlane.f32.xlu0 %v7503
    %v7505 = vpop.xlane.xlu0 %7504
    %v7506 = vadd.f32 %v7096, %v7097
    %v7507 = vadd.f32 %v7506, %v7098
    %v7508 = vadd.f32 %v7507, %v7099
    %v7509 = vadd.f32 %v7508, %v7100
    %v7510 = vadd.f32 %v7509, %v7101
    %v7511 = vadd.f32 %v7510, %v7102
    %v7512 = vadd.f32 %v7511, %v7103
    %7513 = vadd.xlane.f32.xlu0 %v7512
    %v7514 = vpop.xlane.xlu0 %7513
    %v7515 = vadd.f32 %v7104, %v7105
    %v7516 = vadd.f32 %v7515, %v7106
    %v7517 = vadd.f32 %v7516, %v7107
    %v7518 = vadd.f32 %v7517, %v7108
    %v7519 = vadd.f32 %v7518, %v7109
    %v7520 = vadd.f32 %v7519, %v7110
    %v7521 = vadd.f32 %v7520, %v7111
    %7522 = vadd.xlane.f32.xlu0 %v7521
    %v7523 = vpop.xlane.xlu0 %7522
    %v7524 = vadd.f32 %v7112, %v7113
    %v7525 = vadd.f32 %v7524, %v7114
    %v7526 = vadd.f32 %v7525, %v7115
    %v7527 = vadd.f32 %v7526, %v7116
    %v7528 = vadd.f32 %v7527, %v7117
    %v7529 = vadd.f32 %v7528, %v7118
    %v7530 = vadd.f32 %v7529, %v7119
    %7531 = vadd.xlane.f32.xlu0 %v7530
    %v7532 = vpop.xlane.xlu0 %7531
    %v7533 = vadd.f32 %v7120, %v7121
    %v7534 = vadd.f32 %v7533, %v7122
    %v7535 = vadd.f32 %v7534, %v7123
    %v7536 = vadd.f32 %v7535, %v7124
    %v7537 = vadd.f32 %v7536, %v7125
    %v7538 = vadd.f32 %v7537, %v7126
    %v7539 = vadd.f32 %v7538, %v7127
    %7540 = vadd.xlane.f32.xlu0 %v7539
    %v7541 = vpop.xlane.xlu0 %7540
    %v7542 = vadd.f32 %v7128, %v7129
    %v7543 = vadd.f32 %v7542, %v7130
    %v7544 = vadd.f32 %v7543, %v7131
    %v7545 = vadd.f32 %v7544, %v7132
    %v7546 = vadd.f32 %v7545, %v7133
    %v7547 = vadd.f32 %v7546, %v7134
    %v7548 = vadd.f32 %v7547, %v7135
    %7549 = vadd.xlane.f32.xlu0 %v7548
    %v7550 = vpop.xlane.xlu0 %7549
    %v7551 = vadd.f32 %v7136, %v7137
    %v7552 = vadd.f32 %v7551, %v7138
    %v7553 = vadd.f32 %v7552, %v7139
    %v7554 = vadd.f32 %v7553, %v7140
    %v7555 = vadd.f32 %v7554, %v7141
    %v7556 = vadd.f32 %v7555, %v7142
    %v7557 = vadd.f32 %v7556, %v7143
    %7558 = vadd.xlane.f32.xlu0 %v7557
    %v7559 = vpop.xlane.xlu0 %7558
    %v7560 = vadd.f32 %v7144, %v7145
    %v7561 = vadd.f32 %v7560, %v7146
    %v7562 = vadd.f32 %v7561, %v7147
    %v7563 = vadd.f32 %v7562, %v7148
    %v7564 = vadd.f32 %v7563, %v7149
    %v7565 = vadd.f32 %v7564, %v7150
    %v7566 = vadd.f32 %v7565, %v7151
    %7567 = vadd.xlane.f32.xlu0 %v7566
    %v7568 = vpop.xlane.xlu0 %7567
    %v7569 = vadd.f32 %v7152, %v7153
    %v7570 = vadd.f32 %v7569, %v7154
    %v7571 = vadd.f32 %v7570, %v7155
    %v7572 = vadd.f32 %v7571, %v7156
    %v7573 = vadd.f32 %v7572, %v7157
    %v7574 = vadd.f32 %v7573, %v7158
    %v7575 = vadd.f32 %v7574, %v7159
    %7576 = vadd.xlane.f32.xlu0 %v7575
    %v7577 = vpop.xlane.xlu0 %7576
    %v7578 = vadd.f32 %v7160, %v7161
    %v7579 = vadd.f32 %v7578, %v7162
    %v7580 = vadd.f32 %v7579, %v7163
    %v7581 = vadd.f32 %v7580, %v7164
    %v7582 = vadd.f32 %v7581, %v7165
    %v7583 = vadd.f32 %v7582, %v7166
    %v7584 = vadd.f32 %v7583, %v7167
    %7585 = vadd.xlane.f32.xlu0 %v7584
    %v7586 = vpop.xlane.xlu0 %7585
    %v7587 = vadd.f32 %v7168, %v7169
    %v7588 = vadd.f32 %v7587, %v7170
    %v7589 = vadd.f32 %v7588, %v7171
    %v7590 = vadd.f32 %v7589, %v7172
    %v7591 = vadd.f32 %v7590, %v7173
    %v7592 = vadd.f32 %v7591, %v7174
    %v7593 = vadd.f32 %v7592, %v7175
    %7594 = vadd.xlane.f32.xlu0 %v7593
    %v7595 = vpop.xlane.xlu0 %7594
    %v7596 = vadd.f32 %v7176, %v7177
    %v7597 = vadd.f32 %v7596, %v7178
    %v7598 = vadd.f32 %v7597, %v7179
    %v7599 = vadd.f32 %v7598, %v7180
    %v7600 = vadd.f32 %v7599, %v7181
    %v7601 = vadd.f32 %v7600, %v7182
    %v7602 = vadd.f32 %v7601, %v7183
    %7603 = vadd.xlane.f32.xlu0 %v7602
    %v7604 = vpop.xlane.xlu0 %7603
    %v7605 = vadd.f32 %v7184, %v7185
    %v7606 = vadd.f32 %v7605, %v7186
    %v7607 = vadd.f32 %v7606, %v7187
    %v7608 = vadd.f32 %v7607, %v7188
    %v7609 = vadd.f32 %v7608, %v7189
    %v7610 = vadd.f32 %v7609, %v7190
    %v7611 = vadd.f32 %v7610, %v7191
    %7612 = vadd.xlane.f32.xlu0 %v7611
    %v7613 = vpop.xlane.xlu0 %7612
    %v7614 = vadd.f32 %v7192, %v7193
    %v7615 = vadd.f32 %v7614, %v7194
    %v7616 = vadd.f32 %v7615, %v7195
    %v7617 = vadd.f32 %v7616, %v7196
    %v7618 = vadd.f32 %v7617, %v7197
    %v7619 = vadd.f32 %v7618, %v7198
    %v7620 = vadd.f32 %v7619, %v7199
    %7621 = vadd.xlane.f32.xlu0 %v7620
    %v7622 = vpop.xlane.xlu0 %7621
    %v7623 = vadd.f32 %v7200, %v7201
    %v7624 = vadd.f32 %v7623, %v7202
    %v7625 = vadd.f32 %v7624, %v7203
    %v7626 = vadd.f32 %v7625, %v7204
    %v7627 = vadd.f32 %v7626, %v7205
    %v7628 = vadd.f32 %v7627, %v7206
    %v7629 = vadd.f32 %v7628, %v7207
    %7630 = vadd.xlane.f32.xlu0 %v7629
    %v7631 = vpop.xlane.xlu0 %7630
    %v7632 = vadd.f32 %v7208, %v7209
    %v7633 = vadd.f32 %v7632, %v7210
    %v7634 = vadd.f32 %v7633, %v7211
    %v7635 = vadd.f32 %v7634, %v7212
    %v7636 = vadd.f32 %v7635, %v7213
    %v7637 = vadd.f32 %v7636, %v7214
    %v7638 = vadd.f32 %v7637, %v7215
    %7639 = vadd.xlane.f32.xlu0 %v7638
    %v7640 = vpop.xlane.xlu0 %7639
    %v7641 = vadd.f32 %v7216, %v7217
    %v7642 = vadd.f32 %v7641, %v7218
    %v7643 = vadd.f32 %v7642, %v7219
    %v7644 = vadd.f32 %v7643, %v7220
    %v7645 = vadd.f32 %v7644, %v7221
    %v7646 = vadd.f32 %v7645, %v7222
    %v7647 = vadd.f32 %v7646, %v7223
    %7648 = vadd.xlane.f32.xlu0 %v7647
    %v7649 = vpop.xlane.xlu0 %7648
    %v7650 = vadd.f32 %v7224, %v7225
    %v7651 = vadd.f32 %v7650, %v7226
    %v7652 = vadd.f32 %v7651, %v7227
    %v7653 = vadd.f32 %v7652, %v7228
    %v7654 = vadd.f32 %v7653, %v7229
    %v7655 = vadd.f32 %v7654, %v7230
    %v7656 = vadd.f32 %v7655, %v7231
    %7657 = vadd.xlane.f32.xlu0 %v7656
    %v7658 = vpop.xlane.xlu0 %7657
    %v7659 = vadd.f32 %v7232, %v7233
    %v7660 = vadd.f32 %v7659, %v7234
    %v7661 = vadd.f32 %v7660, %v7235
    %v7662 = vadd.f32 %v7661, %v7236
    %v7663 = vadd.f32 %v7662, %v7237
    %v7664 = vadd.f32 %v7663, %v7238
    %v7665 = vadd.f32 %v7664, %v7239
    %7666 = vadd.xlane.f32.xlu0 %v7665
    %v7667 = vpop.xlane.xlu0 %7666
    %v7668 = vadd.f32 %v7240, %v7241
    %v7669 = vadd.f32 %v7668, %v7242
    %v7670 = vadd.f32 %v7669, %v7243
    %v7671 = vadd.f32 %v7670, %v7244
    %v7672 = vadd.f32 %v7671, %v7245
    %v7673 = vadd.f32 %v7672, %v7246
    %v7674 = vadd.f32 %v7673, %v7247
    %7675 = vadd.xlane.f32.xlu0 %v7674
    %v7676 = vpop.xlane.xlu0 %7675
    %v7677 = vadd.f32 %v7248, %v7249
    %v7678 = vadd.f32 %v7677, %v7250
    %v7679 = vadd.f32 %v7678, %v7251
    %v7680 = vadd.f32 %v7679, %v7252
    %v7681 = vadd.f32 %v7680, %v7253
    %v7682 = vadd.f32 %v7681, %v7254
    %v7683 = vadd.f32 %v7682, %v7255
    %7684 = vadd.xlane.f32.xlu0 %v7683
    %v7685 = vpop.xlane.xlu0 %7684
    %v7686 = vadd.f32 %v7256, %v7257
    %v7687 = vadd.f32 %v7686, %v7258
    %v7688 = vadd.f32 %v7687, %v7259
    %v7689 = vadd.f32 %v7688, %v7260
    %v7690 = vadd.f32 %v7689, %v7261
    %v7691 = vadd.f32 %v7690, %v7262
    %v7692 = vadd.f32 %v7691, %v7263
    %7693 = vadd.xlane.f32.xlu0 %v7692
    %v7694 = vpop.xlane.xlu0 %7693
    %v7695 = vadd.f32 %v7264, %v7265
    %v7696 = vadd.f32 %v7695, %v7266
    %v7697 = vadd.f32 %v7696, %v7267
    %v7698 = vadd.f32 %v7697, %v7268
    %v7699 = vadd.f32 %v7698, %v7269
    %v7700 = vadd.f32 %v7699, %v7270
    %v7701 = vadd.f32 %v7700, %v7271
    %7702 = vadd.xlane.f32.xlu0 %v7701
    %v7703 = vpop.xlane.xlu0 %7702
    %v7704 = vadd.f32 %v7272, %v7273
    %v7705 = vadd.f32 %v7704, %v7274
    %v7706 = vadd.f32 %v7705, %v7275
    %v7707 = vadd.f32 %v7706, %v7276
    %v7708 = vadd.f32 %v7707, %v7277
    %v7709 = vadd.f32 %v7708, %v7278
    %v7710 = vadd.f32 %v7709, %v7279
    %7711 = vadd.xlane.f32.xlu0 %v7710
    %v7712 = vpop.xlane.xlu0 %7711
    %v7713 = vadd.f32 %v7280, %v7281
    %v7714 = vadd.f32 %v7713, %v7282
    %v7715 = vadd.f32 %v7714, %v7283
    %v7716 = vadd.f32 %v7715, %v7284
    %v7717 = vadd.f32 %v7716, %v7285
    %v7718 = vadd.f32 %v7717, %v7286
    %v7719 = vadd.f32 %v7718, %v7287
    %7720 = vadd.xlane.f32.xlu0 %v7719
    %v7721 = vpop.xlane.xlu0 %7720
    %v7722 = vadd.f32 %v7288, %v7289
    %v7723 = vadd.f32 %v7722, %v7290
    %v7724 = vadd.f32 %v7723, %v7291
    %v7725 = vadd.f32 %v7724, %v7292
    %v7726 = vadd.f32 %v7725, %v7293
    %v7727 = vadd.f32 %v7726, %v7294
    %v7728 = vadd.f32 %v7727, %v7295
    %7729 = vadd.xlane.f32.xlu0 %v7728
    %v7730 = vpop.xlane.xlu0 %7729
    %v7731 = vadd.f32 %v7296, %v7297
    %v7732 = vadd.f32 %v7731, %v7298
    %v7733 = vadd.f32 %v7732, %v7299
    %v7734 = vadd.f32 %v7733, %v7300
    %v7735 = vadd.f32 %v7734, %v7301
    %v7736 = vadd.f32 %v7735, %v7302
    %v7737 = vadd.f32 %v7736, %v7303
    %7738 = vadd.xlane.f32.xlu0 %v7737
    %v7739 = vpop.xlane.xlu0 %7738
    %v7740 = vadd.f32 %v7304, %v7305
    %v7741 = vadd.f32 %v7740, %v7306
    %v7742 = vadd.f32 %v7741, %v7307
    %v7743 = vadd.f32 %v7742, %v7308
    %v7744 = vadd.f32 %v7743, %v7309
    %v7745 = vadd.f32 %v7744, %v7310
    %v7746 = vadd.f32 %v7745, %v7311
    %7747 = vadd.xlane.f32.xlu0 %v7746
    %v7748 = vpop.xlane.xlu0 %7747
    %v7749 = vadd.f32 %v7312, %v7313
    %v7750 = vadd.f32 %v7749, %v7314
    %v7751 = vadd.f32 %v7750, %v7315
    %v7752 = vadd.f32 %v7751, %v7316
    %v7753 = vadd.f32 %v7752, %v7317
    %v7754 = vadd.f32 %v7753, %v7318
    %v7755 = vadd.f32 %v7754, %v7319
    %7756 = vadd.xlane.f32.xlu0 %v7755
    %v7757 = vpop.xlane.xlu0 %7756
    %v7758 = vadd.f32 %v7320, %v7321
    %v7759 = vadd.f32 %v7758, %v7322
    %v7760 = vadd.f32 %v7759, %v7323
    %v7761 = vadd.f32 %v7760, %v7324
    %v7762 = vadd.f32 %v7761, %v7325
    %v7763 = vadd.f32 %v7762, %v7326
    %v7764 = vadd.f32 %v7763, %v7327
    %7765 = vadd.xlane.f32.xlu0 %v7764
    %v7766 = vpop.xlane.xlu0 %7765
    %v7767 = vadd.f32 %v7328, %v7329
    %v7768 = vadd.f32 %v7767, %v7330
    %v7769 = vadd.f32 %v7768, %v7331
    %v7770 = vadd.f32 %v7769, %v7332
    %v7771 = vadd.f32 %v7770, %v7333
    %v7772 = vadd.f32 %v7771, %v7334
    %v7773 = vadd.f32 %v7772, %v7335
    %7774 = vadd.xlane.f32.xlu0 %v7773
    %v7775 = vpop.xlane.xlu0 %7774
    %v7776 = vadd.f32 %v7336, %v7337
    %v7777 = vadd.f32 %v7776, %v7338
    %v7778 = vadd.f32 %v7777, %v7339
    %v7779 = vadd.f32 %v7778, %v7340
    %v7780 = vadd.f32 %v7779, %v7341
    %v7781 = vadd.f32 %v7780, %v7342
    %v7782 = vadd.f32 %v7781, %v7343
    %7783 = vadd.xlane.f32.xlu0 %v7782
    %v7784 = vpop.xlane.xlu0 %7783
    %v7785 = vmul.f32 %v7352, %v6510
    %v7786 = vmul.f32 %v7361, %v6510
    %v7787 = vmul.f32 %v7370, %v6510
    %v7788 = vmul.f32 %v7379, %v6510
    %v7789 = vmul.f32 %v7388, %v6510
    %v7790 = vmul.f32 %v7397, %v6510
    %v7791 = vmul.f32 %v7406, %v6510
    %v7792 = vmul.f32 %v7415, %v6510
    %v7793 = vmul.f32 %v7424, %v6510
    %v7794 = vmul.f32 %v7433, %v6510
    %v7795 = vmul.f32 %v7442, %v6510
    %v7796 = vmul.f32 %v7451, %v6510
    %v7797 = vmul.f32 %v7460, %v6510
    %v7798 = vmul.f32 %v7469, %v6510
    %v7799 = vmul.f32 %v7478, %v6510
    %v7800 = vmul.f32 %v7487, %v6510
    %v7801 = vmul.f32 %v7496, %v6510
    %v7802 = vmul.f32 %v7505, %v6510
    %v7803 = vmul.f32 %v7514, %v6510
    %v7804 = vmul.f32 %v7523, %v6510
    %v7805 = vmul.f32 %v7532, %v6510
    %v7806 = vmul.f32 %v7541, %v6510
    %v7807 = vmul.f32 %v7550, %v6510
    %v7808 = vmul.f32 %v7559, %v6510
    %v7809 = vmul.f32 %v7568, %v6510
    %v7810 = vmul.f32 %v7577, %v6510
    %v7811 = vmul.f32 %v7586, %v6510
    %v7812 = vmul.f32 %v7595, %v6510
    %v7813 = vmul.f32 %v7604, %v6510
    %v7814 = vmul.f32 %v7613, %v6510
    %v7815 = vmul.f32 %v7622, %v6510
    %v7816 = vmul.f32 %v7631, %v6510
    %v7817 = vmul.f32 %v7640, %v6510
    %v7818 = vmul.f32 %v7649, %v6510
    %v7819 = vmul.f32 %v7658, %v6510
    %v7820 = vmul.f32 %v7667, %v6510
    %v7821 = vmul.f32 %v7676, %v6510
    %v7822 = vmul.f32 %v7685, %v6510
    %v7823 = vmul.f32 %v7694, %v6510
    %v7824 = vmul.f32 %v7703, %v6510
    %v7825 = vmul.f32 %v7712, %v6510
    %v7826 = vmul.f32 %v7721, %v6510
    %v7827 = vmul.f32 %v7730, %v6510
    %v7828 = vmul.f32 %v7739, %v6510
    %v7829 = vmul.f32 %v7748, %v6510
    %v7830 = vmul.f32 %v7757, %v6510
    %v7831 = vmul.f32 %v7766, %v6510
    %v7832 = vmul.f32 %v7775, %v6510
    %v7833 = vmul.f32 %v7784, %v6510
    %v7834 = vadd.f32 %v7785, 1e-05
    %v7835 = vadd.f32 %v7786, 1e-05
    %v7836 = vadd.f32 %v7787, 1e-05
    %v7837 = vadd.f32 %v7788, 1e-05
    %v7838 = vadd.f32 %v7789, 1e-05
    %v7839 = vadd.f32 %v7790, 1e-05
    %v7840 = vadd.f32 %v7791, 1e-05
    %v7841 = vadd.f32 %v7792, 1e-05
    %v7842 = vadd.f32 %v7793, 1e-05
    %v7843 = vadd.f32 %v7794, 1e-05
    %v7844 = vadd.f32 %v7795, 1e-05
    %v7845 = vadd.f32 %v7796, 1e-05
    %v7846 = vadd.f32 %v7797, 1e-05
    %v7847 = vadd.f32 %v7798, 1e-05
    %v7848 = vadd.f32 %v7799, 1e-05
    %v7849 = vadd.f32 %v7800, 1e-05
    %v7850 = vadd.f32 %v7801, 1e-05
    %v7851 = vadd.f32 %v7802, 1e-05
    %v7852 = vadd.f32 %v7803, 1e-05
    %v7853 = vadd.f32 %v7804, 1e-05
    %v7854 = vadd.f32 %v7805, 1e-05
    %v7855 = vadd.f32 %v7806, 1e-05
    %v7856 = vadd.f32 %v7807, 1e-05
    %v7857 = vadd.f32 %v7808, 1e-05
    %v7858 = vadd.f32 %v7809, 1e-05
    %v7859 = vadd.f32 %v7810, 1e-05
    %v7860 = vadd.f32 %v7811, 1e-05
    %v7861 = vadd.f32 %v7812, 1e-05
    %v7862 = vadd.f32 %v7813, 1e-05
    %v7863 = vadd.f32 %v7814, 1e-05
    %v7864 = vadd.f32 %v7815, 1e-05
    %v7865 = vadd.f32 %v7816, 1e-05
    %v7866 = vadd.f32 %v7817, 1e-05
    %v7867 = vadd.f32 %v7818, 1e-05
    %v7868 = vadd.f32 %v7819, 1e-05
    %v7869 = vadd.f32 %v7820, 1e-05
    %v7870 = vadd.f32 %v7821, 1e-05
    %v7871 = vadd.f32 %v7822, 1e-05
    %v7872 = vadd.f32 %v7823, 1e-05
    %v7873 = vadd.f32 %v7824, 1e-05
    %v7874 = vadd.f32 %v7825, 1e-05
    %v7875 = vadd.f32 %v7826, 1e-05
    %v7876 = vadd.f32 %v7827, 1e-05
    %v7877 = vadd.f32 %v7828, 1e-05
    %v7878 = vadd.f32 %v7829, 1e-05
    %v7879 = vadd.f32 %v7830, 1e-05
    %v7880 = vadd.f32 %v7831, 1e-05
    %v7881 = vadd.f32 %v7832, 1e-05
    %v7882 = vadd.f32 %v7833, 1e-05
    %v7883 = vrsqrt.pop %v7834
    %v7884 = vrsqrt.pop %v7835
    %v7885 = vrsqrt.pop %v7836
    %v7886 = vrsqrt.pop %v7837
    %v7887 = vrsqrt.pop %v7838
    %v7888 = vrsqrt.pop %v7839
    %v7889 = vrsqrt.pop %v7840
    %v7890 = vrsqrt.pop %v7841
    %v7891 = vrsqrt.pop %v7842
    %v7892 = vrsqrt.pop %v7843
    %v7893 = vrsqrt.pop %v7844
    %v7894 = vrsqrt.pop %v7845
    %v7895 = vrsqrt.pop %v7846
    %v7896 = vrsqrt.pop %v7847
    %v7897 = vrsqrt.pop %v7848
    %v7898 = vrsqrt.pop %v7849
    %v7899 = vrsqrt.pop %v7850
    %v7900 = vrsqrt.pop %v7851
    %v7901 = vrsqrt.pop %v7852
    %v7902 = vrsqrt.pop %v7853
    %v7903 = vrsqrt.pop %v7854
    %v7904 = vrsqrt.pop %v7855
    %v7905 = vrsqrt.pop %v7856
    %v7906 = vrsqrt.pop %v7857
    %v7907 = vrsqrt.pop %v7858
    %v7908 = vrsqrt.pop %v7859
    %v7909 = vrsqrt.pop %v7860
    %v7910 = vrsqrt.pop %v7861
    %v7911 = vrsqrt.pop %v7862
    %v7912 = vrsqrt.pop %v7863
    %v7913 = vrsqrt.pop %v7864
    %v7914 = vrsqrt.pop %v7865
    %v7915 = vrsqrt.pop %v7866
    %v7916 = vrsqrt.pop %v7867
    %v7917 = vrsqrt.pop %v7868
    %v7918 = vrsqrt.pop %v7869
    %v7919 = vrsqrt.pop %v7870
    %v7920 = vrsqrt.pop %v7871
    %v7921 = vrsqrt.pop %v7872
    %v7922 = vrsqrt.pop %v7873
    %v7923 = vrsqrt.pop %v7874
    %v7924 = vrsqrt.pop %v7875
    %v7925 = vrsqrt.pop %v7876
    %v7926 = vrsqrt.pop %v7877
    %v7927 = vrsqrt.pop %v7878
    %v7928 = vrsqrt.pop %v7879
    %v7929 = vrsqrt.pop %v7880
    %v7930 = vrsqrt.pop %v7881
    %v7931 = vrsqrt.pop %v7882
    %v7932 = vmul.f32 %v6560, %v7883
    %v7933 = vmul.f32 %v6561, %v7883
    %v7934 = vmul.f32 %v6562, %v7883
    %v7935 = vmul.f32 %v6563, %v7883
    %v7936 = vmul.f32 %v6564, %v7883
    %v7937 = vmul.f32 %v6565, %v7883
    %v7938 = vmul.f32 %v6566, %v7883
    %v7939 = vmul.f32 %v6567, %v7883
    %v7940 = vmul.f32 %v6568, %v7884
    %v7941 = vmul.f32 %v6569, %v7884
    %v7942 = vmul.f32 %v6570, %v7884
    %v7943 = vmul.f32 %v6571, %v7884
    %v7944 = vmul.f32 %v6572, %v7884
    %v7945 = vmul.f32 %v6573, %v7884
    %v7946 = vmul.f32 %v6574, %v7884
    %v7947 = vmul.f32 %v6575, %v7884
    %v7948 = vmul.f32 %v6576, %v7885
    %v7949 = vmul.f32 %v6577, %v7885
    %v7950 = vmul.f32 %v6578, %v7885
    %v7951 = vmul.f32 %v6579, %v7885
    %v7952 = vmul.f32 %v6580, %v7885
    %v7953 = vmul.f32 %v6581, %v7885
    %v7954 = vmul.f32 %v6582, %v7885
    %v7955 = vmul.f32 %v6583, %v7885
    %v7956 = vmul.f32 %v6584, %v7886
    %v7957 = vmul.f32 %v6585, %v7886
    %v7958 = vmul.f32 %v6586, %v7886
    %v7959 = vmul.f32 %v6587, %v7886
    %v7960 = vmul.f32 %v6588, %v7886
    %v7961 = vmul.f32 %v6589, %v7886
    %v7962 = vmul.f32 %v6590, %v7886
    %v7963 = vmul.f32 %v6591, %v7886
    %v7964 = vmul.f32 %v6592, %v7887
    %v7965 = vmul.f32 %v6593, %v7887
    %v7966 = vmul.f32 %v6594, %v7887
    %v7967 = vmul.f32 %v6595, %v7887
    %v7968 = vmul.f32 %v6596, %v7887
    %v7969 = vmul.f32 %v6597, %v7887
    %v7970 = vmul.f32 %v6598, %v7887
    %v7971 = vmul.f32 %v6599, %v7887
    %v7972 = vmul.f32 %v6600, %v7888
    %v7973 = vmul.f32 %v6601, %v7888
    %v7974 = vmul.f32 %v6602, %v7888
    %v7975 = vmul.f32 %v6603, %v7888
    %v7976 = vmul.f32 %v6604, %v7888
    %v7977 = vmul.f32 %v6605, %v7888
    %v7978 = vmul.f32 %v6606, %v7888
    %v7979 = vmul.f32 %v6607, %v7888
    %v7980 = vmul.f32 %v6608, %v7889
    %v7981 = vmul.f32 %v6609, %v7889
    %v7982 = vmul.f32 %v6610, %v7889
    %v7983 = vmul.f32 %v6611, %v7889
    %v7984 = vmul.f32 %v6612, %v7889
    %v7985 = vmul.f32 %v6613, %v7889
    %v7986 = vmul.f32 %v6614, %v7889
    %v7987 = vmul.f32 %v6615, %v7889
    %v7988 = vmul.f32 %v6616, %v7890
    %v7989 = vmul.f32 %v6617, %v7890
    %v7990 = vmul.f32 %v6618, %v7890
    %v7991 = vmul.f32 %v6619, %v7890
    %v7992 = vmul.f32 %v6620, %v7890
    %v7993 = vmul.f32 %v6621, %v7890
    %v7994 = vmul.f32 %v6622, %v7890
    %v7995 = vmul.f32 %v6623, %v7890
    %v7996 = vmul.f32 %v6624, %v7891
    %v7997 = vmul.f32 %v6625, %v7891
    %v7998 = vmul.f32 %v6626, %v7891
    %v7999 = vmul.f32 %v6627, %v7891
    %v8000 = vmul.f32 %v6628, %v7891
    %v8001 = vmul.f32 %v6629, %v7891
    %v8002 = vmul.f32 %v6630, %v7891
    %v8003 = vmul.f32 %v6631, %v7891
    %v8004 = vmul.f32 %v6632, %v7892
    %v8005 = vmul.f32 %v6633, %v7892
    %v8006 = vmul.f32 %v6634, %v7892
    %v8007 = vmul.f32 %v6635, %v7892
    %v8008 = vmul.f32 %v6636, %v7892
    %v8009 = vmul.f32 %v6637, %v7892
    %v8010 = vmul.f32 %v6638, %v7892
    %v8011 = vmul.f32 %v6639, %v7892
    %v8012 = vmul.f32 %v6640, %v7893
    %v8013 = vmul.f32 %v6641, %v7893
    %v8014 = vmul.f32 %v6642, %v7893
    %v8015 = vmul.f32 %v6643, %v7893
    %v8016 = vmul.f32 %v6644, %v7893
    %v8017 = vmul.f32 %v6645, %v7893
    %v8018 = vmul.f32 %v6646, %v7893
    %v8019 = vmul.f32 %v6647, %v7893
    %v8020 = vmul.f32 %v6648, %v7894
    %v8021 = vmul.f32 %v6649, %v7894
    %v8022 = vmul.f32 %v6650, %v7894
    %v8023 = vmul.f32 %v6651, %v7894
    %v8024 = vmul.f32 %v6652, %v7894
    %v8025 = vmul.f32 %v6653, %v7894
    %v8026 = vmul.f32 %v6654, %v7894
    %v8027 = vmul.f32 %v6655, %v7894
    %v8028 = vmul.f32 %v6656, %v7895
    %v8029 = vmul.f32 %v6657, %v7895
    %v8030 = vmul.f32 %v6658, %v7895
    %v8031 = vmul.f32 %v6659, %v7895
    %v8032 = vmul.f32 %v6660, %v7895
    %v8033 = vmul.f32 %v6661, %v7895
    %v8034 = vmul.f32 %v6662, %v7895
    %v8035 = vmul.f32 %v6663, %v7895
    %v8036 = vmul.f32 %v6664, %v7896
    %v8037 = vmul.f32 %v6665, %v7896
    %v8038 = vmul.f32 %v6666, %v7896
    %v8039 = vmul.f32 %v6667, %v7896
    %v8040 = vmul.f32 %v6668, %v7896
    %v8041 = vmul.f32 %v6669, %v7896
    %v8042 = vmul.f32 %v6670, %v7896
    %v8043 = vmul.f32 %v6671, %v7896
    %v8044 = vmul.f32 %v6672, %v7897
    %v8045 = vmul.f32 %v6673, %v7897
    %v8046 = vmul.f32 %v6674, %v7897
    %v8047 = vmul.f32 %v6675, %v7897
    %v8048 = vmul.f32 %v6676, %v7897
    %v8049 = vmul.f32 %v6677, %v7897
    %v8050 = vmul.f32 %v6678, %v7897
    %v8051 = vmul.f32 %v6679, %v7897
    %v8052 = vmul.f32 %v6680, %v7898
    %v8053 = vmul.f32 %v6681, %v7898
    %v8054 = vmul.f32 %v6682, %v7898
    %v8055 = vmul.f32 %v6683, %v7898
    %v8056 = vmul.f32 %v6684, %v7898
    %v8057 = vmul.f32 %v6685, %v7898
    %v8058 = vmul.f32 %v6686, %v7898
    %v8059 = vmul.f32 %v6687, %v7898
    %v8060 = vmul.f32 %v6688, %v7899
    %v8061 = vmul.f32 %v6689, %v7899
    %v8062 = vmul.f32 %v6690, %v7899
    %v8063 = vmul.f32 %v6691, %v7899
    %v8064 = vmul.f32 %v6692, %v7899
    %v8065 = vmul.f32 %v6693, %v7899
    %v8066 = vmul.f32 %v6694, %v7899
    %v8067 = vmul.f32 %v6695, %v7899
    %v8068 = vmul.f32 %v6696, %v7900
    %v8069 = vmul.f32 %v6697, %v7900
    %v8070 = vmul.f32 %v6698, %v7900
    %v8071 = vmul.f32 %v6699, %v7900
    %v8072 = vmul.f32 %v6700, %v7900
    %v8073 = vmul.f32 %v6701, %v7900
    %v8074 = vmul.f32 %v6702, %v7900
    %v8075 = vmul.f32 %v6703, %v7900
    %v8076 = vmul.f32 %v6704, %v7901
    %v8077 = vmul.f32 %v6705, %v7901
    %v8078 = vmul.f32 %v6706, %v7901
    %v8079 = vmul.f32 %v6707, %v7901
    %v8080 = vmul.f32 %v6708, %v7901
    %v8081 = vmul.f32 %v6709, %v7901
    %v8082 = vmul.f32 %v6710, %v7901
    %v8083 = vmul.f32 %v6711, %v7901
    %v8084 = vmul.f32 %v6712, %v7902
    %v8085 = vmul.f32 %v6713, %v7902
    %v8086 = vmul.f32 %v6714, %v7902
    %v8087 = vmul.f32 %v6715, %v7902
    %v8088 = vmul.f32 %v6716, %v7902
    %v8089 = vmul.f32 %v6717, %v7902
    %v8090 = vmul.f32 %v6718, %v7902
    %v8091 = vmul.f32 %v6719, %v7902
    %v8092 = vmul.f32 %v6720, %v7903
    %v8093 = vmul.f32 %v6721, %v7903
    %v8094 = vmul.f32 %v6722, %v7903
    %v8095 = vmul.f32 %v6723, %v7903
    %v8096 = vmul.f32 %v6724, %v7903
    %v8097 = vmul.f32 %v6725, %v7903
    %v8098 = vmul.f32 %v6726, %v7903
    %v8099 = vmul.f32 %v6727, %v7903
    %v8100 = vmul.f32 %v6728, %v7904
    %v8101 = vmul.f32 %v6729, %v7904
    %v8102 = vmul.f32 %v6730, %v7904
    %v8103 = vmul.f32 %v6731, %v7904
    %v8104 = vmul.f32 %v6732, %v7904
    %v8105 = vmul.f32 %v6733, %v7904
    %v8106 = vmul.f32 %v6734, %v7904
    %v8107 = vmul.f32 %v6735, %v7904
    %v8108 = vmul.f32 %v6736, %v7905
    %v8109 = vmul.f32 %v6737, %v7905
    %v8110 = vmul.f32 %v6738, %v7905
    %v8111 = vmul.f32 %v6739, %v7905
    %v8112 = vmul.f32 %v6740, %v7905
    %v8113 = vmul.f32 %v6741, %v7905
    %v8114 = vmul.f32 %v6742, %v7905
    %v8115 = vmul.f32 %v6743, %v7905
    %v8116 = vmul.f32 %v6744, %v7906
    %v8117 = vmul.f32 %v6745, %v7906
    %v8118 = vmul.f32 %v6746, %v7906
    %v8119 = vmul.f32 %v6747, %v7906
    %v8120 = vmul.f32 %v6748, %v7906
    %v8121 = vmul.f32 %v6749, %v7906
    %v8122 = vmul.f32 %v6750, %v7906
    %v8123 = vmul.f32 %v6751, %v7906
    %v8124 = vmul.f32 %v6752, %v7907
    %v8125 = vmul.f32 %v6753, %v7907
    %v8126 = vmul.f32 %v6754, %v7907
    %v8127 = vmul.f32 %v6755, %v7907
    %v8128 = vmul.f32 %v6756, %v7907
    %v8129 = vmul.f32 %v6757, %v7907
    %v8130 = vmul.f32 %v6758, %v7907
    %v8131 = vmul.f32 %v6759, %v7907
    %v8132 = vmul.f32 %v6760, %v7908
    %v8133 = vmul.f32 %v6761, %v7908
    %v8134 = vmul.f32 %v6762, %v7908
    %v8135 = vmul.f32 %v6763, %v7908
    %v8136 = vmul.f32 %v6764, %v7908
    %v8137 = vmul.f32 %v6765, %v7908
    %v8138 = vmul.f32 %v6766, %v7908
    %v8139 = vmul.f32 %v6767, %v7908
    %v8140 = vmul.f32 %v6768, %v7909
    %v8141 = vmul.f32 %v6769, %v7909
    %v8142 = vmul.f32 %v6770, %v7909
    %v8143 = vmul.f32 %v6771, %v7909
    %v8144 = vmul.f32 %v6772, %v7909
    %v8145 = vmul.f32 %v6773, %v7909
    %v8146 = vmul.f32 %v6774, %v7909
    %v8147 = vmul.f32 %v6775, %v7909
    %v8148 = vmul.f32 %v6776, %v7910
    %v8149 = vmul.f32 %v6777, %v7910
    %v8150 = vmul.f32 %v6778, %v7910
    %v8151 = vmul.f32 %v6779, %v7910
    %v8152 = vmul.f32 %v6780, %v7910
    %v8153 = vmul.f32 %v6781, %v7910
    %v8154 = vmul.f32 %v6782, %v7910
    %v8155 = vmul.f32 %v6783, %v7910
    %v8156 = vmul.f32 %v6784, %v7911
    %v8157 = vmul.f32 %v6785, %v7911
    %v8158 = vmul.f32 %v6786, %v7911
    %v8159 = vmul.f32 %v6787, %v7911
    %v8160 = vmul.f32 %v6788, %v7911
    %v8161 = vmul.f32 %v6789, %v7911
    %v8162 = vmul.f32 %v6790, %v7911
    %v8163 = vmul.f32 %v6791, %v7911
    %v8164 = vmul.f32 %v6792, %v7912
    %v8165 = vmul.f32 %v6793, %v7912
    %v8166 = vmul.f32 %v6794, %v7912
    %v8167 = vmul.f32 %v6795, %v7912
    %v8168 = vmul.f32 %v6796, %v7912
    %v8169 = vmul.f32 %v6797, %v7912
    %v8170 = vmul.f32 %v6798, %v7912
    %v8171 = vmul.f32 %v6799, %v7912
    %v8172 = vmul.f32 %v6800, %v7913
    %v8173 = vmul.f32 %v6801, %v7913
    %v8174 = vmul.f32 %v6802, %v7913
    %v8175 = vmul.f32 %v6803, %v7913
    %v8176 = vmul.f32 %v6804, %v7913
    %v8177 = vmul.f32 %v6805, %v7913
    %v8178 = vmul.f32 %v6806, %v7913
    %v8179 = vmul.f32 %v6807, %v7913
    %v8180 = vmul.f32 %v6808, %v7914
    %v8181 = vmul.f32 %v6809, %v7914
    %v8182 = vmul.f32 %v6810, %v7914
    %v8183 = vmul.f32 %v6811, %v7914
    %v8184 = vmul.f32 %v6812, %v7914
    %v8185 = vmul.f32 %v6813, %v7914
    %v8186 = vmul.f32 %v6814, %v7914
    %v8187 = vmul.f32 %v6815, %v7914
    %v8188 = vmul.f32 %v6816, %v7915
    %v8189 = vmul.f32 %v6817, %v7915
    %v8190 = vmul.f32 %v6818, %v7915
    %v8191 = vmul.f32 %v6819, %v7915
    %v8192 = vmul.f32 %v6820, %v7915
    %v8193 = vmul.f32 %v6821, %v7915
    %v8194 = vmul.f32 %v6822, %v7915
    %v8195 = vmul.f32 %v6823, %v7915
    %v8196 = vmul.f32 %v6824, %v7916
    %v8197 = vmul.f32 %v6825, %v7916
    %v8198 = vmul.f32 %v6826, %v7916
    %v8199 = vmul.f32 %v6827, %v7916
    %v8200 = vmul.f32 %v6828, %v7916
    %v8201 = vmul.f32 %v6829, %v7916
    %v8202 = vmul.f32 %v6830, %v7916
    %v8203 = vmul.f32 %v6831, %v7916
    %v8204 = vmul.f32 %v6832, %v7917
    %v8205 = vmul.f32 %v6833, %v7917
    %v8206 = vmul.f32 %v6834, %v7917
    %v8207 = vmul.f32 %v6835, %v7917
    %v8208 = vmul.f32 %v6836, %v7917
    %v8209 = vmul.f32 %v6837, %v7917
    %v8210 = vmul.f32 %v6838, %v7917
    %v8211 = vmul.f32 %v6839, %v7917
    %v8212 = vmul.f32 %v6840, %v7918
    %v8213 = vmul.f32 %v6841, %v7918
    %v8214 = vmul.f32 %v6842, %v7918
    %v8215 = vmul.f32 %v6843, %v7918
    %v8216 = vmul.f32 %v6844, %v7918
    %v8217 = vmul.f32 %v6845, %v7918
    %v8218 = vmul.f32 %v6846, %v7918
    %v8219 = vmul.f32 %v6847, %v7918
    %v8220 = vmul.f32 %v6848, %v7919
    %v8221 = vmul.f32 %v6849, %v7919
    %v8222 = vmul.f32 %v6850, %v7919
    %v8223 = vmul.f32 %v6851, %v7919
    %v8224 = vmul.f32 %v6852, %v7919
    %v8225 = vmul.f32 %v6853, %v7919
    %v8226 = vmul.f32 %v6854, %v7919
    %v8227 = vmul.f32 %v6855, %v7919
    %v8228 = vmul.f32 %v6856, %v7920
    %v8229 = vmul.f32 %v6857, %v7920
    %v8230 = vmul.f32 %v6858, %v7920
    %v8231 = vmul.f32 %v6859, %v7920
    %v8232 = vmul.f32 %v6860, %v7920
    %v8233 = vmul.f32 %v6861, %v7920
    %v8234 = vmul.f32 %v6862, %v7920
    %v8235 = vmul.f32 %v6863, %v7920
    %v8236 = vmul.f32 %v6864, %v7921
    %v8237 = vmul.f32 %v6865, %v7921
    %v8238 = vmul.f32 %v6866, %v7921
    %v8239 = vmul.f32 %v6867, %v7921
    %v8240 = vmul.f32 %v6868, %v7921
    %v8241 = vmul.f32 %v6869, %v7921
    %v8242 = vmul.f32 %v6870, %v7921
    %v8243 = vmul.f32 %v6871, %v7921
    %v8244 = vmul.f32 %v6872, %v7922
    %v8245 = vmul.f32 %v6873, %v7922
    %v8246 = vmul.f32 %v6874, %v7922
    %v8247 = vmul.f32 %v6875, %v7922
    %v8248 = vmul.f32 %v6876, %v7922
    %v8249 = vmul.f32 %v6877, %v7922
    %v8250 = vmul.f32 %v6878, %v7922
    %v8251 = vmul.f32 %v6879, %v7922
    %v8252 = vmul.f32 %v6880, %v7923
    %v8253 = vmul.f32 %v6881, %v7923
    %v8254 = vmul.f32 %v6882, %v7923
    %v8255 = vmul.f32 %v6883, %v7923
    %v8256 = vmul.f32 %v6884, %v7923
    %v8257 = vmul.f32 %v6885, %v7923
    %v8258 = vmul.f32 %v6886, %v7923
    %v8259 = vmul.f32 %v6887, %v7923
    %v8260 = vmul.f32 %v6888, %v7924
    %v8261 = vmul.f32 %v6889, %v7924
    %v8262 = vmul.f32 %v6890, %v7924
    %v8263 = vmul.f32 %v6891, %v7924
    %v8264 = vmul.f32 %v6892, %v7924
    %v8265 = vmul.f32 %v6893, %v7924
    %v8266 = vmul.f32 %v6894, %v7924
    %v8267 = vmul.f32 %v6895, %v7924
    %v8268 = vmul.f32 %v6896, %v7925
    %v8269 = vmul.f32 %v6897, %v7925
    %v8270 = vmul.f32 %v6898, %v7925
    %v8271 = vmul.f32 %v6899, %v7925
    %v8272 = vmul.f32 %v6900, %v7925
    %v8273 = vmul.f32 %v6901, %v7925
    %v8274 = vmul.f32 %v6902, %v7925
    %v8275 = vmul.f32 %v6903, %v7925
    %v8276 = vmul.f32 %v6904, %v7926
    %v8277 = vmul.f32 %v6905, %v7926
    %v8278 = vmul.f32 %v6906, %v7926
    %v8279 = vmul.f32 %v6907, %v7926
    %v8280 = vmul.f32 %v6908, %v7926
    %v8281 = vmul.f32 %v6909, %v7926
    %v8282 = vmul.f32 %v6910, %v7926
    %v8283 = vmul.f32 %v6911, %v7926
    %v8284 = vmul.f32 %v6912, %v7927
    %v8285 = vmul.f32 %v6913, %v7927
    %v8286 = vmul.f32 %v6914, %v7927
    %v8287 = vmul.f32 %v6915, %v7927
    %v8288 = vmul.f32 %v6916, %v7927
    %v8289 = vmul.f32 %v6917, %v7927
    %v8290 = vmul.f32 %v6918, %v7927
    %v8291 = vmul.f32 %v6919, %v7927
    %v8292 = vmul.f32 %v6920, %v7928
    %v8293 = vmul.f32 %v6921, %v7928
    %v8294 = vmul.f32 %v6922, %v7928
    %v8295 = vmul.f32 %v6923, %v7928
    %v8296 = vmul.f32 %v6924, %v7928
    %v8297 = vmul.f32 %v6925, %v7928
    %v8298 = vmul.f32 %v6926, %v7928
    %v8299 = vmul.f32 %v6927, %v7928
    %v8300 = vmul.f32 %v6928, %v7929
    %v8301 = vmul.f32 %v6929, %v7929
    %v8302 = vmul.f32 %v6930, %v7929
    %v8303 = vmul.f32 %v6931, %v7929
    %v8304 = vmul.f32 %v6932, %v7929
    %v8305 = vmul.f32 %v6933, %v7929
    %v8306 = vmul.f32 %v6934, %v7929
    %v8307 = vmul.f32 %v6935, %v7929
    %v8308 = vmul.f32 %v6936, %v7930
    %v8309 = vmul.f32 %v6937, %v7930
    %v8310 = vmul.f32 %v6938, %v7930
    %v8311 = vmul.f32 %v6939, %v7930
    %v8312 = vmul.f32 %v6940, %v7930
    %v8313 = vmul.f32 %v6941, %v7930
    %v8314 = vmul.f32 %v6942, %v7930
    %v8315 = vmul.f32 %v6943, %v7930
    %v8316 = vmul.f32 %v6944, %v7931
    %v8317 = vmul.f32 %v6945, %v7931
    %v8318 = vmul.f32 %v6946, %v7931
    %v8319 = vmul.f32 %v6947, %v7931
    %v8320 = vmul.f32 %v6948, %v7931
    %v8321 = vmul.f32 %v6949, %v7931
    %v8322 = vmul.f32 %v6950, %v7931
    %v8323 = vmul.f32 %v6951, %v7931
    %v8324 = vld [vmem:[#allocation10] sm:$0xff]
    %v8326 = vlaneseq
    %v8327 = vshrl.u32 %v8326, 7
    %v8328 = vsub.s32 0, %v8327
    %v8329 = vrot.slane %v8324, %v8328
    %v8330 = vlaneseq
    %v8331 = vshrl.u32 %v8330, 7
    %v8332 = vsub.s32 1, %v8331
    %v8333 = vrot.slane %v8324, %v8332
    %v8334 = vlaneseq
    %v8335 = vshrl.u32 %v8334, 7
    %v8336 = vsub.s32 2, %v8335
    %v8337 = vrot.slane %v8324, %v8336
    %v8338 = vlaneseq
    %v8339 = vshrl.u32 %v8338, 7
    %v8340 = vsub.s32 3, %v8339
    %v8341 = vrot.slane %v8324, %v8340
    %v8342 = vlaneseq
    %v8343 = vshrl.u32 %v8342, 7
    %v8344 = vsub.s32 4, %v8343
    %v8345 = vrot.slane %v8324, %v8344
    %v8346 = vlaneseq
    %v8347 = vshrl.u32 %v8346, 7
    %v8348 = vsub.s32 5, %v8347
    %v8349 = vrot.slane %v8324, %v8348
    %v8350 = vlaneseq
    %v8351 = vshrl.u32 %v8350, 7
    %v8352 = vsub.s32 6, %v8351
    %v8353 = vrot.slane %v8324, %v8352
    %v8354 = vlaneseq
    %v8355 = vshrl.u32 %v8354, 7
    %v8356 = vsub.s32 7, %v8355
    %v8357 = vrot.slane %v8324, %v8356
    %v8366 = vmul.f32 %v7932, %v8329
    %v8367 = vmul.f32 %v7933, %v8333
    %v8368 = vmul.f32 %v7934, %v8337
    %v8369 = vmul.f32 %v7935, %v8341
    %v8370 = vmul.f32 %v7936, %v8345
    %v8371 = vmul.f32 %v7937, %v8349
    %v8372 = vmul.f32 %v7938, %v8353
    %v8373 = vmul.f32 %v7939, %v8357
    %v8374 = vmul.f32 %v7940, %v8329
    %v8375 = vmul.f32 %v7941, %v8333
    %v8376 = vmul.f32 %v7942, %v8337
    %v8377 = vmul.f32 %v7943, %v8341
    %v8378 = vmul.f32 %v7944, %v8345
    %v8379 = vmul.f32 %v7945, %v8349
    %v8380 = vmul.f32 %v7946, %v8353
    %v8381 = vmul.f32 %v7947, %v8357
    %v8382 = vmul.f32 %v7948, %v8329
    %v8383 = vmul.f32 %v7949, %v8333
    %v8384 = vmul.f32 %v7950, %v8337
    %v8385 = vmul.f32 %v7951, %v8341
    %v8386 = vmul.f32 %v7952, %v8345
    %v8387 = vmul.f32 %v7953, %v8349
    %v8388 = vmul.f32 %v7954, %v8353
    %v8389 = vmul.f32 %v7955, %v8357
    %v8390 = vmul.f32 %v7956, %v8329
    %v8391 = vmul.f32 %v7957, %v8333
    %v8392 = vmul.f32 %v7958, %v8337
    %v8393 = vmul.f32 %v7959, %v8341
    %v8394 = vmul.f32 %v7960, %v8345
    %v8395 = vmul.f32 %v7961, %v8349
    %v8396 = vmul.f32 %v7962, %v8353
    %v8397 = vmul.f32 %v7963, %v8357
    %v8398 = vmul.f32 %v7964, %v8329
    %v8399 = vmul.f32 %v7965, %v8333
    %v8400 = vmul.f32 %v7966, %v8337
    %v8401 = vmul.f32 %v7967, %v8341
    %v8402 = vmul.f32 %v7968, %v8345
    %v8403 = vmul.f32 %v7969, %v8349
    %v8404 = vmul.f32 %v7970, %v8353
    %v8405 = vmul.f32 %v7971, %v8357
    %v8406 = vmul.f32 %v7972, %v8329
    %v8407 = vmul.f32 %v7973, %v8333
    %v8408 = vmul.f32 %v7974, %v8337
    %v8409 = vmul.f32 %v7975, %v8341
    %v8410 = vmul.f32 %v7976, %v8345
    %v8411 = vmul.f32 %v7977, %v8349
    %v8412 = vmul.f32 %v7978, %v8353
    %v8413 = vmul.f32 %v7979, %v8357
    %v8414 = vmul.f32 %v7980, %v8329
    %v8415 = vmul.f32 %v7981, %v8333
    %v8416 = vmul.f32 %v7982, %v8337
    %v8417 = vmul.f32 %v7983, %v8341
    %v8418 = vmul.f32 %v7984, %v8345
    %v8419 = vmul.f32 %v7985, %v8349
    %v8420 = vmul.f32 %v7986, %v8353
    %v8421 = vmul.f32 %v7987, %v8357
    %v8422 = vmul.f32 %v7988, %v8329
    %v8423 = vmul.f32 %v7989, %v8333
    %v8424 = vmul.f32 %v7990, %v8337
    %v8425 = vmul.f32 %v7991, %v8341
    %v8426 = vmul.f32 %v7992, %v8345
    %v8427 = vmul.f32 %v7993, %v8349
    %v8428 = vmul.f32 %v7994, %v8353
    %v8429 = vmul.f32 %v7995, %v8357
    %v8430 = vmul.f32 %v7996, %v8329
    %v8431 = vmul.f32 %v7997, %v8333
    %v8432 = vmul.f32 %v7998, %v8337
    %v8433 = vmul.f32 %v7999, %v8341
    %v8434 = vmul.f32 %v8000, %v8345
    %v8435 = vmul.f32 %v8001, %v8349
    %v8436 = vmul.f32 %v8002, %v8353
    %v8437 = vmul.f32 %v8003, %v8357
    %v8438 = vmul.f32 %v8004, %v8329
    %v8439 = vmul.f32 %v8005, %v8333
    %v8440 = vmul.f32 %v8006, %v8337
    %v8441 = vmul.f32 %v8007, %v8341
    %v8442 = vmul.f32 %v8008, %v8345
    %v8443 = vmul.f32 %v8009, %v8349
    %v8444 = vmul.f32 %v8010, %v8353
    %v8445 = vmul.f32 %v8011, %v8357
    %v8446 = vmul.f32 %v8012, %v8329
    %v8447 = vmul.f32 %v8013, %v8333
    %v8448 = vmul.f32 %v8014, %v8337
    %v8449 = vmul.f32 %v8015, %v8341
    %v8450 = vmul.f32 %v8016, %v8345
    %v8451 = vmul.f32 %v8017, %v8349
    %v8452 = vmul.f32 %v8018, %v8353
    %v8453 = vmul.f32 %v8019, %v8357
    %v8454 = vmul.f32 %v8020, %v8329
    %v8455 = vmul.f32 %v8021, %v8333
    %v8456 = vmul.f32 %v8022, %v8337
    %v8457 = vmul.f32 %v8023, %v8341
    %v8458 = vmul.f32 %v8024, %v8345
    %v8459 = vmul.f32 %v8025, %v8349
    %v8460 = vmul.f32 %v8026, %v8353
    %v8461 = vmul.f32 %v8027, %v8357
    %v8462 = vmul.f32 %v8028, %v8329
    %v8463 = vmul.f32 %v8029, %v8333
    %v8464 = vmul.f32 %v8030, %v8337
    %v8465 = vmul.f32 %v8031, %v8341
    %v8466 = vmul.f32 %v8032, %v8345
    %v8467 = vmul.f32 %v8033, %v8349
    %v8468 = vmul.f32 %v8034, %v8353
    %v8469 = vmul.f32 %v8035, %v8357
    %v8470 = vmul.f32 %v8036, %v8329
    %v8471 = vmul.f32 %v8037, %v8333
    %v8472 = vmul.f32 %v8038, %v8337
    %v8473 = vmul.f32 %v8039, %v8341
    %v8474 = vmul.f32 %v8040, %v8345
    %v8475 = vmul.f32 %v8041, %v8349
    %v8476 = vmul.f32 %v8042, %v8353
    %v8477 = vmul.f32 %v8043, %v8357
    %v8478 = vmul.f32 %v8044, %v8329
    %v8479 = vmul.f32 %v8045, %v8333
    %v8480 = vmul.f32 %v8046, %v8337
    %v8481 = vmul.f32 %v8047, %v8341
    %v8482 = vmul.f32 %v8048, %v8345
    %v8483 = vmul.f32 %v8049, %v8349
    %v8484 = vmul.f32 %v8050, %v8353
    %v8485 = vmul.f32 %v8051, %v8357
    %v8486 = vmul.f32 %v8052, %v8329
    %v8487 = vmul.f32 %v8053, %v8333
    %v8488 = vmul.f32 %v8054, %v8337
    %v8489 = vmul.f32 %v8055, %v8341
    %v8490 = vmul.f32 %v8056, %v8345
    %v8491 = vmul.f32 %v8057, %v8349
    %v8492 = vmul.f32 %v8058, %v8353
    %v8493 = vmul.f32 %v8059, %v8357
    %v8494 = vmul.f32 %v8060, %v8329
    %v8495 = vmul.f32 %v8061, %v8333
    %v8496 = vmul.f32 %v8062, %v8337
    %v8497 = vmul.f32 %v8063, %v8341
    %v8498 = vmul.f32 %v8064, %v8345
    %v8499 = vmul.f32 %v8065, %v8349
    %v8500 = vmul.f32 %v8066, %v8353
    %v8501 = vmul.f32 %v8067, %v8357
    %v8502 = vmul.f32 %v8068, %v8329
    %v8503 = vmul.f32 %v8069, %v8333
    %v8504 = vmul.f32 %v8070, %v8337
    %v8505 = vmul.f32 %v8071, %v8341
    %v8506 = vmul.f32 %v8072, %v8345
    %v8507 = vmul.f32 %v8073, %v8349
    %v8508 = vmul.f32 %v8074, %v8353
    %v8509 = vmul.f32 %v8075, %v8357
    %v8510 = vmul.f32 %v8076, %v8329
    %v8511 = vmul.f32 %v8077, %v8333
    %v8512 = vmul.f32 %v8078, %v8337
    %v8513 = vmul.f32 %v8079, %v8341
    %v8514 = vmul.f32 %v8080, %v8345
    %v8515 = vmul.f32 %v8081, %v8349
    %v8516 = vmul.f32 %v8082, %v8353
    %v8517 = vmul.f32 %v8083, %v8357
    %v8518 = vmul.f32 %v8084, %v8329
    %v8519 = vmul.f32 %v8085, %v8333
    %v8520 = vmul.f32 %v8086, %v8337
    %v8521 = vmul.f32 %v8087, %v8341
    %v8522 = vmul.f32 %v8088, %v8345
    %v8523 = vmul.f32 %v8089, %v8349
    %v8524 = vmul.f32 %v8090, %v8353
    %v8525 = vmul.f32 %v8091, %v8357
    %v8526 = vmul.f32 %v8092, %v8329
    %v8527 = vmul.f32 %v8093, %v8333
    %v8528 = vmul.f32 %v8094, %v8337
    %v8529 = vmul.f32 %v8095, %v8341
    %v8530 = vmul.f32 %v8096, %v8345
    %v8531 = vmul.f32 %v8097, %v8349
    %v8532 = vmul.f32 %v8098, %v8353
    %v8533 = vmul.f32 %v8099, %v8357
    %v8534 = vmul.f32 %v8100, %v8329
    %v8535 = vmul.f32 %v8101, %v8333
    %v8536 = vmul.f32 %v8102, %v8337
    %v8537 = vmul.f32 %v8103, %v8341
    %v8538 = vmul.f32 %v8104, %v8345
    %v8539 = vmul.f32 %v8105, %v8349
    %v8540 = vmul.f32 %v8106, %v8353
    %v8541 = vmul.f32 %v8107, %v8357
    %v8542 = vmul.f32 %v8108, %v8329
    %v8543 = vmul.f32 %v8109, %v8333
    %v8544 = vmul.f32 %v8110, %v8337
    %v8545 = vmul.f32 %v8111, %v8341
    %v8546 = vmul.f32 %v8112, %v8345
    %v8547 = vmul.f32 %v8113, %v8349
    %v8548 = vmul.f32 %v8114, %v8353
    %v8549 = vmul.f32 %v8115, %v8357
    %v8550 = vmul.f32 %v8116, %v8329
    %v8551 = vmul.f32 %v8117, %v8333
    %v8552 = vmul.f32 %v8118, %v8337
    %v8553 = vmul.f32 %v8119, %v8341
    %v8554 = vmul.f32 %v8120, %v8345
    %v8555 = vmul.f32 %v8121, %v8349
    %v8556 = vmul.f32 %v8122, %v8353
    %v8557 = vmul.f32 %v8123, %v8357
    %v8558 = vmul.f32 %v8124, %v8329
    %v8559 = vmul.f32 %v8125, %v8333
    %v8560 = vmul.f32 %v8126, %v8337
    %v8561 = vmul.f32 %v8127, %v8341
    %v8562 = vmul.f32 %v8128, %v8345
    %v8563 = vmul.f32 %v8129, %v8349
    %v8564 = vmul.f32 %v8130, %v8353
    %v8565 = vmul.f32 %v8131, %v8357
    %v8566 = vmul.f32 %v8132, %v8329
    %v8567 = vmul.f32 %v8133, %v8333
    %v8568 = vmul.f32 %v8134, %v8337
    %v8569 = vmul.f32 %v8135, %v8341
    %v8570 = vmul.f32 %v8136, %v8345
    %v8571 = vmul.f32 %v8137, %v8349
    %v8572 = vmul.f32 %v8138, %v8353
    %v8573 = vmul.f32 %v8139, %v8357
    %v8574 = vmul.f32 %v8140, %v8329
    %v8575 = vmul.f32 %v8141, %v8333
    %v8576 = vmul.f32 %v8142, %v8337
    %v8577 = vmul.f32 %v8143, %v8341
    %v8578 = vmul.f32 %v8144, %v8345
    %v8579 = vmul.f32 %v8145, %v8349
    %v8580 = vmul.f32 %v8146, %v8353
    %v8581 = vmul.f32 %v8147, %v8357
    %v8582 = vmul.f32 %v8148, %v8329
    %v8583 = vmul.f32 %v8149, %v8333
    %v8584 = vmul.f32 %v8150, %v8337
    %v8585 = vmul.f32 %v8151, %v8341
    %v8586 = vmul.f32 %v8152, %v8345
    %v8587 = vmul.f32 %v8153, %v8349
    %v8588 = vmul.f32 %v8154, %v8353
    %v8589 = vmul.f32 %v8155, %v8357
    %v8590 = vmul.f32 %v8156, %v8329
    %v8591 = vmul.f32 %v8157, %v8333
    %v8592 = vmul.f32 %v8158, %v8337
    %v8593 = vmul.f32 %v8159, %v8341
    %v8594 = vmul.f32 %v8160, %v8345
    %v8595 = vmul.f32 %v8161, %v8349
    %v8596 = vmul.f32 %v8162, %v8353
    %v8597 = vmul.f32 %v8163, %v8357
    %v8598 = vmul.f32 %v8164, %v8329
    %v8599 = vmul.f32 %v8165, %v8333
    %v8600 = vmul.f32 %v8166, %v8337
    %v8601 = vmul.f32 %v8167, %v8341
    %v8602 = vmul.f32 %v8168, %v8345
    %v8603 = vmul.f32 %v8169, %v8349
    %v8604 = vmul.f32 %v8170, %v8353
    %v8605 = vmul.f32 %v8171, %v8357
    %v8606 = vmul.f32 %v8172, %v8329
    %v8607 = vmul.f32 %v8173, %v8333
    %v8608 = vmul.f32 %v8174, %v8337
    %v8609 = vmul.f32 %v8175, %v8341
    %v8610 = vmul.f32 %v8176, %v8345
    %v8611 = vmul.f32 %v8177, %v8349
    %v8612 = vmul.f32 %v8178, %v8353
    %v8613 = vmul.f32 %v8179, %v8357
    %v8614 = vmul.f32 %v8180, %v8329
    %v8615 = vmul.f32 %v8181, %v8333
    %v8616 = vmul.f32 %v8182, %v8337
    %v8617 = vmul.f32 %v8183, %v8341
    %v8618 = vmul.f32 %v8184, %v8345
    %v8619 = vmul.f32 %v8185, %v8349
    %v8620 = vmul.f32 %v8186, %v8353
    %v8621 = vmul.f32 %v8187, %v8357
    %v8622 = vmul.f32 %v8188, %v8329
    %v8623 = vmul.f32 %v8189, %v8333
    %v8624 = vmul.f32 %v8190, %v8337
    %v8625 = vmul.f32 %v8191, %v8341
    %v8626 = vmul.f32 %v8192, %v8345
    %v8627 = vmul.f32 %v8193, %v8349
    %v8628 = vmul.f32 %v8194, %v8353
    %v8629 = vmul.f32 %v8195, %v8357
    %v8630 = vmul.f32 %v8196, %v8329
    %v8631 = vmul.f32 %v8197, %v8333
    %v8632 = vmul.f32 %v8198, %v8337
    %v8633 = vmul.f32 %v8199, %v8341
    %v8634 = vmul.f32 %v8200, %v8345
    %v8635 = vmul.f32 %v8201, %v8349
    %v8636 = vmul.f32 %v8202, %v8353
    %v8637 = vmul.f32 %v8203, %v8357
    %v8638 = vmul.f32 %v8204, %v8329
    %v8639 = vmul.f32 %v8205, %v8333
    %v8640 = vmul.f32 %v8206, %v8337
    %v8641 = vmul.f32 %v8207, %v8341
    %v8642 = vmul.f32 %v8208, %v8345
    %v8643 = vmul.f32 %v8209, %v8349
    %v8644 = vmul.f32 %v8210, %v8353
    %v8645 = vmul.f32 %v8211, %v8357
    %v8646 = vmul.f32 %v8212, %v8329
    %v8647 = vmul.f32 %v8213, %v8333
    %v8648 = vmul.f32 %v8214, %v8337
    %v8649 = vmul.f32 %v8215, %v8341
    %v8650 = vmul.f32 %v8216, %v8345
    %v8651 = vmul.f32 %v8217, %v8349
    %v8652 = vmul.f32 %v8218, %v8353
    %v8653 = vmul.f32 %v8219, %v8357
    %v8654 = vmul.f32 %v8220, %v8329
    %v8655 = vmul.f32 %v8221, %v8333
    %v8656 = vmul.f32 %v8222, %v8337
    %v8657 = vmul.f32 %v8223, %v8341
    %v8658 = vmul.f32 %v8224, %v8345
    %v8659 = vmul.f32 %v8225, %v8349
    %v8660 = vmul.f32 %v8226, %v8353
    %v8661 = vmul.f32 %v8227, %v8357
    %v8662 = vmul.f32 %v8228, %v8329
    %v8663 = vmul.f32 %v8229, %v8333
    %v8664 = vmul.f32 %v8230, %v8337
    %v8665 = vmul.f32 %v8231, %v8341
    %v8666 = vmul.f32 %v8232, %v8345
    %v8667 = vmul.f32 %v8233, %v8349
    %v8668 = vmul.f32 %v8234, %v8353
    %v8669 = vmul.f32 %v8235, %v8357
    %v8670 = vmul.f32 %v8236, %v8329
    %v8671 = vmul.f32 %v8237, %v8333
    %v8672 = vmul.f32 %v8238, %v8337
    %v8673 = vmul.f32 %v8239, %v8341
    %v8674 = vmul.f32 %v8240, %v8345
    %v8675 = vmul.f32 %v8241, %v8349
    %v8676 = vmul.f32 %v8242, %v8353
    %v8677 = vmul.f32 %v8243, %v8357
    %v8678 = vmul.f32 %v8244, %v8329
    %v8679 = vmul.f32 %v8245, %v8333
    %v8680 = vmul.f32 %v8246, %v8337
    %v8681 = vmul.f32 %v8247, %v8341
    %v8682 = vmul.f32 %v8248, %v8345
    %v8683 = vmul.f32 %v8249, %v8349
    %v8684 = vmul.f32 %v8250, %v8353
    %v8685 = vmul.f32 %v8251, %v8357
    %v8686 = vmul.f32 %v8252, %v8329
    %v8687 = vmul.f32 %v8253, %v8333
    %v8688 = vmul.f32 %v8254, %v8337
    %v8689 = vmul.f32 %v8255, %v8341
    %v8690 = vmul.f32 %v8256, %v8345
    %v8691 = vmul.f32 %v8257, %v8349
    %v8692 = vmul.f32 %v8258, %v8353
    %v8693 = vmul.f32 %v8259, %v8357
    %v8694 = vmul.f32 %v8260, %v8329
    %v8695 = vmul.f32 %v8261, %v8333
    %v8696 = vmul.f32 %v8262, %v8337
    %v8697 = vmul.f32 %v8263, %v8341
    %v8698 = vmul.f32 %v8264, %v8345
    %v8699 = vmul.f32 %v8265, %v8349
    %v8700 = vmul.f32 %v8266, %v8353
    %v8701 = vmul.f32 %v8267, %v8357
    %v8702 = vmul.f32 %v8268, %v8329
    %v8703 = vmul.f32 %v8269, %v8333
    %v8704 = vmul.f32 %v8270, %v8337
    %v8705 = vmul.f32 %v8271, %v8341
    %v8706 = vmul.f32 %v8272, %v8345
    %v8707 = vmul.f32 %v8273, %v8349
    %v8708 = vmul.f32 %v8274, %v8353
    %v8709 = vmul.f32 %v8275, %v8357
    %v8710 = vmul.f32 %v8276, %v8329
    %v8711 = vmul.f32 %v8277, %v8333
    %v8712 = vmul.f32 %v8278, %v8337
    %v8713 = vmul.f32 %v8279, %v8341
    %v8714 = vmul.f32 %v8280, %v8345
    %v8715 = vmul.f32 %v8281, %v8349
    %v8716 = vmul.f32 %v8282, %v8353
    %v8717 = vmul.f32 %v8283, %v8357
    %v8718 = vmul.f32 %v8284, %v8329
    %v8719 = vmul.f32 %v8285, %v8333
    %v8720 = vmul.f32 %v8286, %v8337
    %v8721 = vmul.f32 %v8287, %v8341
    %v8722 = vmul.f32 %v8288, %v8345
    %v8723 = vmul.f32 %v8289, %v8349
    %v8724 = vmul.f32 %v8290, %v8353
    %v8725 = vmul.f32 %v8291, %v8357
    %v8726 = vmul.f32 %v8292, %v8329
    %v8727 = vmul.f32 %v8293, %v8333
    %v8728 = vmul.f32 %v8294, %v8337
    %v8729 = vmul.f32 %v8295, %v8341
    %v8730 = vmul.f32 %v8296, %v8345
    %v8731 = vmul.f32 %v8297, %v8349
    %v8732 = vmul.f32 %v8298, %v8353
    %v8733 = vmul.f32 %v8299, %v8357
    %v8734 = vmul.f32 %v8300, %v8329
    %v8735 = vmul.f32 %v8301, %v8333
    %v8736 = vmul.f32 %v8302, %v8337
    %v8737 = vmul.f32 %v8303, %v8341
    %v8738 = vmul.f32 %v8304, %v8345
    %v8739 = vmul.f32 %v8305, %v8349
    %v8740 = vmul.f32 %v8306, %v8353
    %v8741 = vmul.f32 %v8307, %v8357
    %v8742 = vmul.f32 %v8308, %v8329
    %v8743 = vmul.f32 %v8309, %v8333
    %v8744 = vmul.f32 %v8310, %v8337
    %v8745 = vmul.f32 %v8311, %v8341
    %v8746 = vmul.f32 %v8312, %v8345
    %v8747 = vmul.f32 %v8313, %v8349
    %v8748 = vmul.f32 %v8314, %v8353
    %v8749 = vmul.f32 %v8315, %v8357
    %v8750 = vmul.f32 %v8316, %v8329
    %v8751 = vmul.f32 %v8317, %v8333
    %v8752 = vmul.f32 %v8318, %v8337
    %v8753 = vmul.f32 %v8319, %v8341
    %v8754 = vmul.f32 %v8320, %v8345
    %v8755 = vmul.f32 %v8321, %v8349
    %v8756 = vmul.f32 %v8322, %v8353
    %v8757 = vmul.f32 %v8323, %v8357
    %v8758 = vld [vmem:[#allocation11] sm:$0xff]
    %v8760 = vlaneseq
    %v8761 = vshrl.u32 %v8760, 7
    %v8762 = vsub.s32 0, %v8761
    %v8763 = vrot.slane %v8758, %v8762
    %v8764 = vlaneseq
    %v8765 = vshrl.u32 %v8764, 7
    %v8766 = vsub.s32 1, %v8765
    %v8767 = vrot.slane %v8758, %v8766
    %v8768 = vlaneseq
    %v8769 = vshrl.u32 %v8768, 7
    %v8770 = vsub.s32 2, %v8769
    %v8771 = vrot.slane %v8758, %v8770
    %v8772 = vlaneseq
    %v8773 = vshrl.u32 %v8772, 7
    %v8774 = vsub.s32 3, %v8773
    %v8775 = vrot.slane %v8758, %v8774
    %v8776 = vlaneseq
    %v8777 = vshrl.u32 %v8776, 7
    %v8778 = vsub.s32 4, %v8777
    %v8779 = vrot.slane %v8758, %v8778
    %v8780 = vlaneseq
    %v8781 = vshrl.u32 %v8780, 7
    %v8782 = vsub.s32 5, %v8781
    %v8783 = vrot.slane %v8758, %v8782
    %v8784 = vlaneseq
    %v8785 = vshrl.u32 %v8784, 7
    %v8786 = vsub.s32 6, %v8785
    %v8787 = vrot.slane %v8758, %v8786
    %v8788 = vlaneseq
    %v8789 = vshrl.u32 %v8788, 7
    %v8790 = vsub.s32 7, %v8789
    %v8791 = vrot.slane %v8758, %v8790
    %v8800 = vadd.f32 %v8366, %v8763
    %v8801 = vadd.f32 %v8367, %v8767
    %v8802 = vadd.f32 %v8368, %v8771
    %v8803 = vadd.f32 %v8369, %v8775
    %v8804 = vadd.f32 %v8370, %v8779
    %v8805 = vadd.f32 %v8371, %v8783
    %v8806 = vadd.f32 %v8372, %v8787
    %v8807 = vadd.f32 %v8373, %v8791
    %v8808 = vadd.f32 %v8374, %v8763
    %v8809 = vadd.f32 %v8375, %v8767
    %v8810 = vadd.f32 %v8376, %v8771
    %v8811 = vadd.f32 %v8377, %v8775
    %v8812 = vadd.f32 %v8378, %v8779
    %v8813 = vadd.f32 %v8379, %v8783
    %v8814 = vadd.f32 %v8380, %v8787
    %v8815 = vadd.f32 %v8381, %v8791
    %v8816 = vadd.f32 %v8382, %v8763
    %v8817 = vadd.f32 %v8383, %v8767
    %v8818 = vadd.f32 %v8384, %v8771
    %v8819 = vadd.f32 %v8385, %v8775
    %v8820 = vadd.f32 %v8386, %v8779
    %v8821 = vadd.f32 %v8387, %v8783
    %v8822 = vadd.f32 %v8388, %v8787
    %v8823 = vadd.f32 %v8389, %v8791
    %v8824 = vadd.f32 %v8390, %v8763
    %v8825 = vadd.f32 %v8391, %v8767
    %v8826 = vadd.f32 %v8392, %v8771
    %v8827 = vadd.f32 %v8393, %v8775
    %v8828 = vadd.f32 %v8394, %v8779
    %v8829 = vadd.f32 %v8395, %v8783
    %v8830 = vadd.f32 %v8396, %v8787
    %v8831 = vadd.f32 %v8397, %v8791
    %v8832 = vadd.f32 %v8398, %v8763
    %v8833 = vadd.f32 %v8399, %v8767
    %v8834 = vadd.f32 %v8400, %v8771
    %v8835 = vadd.f32 %v8401, %v8775
    %v8836 = vadd.f32 %v8402, %v8779
    %v8837 = vadd.f32 %v8403, %v8783
    %v8838 = vadd.f32 %v8404, %v8787
    %v8839 = vadd.f32 %v8405, %v8791
    %v8840 = vadd.f32 %v8406, %v8763
    %v8841 = vadd.f32 %v8407, %v8767
    %v8842 = vadd.f32 %v8408, %v8771
    %v8843 = vadd.f32 %v8409, %v8775
    %v8844 = vadd.f32 %v8410, %v8779
    %v8845 = vadd.f32 %v8411, %v8783
    %v8846 = vadd.f32 %v8412, %v8787
    %v8847 = vadd.f32 %v8413, %v8791
    %v8848 = vadd.f32 %v8414, %v8763
    %v8849 = vadd.f32 %v8415, %v8767
    %v8850 = vadd.f32 %v8416, %v8771
    %v8851 = vadd.f32 %v8417, %v8775
    %v8852 = vadd.f32 %v8418, %v8779
    %v8853 = vadd.f32 %v8419, %v8783
    %v8854 = vadd.f32 %v8420, %v8787
    %v8855 = vadd.f32 %v8421, %v8791
    %v8856 = vadd.f32 %v8422, %v8763
    %v8857 = vadd.f32 %v8423, %v8767
    %v8858 = vadd.f32 %v8424, %v8771
    %v8859 = vadd.f32 %v8425, %v8775
    %v8860 = vadd.f32 %v8426, %v8779
    %v8861 = vadd.f32 %v8427, %v8783
    %v8862 = vadd.f32 %v8428, %v8787
    %v8863 = vadd.f32 %v8429, %v8791
    %v8864 = vadd.f32 %v8430, %v8763
    %v8865 = vadd.f32 %v8431, %v8767
    %v8866 = vadd.f32 %v8432, %v8771
    %v8867 = vadd.f32 %v8433, %v8775
    %v8868 = vadd.f32 %v8434, %v8779
    %v8869 = vadd.f32 %v8435, %v8783
    %v8870 = vadd.f32 %v8436, %v8787
    %v8871 = vadd.f32 %v8437, %v8791
    %v8872 = vadd.f32 %v8438, %v8763
    %v8873 = vadd.f32 %v8439, %v8767
    %v8874 = vadd.f32 %v8440, %v8771
    %v8875 = vadd.f32 %v8441, %v8775
    %v8876 = vadd.f32 %v8442, %v8779
    %v8877 = vadd.f32 %v8443, %v8783
    %v8878 = vadd.f32 %v8444, %v8787
    %v8879 = vadd.f32 %v8445, %v8791
    %v8880 = vadd.f32 %v8446, %v8763
    %v8881 = vadd.f32 %v8447, %v8767
    %v8882 = vadd.f32 %v8448, %v8771
    %v8883 = vadd.f32 %v8449, %v8775
    %v8884 = vadd.f32 %v8450, %v8779
    %v8885 = vadd.f32 %v8451, %v8783
    %v8886 = vadd.f32 %v8452, %v8787
    %v8887 = vadd.f32 %v8453, %v8791
    %v8888 = vadd.f32 %v8454, %v8763
    %v8889 = vadd.f32 %v8455, %v8767
    %v8890 = vadd.f32 %v8456, %v8771
    %v8891 = vadd.f32 %v8457, %v8775
    %v8892 = vadd.f32 %v8458, %v8779
    %v8893 = vadd.f32 %v8459, %v8783
    %v8894 = vadd.f32 %v8460, %v8787
    %v8895 = vadd.f32 %v8461, %v8791
    %v8896 = vadd.f32 %v8462, %v8763
    %v8897 = vadd.f32 %v8463, %v8767
    %v8898 = vadd.f32 %v8464, %v8771
    %v8899 = vadd.f32 %v8465, %v8775
    %v8900 = vadd.f32 %v8466, %v8779
    %v8901 = vadd.f32 %v8467, %v8783
    %v8902 = vadd.f32 %v8468, %v8787
    %v8903 = vadd.f32 %v8469, %v8791
    %v8904 = vadd.f32 %v8470, %v8763
    %v8905 = vadd.f32 %v8471, %v8767
    %v8906 = vadd.f32 %v8472, %v8771
    %v8907 = vadd.f32 %v8473, %v8775
    %v8908 = vadd.f32 %v8474, %v8779
    %v8909 = vadd.f32 %v8475, %v8783
    %v8910 = vadd.f32 %v8476, %v8787
    %v8911 = vadd.f32 %v8477, %v8791
    %v8912 = vadd.f32 %v8478, %v8763
    %v8913 = vadd.f32 %v8479, %v8767
    %v8914 = vadd.f32 %v8480, %v8771
    %v8915 = vadd.f32 %v8481, %v8775
    %v8916 = vadd.f32 %v8482, %v8779
    %v8917 = vadd.f32 %v8483, %v8783
    %v8918 = vadd.f32 %v8484, %v8787
    %v8919 = vadd.f32 %v8485, %v8791
    %v8920 = vadd.f32 %v8486, %v8763
    %v8921 = vadd.f32 %v8487, %v8767
    %v8922 = vadd.f32 %v8488, %v8771
    %v8923 = vadd.f32 %v8489, %v8775
    %v8924 = vadd.f32 %v8490, %v8779
    %v8925 = vadd.f32 %v8491, %v8783
    %v8926 = vadd.f32 %v8492, %v8787
    %v8927 = vadd.f32 %v8493, %v8791
    %v8928 = vadd.f32 %v8494, %v8763
    %v8929 = vadd.f32 %v8495, %v8767
    %v8930 = vadd.f32 %v8496, %v8771
    %v8931 = vadd.f32 %v8497, %v8775
    %v8932 = vadd.f32 %v8498, %v8779
    %v8933 = vadd.f32 %v8499, %v8783
    %v8934 = vadd.f32 %v8500, %v8787
    %v8935 = vadd.f32 %v8501, %v8791
    %v8936 = vadd.f32 %v8502, %v8763
    %v8937 = vadd.f32 %v8503, %v8767
    %v8938 = vadd.f32 %v8504, %v8771
    %v8939 = vadd.f32 %v8505, %v8775
    %v8940 = vadd.f32 %v8506, %v8779
    %v8941 = vadd.f32 %v8507, %v8783
    %v8942 = vadd.f32 %v8508, %v8787
    %v8943 = vadd.f32 %v8509, %v8791
    %v8944 = vadd.f32 %v8510, %v8763
    %v8945 = vadd.f32 %v8511, %v8767
    %v8946 = vadd.f32 %v8512, %v8771
    %v8947 = vadd.f32 %v8513, %v8775
    %v8948 = vadd.f32 %v8514, %v8779
    %v8949 = vadd.f32 %v8515, %v8783
    %v8950 = vadd.f32 %v8516, %v8787
    %v8951 = vadd.f32 %v8517, %v8791
    %v8952 = vadd.f32 %v8518, %v8763
    %v8953 = vadd.f32 %v8519, %v8767
    %v8954 = vadd.f32 %v8520, %v8771
    %v8955 = vadd.f32 %v8521, %v8775
    %v8956 = vadd.f32 %v8522, %v8779
    %v8957 = vadd.f32 %v8523, %v8783
    %v8958 = vadd.f32 %v8524, %v8787
    %v8959 = vadd.f32 %v8525, %v8791
    %v8960 = vadd.f32 %v8526, %v8763
    %v8961 = vadd.f32 %v8527, %v8767
    %v8962 = vadd.f32 %v8528, %v8771
    %v8963 = vadd.f32 %v8529, %v8775
    %v8964 = vadd.f32 %v8530, %v8779
    %v8965 = vadd.f32 %v8531, %v8783
    %v8966 = vadd.f32 %v8532, %v8787
    %v8967 = vadd.f32 %v8533, %v8791
    %v8968 = vadd.f32 %v8534, %v8763
    %v8969 = vadd.f32 %v8535, %v8767
    %v8970 = vadd.f32 %v8536, %v8771
    %v8971 = vadd.f32 %v8537, %v8775
    %v8972 = vadd.f32 %v8538, %v8779
    %v8973 = vadd.f32 %v8539, %v8783
    %v8974 = vadd.f32 %v8540, %v8787
    %v8975 = vadd.f32 %v8541, %v8791
    %v8976 = vadd.f32 %v8542, %v8763
    %v8977 = vadd.f32 %v8543, %v8767
    %v8978 = vadd.f32 %v8544, %v8771
    %v8979 = vadd.f32 %v8545, %v8775
    %v8980 = vadd.f32 %v8546, %v8779
    %v8981 = vadd.f32 %v8547, %v8783
    %v8982 = vadd.f32 %v8548, %v8787
    %v8983 = vadd.f32 %v8549, %v8791
    %v8984 = vadd.f32 %v8550, %v8763
    %v8985 = vadd.f32 %v8551, %v8767
    %v8986 = vadd.f32 %v8552, %v8771
    %v8987 = vadd.f32 %v8553, %v8775
    %v8988 = vadd.f32 %v8554, %v8779
    %v8989 = vadd.f32 %v8555, %v8783
    %v8990 = vadd.f32 %v8556, %v8787
    %v8991 = vadd.f32 %v8557, %v8791
    %v8992 = vadd.f32 %v8558, %v8763
    %v8993 = vadd.f32 %v8559, %v8767
    %v8994 = vadd.f32 %v8560, %v8771
    %v8995 = vadd.f32 %v8561, %v8775
    %v8996 = vadd.f32 %v8562, %v8779
    %v8997 = vadd.f32 %v8563, %v8783
    %v8998 = vadd.f32 %v8564, %v8787
    %v8999 = vadd.f32 %v8565, %v8791
    %v9000 = vadd.f32 %v8566, %v8763
    %v9001 = vadd.f32 %v8567, %v8767
    %v9002 = vadd.f32 %v8568, %v8771
    %v9003 = vadd.f32 %v8569, %v8775
    %v9004 = vadd.f32 %v8570, %v8779
    %v9005 = vadd.f32 %v8571, %v8783
    %v9006 = vadd.f32 %v8572, %v8787
    %v9007 = vadd.f32 %v8573, %v8791
    %v9008 = vadd.f32 %v8574, %v8763
    %v9009 = vadd.f32 %v8575, %v8767
    %v9010 = vadd.f32 %v8576, %v8771
    %v9011 = vadd.f32 %v8577, %v8775
    %v9012 = vadd.f32 %v8578, %v8779
    %v9013 = vadd.f32 %v8579, %v8783
    %v9014 = vadd.f32 %v8580, %v8787
    %v9015 = vadd.f32 %v8581, %v8791
    %v9016 = vadd.f32 %v8582, %v8763
    %v9017 = vadd.f32 %v8583, %v8767
    %v9018 = vadd.f32 %v8584, %v8771
    %v9019 = vadd.f32 %v8585, %v8775
    %v9020 = vadd.f32 %v8586, %v8779
    %v9021 = vadd.f32 %v8587, %v8783
    %v9022 = vadd.f32 %v8588, %v8787
    %v9023 = vadd.f32 %v8589, %v8791
    %v9024 = vadd.f32 %v8590, %v8763
    %v9025 = vadd.f32 %v8591, %v8767
    %v9026 = vadd.f32 %v8592, %v8771
    %v9027 = vadd.f32 %v8593, %v8775
    %v9028 = vadd.f32 %v8594, %v8779
    %v9029 = vadd.f32 %v8595, %v8783
    %v9030 = vadd.f32 %v8596, %v8787
    %v9031 = vadd.f32 %v8597, %v8791
    %v9032 = vadd.f32 %v8598, %v8763
    %v9033 = vadd.f32 %v8599, %v8767
    %v9034 = vadd.f32 %v8600, %v8771
    %v9035 = vadd.f32 %v8601, %v8775
    %v9036 = vadd.f32 %v8602, %v8779
    %v9037 = vadd.f32 %v8603, %v8783
    %v9038 = vadd.f32 %v8604, %v8787
    %v9039 = vadd.f32 %v8605, %v8791
    %v9040 = vadd.f32 %v8606, %v8763
    %v9041 = vadd.f32 %v8607, %v8767
    %v9042 = vadd.f32 %v8608, %v8771
    %v9043 = vadd.f32 %v8609, %v8775
    %v9044 = vadd.f32 %v8610, %v8779
    %v9045 = vadd.f32 %v8611, %v8783
    %v9046 = vadd.f32 %v8612, %v8787
    %v9047 = vadd.f32 %v8613, %v8791
    %v9048 = vadd.f32 %v8614, %v8763
    %v9049 = vadd.f32 %v8615, %v8767
    %v9050 = vadd.f32 %v8616, %v8771
    %v9051 = vadd.f32 %v8617, %v8775
    %v9052 = vadd.f32 %v8618, %v8779
    %v9053 = vadd.f32 %v8619, %v8783
    %v9054 = vadd.f32 %v8620, %v8787
    %v9055 = vadd.f32 %v8621, %v8791
    %v9056 = vadd.f32 %v8622, %v8763
    %v9057 = vadd.f32 %v8623, %v8767
    %v9058 = vadd.f32 %v8624, %v8771
    %v9059 = vadd.f32 %v8625, %v8775
    %v9060 = vadd.f32 %v8626, %v8779
    %v9061 = vadd.f32 %v8627, %v8783
    %v9062 = vadd.f32 %v8628, %v8787
    %v9063 = vadd.f32 %v8629, %v8791
    %v9064 = vadd.f32 %v8630, %v8763
    %v9065 = vadd.f32 %v8631, %v8767
    %v9066 = vadd.f32 %v8632, %v8771
    %v9067 = vadd.f32 %v8633, %v8775
    %v9068 = vadd.f32 %v8634, %v8779
    %v9069 = vadd.f32 %v8635, %v8783
    %v9070 = vadd.f32 %v8636, %v8787
    %v9071 = vadd.f32 %v8637, %v8791
    %v9072 = vadd.f32 %v8638, %v8763
    %v9073 = vadd.f32 %v8639, %v8767
    %v9074 = vadd.f32 %v8640, %v8771
    %v9075 = vadd.f32 %v8641, %v8775
    %v9076 = vadd.f32 %v8642, %v8779
    %v9077 = vadd.f32 %v8643, %v8783
    %v9078 = vadd.f32 %v8644, %v8787
    %v9079 = vadd.f32 %v8645, %v8791
    %v9080 = vadd.f32 %v8646, %v8763
    %v9081 = vadd.f32 %v8647, %v8767
    %v9082 = vadd.f32 %v8648, %v8771
    %v9083 = vadd.f32 %v8649, %v8775
    %v9084 = vadd.f32 %v8650, %v8779
    %v9085 = vadd.f32 %v8651, %v8783
    %v9086 = vadd.f32 %v8652, %v8787
    %v9087 = vadd.f32 %v8653, %v8791
    %v9088 = vadd.f32 %v8654, %v8763
    %v9089 = vadd.f32 %v8655, %v8767
    %v9090 = vadd.f32 %v8656, %v8771
    %v9091 = vadd.f32 %v8657, %v8775
    %v9092 = vadd.f32 %v8658, %v8779
    %v9093 = vadd.f32 %v8659, %v8783
    %v9094 = vadd.f32 %v8660, %v8787
    %v9095 = vadd.f32 %v8661, %v8791
    %v9096 = vadd.f32 %v8662, %v8763
    %v9097 = vadd.f32 %v8663, %v8767
    %v9098 = vadd.f32 %v8664, %v8771
    %v9099 = vadd.f32 %v8665, %v8775
    %v9100 = vadd.f32 %v8666, %v8779
    %v9101 = vadd.f32 %v8667, %v8783
    %v9102 = vadd.f32 %v8668, %v8787
    %v9103 = vadd.f32 %v8669, %v8791
    %v9104 = vadd.f32 %v8670, %v8763
    %v9105 = vadd.f32 %v8671, %v8767
    %v9106 = vadd.f32 %v8672, %v8771
    %v9107 = vadd.f32 %v8673, %v8775
    %v9108 = vadd.f32 %v8674, %v8779
    %v9109 = vadd.f32 %v8675, %v8783
    %v9110 = vadd.f32 %v8676, %v8787
    %v9111 = vadd.f32 %v8677, %v8791
    %v9112 = vadd.f32 %v8678, %v8763
    %v9113 = vadd.f32 %v8679, %v8767
    %v9114 = vadd.f32 %v8680, %v8771
    %v9115 = vadd.f32 %v8681, %v8775
    %v9116 = vadd.f32 %v8682, %v8779
    %v9117 = vadd.f32 %v8683, %v8783
    %v9118 = vadd.f32 %v8684, %v8787
    %v9119 = vadd.f32 %v8685, %v8791
    %v9120 = vadd.f32 %v8686, %v8763
    %v9121 = vadd.f32 %v8687, %v8767
    %v9122 = vadd.f32 %v8688, %v8771
    %v9123 = vadd.f32 %v8689, %v8775
    %v9124 = vadd.f32 %v8690, %v8779
    %v9125 = vadd.f32 %v8691, %v8783
    %v9126 = vadd.f32 %v8692, %v8787
    %v9127 = vadd.f32 %v8693, %v8791
    %v9128 = vadd.f32 %v8694, %v8763
    %v9129 = vadd.f32 %v8695, %v8767
    %v9130 = vadd.f32 %v8696, %v8771
    %v9131 = vadd.f32 %v8697, %v8775
    %v9132 = vadd.f32 %v8698, %v8779
    %v9133 = vadd.f32 %v8699, %v8783
    %v9134 = vadd.f32 %v8700, %v8787
    %v9135 = vadd.f32 %v8701, %v8791
    %v9136 = vadd.f32 %v8702, %v8763
    %v9137 = vadd.f32 %v8703, %v8767
    %v9138 = vadd.f32 %v8704, %v8771
    %v9139 = vadd.f32 %v8705, %v8775
    %v9140 = vadd.f32 %v8706, %v8779
    %v9141 = vadd.f32 %v8707, %v8783
    %v9142 = vadd.f32 %v8708, %v8787
    %v9143 = vadd.f32 %v8709, %v8791
    %v9144 = vadd.f32 %v8710, %v8763
    %v9145 = vadd.f32 %v8711, %v8767
    %v9146 = vadd.f32 %v8712, %v8771
    %v9147 = vadd.f32 %v8713, %v8775
    %v9148 = vadd.f32 %v8714, %v8779
    %v9149 = vadd.f32 %v8715, %v8783
    %v9150 = vadd.f32 %v8716, %v8787
    %v9151 = vadd.f32 %v8717, %v8791
    %v9152 = vadd.f32 %v8718, %v8763
    %v9153 = vadd.f32 %v8719, %v8767
    %v9154 = vadd.f32 %v8720, %v8771
    %v9155 = vadd.f32 %v8721, %v8775
    %v9156 = vadd.f32 %v8722, %v8779
    %v9157 = vadd.f32 %v8723, %v8783
    %v9158 = vadd.f32 %v8724, %v8787
    %v9159 = vadd.f32 %v8725, %v8791
    %v9160 = vadd.f32 %v8726, %v8763
    %v9161 = vadd.f32 %v8727, %v8767
    %v9162 = vadd.f32 %v8728, %v8771
    %v9163 = vadd.f32 %v8729, %v8775
    %v9164 = vadd.f32 %v8730, %v8779
    %v9165 = vadd.f32 %v8731, %v8783
    %v9166 = vadd.f32 %v8732, %v8787
    %v9167 = vadd.f32 %v8733, %v8791
    %v9168 = vadd.f32 %v8734, %v8763
    %v9169 = vadd.f32 %v8735, %v8767
    %v9170 = vadd.f32 %v8736, %v8771
    %v9171 = vadd.f32 %v8737, %v8775
    %v9172 = vadd.f32 %v8738, %v8779
    %v9173 = vadd.f32 %v8739, %v8783
    %v9174 = vadd.f32 %v8740, %v8787
    %v9175 = vadd.f32 %v8741, %v8791
    %v9176 = vadd.f32 %v8742, %v8763
    %v9177 = vadd.f32 %v8743, %v8767
    %v9178 = vadd.f32 %v8744, %v8771
    %v9179 = vadd.f32 %v8745, %v8775
    %v9180 = vadd.f32 %v8746, %v8779
    %v9181 = vadd.f32 %v8747, %v8783
    %v9182 = vadd.f32 %v8748, %v8787
    %v9183 = vadd.f32 %v8749, %v8791
    %v9184 = vadd.f32 %v8750, %v8763
    %v9185 = vadd.f32 %v8751, %v8767
    %v9186 = vadd.f32 %v8752, %v8771
    %v9187 = vadd.f32 %v8753, %v8775
    %v9188 = vadd.f32 %v8754, %v8779
    %v9189 = vadd.f32 %v8755, %v8783
    %v9190 = vadd.f32 %v8756, %v8787
    %v9191 = vadd.f32 %v8757, %v8791
    %9192 = vst [vmem:[#allocation13] sm:$0xff] %v8800
    %9193 = vst [vmem:[#allocation13 + $0x8] sm:$0xff] %v8801
    %9194 = vst [vmem:[#allocation13 + $0x10] sm:$0xff] %v8802
    %9195 = vst [vmem:[#allocation13 + $0x18] sm:$0xff] %v8803
    %9196 = vst [vmem:[#allocation13 + $0x20] sm:$0xff] %v8804
    %9197 = vst [vmem:[#allocation13 + $0x28] sm:$0xff] %v8805
    %9198 = vst [vmem:[#allocation13 + $0x30] sm:$0xff] %v8806
    %9199 = vst [vmem:[#allocation13 + $0x38] sm:$0xff] %v8807
    %9200 = vst [vmem:[#allocation13 + $0x40] sm:$0xff] %v8808
    %9201 = vst [vmem:[#allocation13 + $0x48] sm:$0xff] %v8809
    %9202 = vst [vmem:[#allocation13 + $0x50] sm:$0xff] %v8810
    %9203 = vst [vmem:[#allocation13 + $0x58] sm:$0xff] %v8811
    %9204 = vst [vmem:[#allocation13 + $0x60] sm:$0xff] %v8812
    %9205 = vst [vmem:[#allocation13 + $0x68] sm:$0xff] %v8813
    %9206 = vst [vmem:[#allocation13 + $0x70] sm:$0xff] %v8814
    %9207 = vst [vmem:[#allocation13 + $0x78] sm:$0xff] %v8815
    %9208 = vst [vmem:[#allocation13 + $0x80] sm:$0xff] %v8816
    %9209 = vst [vmem:[#allocation13 + $0x88] sm:$0xff] %v8817
    %9210 = vst [vmem:[#allocation13 + $0x90] sm:$0xff] %v8818
    %9211 = vst [vmem:[#allocation13 + $0x98] sm:$0xff] %v8819
    %9212 = vst [vmem:[#allocation13 + $0xa0] sm:$0xff] %v8820
    %9213 = vst [vmem:[#allocation13 + $0xa8] sm:$0xff] %v8821
    %9214 = vst [vmem:[#allocation13 + $0xb0] sm:$0xff] %v8822
    %9215 = vst [vmem:[#allocation13 + $0xb8] sm:$0xff] %v8823
    %9216 = vst [vmem:[#allocation13 + $0xc0] sm:$0xff] %v8824
    %9217 = vst [vmem:[#allocation13 + $0xc8] sm:$0xff] %v8825
    %9218 = vst [vmem:[#allocation13 + $0xd0] sm:$0xff] %v8826
    %9219 = vst [vmem:[#allocation13 + $0xd8] sm:$0xff] %v8827
    %9220 = vst [vmem:[#allocation13 + $0xe0] sm:$0xff] %v8828
    %9221 = vst [vmem:[#allocation13 + $0xe8] sm:$0xff] %v8829
    %9222 = vst [vmem:[#allocation13 + $0xf0] sm:$0xff] %v8830
    %9223 = vst [vmem:[#allocation13 + $0xf8] sm:$0xff] %v8831
    %9224 = vst [vmem:[#allocation13 + $0x100] sm:$0xff] %v8832
    %9225 = vst [vmem:[#allocation13 + $0x108] sm:$0xff] %v8833
    %9226 = vst [vmem:[#allocation13 + $0x110] sm:$0xff] %v8834
    %9227 = vst [vmem:[#allocation13 + $0x118] sm:$0xff] %v8835
    %9228 = vst [vmem:[#allocation13 + $0x120] sm:$0xff] %v8836
    %9229 = vst [vmem:[#allocation13 + $0x128] sm:$0xff] %v8837
    %9230 = vst [vmem:[#allocation13 + $0x130] sm:$0xff] %v8838
    %9231 = vst [vmem:[#allocation13 + $0x138] sm:$0xff] %v8839
    %9232 = vst [vmem:[#allocation13 + $0x140] sm:$0xff] %v8840
    %9233 = vst [vmem:[#allocation13 + $0x148] sm:$0xff] %v8841
    %9234 = vst [vmem:[#allocation13 + $0x150] sm:$0xff] %v8842
    %9235 = vst [vmem:[#allocation13 + $0x158] sm:$0xff] %v8843
    %9236 = vst [vmem:[#allocation13 + $0x160] sm:$0xff] %v8844
    %9237 = vst [vmem:[#allocation13 + $0x168] sm:$0xff] %v8845
    %9238 = vst [vmem:[#allocation13 + $0x170] sm:$0xff] %v8846
    %9239 = vst [vmem:[#allocation13 + $0x178] sm:$0xff] %v8847
    %9240 = vst [vmem:[#allocation13 + $0x180] sm:$0xff] %v8848
    %9241 = vst [vmem:[#allocation13 + $0x188] sm:$0xff] %v8849
    %9242 = vst [vmem:[#allocation13 + $0x190] sm:$0xff] %v8850
    %9243 = vst [vmem:[#allocation13 + $0x198] sm:$0xff] %v8851
    %9244 = vst [vmem:[#allocation13 + $0x1a0] sm:$0xff] %v8852
    %9245 = vst [vmem:[#allocation13 + $0x1a8] sm:$0xff] %v8853
    %9246 = vst [vmem:[#allocation13 + $0x1b0] sm:$0xff] %v8854
    %9247 = vst [vmem:[#allocation13 + $0x1b8] sm:$0xff] %v8855
    %9248 = vst [vmem:[#allocation13 + $0x1c0] sm:$0xff] %v8856
    %9249 = vst [vmem:[#allocation13 + $0x1c8] sm:$0xff] %v8857
    %9250 = vst [vmem:[#allocation13 + $0x1d0] sm:$0xff] %v8858
    %9251 = vst [vmem:[#allocation13 + $0x1d8] sm:$0xff] %v8859
    %9252 = vst [vmem:[#allocation13 + $0x1e0] sm:$0xff] %v8860
    %9253 = vst [vmem:[#allocation13 + $0x1e8] sm:$0xff] %v8861
    %9254 = vst [vmem:[#allocation13 + $0x1f0] sm:$0xff] %v8862
    %9255 = vst [vmem:[#allocation13 + $0x1f8] sm:$0xff] %v8863
    %9256 = vst [vmem:[#allocation13 + $0x200] sm:$0xff] %v8864
    %9257 = vst [vmem:[#allocation13 + $0x208] sm:$0xff] %v8865
    %9258 = vst [vmem:[#allocation13 + $0x210] sm:$0xff] %v8866
    %9259 = vst [vmem:[#allocation13 + $0x218] sm:$0xff] %v8867
    %9260 = vst [vmem:[#allocation13 + $0x220] sm:$0xff] %v8868
    %9261 = vst [vmem:[#allocation13 + $0x228] sm:$0xff] %v8869
    %9262 = vst [vmem:[#allocation13 + $0x230] sm:$0xff] %v8870
    %9263 = vst [vmem:[#allocation13 + $0x238] sm:$0xff] %v8871
    %9264 = vst [vmem:[#allocation13 + $0x240] sm:$0xff] %v8872
    %9265 = vst [vmem:[#allocation13 + $0x248] sm:$0xff] %v8873
    %9266 = vst [vmem:[#allocation13 + $0x250] sm:$0xff] %v8874
    %9267 = vst [vmem:[#allocation13 + $0x258] sm:$0xff] %v8875
    %9268 = vst [vmem:[#allocation13 + $0x260] sm:$0xff] %v8876
    %9269 = vst [vmem:[#allocation13 + $0x268] sm:$0xff] %v8877
    %9270 = vst [vmem:[#allocation13 + $0x270] sm:$0xff] %v8878
    %9271 = vst [vmem:[#allocation13 + $0x278] sm:$0xff] %v8879
    %9272 = vst [vmem:[#allocation13 + $0x280] sm:$0xff] %v8880
    %9273 = vst [vmem:[#allocation13 + $0x288] sm:$0xff] %v8881
    %9274 = vst [vmem:[#allocation13 + $0x290] sm:$0xff] %v8882
    %9275 = vst [vmem:[#allocation13 + $0x298] sm:$0xff] %v8883
    %9276 = vst [vmem:[#allocation13 + $0x2a0] sm:$0xff] %v8884
    %9277 = vst [vmem:[#allocation13 + $0x2a8] sm:$0xff] %v8885
    %9278 = vst [vmem:[#allocation13 + $0x2b0] sm:$0xff] %v8886
    %9279 = vst [vmem:[#allocation13 + $0x2b8] sm:$0xff] %v8887
    %9280 = vst [vmem:[#allocation13 + $0x2c0] sm:$0xff] %v8888
    %9281 = vst [vmem:[#allocation13 + $0x2c8] sm:$0xff] %v8889
    %9282 = vst [vmem:[#allocation13 + $0x2d0] sm:$0xff] %v8890
    %9283 = vst [vmem:[#allocation13 + $0x2d8] sm:$0xff] %v8891
    %9284 = vst [vmem:[#allocation13 + $0x2e0] sm:$0xff] %v8892
    %9285 = vst [vmem:[#allocation13 + $0x2e8] sm:$0xff] %v8893
    %9286 = vst [vmem:[#allocation13 + $0x2f0] sm:$0xff] %v8894
    %9287 = vst [vmem:[#allocation13 + $0x2f8] sm:$0xff] %v8895
    %9288 = vst [vmem:[#allocation13 + $0x300] sm:$0xff] %v8896
    %9289 = vst [vmem:[#allocation13 + $0x308] sm:$0xff] %v8897
    %9290 = vst [vmem:[#allocation13 + $0x310] sm:$0xff] %v8898
    %9291 = vst [vmem:[#allocation13 + $0x318] sm:$0xff] %v8899
    %9292 = vst [vmem:[#allocation13 + $0x320] sm:$0xff] %v8900
    %9293 = vst [vmem:[#allocation13 + $0x328] sm:$0xff] %v8901
    %9294 = vst [vmem:[#allocation13 + $0x330] sm:$0xff] %v8902
    %9295 = vst [vmem:[#allocation13 + $0x338] sm:$0xff] %v8903
    %9296 = vst [vmem:[#allocation13 + $0x340] sm:$0xff] %v8904
    %9297 = vst [vmem:[#allocation13 + $0x348] sm:$0xff] %v8905
    %9298 = vst [vmem:[#allocation13 + $0x350] sm:$0xff] %v8906
    %9299 = vst [vmem:[#allocation13 + $0x358] sm:$0xff] %v8907
    %9300 = vst [vmem:[#allocation13 + $0x360] sm:$0xff] %v8908
    %9301 = vst [vmem:[#allocation13 + $0x368] sm:$0xff] %v8909
    %9302 = vst [vmem:[#allocation13 + $0x370] sm:$0xff] %v8910
    %9303 = vst [vmem:[#allocation13 + $0x378] sm:$0xff] %v8911
    %9304 = vst [vmem:[#allocation13 + $0x380] sm:$0xff] %v8912
    %9305 = vst [vmem:[#allocation13 + $0x388] sm:$0xff] %v8913
    %9306 = vst [vmem:[#allocation13 + $0x390] sm:$0xff] %v8914
    %9307 = vst [vmem:[#allocation13 + $0x398] sm:$0xff] %v8915
    %9308 = vst [vmem:[#allocation13 + $0x3a0] sm:$0xff] %v8916
    %9309 = vst [vmem:[#allocation13 + $0x3a8] sm:$0xff] %v8917
    %9310 = vst [vmem:[#allocation13 + $0x3b0] sm:$0xff] %v8918
    %9311 = vst [vmem:[#allocation13 + $0x3b8] sm:$0xff] %v8919
    %9312 = vst [vmem:[#allocation13 + $0x3c0] sm:$0xff] %v8920
    %9313 = vst [vmem:[#allocation13 + $0x3c8] sm:$0xff] %v8921
    %9314 = vst [vmem:[#allocation13 + $0x3d0] sm:$0xff] %v8922
    %9315 = vst [vmem:[#allocation13 + $0x3d8] sm:$0xff] %v8923
    %9316 = vst [vmem:[#allocation13 + $0x3e0] sm:$0xff] %v8924
    %9317 = vst [vmem:[#allocation13 + $0x3e8] sm:$0xff] %v8925
    %9318 = vst [vmem:[#allocation13 + $0x3f0] sm:$0xff] %v8926
    %9319 = vst [vmem:[#allocation13 + $0x3f8] sm:$0xff] %v8927
    %9320 = vst [vmem:[#allocation13 + $0x400] sm:$0xff] %v8928
    %9321 = vst [vmem:[#allocation13 + $0x408] sm:$0xff] %v8929
    %9322 = vst [vmem:[#allocation13 + $0x410] sm:$0xff] %v8930
    %9323 = vst [vmem:[#allocation13 + $0x418] sm:$0xff] %v8931
    %9324 = vst [vmem:[#allocation13 + $0x420] sm:$0xff] %v8932
    %9325 = vst [vmem:[#allocation13 + $0x428] sm:$0xff] %v8933
    %9326 = vst [vmem:[#allocation13 + $0x430] sm:$0xff] %v8934
    %9327 = vst [vmem:[#allocation13 + $0x438] sm:$0xff] %v8935
    %9328 = vst [vmem:[#allocation13 + $0x440] sm:$0xff] %v8936
    %9329 = vst [vmem:[#allocation13 + $0x448] sm:$0xff] %v8937
    %9330 = vst [vmem:[#allocation13 + $0x450] sm:$0xff] %v8938
    %9331 = vst [vmem:[#allocation13 + $0x458] sm:$0xff] %v8939
    %9332 = vst [vmem:[#allocation13 + $0x460] sm:$0xff] %v8940
    %9333 = vst [vmem:[#allocation13 + $0x468] sm:$0xff] %v8941
    %9334 = vst [vmem:[#allocation13 + $0x470] sm:$0xff] %v8942
    %9335 = vst [vmem:[#allocation13 + $0x478] sm:$0xff] %v8943
    %9336 = vst [vmem:[#allocation13 + $0x480] sm:$0xff] %v8944
    %9337 = vst [vmem:[#allocation13 + $0x488] sm:$0xff] %v8945
    %9338 = vst [vmem:[#allocation13 + $0x490] sm:$0xff] %v8946
    %9339 = vst [vmem:[#allocation13 + $0x498] sm:$0xff] %v8947
    %9340 = vst [vmem:[#allocation13 + $0x4a0] sm:$0xff] %v8948
    %9341 = vst [vmem:[#allocation13 + $0x4a8] sm:$0xff] %v8949
    %9342 = vst [vmem:[#allocation13 + $0x4b0] sm:$0xff] %v8950
    %9343 = vst [vmem:[#allocation13 + $0x4b8] sm:$0xff] %v8951
    %9344 = vst [vmem:[#allocation13 + $0x4c0] sm:$0xff] %v8952
    %9345 = vst [vmem:[#allocation13 + $0x4c8] sm:$0xff] %v8953
    %9346 = vst [vmem:[#allocation13 + $0x4d0] sm:$0xff] %v8954
    %9347 = vst [vmem:[#allocation13 + $0x4d8] sm:$0xff] %v8955
    %9348 = vst [vmem:[#allocation13 + $0x4e0] sm:$0xff] %v8956
    %9349 = vst [vmem:[#allocation13 + $0x4e8] sm:$0xff] %v8957
    %9350 = vst [vmem:[#allocation13 + $0x4f0] sm:$0xff] %v8958
    %9351 = vst [vmem:[#allocation13 + $0x4f8] sm:$0xff] %v8959
    %9352 = vst [vmem:[#allocation13 + $0x500] sm:$0xff] %v8960
    %9353 = vst [vmem:[#allocation13 + $0x508] sm:$0xff] %v8961
    %9354 = vst [vmem:[#allocation13 + $0x510] sm:$0xff] %v8962
    %9355 = vst [vmem:[#allocation13 + $0x518] sm:$0xff] %v8963
    %9356 = vst [vmem:[#allocation13 + $0x520] sm:$0xff] %v8964
    %9357 = vst [vmem:[#allocation13 + $0x528] sm:$0xff] %v8965
    %9358 = vst [vmem:[#allocation13 + $0x530] sm:$0xff] %v8966
    %9359 = vst [vmem:[#allocation13 + $0x538] sm:$0xff] %v8967
    %9360 = vst [vmem:[#allocation13 + $0x540] sm:$0xff] %v8968
    %9361 = vst [vmem:[#allocation13 + $0x548] sm:$0xff] %v8969
    %9362 = vst [vmem:[#allocation13 + $0x550] sm:$0xff] %v8970
    %9363 = vst [vmem:[#allocation13 + $0x558] sm:$0xff] %v8971
    %9364 = vst [vmem:[#allocation13 + $0x560] sm:$0xff] %v8972
    %9365 = vst [vmem:[#allocation13 + $0x568] sm:$0xff] %v8973
    %9366 = vst [vmem:[#allocation13 + $0x570] sm:$0xff] %v8974
    %9367 = vst [vmem:[#allocation13 + $0x578] sm:$0xff] %v8975
    %9368 = vst [vmem:[#allocation13 + $0x580] sm:$0xff] %v8976
    %9369 = vst [vmem:[#allocation13 + $0x588] sm:$0xff] %v8977
    %9370 = vst [vmem:[#allocation13 + $0x590] sm:$0xff] %v8978
    %9371 = vst [vmem:[#allocation13 + $0x598] sm:$0xff] %v8979
    %9372 = vst [vmem:[#allocation13 + $0x5a0] sm:$0xff] %v8980
    %9373 = vst [vmem:[#allocation13 + $0x5a8] sm:$0xff] %v8981
    %9374 = vst [vmem:[#allocation13 + $0x5b0] sm:$0xff] %v8982
    %9375 = vst [vmem:[#allocation13 + $0x5b8] sm:$0xff] %v8983
    %9376 = vst [vmem:[#allocation13 + $0x5c0] sm:$0xff] %v8984
    %9377 = vst [vmem:[#allocation13 + $0x5c8] sm:$0xff] %v8985
    %9378 = vst [vmem:[#allocation13 + $0x5d0] sm:$0xff] %v8986
    %9379 = vst [vmem:[#allocation13 + $0x5d8] sm:$0xff] %v8987
    %9380 = vst [vmem:[#allocation13 + $0x5e0] sm:$0xff] %v8988
    %9381 = vst [vmem:[#allocation13 + $0x5e8] sm:$0xff] %v8989
    %9382 = vst [vmem:[#allocation13 + $0x5f0] sm:$0xff] %v8990
    %9383 = vst [vmem:[#allocation13 + $0x5f8] sm:$0xff] %v8991
    %9384 = vst [vmem:[#allocation13 + $0x600] sm:$0xff] %v8992
    %9385 = vst [vmem:[#allocation13 + $0x608] sm:$0xff] %v8993
    %9386 = vst [vmem:[#allocation13 + $0x610] sm:$0xff] %v8994
    %9387 = vst [vmem:[#allocation13 + $0x618] sm:$0xff] %v8995
    %9388 = vst [vmem:[#allocation13 + $0x620] sm:$0xff] %v8996
    %9389 = vst [vmem:[#allocation13 + $0x628] sm:$0xff] %v8997
    %9390 = vst [vmem:[#allocation13 + $0x630] sm:$0xff] %v8998
    %9391 = vst [vmem:[#allocation13 + $0x638] sm:$0xff] %v8999
    %9392 = vst [vmem:[#allocation13 + $0x640] sm:$0xff] %v9000
    %9393 = vst [vmem:[#allocation13 + $0x648] sm:$0xff] %v9001
    %9394 = vst [vmem:[#allocation13 + $0x650] sm:$0xff] %v9002
    %9395 = vst [vmem:[#allocation13 + $0x658] sm:$0xff] %v9003
    %9396 = vst [vmem:[#allocation13 + $0x660] sm:$0xff] %v9004
    %9397 = vst [vmem:[#allocation13 + $0x668] sm:$0xff] %v9005
    %9398 = vst [vmem:[#allocation13 + $0x670] sm:$0xff] %v9006
    %9399 = vst [vmem:[#allocation13 + $0x678] sm:$0xff] %v9007
    %9400 = vst [vmem:[#allocation13 + $0x680] sm:$0xff] %v9008
    %9401 = vst [vmem:[#allocation13 + $0x688] sm:$0xff] %v9009
    %9402 = vst [vmem:[#allocation13 + $0x690] sm:$0xff] %v9010
    %9403 = vst [vmem:[#allocation13 + $0x698] sm:$0xff] %v9011
    %9404 = vst [vmem:[#allocation13 + $0x6a0] sm:$0xff] %v9012
    %9405 = vst [vmem:[#allocation13 + $0x6a8] sm:$0xff] %v9013
    %9406 = vst [vmem:[#allocation13 + $0x6b0] sm:$0xff] %v9014
    %9407 = vst [vmem:[#allocation13 + $0x6b8] sm:$0xff] %v9015
    %9408 = vst [vmem:[#allocation13 + $0x6c0] sm:$0xff] %v9016
    %9409 = vst [vmem:[#allocation13 + $0x6c8] sm:$0xff] %v9017
    %9410 = vst [vmem:[#allocation13 + $0x6d0] sm:$0xff] %v9018
    %9411 = vst [vmem:[#allocation13 + $0x6d8] sm:$0xff] %v9019
    %9412 = vst [vmem:[#allocation13 + $0x6e0] sm:$0xff] %v9020
    %9413 = vst [vmem:[#allocation13 + $0x6e8] sm:$0xff] %v9021
    %9414 = vst [vmem:[#allocation13 + $0x6f0] sm:$0xff] %v9022
    %9415 = vst [vmem:[#allocation13 + $0x6f8] sm:$0xff] %v9023
    %9416 = vst [vmem:[#allocation13 + $0x700] sm:$0xff] %v9024
    %9417 = vst [vmem:[#allocation13 + $0x708] sm:$0xff] %v9025
    %9418 = vst [vmem:[#allocation13 + $0x710] sm:$0xff] %v9026
    %9419 = vst [vmem:[#allocation13 + $0x718] sm:$0xff] %v9027
    %9420 = vst [vmem:[#allocation13 + $0x720] sm:$0xff] %v9028
    %9421 = vst [vmem:[#allocation13 + $0x728] sm:$0xff] %v9029
    %9422 = vst [vmem:[#allocation13 + $0x730] sm:$0xff] %v9030
    %9423 = vst [vmem:[#allocation13 + $0x738] sm:$0xff] %v9031
    %9424 = vst [vmem:[#allocation13 + $0x740] sm:$0xff] %v9032
    %9425 = vst [vmem:[#allocation13 + $0x748] sm:$0xff] %v9033
    %9426 = vst [vmem:[#allocation13 + $0x750] sm:$0xff] %v9034
    %9427 = vst [vmem:[#allocation13 + $0x758] sm:$0xff] %v9035
    %9428 = vst [vmem:[#allocation13 + $0x760] sm:$0xff] %v9036
    %9429 = vst [vmem:[#allocation13 + $0x768] sm:$0xff] %v9037
    %9430 = vst [vmem:[#allocation13 + $0x770] sm:$0xff] %v9038
    %9431 = vst [vmem:[#allocation13 + $0x778] sm:$0xff] %v9039
    %9432 = vst [vmem:[#allocation13 + $0x780] sm:$0xff] %v9040
    %9433 = vst [vmem:[#allocation13 + $0x788] sm:$0xff] %v9041
    %9434 = vst [vmem:[#allocation13 + $0x790] sm:$0xff] %v9042
    %9435 = vst [vmem:[#allocation13 + $0x798] sm:$0xff] %v9043
    %9436 = vst [vmem:[#allocation13 + $0x7a0] sm:$0xff] %v9044
    %9437 = vst [vmem:[#allocation13 + $0x7a8] sm:$0xff] %v9045
    %9438 = vst [vmem:[#allocation13 + $0x7b0] sm:$0xff] %v9046
    %9439 = vst [vmem:[#allocation13 + $0x7b8] sm:$0xff] %v9047
    %9440 = vst [vmem:[#allocation13 + $0x7c0] sm:$0xff] %v9048
    %9441 = vst [vmem:[#allocation13 + $0x7c8] sm:$0xff] %v9049
    %9442 = vst [vmem:[#allocation13 + $0x7d0] sm:$0xff] %v9050
    %9443 = vst [vmem:[#allocation13 + $0x7d8] sm:$0xff] %v9051
    %9444 = vst [vmem:[#allocation13 + $0x7e0] sm:$0xff] %v9052
    %9445 = vst [vmem:[#allocation13 + $0x7e8] sm:$0xff] %v9053
    %9446 = vst [vmem:[#allocation13 + $0x7f0] sm:$0xff] %v9054
    %9447 = vst [vmem:[#allocation13 + $0x7f8] sm:$0xff] %v9055
    %9448 = vst [vmem:[#allocation13 + $0x800] sm:$0xff] %v9056
    %9449 = vst [vmem:[#allocation13 + $0x808] sm:$0xff] %v9057
    %9450 = vst [vmem:[#allocation13 + $0x810] sm:$0xff] %v9058
    %9451 = vst [vmem:[#allocation13 + $0x818] sm:$0xff] %v9059
    %9452 = vst [vmem:[#allocation13 + $0x820] sm:$0xff] %v9060
    %9453 = vst [vmem:[#allocation13 + $0x828] sm:$0xff] %v9061
    %9454 = vst [vmem:[#allocation13 + $0x830] sm:$0xff] %v9062
    %9455 = vst [vmem:[#allocation13 + $0x838] sm:$0xff] %v9063
    %9456 = vst [vmem:[#allocation13 + $0x840] sm:$0xff] %v9064
    %9457 = vst [vmem:[#allocation13 + $0x848] sm:$0xff] %v9065
    %9458 = vst [vmem:[#allocation13 + $0x850] sm:$0xff] %v9066
    %9459 = vst [vmem:[#allocation13 + $0x858] sm:$0xff] %v9067
    %9460 = vst [vmem:[#allocation13 + $0x860] sm:$0xff] %v9068
    %9461 = vst [vmem:[#allocation13 + $0x868] sm:$0xff] %v9069
    %9462 = vst [vmem:[#allocation13 + $0x870] sm:$0xff] %v9070
    %9463 = vst [vmem:[#allocation13 + $0x878] sm:$0xff] %v9071
    %9464 = vst [vmem:[#allocation13 + $0x880] sm:$0xff] %v9072
    %9465 = vst [vmem:[#allocation13 + $0x888] sm:$0xff] %v9073
    %9466 = vst [vmem:[#allocation13 + $0x890] sm:$0xff] %v9074
    %9467 = vst [vmem:[#allocation13 + $0x898] sm:$0xff] %v9075
    %9468 = vst [vmem:[#allocation13 + $0x8a0] sm:$0xff] %v9076
    %9469 = vst [vmem:[#allocation13 + $0x8a8] sm:$0xff] %v9077
    %9470 = vst [vmem:[#allocation13 + $0x8b0] sm:$0xff] %v9078
    %9471 = vst [vmem:[#allocation13 + $0x8b8] sm:$0xff] %v9079
    %9472 = vst [vmem:[#allocation13 + $0x8c0] sm:$0xff] %v9080
    %9473 = vst [vmem:[#allocation13 + $0x8c8] sm:$0xff] %v9081
    %9474 = vst [vmem:[#allocation13 + $0x8d0] sm:$0xff] %v9082
    %9475 = vst [vmem:[#allocation13 + $0x8d8] sm:$0xff] %v9083
    %9476 = vst [vmem:[#allocation13 + $0x8e0] sm:$0xff] %v9084
    %9477 = vst [vmem:[#allocation13 + $0x8e8] sm:$0xff] %v9085
    %9478 = vst [vmem:[#allocation13 + $0x8f0] sm:$0xff] %v9086
    %9479 = vst [vmem:[#allocation13 + $0x8f8] sm:$0xff] %v9087
    %9480 = vst [vmem:[#allocation13 + $0x900] sm:$0xff] %v9088
    %9481 = vst [vmem:[#allocation13 + $0x908] sm:$0xff] %v9089
    %9482 = vst [vmem:[#allocation13 + $0x910] sm:$0xff] %v9090
    %9483 = vst [vmem:[#allocation13 + $0x918] sm:$0xff] %v9091
    %9484 = vst [vmem:[#allocation13 + $0x920] sm:$0xff] %v9092
    %9485 = vst [vmem:[#allocation13 + $0x928] sm:$0xff] %v9093
    %9486 = vst [vmem:[#allocation13 + $0x930] sm:$0xff] %v9094
    %9487 = vst [vmem:[#allocation13 + $0x938] sm:$0xff] %v9095
    %9488 = vst [vmem:[#allocation13 + $0x940] sm:$0xff] %v9096
    %9489 = vst [vmem:[#allocation13 + $0x948] sm:$0xff] %v9097
    %9490 = vst [vmem:[#allocation13 + $0x950] sm:$0xff] %v9098
    %9491 = vst [vmem:[#allocation13 + $0x958] sm:$0xff] %v9099
    %9492 = vst [vmem:[#allocation13 + $0x960] sm:$0xff] %v9100
    %9493 = vst [vmem:[#allocation13 + $0x968] sm:$0xff] %v9101
    %9494 = vst [vmem:[#allocation13 + $0x970] sm:$0xff] %v9102
    %9495 = vst [vmem:[#allocation13 + $0x978] sm:$0xff] %v9103
    %9496 = vst [vmem:[#allocation13 + $0x980] sm:$0xff] %v9104
    %9497 = vst [vmem:[#allocation13 + $0x988] sm:$0xff] %v9105
    %9498 = vst [vmem:[#allocation13 + $0x990] sm:$0xff] %v9106
    %9499 = vst [vmem:[#allocation13 + $0x998] sm:$0xff] %v9107
    %9500 = vst [vmem:[#allocation13 + $0x9a0] sm:$0xff] %v9108
    %9501 = vst [vmem:[#allocation13 + $0x9a8] sm:$0xff] %v9109
    %9502 = vst [vmem:[#allocation13 + $0x9b0] sm:$0xff] %v9110
    %9503 = vst [vmem:[#allocation13 + $0x9b8] sm:$0xff] %v9111
    %9504 = vst [vmem:[#allocation13 + $0x9c0] sm:$0xff] %v9112
    %9505 = vst [vmem:[#allocation13 + $0x9c8] sm:$0xff] %v9113
    %9506 = vst [vmem:[#allocation13 + $0x9d0] sm:$0xff] %v9114
    %9507 = vst [vmem:[#allocation13 + $0x9d8] sm:$0xff] %v9115
    %9508 = vst [vmem:[#allocation13 + $0x9e0] sm:$0xff] %v9116
    %9509 = vst [vmem:[#allocation13 + $0x9e8] sm:$0xff] %v9117
    %9510 = vst [vmem:[#allocation13 + $0x9f0] sm:$0xff] %v9118
    %9511 = vst [vmem:[#allocation13 + $0x9f8] sm:$0xff] %v9119
    %9512 = vst [vmem:[#allocation13 + $0xa00] sm:$0xff] %v9120
    %9513 = vst [vmem:[#allocation13 + $0xa08] sm:$0xff] %v9121
    %9514 = vst [vmem:[#allocation13 + $0xa10] sm:$0xff] %v9122
    %9515 = vst [vmem:[#allocation13 + $0xa18] sm:$0xff] %v9123
    %9516 = vst [vmem:[#allocation13 + $0xa20] sm:$0xff] %v9124
    %9517 = vst [vmem:[#allocation13 + $0xa28] sm:$0xff] %v9125
    %9518 = vst [vmem:[#allocation13 + $0xa30] sm:$0xff] %v9126
    %9519 = vst [vmem:[#allocation13 + $0xa38] sm:$0xff] %v9127
    %9520 = vst [vmem:[#allocation13 + $0xa40] sm:$0xff] %v9128
    %9521 = vst [vmem:[#allocation13 + $0xa48] sm:$0xff] %v9129
    %9522 = vst [vmem:[#allocation13 + $0xa50] sm:$0xff] %v9130
    %9523 = vst [vmem:[#allocation13 + $0xa58] sm:$0xff] %v9131
    %9524 = vst [vmem:[#allocation13 + $0xa60] sm:$0xff] %v9132
    %9525 = vst [vmem:[#allocation13 + $0xa68] sm:$0xff] %v9133
    %9526 = vst [vmem:[#allocation13 + $0xa70] sm:$0xff] %v9134
    %9527 = vst [vmem:[#allocation13 + $0xa78] sm:$0xff] %v9135
    %9528 = vst [vmem:[#allocation13 + $0xa80] sm:$0xff] %v9136
    %9529 = vst [vmem:[#allocation13 + $0xa88] sm:$0xff] %v9137
    %9530 = vst [vmem:[#allocation13 + $0xa90] sm:$0xff] %v9138
    %9531 = vst [vmem:[#allocation13 + $0xa98] sm:$0xff] %v9139
    %9532 = vst [vmem:[#allocation13 + $0xaa0] sm:$0xff] %v9140
    %9533 = vst [vmem:[#allocation13 + $0xaa8] sm:$0xff] %v9141
    %9534 = vst [vmem:[#allocation13 + $0xab0] sm:$0xff] %v9142
    %9535 = vst [vmem:[#allocation13 + $0xab8] sm:$0xff] %v9143
    %9536 = vst [vmem:[#allocation13 + $0xac0] sm:$0xff] %v9144
    %9537 = vst [vmem:[#allocation13 + $0xac8] sm:$0xff] %v9145
    %9538 = vst [vmem:[#allocation13 + $0xad0] sm:$0xff] %v9146
    %9539 = vst [vmem:[#allocation13 + $0xad8] sm:$0xff] %v9147
    %9540 = vst [vmem:[#allocation13 + $0xae0] sm:$0xff] %v9148
    %9541 = vst [vmem:[#allocation13 + $0xae8] sm:$0xff] %v9149
    %9542 = vst [vmem:[#allocation13 + $0xaf0] sm:$0xff] %v9150
    %9543 = vst [vmem:[#allocation13 + $0xaf8] sm:$0xff] %v9151
    %9544 = vst [vmem:[#allocation13 + $0xb00] sm:$0xff] %v9152
    %9545 = vst [vmem:[#allocation13 + $0xb08] sm:$0xff] %v9153
    %9546 = vst [vmem:[#allocation13 + $0xb10] sm:$0xff] %v9154
    %9547 = vst [vmem:[#allocation13 + $0xb18] sm:$0xff] %v9155
    %9548 = vst [vmem:[#allocation13 + $0xb20] sm:$0xff] %v9156
    %9549 = vst [vmem:[#allocation13 + $0xb28] sm:$0xff] %v9157
    %9550 = vst [vmem:[#allocation13 + $0xb30] sm:$0xff] %v9158
    %9551 = vst [vmem:[#allocation13 + $0xb38] sm:$0xff] %v9159
    %9552 = vst [vmem:[#allocation13 + $0xb40] sm:$0xff] %v9160
    %9553 = vst [vmem:[#allocation13 + $0xb48] sm:$0xff] %v9161
    %9554 = vst [vmem:[#allocation13 + $0xb50] sm:$0xff] %v9162
    %9555 = vst [vmem:[#allocation13 + $0xb58] sm:$0xff] %v9163
    %9556 = vst [vmem:[#allocation13 + $0xb60] sm:$0xff] %v9164
    %9557 = vst [vmem:[#allocation13 + $0xb68] sm:$0xff] %v9165
    %9558 = vst [vmem:[#allocation13 + $0xb70] sm:$0xff] %v9166
    %9559 = vst [vmem:[#allocation13 + $0xb78] sm:$0xff] %v9167
    %9560 = vst [vmem:[#allocation13 + $0xb80] sm:$0xff] %v9168
    %9561 = vst [vmem:[#allocation13 + $0xb88] sm:$0xff] %v9169
    %9562 = vst [vmem:[#allocation13 + $0xb90] sm:$0xff] %v9170
    %9563 = vst [vmem:[#allocation13 + $0xb98] sm:$0xff] %v9171
    %9564 = vst [vmem:[#allocation13 + $0xba0] sm:$0xff] %v9172
    %9565 = vst [vmem:[#allocation13 + $0xba8] sm:$0xff] %v9173
    %9566 = vst [vmem:[#allocation13 + $0xbb0] sm:$0xff] %v9174
    %9567 = vst [vmem:[#allocation13 + $0xbb8] sm:$0xff] %v9175
    %9568 = vst [vmem:[#allocation13 + $0xbc0] sm:$0xff] %v9176
    %9569 = vst [vmem:[#allocation13 + $0xbc8] sm:$0xff] %v9177
    %9570 = vst [vmem:[#allocation13 + $0xbd0] sm:$0xff] %v9178
    %9571 = vst [vmem:[#allocation13 + $0xbd8] sm:$0xff] %v9179
    %9572 = vst [vmem:[#allocation13 + $0xbe0] sm:$0xff] %v9180
    %9573 = vst [vmem:[#allocation13 + $0xbe8] sm:$0xff] %v9181
    %9574 = vst [vmem:[#allocation13 + $0xbf0] sm:$0xff] %v9182
    %9575 = vst [vmem:[#allocation13 + $0xbf8] sm:$0xff] %v9183
    %9576 = vst [vmem:[#allocation13 + $0xc00] sm:$0xff] %v9184
    %9577 = vst [vmem:[#allocation13 + $0xc08] sm:$0xff] %v9185
    %9578 = vst [vmem:[#allocation13 + $0xc10] sm:$0xff] %v9186
    %9579 = vst [vmem:[#allocation13 + $0xc18] sm:$0xff] %v9187
    %9580 = vst [vmem:[#allocation13 + $0xc20] sm:$0xff] %v9188
    %9581 = vst [vmem:[#allocation13 + $0xc28] sm:$0xff] %v9189
    %9582 = vst [vmem:[#allocation13 + $0xc30] sm:$0xff] %v9190
    %9583 = vst [vmem:[#allocation13 + $0xc38] sm:$0xff] %v9191
    // Predicated region
    $region58: #{tpu_custom_call.1} parent=1 // pred_check
      _
    $region59: #{tpu_custom_call.1} parent=1 // pred_check_branch
      %9585 = sbr.rel (0) target = $region61
    $region60: #{tpu_custom_call.1} parent=1 // pred_region
      %s9587 = ssub.s32 50176, 50176
      %9588 = vsyncadd [#allocation4], %s9587
      %s9589 = sshll.u32 [#allocation13], 4
      %s9590 = int_to_ptr.vmem [resolvable:$true] %s9589
      %9595 = dma.vmem_to_hbm [thread:$0]  %s9590, 50176, %s8, [#allocation4], 1024, 1024, 64
    $region61: #{tpu_custom_call.1} parent=1 // pred_fallthru
      _
    // Predicated region
    $region62: #{tpu_custom_call.1} parent=1 // pred_check
      _
    $region63: #{tpu_custom_call.1} parent=1 // pred_check_branch
      %9597 = sbr.rel (0) target = $region65
    $region64: #{tpu_custom_call.1} parent=1 // pred_region
      %s9599 = ssub.s32 512, 512
      %9600 = vsyncadd [#allocation15], %s9599
      %s9602 = sshll.u32 [#allocation14], 4
      %s9603 = int_to_ptr.vmem [resolvable:$true] %s9602
      %9605 = dma.vmem_to_hbm [thread:$0]  %s9603, 512, %s9, [#allocation15]
    $region65: #{tpu_custom_call.1} parent=1 // pred_fallthru
      _
    // Predicated region
    $region66: #{tpu_custom_call.1} parent=1 // pred_check
      _
    $region67: #{tpu_custom_call.1} parent=1 // pred_check_branch
      %9607 = sbr.rel (0) target = $region69
    $region68: #{tpu_custom_call.1} parent=1 // pred_region
      %9608 = dma.done [#allocation4], 50176
    $region69: #{tpu_custom_call.1} parent=1 // pred_fallthru
      _
    // Predicated region
    $region70: #{tpu_custom_call.1} parent=1 // pred_check
      _
    $region71: #{tpu_custom_call.1} parent=1 // pred_check_branch
      %9610 = sbr.rel (0) target = $region73
    $region72: #{tpu_custom_call.1} parent=1 // pred_region
      %9611 = dma.done [#allocation15], 512
    $region73: #{tpu_custom_call.1} parent=1 // pred_fallthru
      _
    %9612 = vsyncpa [#allocation3], 1
    %9613 = vsyncpa [#allocation6], 1
    %9614 = vsyncpa [#allocation9], 1
    %9615 = vsyncpa [#allocation12], 1
    %9616 = vsyncpa [#allocation4], 1
    %9617 = vsyncpa [#allocation15], 1

</llo_original>
